<compile_context>
chip_gen: v5e
topology: v5e:2x2
jax: 0.10.0
libtpu: 0.0.40
codegen_flags: <defaults>
</compile_context>

<pallas_src>
import functools
import math

import jax
import jax.numpy as jnp
from jax.experimental import pallas as pl
from jax.experimental.pallas import tpu as pltpu


# --------------------------- fused Pallas kernels ---------------------------

def _dual_lstm_kernel(a_ref, v_ref,
                      wih_a_ref, whh_a_ref, b_a_ref,
                      wih_v_ref, whh_v_ref, b_v_ref,
                      o_ref):
    """netEmoA + netEmoV + torch.cat((V, A), -1) fused into one kernel.

    One statically unrolled time loop runs both recurrences; the hidden states
    are carried as values (no scratch refs needed), and each timestep writes
    its (V, A) slice of the batch-first output directly.
    """
    B, T, _ = a_ref.shape
    Ha = whh_a_ref.shape[0]
    Hv = whh_v_ref.shape[0]

    xa_all = a_ref[...]                      # [B, T, Da] (tiny; load once)
    xv_all = v_ref[...]                      # [B, T, Dv]
    wih_a = wih_a_ref[...]; whh_a = whh_a_ref[...]; b_a = b_a_ref[...]
    wih_v = wih_v_ref[...]; whh_v = whh_v_ref[...]; b_v = b_v_ref[...]

    def step(x_t, h, c, wih, whh, b, H):
        gates = (jnp.dot(x_t, wih, preferred_element_type=jnp.float32)
                 + jnp.dot(h, whh, preferred_element_type=jnp.float32)
                 + b)
        # PyTorch LSTM gate order: i, f, g, o
        i = jax.nn.sigmoid(gates[:, 0:H])
        f = jax.nn.sigmoid(gates[:, H:2 * H])
        g = jnp.tanh(gates[:, 2 * H:3 * H])
        o = jax.nn.sigmoid(gates[:, 3 * H:4 * H])
        c_new = f * c + i * g
        h_new = o * jnp.tanh(c_new)
        return h_new, c_new

    h_a = jnp.zeros((B, Ha), jnp.float32); c_a = jnp.zeros((B, Ha), jnp.float32)
    h_v = jnp.zeros((B, Hv), jnp.float32); c_v = jnp.zeros((B, Hv), jnp.float32)

    # Static unroll (T small & fixed): gives the scheduler visibility across
    # timesteps so the tiny matmul/sigmoid/tanh chains can interleave.
    for t in range(T):
        h_a, c_a = step(xa_all[:, t, :], h_a, c_a, wih_a, whh_a, b_a, Ha)
        h_v, c_v = step(xv_all[:, t, :], h_v, c_v, wih_v, whh_v, b_v, Hv)
        o_ref[:, t:t + 1, 0:Hv] = h_v[:, None, :]            # V first ...
        o_ref[:, t:t + 1, Hv:Hv + Ha] = h_a[:, None, :]      # ... then A


def _transformer_encoder_kernel(*refs, num_layers, nhead, eps=1e-5):
    """netEmoFusion: full nn.TransformerEncoder (post-norm, relu, batch_first,
    eval mode) fused into a single kernel.  All intermediates (QKV, attention
    probs, the [B*T, 2048] FFN activation, residuals) stay in VMEM/vregs."""
    x_ref = refs[0]
    o_ref = refs[1 + 12 * num_layers]
    ctx_sc = refs[2 + 12 * num_layers]       # [B, T, d] VMEM scratch (head concat)

    B, T, d = x_ref.shape
    hd = d // nhead
    scale = 1.0 / math.sqrt(hd)

    def layer_norm(z, g, b):
        mean = jnp.mean(z, axis=-1, keepdims=True)
        var = jnp.mean((z - mean) ** 2, axis=-1, keepdims=True)
        return (z - mean) * jax.lax.rsqrt(var + eps) * g + b

    x2 = x_ref[...].reshape(B * T, d)
    for layer in range(num_layers):
        base = 1 + 12 * layer
        (w_in, b_in, w_out, b_out, ln1_g, ln1_b,
         w_ff1, b_ff1, w_ff2, b_ff2, ln2_g, ln2_b) = [refs[base + i][...]
                                                      for i in range(12)]

        # ---------------- self attention ----------------
        qkv = jnp.dot(x2, w_in, preferred_element_type=jnp.float32) + b_in
        q = qkv[:, 0:d].reshape(B, T, d)
        k = qkv[:, d:2 * d].reshape(B, T, d)
        v = qkv[:, 2 * d:3 * d].reshape(B, T, d)
        for h in range(nhead):               # static head loop
            sl = slice(h * hd, (h + 1) * hd)
            s = jnp.einsum("bqd,bkd->bqk", q[:, :, sl], k[:, :, sl],
                           preferred_element_type=jnp.float32) * scale
            s = s - jnp.max(s, axis=-1, keepdims=True)
            e = jnp.exp(s)
            p = e * pl.reciprocal(jnp.sum(e, axis=-1, keepdims=True), approx=True)
            ctx_sc[:, :, sl] = jnp.einsum("bqk,bkd->bqd", p, v[:, :, sl],
                                          preferred_element_type=jnp.float32)
        ctx = ctx_sc[...].reshape(B * T, d)
        # single out-projection matmul for all heads (instead of 4 tiny ones)
        attn = jnp.dot(ctx, w_out, preferred_element_type=jnp.float32) + b_out

        # ------------- add & norm, FFN, add & norm (post-norm) -------------
        zn = layer_norm(x2 + attn, ln1_g, ln1_b)
        hff = jnp.maximum(
            jnp.dot(zn, w_ff1, preferred_element_type=jnp.float32) + b_ff1, 0.0)
        ffn = jnp.dot(hff, w_ff2, preferred_element_type=jnp.float32) + b_ff2
        x2 = layer_norm(zn + ffn, ln2_g, ln2_b)

    o_ref[...] = x2.reshape(B, T, d)


def _classifier_kernel(*refs, n_hidden):
    """netEmoC (FcClassifier): hidden Linear+ReLU (+Dropout==identity at eval),
    fc_out, and the final softmax fused into one kernel.  The concat of the
    flattened fusion features with `personalized` is folded into a row-split
    first matmul, so no concat is materialized."""
    flat_ref, pers_ref = refs[0], refs[1]
    logits_ref, pred_ref = refs[-2], refs[-1]
    wrefs = refs[2:-2]
    F0 = flat_ref.shape[1]

    def split_matmul(w, b):
        # [flat | pers] @ W == flat @ W[:F0] + pers @ W[F0:]
        return (jnp.dot(flat_ref[...], w[0:F0, :], preferred_element_type=jnp.float32)
                + jnp.dot(pers_ref[...], w[F0:, :], preferred_element_type=jnp.float32)
                + b)

    x = None
    for li in range(n_hidden):
        w = wrefs[2 * li][...]
        b = wrefs[2 * li + 1][...]
        y = split_matmul(w, b) if li == 0 else (
            jnp.dot(x, w, preferred_element_type=jnp.float32) + b)
        x = jnp.maximum(y, 0.0)              # ReLU
    wo = wrefs[2 * n_hidden][...]
    bo = wrefs[2 * n_hidden + 1][...]
    logits = split_matmul(wo, bo) if n_hidden == 0 else (
        jnp.dot(x, wo, preferred_element_type=jnp.float32) + bo)

    logits_ref[...] = logits
    m = jnp.max(logits, axis=-1, keepdims=True)
    e = jnp.exp(logits - m)
    pred_ref[...] = e / jnp.sum(e, axis=-1, keepdims=True)


# ----------------------------- model wrapper -----------------------------

def custom_model_forward(params, acoustic, visual, personalized, *, nhead):
    B, T, _ = acoustic.shape
    Ha = params["lstm_a"]["whh"].shape[0]
    Hv = params["lstm_v"]["whh"].shape[0]
    H = Hv + Ha

    # (1) netEmoA + netEmoV + cat((V, A), -1): one fused launch.
    fusion = pl.pallas_call(
        _dual_lstm_kernel,
        out_shape=jax.ShapeDtypeStruct((B, T, H), jnp.float32),
    )(acoustic, visual,
      params["lstm_a"]["wih"], params["lstm_a"]["whh"], params["lstm_a"]["b"],
      params["lstm_v"]["wih"], params["lstm_v"]["whh"], params["lstm_v"]["b"])

    # (2) netEmoFusion: all transformer layers in one launch.
    layer_refs = []
    for lp in params["transformer"]:
        layer_refs += [lp["w_in"], lp["b_in"], lp["w_out"], lp["b_out"],
                       lp["ln1_g"], lp["ln1_b"], lp["w_ff1"], lp["b_ff1"],
                       lp["w_ff2"], lp["b_ff2"], lp["ln2_g"], lp["ln2_b"]]
    num_layers = len(params["transformer"])
    fusion = pl.pallas_call(
        functools.partial(_transformer_encoder_kernel,
                          num_layers=num_layers, nhead=nhead),
        out_shape=jax.ShapeDtypeStruct((B, T, H), jnp.float32),
        scratch_shapes=[pltpu.VMEM((B, T, H), jnp.float32)],
    )(fusion, *layer_refs)

    # exactly: fusion.permute(1, 0, 2).reshape(fusion.size(0), -1)  (PyTorch quirk)
    flat = jnp.transpose(fusion, (1, 0, 2)).reshape(B, T * H)

    # (3) netEmoC + fc_out + softmax: one fused launch.
    cls_refs = []
    for (w, b) in params["cls_hidden"]:
        cls_refs += [w, b]
    cls_refs += [params["fc_out_w"], params["fc_out_b"]]
    n_cls = params["fc_out_w"].shape[1]
    logits, pred = pl.pallas_call(
        functools.partial(_classifier_kernel, n_hidden=len(params["cls_hidden"])),
        out_shape=(jax.ShapeDtypeStruct((B, n_cls), jnp.float32),
                   jax.ShapeDtypeStruct((B, n_cls), jnp.float32)),
    )(flat, personalized, *cls_refs)
    return logits, pred


# ----------------------------- parameter init -----------------------------

def init_params(key, *, input_dim_a, input_dim_v, embd_size_a, embd_size_v,
                hidden_size, num_layers, ffn_dim, feature_max_len,
                cls_layers, emo_output_dim, personalized_dim):
    keys = iter(jax.random.split(key, 256))

    def uniform(shape, fan_in):
        bound = 1.0 / math.sqrt(fan_in)
        return jax.random.uniform(next(keys), shape, jnp.float32, -bound, bound)

    def lstm_params(d_in, h):
        return {"wih": uniform((d_in, 4 * h), h),
                "whh": uniform((h, 4 * h), h),
                "b": uniform((1, 4 * h), h)}

    def layer_params(d, ffn):
        return {"w_in": uniform((d, 3 * d), d),
                "b_in": uniform((1, 3 * d), d),
                "w_out": uniform((d, d), d),
                "b_out": uniform((1, d), d),
                "ln1_g": jnp.ones((1, d), jnp.float32),
                "ln1_b": jnp.zeros((1, d), jnp.float32),
                "w_ff1": uniform((d, ffn), d),
                "b_ff1": uniform((1, ffn), d),
                "w_ff2": uniform((ffn, d), ffn),
                "b_ff2": uniform((1, d), ffn),
                "ln2_g": jnp.ones((1, d), jnp.float32),
                "ln2_b": jnp.zeros((1, d), jnp.float32)}

    params = {
        "lstm_a": lstm_params(input_dim_a, embd_size_a),
        "lstm_v": lstm_params(input_dim_v, embd_size_v),
        "transformer": [layer_params(hidden_size, ffn_dim) for _ in range(num_layers)],
    }
    d_in = feature_max_len * hidden_size + personalized_dim   # cls_input_size
    hidden = []
    for d_out in cls_layers:
        hidden.append((uniform((d_in, d_out), d_in), uniform((1, d_out), d_in)))
        d_in = d_out
    params["cls_hidden"] = hidden
    params["fc_out_w"] = uniform((d_in, emo_output_dim), d_in)
    params["fc_out_b"] = uniform((1, emo_output_dim), d_in)
    return params


# --------------------------------- main ---------------------------------

if __name__ == "__main__":
    # small opt-equivalent config
    B = 2
    T = 8                     # opt.feature_max_len
    input_dim_a = 20          # opt.input_dim_a
    input_dim_v = 24          # opt.input_dim_v
    embd_size_a = 16          # opt.embd_size_a
    embd_size_v = 16          # opt.embd_size_v
    hidden_size = embd_size_a + embd_size_v   # 32 == d_model of fusion transformer
    nhead = 4                 # opt.Transformer_head
    num_layers = 2            # opt.Transformer_layers
    ffn_dim = 2048            # nn.TransformerEncoderLayer default dim_feedforward
    cls_layers = [64, 32]     # opt.cls_layers = "64,32"
    emo_output_dim = 6        # opt.emo_output_dim
    personalized_dim = 1024

    key = jax.random.PRNGKey(0)
    k_param, k_a, k_v, k_p = jax.random.split(key, 4)
    params = init_params(
        k_param,
        input_dim_a=input_dim_a, input_dim_v=input_dim_v,
        embd_size_a=embd_size_a, embd_size_v=embd_size_v,
        hidden_size=hidden_size, num_layers=num_layers, ffn_dim=ffn_dim,
        feature_max_len=T, cls_layers=cls_layers,
        emo_output_dim=emo_output_dim, personalized_dim=personalized_dim)

    acoustic = jax.random.normal(k_a, (B, T, input_dim_a), jnp.float32)
    visual = jax.random.normal(k_v, (B, T, input_dim_v), jnp.float32)
    personalized = jax.random.normal(k_p, (B, personalized_dim), jnp.float32)

    fwd = jax.jit(functools.partial(custom_model_forward, nhead=nhead))
    logits, pred = fwd(params, acoustic, visual, personalized)
    jax.block_until_ready((logits, pred))

    assert logits.shape == (B, emo_output_dim)
    assert pred.shape == (B, emo_output_dim)
    assert bool(jnp.all(jnp.isfinite(logits))) and bool(jnp.all(jnp.isfinite(pred)))
    print("KERNEL_OK")
</pallas_src>

<mosaic_0001>
module attributes {stable_mosaic.version = 11 : i64} {
  func.func @_transformer_encoder_kernel(%arg0: memref<2x8x32xf32, #tpu.memory_space<vmem>>, %arg1: memref<32x96xf32, #tpu.memory_space<vmem>>, %arg2: memref<1x96xf32, #tpu.memory_space<vmem>>, %arg3: memref<32x32xf32, #tpu.memory_space<vmem>>, %arg4: memref<1x32xf32, #tpu.memory_space<vmem>>, %arg5: memref<1x32xf32, #tpu.memory_space<vmem>>, %arg6: memref<1x32xf32, #tpu.memory_space<vmem>>, %arg7: memref<32x2048xf32, #tpu.memory_space<vmem>>, %arg8: memref<1x2048xf32, #tpu.memory_space<vmem>>, %arg9: memref<2048x32xf32, #tpu.memory_space<vmem>>, %arg10: memref<1x32xf32, #tpu.memory_space<vmem>>, %arg11: memref<1x32xf32, #tpu.memory_space<vmem>>, %arg12: memref<1x32xf32, #tpu.memory_space<vmem>>, %arg13: memref<32x96xf32, #tpu.memory_space<vmem>>, %arg14: memref<1x96xf32, #tpu.memory_space<vmem>>, %arg15: memref<32x32xf32, #tpu.memory_space<vmem>>, %arg16: memref<1x32xf32, #tpu.memory_space<vmem>>, %arg17: memref<1x32xf32, #tpu.memory_space<vmem>>, %arg18: memref<1x32xf32, #tpu.memory_space<vmem>>, %arg19: memref<32x2048xf32, #tpu.memory_space<vmem>>, %arg20: memref<1x2048xf32, #tpu.memory_space<vmem>>, %arg21: memref<2048x32xf32, #tpu.memory_space<vmem>>, %arg22: memref<1x32xf32, #tpu.memory_space<vmem>>, %arg23: memref<1x32xf32, #tpu.memory_space<vmem>>, %arg24: memref<1x32xf32, #tpu.memory_space<vmem>>, %arg25: memref<2x8x32xf32, #tpu.memory_space<vmem>>, %arg26: memref<2x8x32xf32, #tpu.memory_space<vmem>>) attributes {dimension_semantics = [], scalar_prefetch = 0 : i64, scratch_operands = 1 : i64, tpu.core_type = #tpu.core_type<tc>} {
    %c0 = arith.constant 0 : index
    %c0_0 = arith.constant 0 : index
    %c0_1 = arith.constant 0 : index
    %0 = vector.load %arg0[%c0, %c0_0, %c0_1] : memref<2x8x32xf32, #tpu.memory_space<vmem>>, vector<2x8x32xf32>
    %1 = vector.shape_cast %0 : vector<2x8x32xf32> to vector<16x32xf32>
    %c0_2 = arith.constant 0 : index
    %c0_3 = arith.constant 0 : index
    %2 = vector.load %arg1[%c0_2, %c0_3] : memref<32x96xf32, #tpu.memory_space<vmem>>, vector<32x96xf32>
    %c0_4 = arith.constant 0 : index
    %c0_5 = arith.constant 0 : index
    %3 = vector.load %arg2[%c0_4, %c0_5] : memref<1x96xf32, #tpu.memory_space<vmem>>, vector<1x96xf32>
    %c0_6 = arith.constant 0 : index
    %c0_7 = arith.constant 0 : index
    %4 = vector.load %arg3[%c0_6, %c0_7] : memref<32x32xf32, #tpu.memory_space<vmem>>, vector<32x32xf32>
    %c0_8 = arith.constant 0 : index
    %c0_9 = arith.constant 0 : index
    %5 = vector.load %arg4[%c0_8, %c0_9] : memref<1x32xf32, #tpu.memory_space<vmem>>, vector<1x32xf32>
    %c0_10 = arith.constant 0 : index
    %c0_11 = arith.constant 0 : index
    %6 = vector.load %arg5[%c0_10, %c0_11] : memref<1x32xf32, #tpu.memory_space<vmem>>, vector<1x32xf32>
    %c0_12 = arith.constant 0 : index
    %c0_13 = arith.constant 0 : index
    %7 = vector.load %arg6[%c0_12, %c0_13] : memref<1x32xf32, #tpu.memory_space<vmem>>, vector<1x32xf32>
    %c0_14 = arith.constant 0 : index
    %c0_15 = arith.constant 0 : index
    %8 = vector.load %arg7[%c0_14, %c0_15] : memref<32x2048xf32, #tpu.memory_space<vmem>>, vector<32x2048xf32>
    %c0_16 = arith.constant 0 : index
    %c0_17 = arith.constant 0 : index
    %9 = vector.load %arg8[%c0_16, %c0_17] : memref<1x2048xf32, #tpu.memory_space<vmem>>, vector<1x2048xf32>
    %c0_18 = arith.constant 0 : index
    %c0_19 = arith.constant 0 : index
    %10 = vector.load %arg9[%c0_18, %c0_19] : memref<2048x32xf32, #tpu.memory_space<vmem>>, vector<2048x32xf32>
    %c0_20 = arith.constant 0 : index
    %c0_21 = arith.constant 0 : index
    %11 = vector.load %arg10[%c0_20, %c0_21] : memref<1x32xf32, #tpu.memory_space<vmem>>, vector<1x32xf32>
    %c0_22 = arith.constant 0 : index
    %c0_23 = arith.constant 0 : index
    %12 = vector.load %arg11[%c0_22, %c0_23] : memref<1x32xf32, #tpu.memory_space<vmem>>, vector<1x32xf32>
    %c0_24 = arith.constant 0 : index
    %c0_25 = arith.constant 0 : index
    %13 = vector.load %arg12[%c0_24, %c0_25] : memref<1x32xf32, #tpu.memory_space<vmem>>, vector<1x32xf32>
    %cst = arith.constant dense<0.000000e+00> : vector<16x96xf32>
    %14 = tpu.matmul %1, %2, %cst {dimension_numbers = #tpu.dot_dimension_numbers<[1], [0], [0], [1], [0, 0, 1, 1], [], []>} : vector<16x32xf32>, vector<32x96xf32>, vector<16x96xf32> -> vector<16x96xf32>
    %15 = vector.broadcast %3 : vector<1x96xf32> to vector<16x96xf32>
    %16 = arith.addf %14, %15 : vector<16x96xf32>
    %17 = vector.extract_strided_slice %16 {offsets = [0, 0], sizes = [16, 32], strides = [1, 1]} : vector<16x96xf32> to vector<16x32xf32>
    %18 = vector.shape_cast %17 : vector<16x32xf32> to vector<2x8x32xf32>
    %19 = vector.extract_strided_slice %16 {offsets = [0, 32], sizes = [16, 32], strides = [1, 1]} : vector<16x96xf32> to vector<16x32xf32>
    %20 = vector.shape_cast %19 : vector<16x32xf32> to vector<2x8x32xf32>
    %21 = vector.extract_strided_slice %16 {offsets = [0, 64], sizes = [16, 32], strides = [1, 1]} : vector<16x96xf32> to vector<16x32xf32>
    %22 = vector.shape_cast %21 : vector<16x32xf32> to vector<2x8x32xf32>
    %23 = vector.extract_strided_slice %18 {offsets = [0, 0, 0], sizes = [2, 8, 8], strides = [1, 1, 1]} : vector<2x8x32xf32> to vector<2x8x8xf32>
    %24 = vector.extract_strided_slice %20 {offsets = [0, 0, 0], sizes = [2, 8, 8], strides = [1, 1, 1]} : vector<2x8x32xf32> to vector<2x8x8xf32>
    "tpu.trace_start"() <{level = 10 : i32, message = "bqd,bkd->bqk"}> : () -> ()
    %cst_26 = arith.constant dense<0.000000e+00> : vector<2x8x8xf32>
    %25 = tpu.matmul %23, %24, %cst_26 {dimension_numbers = #tpu.dot_dimension_numbers<[2], [2], [1], [1], [0, 0, 0, 1, 1, 1], [0], [0]>} : vector<2x8x8xf32>, vector<2x8x8xf32>, vector<2x8x8xf32> -> vector<2x8x8xf32>
    "tpu.trace_stop"() : () -> ()
    %cst_27 = arith.constant 0.353553385 : f32
    %26 = vector.broadcast %cst_27 : f32 to vector<2x8x8xf32>
    %27 = arith.mulf %25, %26 : vector<2x8x8xf32>
    %cst_28 = arith.constant dense<0xFF800000> : vector<2x8xf32>
    %28 = vector.multi_reduction <maximumf>, %27, %cst_28 [2] : vector<2x8x8xf32> to vector<2x8xf32>
    %29 = vector.shape_cast %28 : vector<2x8xf32> to vector<2x8x1xf32>
    %30 = vector.broadcast %29 : vector<2x8x1xf32> to vector<2x8x8xf32>
    %31 = arith.subf %27, %30 : vector<2x8x8xf32>
    %32 = math.exp %31 : vector<2x8x8xf32>
    %cst_29 = arith.constant dense<0.000000e+00> : vector<2x8xf32>
    %33 = vector.multi_reduction <add>, %32, %cst_29 [2] : vector<2x8x8xf32> to vector<2x8xf32>
    %34 = vector.shape_cast %33 : vector<2x8xf32> to vector<2x8x1xf32>
    %35 = tpu.reciprocal %34 {approx = true} : vector<2x8x1xf32> -> vector<2x8x1xf32>
    %36 = vector.broadcast %35 : vector<2x8x1xf32> to vector<2x8x8xf32>
    %37 = arith.mulf %32, %36 : vector<2x8x8xf32>
    %38 = vector.extract_strided_slice %22 {offsets = [0, 0, 0], sizes = [2, 8, 8], strides = [1, 1, 1]} : vector<2x8x32xf32> to vector<2x8x8xf32>
    "tpu.trace_start"() <{level = 10 : i32, message = "bqk,bkd->bqd"}> : () -> ()
    %cst_30 = arith.constant dense<0.000000e+00> : vector<2x8x8xf32>
    %39 = tpu.matmul %37, %38, %cst_30 {dimension_numbers = #tpu.dot_dimension_numbers<[2], [1], [1], [2], [0, 0, 0, 1, 1, 2], [0], [0]>} : vector<2x8x8xf32>, vector<2x8x8xf32>, vector<2x8x8xf32> -> vector<2x8x8xf32>
    "tpu.trace_stop"() : () -> ()
    %c0_31 = arith.constant 0 : index
    %c0_32 = arith.constant 0 : index
    %c0_33 = arith.constant 0 : index
    %40 = vector.load %arg26[%c0_31, %c0_32, %c0_33] : memref<2x8x32xf32, #tpu.memory_space<vmem>>, vector<2x8x8xf32>
    tpu.vector_store %arg26[%c0_31, %c0_32, %c0_33], %39 {strides = array<i32>} : memref<2x8x32xf32, #tpu.memory_space<vmem>>, vector<2x8x8xf32>,
    %41 = vector.extract_strided_slice %18 {offsets = [0, 0, 8], sizes = [2, 8, 8], strides = [1, 1, 1]} : vector<2x8x32xf32> to vector<2x8x8xf32>
    %42 = vector.extract_strided_slice %20 {offsets = [0, 0, 8], sizes = [2, 8, 8], strides = [1, 1, 1]} : vector<2x8x32xf32> to vector<2x8x8xf32>
    "tpu.trace_start"() <{level = 10 : i32, message = "bqd,bkd->bqk"}> : () -> ()
    %cst_34 = arith.constant dense<0.000000e+00> : vector<2x8x8xf32>
    %43 = tpu.matmul %41, %42, %cst_34 {dimension_numbers = #tpu.dot_dimension_numbers<[2], [2], [1], [1], [0, 0, 0, 1, 1, 1], [0], [0]>} : vector<2x8x8xf32>, vector<2x8x8xf32>, vector<2x8x8xf32> -> vector<2x8x8xf32>
    "tpu.trace_stop"() : () -> ()
    %cst_35 = arith.constant 0.353553385 : f32
    %44 = vector.broadcast %cst_35 : f32 to vector<2x8x8xf32>
    %45 = arith.mulf %43, %44 : vector<2x8x8xf32>
    %cst_36 = arith.constant dense<0xFF800000> : vector<2x8xf32>
    %46 = vector.multi_reduction <maximumf>, %45, %cst_36 [2] : vector<2x8x8xf32> to vector<2x8xf32>
    %47 = vector.shape_cast %46 : vector<2x8xf32> to vector<2x8x1xf32>
    %48 = vector.broadcast %47 : vector<2x8x1xf32> to vector<2x8x8xf32>
    %49 = arith.subf %45, %48 : vector<2x8x8xf32>
    %50 = math.exp %49 : vector<2x8x8xf32>
    %cst_37 = arith.constant dense<0.000000e+00> : vector<2x8xf32>
    %51 = vector.multi_reduction <add>, %50, %cst_37 [2] : vector<2x8x8xf32> to vector<2x8xf32>
    %52 = vector.shape_cast %51 : vector<2x8xf32> to vector<2x8x1xf32>
    %53 = tpu.reciprocal %52 {approx = true} : vector<2x8x1xf32> -> vector<2x8x1xf32>
    %54 = vector.broadcast %53 : vector<2x8x1xf32> to vector<2x8x8xf32>
    %55 = arith.mulf %50, %54 : vector<2x8x8xf32>
    %56 = vector.extract_strided_slice %22 {offsets = [0, 0, 8], sizes = [2, 8, 8], strides = [1, 1, 1]} : vector<2x8x32xf32> to vector<2x8x8xf32>
    "tpu.trace_start"() <{level = 10 : i32, message = "bqk,bkd->bqd"}> : () -> ()
    %cst_38 = arith.constant dense<0.000000e+00> : vector<2x8x8xf32>
    %57 = tpu.matmul %55, %56, %cst_38 {dimension_numbers = #tpu.dot_dimension_numbers<[2], [1], [1], [2], [0, 0, 0, 1, 1, 2], [0], [0]>} : vector<2x8x8xf32>, vector<2x8x8xf32>, vector<2x8x8xf32> -> vector<2x8x8xf32>
    "tpu.trace_stop"() : () -> ()
    %c0_39 = arith.constant 0 : index
    %c0_40 = arith.constant 0 : index
    %c8 = arith.constant 8 : index
    %58 = vector.load %arg26[%c0_39, %c0_40, %c8] : memref<2x8x32xf32, #tpu.memory_space<vmem>>, vector<2x8x8xf32>
    tpu.vector_store %arg26[%c0_39, %c0_40, %c8], %57 {strides = array<i32>} : memref<2x8x32xf32, #tpu.memory_space<vmem>>, vector<2x8x8xf32>,
    %59 = vector.extract_strided_slice %18 {offsets = [0, 0, 16], sizes = [2, 8, 8], strides = [1, 1, 1]} : vector<2x8x32xf32> to vector<2x8x8xf32>
    %60 = vector.extract_strided_slice %20 {offsets = [0, 0, 16], sizes = [2, 8, 8], strides = [1, 1, 1]} : vector<2x8x32xf32> to vector<2x8x8xf32>
    "tpu.trace_start"() <{level = 10 : i32, message = "bqd,bkd->bqk"}> : () -> ()
    %cst_41 = arith.constant dense<0.000000e+00> : vector<2x8x8xf32>
    %61 = tpu.matmul %59, %60, %cst_41 {dimension_numbers = #tpu.dot_dimension_numbers<[2], [2], [1], [1], [0, 0, 0, 1, 1, 1], [0], [0]>} : vector<2x8x8xf32>, vector<2x8x8xf32>, vector<2x8x8xf32> -> vector<2x8x8xf32>
    "tpu.trace_stop"() : () -> ()
    %cst_42 = arith.constant 0.353553385 : f32
    %62 = vector.broadcast %cst_42 : f32 to vector<2x8x8xf32>
    %63 = arith.mulf %61, %62 : vector<2x8x8xf32>
    %cst_43 = arith.constant dense<0xFF800000> : vector<2x8xf32>
    %64 = vector.multi_reduction <maximumf>, %63, %cst_43 [2] : vector<2x8x8xf32> to vector<2x8xf32>
    %65 = vector.shape_cast %64 : vector<2x8xf32> to vector<2x8x1xf32>
    %66 = vector.broadcast %65 : vector<2x8x1xf32> to vector<2x8x8xf32>
    %67 = arith.subf %63, %66 : vector<2x8x8xf32>
    %68 = math.exp %67 : vector<2x8x8xf32>
    %cst_44 = arith.constant dense<0.000000e+00> : vector<2x8xf32>
    %69 = vector.multi_reduction <add>, %68, %cst_44 [2] : vector<2x8x8xf32> to vector<2x8xf32>
    %70 = vector.shape_cast %69 : vector<2x8xf32> to vector<2x8x1xf32>
    %71 = tpu.reciprocal %70 {approx = true} : vector<2x8x1xf32> -> vector<2x8x1xf32>
    %72 = vector.broadcast %71 : vector<2x8x1xf32> to vector<2x8x8xf32>
    %73 = arith.mulf %68, %72 : vector<2x8x8xf32>
    %74 = vector.extract_strided_slice %22 {offsets = [0, 0, 16], sizes = [2, 8, 8], strides = [1, 1, 1]} : vector<2x8x32xf32> to vector<2x8x8xf32>
    "tpu.trace_start"() <{level = 10 : i32, message = "bqk,bkd->bqd"}> : () -> ()
    %cst_45 = arith.constant dense<0.000000e+00> : vector<2x8x8xf32>
    %75 = tpu.matmul %73, %74, %cst_45 {dimension_numbers = #tpu.dot_dimension_numbers<[2], [1], [1], [2], [0, 0, 0, 1, 1, 2], [0], [0]>} : vector<2x8x8xf32>, vector<2x8x8xf32>, vector<2x8x8xf32> -> vector<2x8x8xf32>
    "tpu.trace_stop"() : () -> ()
    %c0_46 = arith.constant 0 : index
    %c0_47 = arith.constant 0 : index
    %c16 = arith.constant 16 : index
    %76 = vector.load %arg26[%c0_46, %c0_47, %c16] : memref<2x8x32xf32, #tpu.memory_space<vmem>>, vector<2x8x8xf32>
    tpu.vector_store %arg26[%c0_46, %c0_47, %c16], %75 {strides = array<i32>} : memref<2x8x32xf32, #tpu.memory_space<vmem>>, vector<2x8x8xf32>,
    %77 = vector.extract_strided_slice %18 {offsets = [0, 0, 24], sizes = [2, 8, 8], strides = [1, 1, 1]} : vector<2x8x32xf32> to vector<2x8x8xf32>
    %78 = vector.extract_strided_slice %20 {offsets = [0, 0, 24], sizes = [2, 8, 8], strides = [1, 1, 1]} : vector<2x8x32xf32> to vector<2x8x8xf32>
    "tpu.trace_start"() <{level = 10 : i32, message = "bqd,bkd->bqk"}> : () -> ()
    %cst_48 = arith.constant dense<0.000000e+00> : vector<2x8x8xf32>
    %79 = tpu.matmul %77, %78, %cst_48 {dimension_numbers = #tpu.dot_dimension_numbers<[2], [2], [1], [1], [0, 0, 0, 1, 1, 1], [0], [0]>} : vector<2x8x8xf32>, vector<2x8x8xf32>, vector<2x8x8xf32> -> vector<2x8x8xf32>
    "tpu.trace_stop"() : () -> ()
    %cst_49 = arith.constant 0.353553385 : f32
    %80 = vector.broadcast %cst_49 : f32 to vector<2x8x8xf32>
    %81 = arith.mulf %79, %80 : vector<2x8x8xf32>
    %cst_50 = arith.constant dense<0xFF800000> : vector<2x8xf32>
    %82 = vector.multi_reduction <maximumf>, %81, %cst_50 [2] : vector<2x8x8xf32> to vector<2x8xf32>
    %83 = vector.shape_cast %82 : vector<2x8xf32> to vector<2x8x1xf32>
    %84 = vector.broadcast %83 : vector<2x8x1xf32> to vector<2x8x8xf32>
    %85 = arith.subf %81, %84 : vector<2x8x8xf32>
    %86 = math.exp %85 : vector<2x8x8xf32>
    %cst_51 = arith.constant dense<0.000000e+00> : vector<2x8xf32>
    %87 = vector.multi_reduction <add>, %86, %cst_51 [2] : vector<2x8x8xf32> to vector<2x8xf32>
    %88 = vector.shape_cast %87 : vector<2x8xf32> to vector<2x8x1xf32>
    %89 = tpu.reciprocal %88 {approx = true} : vector<2x8x1xf32> -> vector<2x8x1xf32>
    %90 = vector.broadcast %89 : vector<2x8x1xf32> to vector<2x8x8xf32>
    %91 = arith.mulf %86, %90 : vector<2x8x8xf32>
    %92 = vector.extract_strided_slice %22 {offsets = [0, 0, 24], sizes = [2, 8, 8], strides = [1, 1, 1]} : vector<2x8x32xf32> to vector<2x8x8xf32>
    "tpu.trace_start"() <{level = 10 : i32, message = "bqk,bkd->bqd"}> : () -> ()
    %cst_52 = arith.constant dense<0.000000e+00> : vector<2x8x8xf32>
    %93 = tpu.matmul %91, %92, %cst_52 {dimension_numbers = #tpu.dot_dimension_numbers<[2], [1], [1], [2], [0, 0, 0, 1, 1, 2], [0], [0]>} : vector<2x8x8xf32>, vector<2x8x8xf32>, vector<2x8x8xf32> -> vector<2x8x8xf32>
    "tpu.trace_stop"() : () -> ()
    %c0_53 = arith.constant 0 : index
    %c0_54 = arith.constant 0 : index
    %c24 = arith.constant 24 : index
    %94 = vector.load %arg26[%c0_53, %c0_54, %c24] : memref<2x8x32xf32, #tpu.memory_space<vmem>>, vector<2x8x8xf32>
    tpu.vector_store %arg26[%c0_53, %c0_54, %c24], %93 {strides = array<i32>} : memref<2x8x32xf32, #tpu.memory_space<vmem>>, vector<2x8x8xf32>,
    %c0_55 = arith.constant 0 : index
    %c0_56 = arith.constant 0 : index
    %c0_57 = arith.constant 0 : index
    %95 = vector.load %arg26[%c0_55, %c0_56, %c0_57] : memref<2x8x32xf32, #tpu.memory_space<vmem>>, vector<2x8x32xf32>
    %96 = vector.shape_cast %95 : vector<2x8x32xf32> to vector<16x32xf32>
    %cst_58 = arith.constant dense<0.000000e+00> : vector<16x32xf32>
    %97 = tpu.matmul %96, %4, %cst_58 {dimension_numbers = #tpu.dot_dimension_numbers<[1], [0], [0], [1], [0, 0, 1, 1], [], []>} : vector<16x32xf32>, vector<32x32xf32>, vector<16x32xf32> -> vector<16x32xf32>
    %98 = vector.broadcast %5 : vector<1x32xf32> to vector<16x32xf32>
    %99 = arith.addf %97, %98 : vector<16x32xf32>
    %100 = arith.addf %1, %99 : vector<16x32xf32>
    %cst_59 = arith.constant dense<0.000000e+00> : vector<16xf32>
    %101 = vector.multi_reduction <add>, %100, %cst_59 [1] : vector<16x32xf32> to vector<16xf32>
    %102 = vector.shape_cast %101 : vector<16xf32> to vector<16x1xf32>
    %cst_60 = arith.constant 3.200000e+01 : f32
    %103 = vector.broadcast %cst_60 : f32 to vector<16x1xf32>
    %104 = arith.divf %102, %103 : vector<16x1xf32>
    %105 = vector.broadcast %104 : vector<16x1xf32> to vector<16x32xf32>
    %106 = arith.subf %100, %105 : vector<16x32xf32>
    %107 = arith.mulf %106, %106 : vector<16x32xf32>
    %cst_61 = arith.constant dense<0.000000e+00> : vector<16xf32>
    %108 = vector.multi_reduction <add>, %107, %cst_61 [1] : vector<16x32xf32> to vector<16xf32>
    %109 = vector.shape_cast %108 : vector<16xf32> to vector<16x1xf32>
    %cst_62 = arith.constant 3.200000e+01 : f32
    %110 = vector.broadcast %cst_62 : f32 to vector<16x1xf32>
    %111 = arith.divf %109, %110 : vector<16x1xf32>
    %112 = vector.broadcast %104 : vector<16x1xf32> to vector<16x32xf32>
    %113 = arith.subf %100, %112 : vector<16x32xf32>
    %cst_63 = arith.constant 9.99999974E-6 : f32
    %114 = vector.broadcast %cst_63 : f32 to vector<16x1xf32>
    %115 = arith.addf %111, %114 : vector<16x1xf32>
    %116 = math.rsqrt %115 : vector<16x1xf32>
    %117 = vector.broadcast %116 : vector<16x1xf32> to vector<16x32xf32>
    %118 = arith.mulf %113, %117 : vector<16x32xf32>
    %119 = vector.broadcast %6 : vector<1x32xf32> to vector<16x32xf32>
    %120 = arith.mulf %118, %119 : vector<16x32xf32>
    %121 = vector.broadcast %7 : vector<1x32xf32> to vector<16x32xf32>
    %122 = arith.addf %120, %121 : vector<16x32xf32>
    %cst_64 = arith.constant dense<0.000000e+00> : vector<16x2048xf32>
    %123 = tpu.matmul %122, %8, %cst_64 {dimension_numbers = #tpu.dot_dimension_numbers<[1], [0], [0], [1], [0, 0, 1, 1], [], []>} : vector<16x32xf32>, vector<32x2048xf32>, vector<16x2048xf32> -> vector<16x2048xf32>
    %124 = vector.broadcast %9 : vector<1x2048xf32> to vector<16x2048xf32>
    %125 = arith.addf %123, %124 : vector<16x2048xf32>
    %cst_65 = arith.constant 0.000000e+00 : f32
    %126 = vector.broadcast %cst_65 : f32 to vector<16x2048xf32>
    %127 = arith.maximumf %125, %126 : vector<16x2048xf32>
    %cst_66 = arith.constant dense<0.000000e+00> : vector<16x32xf32>
    %128 = tpu.matmul %127, %10, %cst_66 {dimension_numbers = #tpu.dot_dimension_numbers<[1], [0], [0], [1], [0, 0, 1, 1], [], []>} : vector<16x2048xf32>, vector<2048x32xf32>, vector<16x32xf32> -> vector<16x32xf32>
    %129 = vector.broadcast %11 : vector<1x32xf32> to vector<16x32xf32>
    %130 = arith.addf %128, %129 : vector<16x32xf32>
    %131 = arith.addf %122, %130 : vector<16x32xf32>
    %cst_67 = arith.constant dense<0.000000e+00> : vector<16xf32>
    %132 = vector.multi_reduction <add>, %131, %cst_67 [1] : vector<16x32xf32> to vector<16xf32>
    %133 = vector.shape_cast %132 : vector<16xf32> to vector<16x1xf32>
    %cst_68 = arith.constant 3.200000e+01 : f32
    %134 = vector.broadcast %cst_68 : f32 to vector<16x1xf32>
    %135 = arith.divf %133, %134 : vector<16x1xf32>
    %136 = vector.broadcast %135 : vector<16x1xf32> to vector<16x32xf32>
    %137 = arith.subf %131, %136 : vector<16x32xf32>
    %138 = arith.mulf %137, %137 : vector<16x32xf32>
    %cst_69 = arith.constant dense<0.000000e+00> : vector<16xf32>
    %139 = vector.multi_reduction <add>, %138, %cst_69 [1] : vector<16x32xf32> to vector<16xf32>
    %140 = vector.shape_cast %139 : vector<16xf32> to vector<16x1xf32>
    %cst_70 = arith.constant 3.200000e+01 : f32
    %141 = vector.broadcast %cst_70 : f32 to vector<16x1xf32>
    %142 = arith.divf %140, %141 : vector<16x1xf32>
    %143 = vector.broadcast %135 : vector<16x1xf32> to vector<16x32xf32>
    %144 = arith.subf %131, %143 : vector<16x32xf32>
    %cst_71 = arith.constant 9.99999974E-6 : f32
    %145 = vector.broadcast %cst_71 : f32 to vector<16x1xf32>
    %146 = arith.addf %142, %145 : vector<16x1xf32>
    %147 = math.rsqrt %146 : vector<16x1xf32>
    %148 = vector.broadcast %147 : vector<16x1xf32> to vector<16x32xf32>
    %149 = arith.mulf %144, %148 : vector<16x32xf32>
    %150 = vector.broadcast %12 : vector<1x32xf32> to vector<16x32xf32>
    %151 = arith.mulf %149, %150 : vector<16x32xf32>
    %152 = vector.broadcast %13 : vector<1x32xf32> to vector<16x32xf32>
    %153 = arith.addf %151, %152 : vector<16x32xf32>
    %c0_72 = arith.constant 0 : index
    %c0_73 = arith.constant 0 : index
    %154 = vector.load %arg13[%c0_72, %c0_73] : memref<32x96xf32, #tpu.memory_space<vmem>>, vector<32x96xf32>
    %c0_74 = arith.constant 0 : index
    %c0_75 = arith.constant 0 : index
    %155 = vector.load %arg14[%c0_74, %c0_75] : memref<1x96xf32, #tpu.memory_space<vmem>>, vector<1x96xf32>
    %c0_76 = arith.constant 0 : index
    %c0_77 = arith.constant 0 : index
    %156 = vector.load %arg15[%c0_76, %c0_77] : memref<32x32xf32, #tpu.memory_space<vmem>>, vector<32x32xf32>
    %c0_78 = arith.constant 0 : index
    %c0_79 = arith.constant 0 : index
    %157 = vector.load %arg16[%c0_78, %c0_79] : memref<1x32xf32, #tpu.memory_space<vmem>>, vector<1x32xf32>
    %c0_80 = arith.constant 0 : index
    %c0_81 = arith.constant 0 : index
    %158 = vector.load %arg17[%c0_80, %c0_81] : memref<1x32xf32, #tpu.memory_space<vmem>>, vector<1x32xf32>
    %c0_82 = arith.constant 0 : index
    %c0_83 = arith.constant 0 : index
    %159 = vector.load %arg18[%c0_82, %c0_83] : memref<1x32xf32, #tpu.memory_space<vmem>>, vector<1x32xf32>
    %c0_84 = arith.constant 0 : index
    %c0_85 = arith.constant 0 : index
    %160 = vector.load %arg19[%c0_84, %c0_85] : memref<32x2048xf32, #tpu.memory_space<vmem>>, vector<32x2048xf32>
    %c0_86 = arith.constant 0 : index
    %c0_87 = arith.constant 0 : index
    %161 = vector.load %arg20[%c0_86, %c0_87] : memref<1x2048xf32, #tpu.memory_space<vmem>>, vector<1x2048xf32>
    %c0_88 = arith.constant 0 : index
    %c0_89 = arith.constant 0 : index
    %162 = vector.load %arg21[%c0_88, %c0_89] : memref<2048x32xf32, #tpu.memory_space<vmem>>, vector<2048x32xf32>
    %c0_90 = arith.constant 0 : index
    %c0_91 = arith.constant 0 : index
    %163 = vector.load %arg22[%c0_90, %c0_91] : memref<1x32xf32, #tpu.memory_space<vmem>>, vector<1x32xf32>
    %c0_92 = arith.constant 0 : index
    %c0_93 = arith.constant 0 : index
    %164 = vector.load %arg23[%c0_92, %c0_93] : memref<1x32xf32, #tpu.memory_space<vmem>>, vector<1x32xf32>
    %c0_94 = arith.constant 0 : index
    %c0_95 = arith.constant 0 : index
    %165 = vector.load %arg24[%c0_94, %c0_95] : memref<1x32xf32, #tpu.memory_space<vmem>>, vector<1x32xf32>
    %cst_96 = arith.constant dense<0.000000e+00> : vector<16x96xf32>
    %166 = tpu.matmul %153, %154, %cst_96 {dimension_numbers = #tpu.dot_dimension_numbers<[1], [0], [0], [1], [0, 0, 1, 1], [], []>} : vector<16x32xf32>, vector<32x96xf32>, vector<16x96xf32> -> vector<16x96xf32>
    %167 = vector.broadcast %155 : vector<1x96xf32> to vector<16x96xf32>
    %168 = arith.addf %166, %167 : vector<16x96xf32>
    %169 = vector.extract_strided_slice %168 {offsets = [0, 0], sizes = [16, 32], strides = [1, 1]} : vector<16x96xf32> to vector<16x32xf32>
    %170 = vector.shape_cast %169 : vector<16x32xf32> to vector<2x8x32xf32>
    %171 = vector.extract_strided_slice %168 {offsets = [0, 32], sizes = [16, 32], strides = [1, 1]} : vector<16x96xf32> to vector<16x32xf32>
    %172 = vector.shape_cast %171 : vector<16x32xf32> to vector<2x8x32xf32>
    %173 = vector.extract_strided_slice %168 {offsets = [0, 64], sizes = [16, 32], strides = [1, 1]} : vector<16x96xf32> to vector<16x32xf32>
    %174 = vector.shape_cast %173 : vector<16x32xf32> to vector<2x8x32xf32>
    %175 = vector.extract_strided_slice %170 {offsets = [0, 0, 0], sizes = [2, 8, 8], strides = [1, 1, 1]} : vector<2x8x32xf32> to vector<2x8x8xf32>
    %176 = vector.extract_strided_slice %172 {offsets = [0, 0, 0], sizes = [2, 8, 8], strides = [1, 1, 1]} : vector<2x8x32xf32> to vector<2x8x8xf32>
    "tpu.trace_start"() <{level = 10 : i32, message = "bqd,bkd->bqk"}> : () -> ()
    %cst_97 = arith.constant dense<0.000000e+00> : vector<2x8x8xf32>
    %177 = tpu.matmul %175, %176, %cst_97 {dimension_numbers = #tpu.dot_dimension_numbers<[2], [2], [1], [1], [0, 0, 0, 1, 1, 1], [0], [0]>} : vector<2x8x8xf32>, vector<2x8x8xf32>, vector<2x8x8xf32> -> vector<2x8x8xf32>
    "tpu.trace_stop"() : () -> ()
    %cst_98 = arith.constant 0.353553385 : f32
    %178 = vector.broadcast %cst_98 : f32 to vector<2x8x8xf32>
    %179 = arith.mulf %177, %178 : vector<2x8x8xf32>
    %cst_99 = arith.constant dense<0xFF800000> : vector<2x8xf32>
    %180 = vector.multi_reduction <maximumf>, %179, %cst_99 [2] : vector<2x8x8xf32> to vector<2x8xf32>
    %181 = vector.shape_cast %180 : vector<2x8xf32> to vector<2x8x1xf32>
    %182 = vector.broadcast %181 : vector<2x8x1xf32> to vector<2x8x8xf32>
    %183 = arith.subf %179, %182 : vector<2x8x8xf32>
    %184 = math.exp %183 : vector<2x8x8xf32>
    %cst_100 = arith.constant dense<0.000000e+00> : vector<2x8xf32>
    %185 = vector.multi_reduction <add>, %184, %cst_100 [2] : vector<2x8x8xf32> to vector<2x8xf32>
    %186 = vector.shape_cast %185 : vector<2x8xf32> to vector<2x8x1xf32>
    %187 = tpu.reciprocal %186 {approx = true} : vector<2x8x1xf32> -> vector<2x8x1xf32>
    %188 = vector.broadcast %187 : vector<2x8x1xf32> to vector<2x8x8xf32>
    %189 = arith.mulf %184, %188 : vector<2x8x8xf32>
    %190 = vector.extract_strided_slice %174 {offsets = [0, 0, 0], sizes = [2, 8, 8], strides = [1, 1, 1]} : vector<2x8x32xf32> to vector<2x8x8xf32>
    "tpu.trace_start"() <{level = 10 : i32, message = "bqk,bkd->bqd"}> : () -> ()
    %cst_101 = arith.constant dense<0.000000e+00> : vector<2x8x8xf32>
    %191 = tpu.matmul %189, %190, %cst_101 {dimension_numbers = #tpu.dot_dimension_numbers<[2], [1], [1], [2], [0, 0, 0, 1, 1, 2], [0], [0]>} : vector<2x8x8xf32>, vector<2x8x8xf32>, vector<2x8x8xf32> -> vector<2x8x8xf32>
    "tpu.trace_stop"() : () -> ()
    %c0_102 = arith.constant 0 : index
    %c0_103 = arith.constant 0 : index
    %c0_104 = arith.constant 0 : index
    %192 = vector.load %arg26[%c0_102, %c0_103, %c0_104] : memref<2x8x32xf32, #tpu.memory_space<vmem>>, vector<2x8x8xf32>
    tpu.vector_store %arg26[%c0_102, %c0_103, %c0_104], %191 {strides = array<i32>} : memref<2x8x32xf32, #tpu.memory_space<vmem>>, vector<2x8x8xf32>,
    %193 = vector.extract_strided_slice %170 {offsets = [0, 0, 8], sizes = [2, 8, 8], strides = [1, 1, 1]} : vector<2x8x32xf32> to vector<2x8x8xf32>
    %194 = vector.extract_strided_slice %172 {offsets = [0, 0, 8], sizes = [2, 8, 8], strides = [1, 1, 1]} : vector<2x8x32xf32> to vector<2x8x8xf32>
    "tpu.trace_start"() <{level = 10 : i32, message = "bqd,bkd->bqk"}> : () -> ()
    %cst_105 = arith.constant dense<0.000000e+00> : vector<2x8x8xf32>
    %195 = tpu.matmul %193, %194, %cst_105 {dimension_numbers = #tpu.dot_dimension_numbers<[2], [2], [1], [1], [0, 0, 0, 1, 1, 1], [0], [0]>} : vector<2x8x8xf32>, vector<2x8x8xf32>, vector<2x8x8xf32> -> vector<2x8x8xf32>
    "tpu.trace_stop"() : () -> ()
    %cst_106 = arith.constant 0.353553385 : f32
    %196 = vector.broadcast %cst_106 : f32 to vector<2x8x8xf32>
    %197 = arith.mulf %195, %196 : vector<2x8x8xf32>
    %cst_107 = arith.constant dense<0xFF800000> : vector<2x8xf32>
    %198 = vector.multi_reduction <maximumf>, %197, %cst_107 [2] : vector<2x8x8xf32> to vector<2x8xf32>
    %199 = vector.shape_cast %198 : vector<2x8xf32> to vector<2x8x1xf32>
    %200 = vector.broadcast %199 : vector<2x8x1xf32> to vector<2x8x8xf32>
    %201 = arith.subf %197, %200 : vector<2x8x8xf32>
    %202 = math.exp %201 : vector<2x8x8xf32>
    %cst_108 = arith.constant dense<0.000000e+00> : vector<2x8xf32>
    %203 = vector.multi_reduction <add>, %202, %cst_108 [2] : vector<2x8x8xf32> to vector<2x8xf32>
    %204 = vector.shape_cast %203 : vector<2x8xf32> to vector<2x8x1xf32>
    %205 = tpu.reciprocal %204 {approx = true} : vector<2x8x1xf32> -> vector<2x8x1xf32>
    %206 = vector.broadcast %205 : vector<2x8x1xf32> to vector<2x8x8xf32>
    %207 = arith.mulf %202, %206 : vector<2x8x8xf32>
    %208 = vector.extract_strided_slice %174 {offsets = [0, 0, 8], sizes = [2, 8, 8], strides = [1, 1, 1]} : vector<2x8x32xf32> to vector<2x8x8xf32>
    "tpu.trace_start"() <{level = 10 : i32, message = "bqk,bkd->bqd"}> : () -> ()
    %cst_109 = arith.constant dense<0.000000e+00> : vector<2x8x8xf32>
    %209 = tpu.matmul %207, %208, %cst_109 {dimension_numbers = #tpu.dot_dimension_numbers<[2], [1], [1], [2], [0, 0, 0, 1, 1, 2], [0], [0]>} : vector<2x8x8xf32>, vector<2x8x8xf32>, vector<2x8x8xf32> -> vector<2x8x8xf32>
    "tpu.trace_stop"() : () -> ()
    %c0_110 = arith.constant 0 : index
    %c0_111 = arith.constant 0 : index
    %c8_112 = arith.constant 8 : index
    %210 = vector.load %arg26[%c0_110, %c0_111, %c8_112] : memref<2x8x32xf32, #tpu.memory_space<vmem>>, vector<2x8x8xf32>
    tpu.vector_store %arg26[%c0_110, %c0_111, %c8_112], %209 {strides = array<i32>} : memref<2x8x32xf32, #tpu.memory_space<vmem>>, vector<2x8x8xf32>,
    %211 = vector.extract_strided_slice %170 {offsets = [0, 0, 16], sizes = [2, 8, 8], strides = [1, 1, 1]} : vector<2x8x32xf32> to vector<2x8x8xf32>
    %212 = vector.extract_strided_slice %172 {offsets = [0, 0, 16], sizes = [2, 8, 8], strides = [1, 1, 1]} : vector<2x8x32xf32> to vector<2x8x8xf32>
    "tpu.trace_start"() <{level = 10 : i32, message = "bqd,bkd->bqk"}> : () -> ()
    %cst_113 = arith.constant dense<0.000000e+00> : vector<2x8x8xf32>
    %213 = tpu.matmul %211, %212, %cst_113 {dimension_numbers = #tpu.dot_dimension_numbers<[2], [2], [1], [1], [0, 0, 0, 1, 1, 1], [0], [0]>} : vector<2x8x8xf32>, vector<2x8x8xf32>, vector<2x8x8xf32> -> vector<2x8x8xf32>
    "tpu.trace_stop"() : () -> ()
    %cst_114 = arith.constant 0.353553385 : f32
    %214 = vector.broadcast %cst_114 : f32 to vector<2x8x8xf32>
    %215 = arith.mulf %213, %214 : vector<2x8x8xf32>
    %cst_115 = arith.constant dense<0xFF800000> : vector<2x8xf32>
    %216 = vector.multi_reduction <maximumf>, %215, %cst_115 [2] : vector<2x8x8xf32> to vector<2x8xf32>
    %217 = vector.shape_cast %216 : vector<2x8xf32> to vector<2x8x1xf32>
    %218 = vector.broadcast %217 : vector<2x8x1xf32> to vector<2x8x8xf32>
    %219 = arith.subf %215, %218 : vector<2x8x8xf32>
    %220 = math.exp %219 : vector<2x8x8xf32>
    %cst_116 = arith.constant dense<0.000000e+00> : vector<2x8xf32>
    %221 = vector.multi_reduction <add>, %220, %cst_116 [2] : vector<2x8x8xf32> to vector<2x8xf32>
    %222 = vector.shape_cast %221 : vector<2x8xf32> to vector<2x8x1xf32>
    %223 = tpu.reciprocal %222 {approx = true} : vector<2x8x1xf32> -> vector<2x8x1xf32>
    %224 = vector.broadcast %223 : vector<2x8x1xf32> to vector<2x8x8xf32>
    %225 = arith.mulf %220, %224 : vector<2x8x8xf32>
    %226 = vector.extract_strided_slice %174 {offsets = [0, 0, 16], sizes = [2, 8, 8], strides = [1, 1, 1]} : vector<2x8x32xf32> to vector<2x8x8xf32>
    "tpu.trace_start"() <{level = 10 : i32, message = "bqk,bkd->bqd"}> : () -> ()
    %cst_117 = arith.constant dense<0.000000e+00> : vector<2x8x8xf32>
    %227 = tpu.matmul %225, %226, %cst_117 {dimension_numbers = #tpu.dot_dimension_numbers<[2], [1], [1], [2], [0, 0, 0, 1, 1, 2], [0], [0]>} : vector<2x8x8xf32>, vector<2x8x8xf32>, vector<2x8x8xf32> -> vector<2x8x8xf32>
    "tpu.trace_stop"() : () -> ()
    %c0_118 = arith.constant 0 : index
    %c0_119 = arith.constant 0 : index
    %c16_120 = arith.constant 16 : index
    %228 = vector.load %arg26[%c0_118, %c0_119, %c16_120] : memref<2x8x32xf32, #tpu.memory_space<vmem>>, vector<2x8x8xf32>
    tpu.vector_store %arg26[%c0_118, %c0_119, %c16_120], %227 {strides = array<i32>} : memref<2x8x32xf32, #tpu.memory_space<vmem>>, vector<2x8x8xf32>,
    %229 = vector.extract_strided_slice %170 {offsets = [0, 0, 24], sizes = [2, 8, 8], strides = [1, 1, 1]} : vector<2x8x32xf32> to vector<2x8x8xf32>
    %230 = vector.extract_strided_slice %172 {offsets = [0, 0, 24], sizes = [2, 8, 8], strides = [1, 1, 1]} : vector<2x8x32xf32> to vector<2x8x8xf32>
    "tpu.trace_start"() <{level = 10 : i32, message = "bqd,bkd->bqk"}> : () -> ()
    %cst_121 = arith.constant dense<0.000000e+00> : vector<2x8x8xf32>
    %231 = tpu.matmul %229, %230, %cst_121 {dimension_numbers = #tpu.dot_dimension_numbers<[2], [2], [1], [1], [0, 0, 0, 1, 1, 1], [0], [0]>} : vector<2x8x8xf32>, vector<2x8x8xf32>, vector<2x8x8xf32> -> vector<2x8x8xf32>
    "tpu.trace_stop"() : () -> ()
    %cst_122 = arith.constant 0.353553385 : f32
    %232 = vector.broadcast %cst_122 : f32 to vector<2x8x8xf32>
    %233 = arith.mulf %231, %232 : vector<2x8x8xf32>
    %cst_123 = arith.constant dense<0xFF800000> : vector<2x8xf32>
    %234 = vector.multi_reduction <maximumf>, %233, %cst_123 [2] : vector<2x8x8xf32> to vector<2x8xf32>
    %235 = vector.shape_cast %234 : vector<2x8xf32> to vector<2x8x1xf32>
    %236 = vector.broadcast %235 : vector<2x8x1xf32> to vector<2x8x8xf32>
    %237 = arith.subf %233, %236 : vector<2x8x8xf32>
    %238 = math.exp %237 : vector<2x8x8xf32>
    %cst_124 = arith.constant dense<0.000000e+00> : vector<2x8xf32>
    %239 = vector.multi_reduction <add>, %238, %cst_124 [2] : vector<2x8x8xf32> to vector<2x8xf32>
    %240 = vector.shape_cast %239 : vector<2x8xf32> to vector<2x8x1xf32>
    %241 = tpu.reciprocal %240 {approx = true} : vector<2x8x1xf32> -> vector<2x8x1xf32>
    %242 = vector.broadcast %241 : vector<2x8x1xf32> to vector<2x8x8xf32>
    %243 = arith.mulf %238, %242 : vector<2x8x8xf32>
    %244 = vector.extract_strided_slice %174 {offsets = [0, 0, 24], sizes = [2, 8, 8], strides = [1, 1, 1]} : vector<2x8x32xf32> to vector<2x8x8xf32>
    "tpu.trace_start"() <{level = 10 : i32, message = "bqk,bkd->bqd"}> : () -> ()
    %cst_125 = arith.constant dense<0.000000e+00> : vector<2x8x8xf32>
    %245 = tpu.matmul %243, %244, %cst_125 {dimension_numbers = #tpu.dot_dimension_numbers<[2], [1], [1], [2], [0, 0, 0, 1, 1, 2], [0], [0]>} : vector<2x8x8xf32>, vector<2x8x8xf32>, vector<2x8x8xf32> -> vector<2x8x8xf32>
    "tpu.trace_stop"() : () -> ()
    %c0_126 = arith.constant 0 : index
    %c0_127 = arith.constant 0 : index
    %c24_128 = arith.constant 24 : index
    %246 = vector.load %arg26[%c0_126, %c0_127, %c24_128] : memref<2x8x32xf32, #tpu.memory_space<vmem>>, vector<2x8x8xf32>
    tpu.vector_store %arg26[%c0_126, %c0_127, %c24_128], %245 {strides = array<i32>} : memref<2x8x32xf32, #tpu.memory_space<vmem>>, vector<2x8x8xf32>,
    %c0_129 = arith.constant 0 : index
    %c0_130 = arith.constant 0 : index
    %c0_131 = arith.constant 0 : index
    %247 = vector.load %arg26[%c0_129, %c0_130, %c0_131] : memref<2x8x32xf32, #tpu.memory_space<vmem>>, vector<2x8x32xf32>
    %248 = vector.shape_cast %247 : vector<2x8x32xf32> to vector<16x32xf32>
    %cst_132 = arith.constant dense<0.000000e+00> : vector<16x32xf32>
    %249 = tpu.matmul %248, %156, %cst_132 {dimension_numbers = #tpu.dot_dimension_numbers<[1], [0], [0], [1], [0, 0, 1, 1], [], []>} : vector<16x32xf32>, vector<32x32xf32>, vector<16x32xf32> -> vector<16x32xf32>
    %250 = vector.broadcast %157 : vector<1x32xf32> to vector<16x32xf32>
    %251 = arith.addf %249, %250 : vector<16x32xf32>
    %252 = arith.addf %153, %251 : vector<16x32xf32>
    %cst_133 = arith.constant dense<0.000000e+00> : vector<16xf32>
    %253 = vector.multi_reduction <add>, %252, %cst_133 [1] : vector<16x32xf32> to vector<16xf32>
    %254 = vector.shape_cast %253 : vector<16xf32> to vector<16x1xf32>
    %cst_134 = arith.constant 3.200000e+01 : f32
    %255 = vector.broadcast %cst_134 : f32 to vector<16x1xf32>
    %256 = arith.divf %254, %255 : vector<16x1xf32>
    %257 = vector.broadcast %256 : vector<16x1xf32> to vector<16x32xf32>
    %258 = arith.subf %252, %257 : vector<16x32xf32>
    %259 = arith.mulf %258, %258 : vector<16x32xf32>
    %cst_135 = arith.constant dense<0.000000e+00> : vector<16xf32>
    %260 = vector.multi_reduction <add>, %259, %cst_135 [1] : vector<16x32xf32> to vector<16xf32>
    %261 = vector.shape_cast %260 : vector<16xf32> to vector<16x1xf32>
    %cst_136 = arith.constant 3.200000e+01 : f32
    %262 = vector.broadcast %cst_136 : f32 to vector<16x1xf32>
    %263 = arith.divf %261, %262 : vector<16x1xf32>
    %264 = vector.broadcast %256 : vector<16x1xf32> to vector<16x32xf32>
    %265 = arith.subf %252, %264 : vector<16x32xf32>
    %cst_137 = arith.constant 9.99999974E-6 : f32
    %266 = vector.broadcast %cst_137 : f32 to vector<16x1xf32>
    %267 = arith.addf %263, %266 : vector<16x1xf32>
    %268 = math.rsqrt %267 : vector<16x1xf32>
    %269 = vector.broadcast %268 : vector<16x1xf32> to vector<16x32xf32>
    %270 = arith.mulf %265, %269 : vector<16x32xf32>
    %271 = vector.broadcast %158 : vector<1x32xf32> to vector<16x32xf32>
    %272 = arith.mulf %270, %271 : vector<16x32xf32>
    %273 = vector.broadcast %159 : vector<1x32xf32> to vector<16x32xf32>
    %274 = arith.addf %272, %273 : vector<16x32xf32>
    %cst_138 = arith.constant dense<0.000000e+00> : vector<16x2048xf32>
    %275 = tpu.matmul %274, %160, %cst_138 {dimension_numbers = #tpu.dot_dimension_numbers<[1], [0], [0], [1], [0, 0, 1, 1], [], []>} : vector<16x32xf32>, vector<32x2048xf32>, vector<16x2048xf32> -> vector<16x2048xf32>
    %276 = vector.broadcast %161 : vector<1x2048xf32> to vector<16x2048xf32>
    %277 = arith.addf %275, %276 : vector<16x2048xf32>
    %cst_139 = arith.constant 0.000000e+00 : f32
    %278 = vector.broadcast %cst_139 : f32 to vector<16x2048xf32>
    %279 = arith.maximumf %277, %278 : vector<16x2048xf32>
    %cst_140 = arith.constant dense<0.000000e+00> : vector<16x32xf32>
    %280 = tpu.matmul %279, %162, %cst_140 {dimension_numbers = #tpu.dot_dimension_numbers<[1], [0], [0], [1], [0, 0, 1, 1], [], []>} : vector<16x2048xf32>, vector<2048x32xf32>, vector<16x32xf32> -> vector<16x32xf32>
    %281 = vector.broadcast %163 : vector<1x32xf32> to vector<16x32xf32>
    %282 = arith.addf %280, %281 : vector<16x32xf32>
    %283 = arith.addf %274, %282 : vector<16x32xf32>
    %cst_141 = arith.constant dense<0.000000e+00> : vector<16xf32>
    %284 = vector.multi_reduction <add>, %283, %cst_141 [1] : vector<16x32xf32> to vector<16xf32>
    %285 = vector.shape_cast %284 : vector<16xf32> to vector<16x1xf32>
    %cst_142 = arith.constant 3.200000e+01 : f32
    %286 = vector.broadcast %cst_142 : f32 to vector<16x1xf32>
    %287 = arith.divf %285, %286 : vector<16x1xf32>
    %288 = vector.broadcast %287 : vector<16x1xf32> to vector<16x32xf32>
    %289 = arith.subf %283, %288 : vector<16x32xf32>
    %290 = arith.mulf %289, %289 : vector<16x32xf32>
    %cst_143 = arith.constant dense<0.000000e+00> : vector<16xf32>
    %291 = vector.multi_reduction <add>, %290, %cst_143 [1] : vector<16x32xf32> to vector<16xf32>
    %292 = vector.shape_cast %291 : vector<16xf32> to vector<16x1xf32>
    %cst_144 = arith.constant 3.200000e+01 : f32
    %293 = vector.broadcast %cst_144 : f32 to vector<16x1xf32>
    %294 = arith.divf %292, %293 : vector<16x1xf32>
    %295 = vector.broadcast %287 : vector<16x1xf32> to vector<16x32xf32>
    %296 = arith.subf %283, %295 : vector<16x32xf32>
    %cst_145 = arith.constant 9.99999974E-6 : f32
    %297 = vector.broadcast %cst_145 : f32 to vector<16x1xf32>
    %298 = arith.addf %294, %297 : vector<16x1xf32>
    %299 = math.rsqrt %298 : vector<16x1xf32>
    %300 = vector.broadcast %299 : vector<16x1xf32> to vector<16x32xf32>
    %301 = arith.mulf %296, %300 : vector<16x32xf32>
    %302 = vector.broadcast %164 : vector<1x32xf32> to vector<16x32xf32>
    %303 = arith.mulf %301, %302 : vector<16x32xf32>
    %304 = vector.broadcast %165 : vector<1x32xf32> to vector<16x32xf32>
    %305 = arith.addf %303, %304 : vector<16x32xf32>
    %306 = vector.shape_cast %305 : vector<16x32xf32> to vector<2x8x32xf32>
    %c0_146 = arith.constant 0 : index
    %c0_147 = arith.constant 0 : index
    %c0_148 = arith.constant 0 : index
    %307 = vector.load %arg25[%c0_146, %c0_147, %c0_148] : memref<2x8x32xf32, #tpu.memory_space<vmem>>, vector<2x8x32xf32>
    tpu.vector_store %arg25[%c0_146, %c0_147, %c0_148], %306 {strides = array<i32>} : memref<2x8x32xf32, #tpu.memory_space<vmem>>, vector<2x8x32xf32>,
    return
  }
}

module attributes {stable_mosaic.version = 11 : i64} {
  func.func @_dual_lstm_kernel(%arg0: memref<2x8x20xf32, #tpu.memory_space<vmem>>, %arg1: memref<2x8x24xf32, #tpu.memory_space<vmem>>, %arg2: memref<20x64xf32, #tpu.memory_space<vmem>>, %arg3: memref<16x64xf32, #tpu.memory_space<vmem>>, %arg4: memref<1x64xf32, #tpu.memory_space<vmem>>, %arg5: memref<24x64xf32, #tpu.memory_space<vmem>>, %arg6: memref<16x64xf32, #tpu.memory_space<vmem>>, %arg7: memref<1x64xf32, #tpu.memory_space<vmem>>, %arg8: memref<2x8x32xf32, #tpu.memory_space<vmem>>) attributes {dimension_semantics = [], scalar_prefetch = 0 : i64, scratch_operands = 0 : i64, tpu.core_type = #tpu.core_type<tc>} {
    %c0 = arith.constant 0 : index
    %c0_0 = arith.constant 0 : index
    %c0_1 = arith.constant 0 : index
    %0 = vector.load %arg0[%c0, %c0_0, %c0_1] : memref<2x8x20xf32, #tpu.memory_space<vmem>>, vector<2x8x20xf32>
    %c0_2 = arith.constant 0 : index
    %c0_3 = arith.constant 0 : index
    %c0_4 = arith.constant 0 : index
    %1 = vector.load %arg1[%c0_2, %c0_3, %c0_4] : memref<2x8x24xf32, #tpu.memory_space<vmem>>, vector<2x8x24xf32>
    %c0_5 = arith.constant 0 : index
    %c0_6 = arith.constant 0 : index
    %2 = vector.load %arg2[%c0_5, %c0_6] : memref<20x64xf32, #tpu.memory_space<vmem>>, vector<20x64xf32>
    %c0_7 = arith.constant 0 : index
    %c0_8 = arith.constant 0 : index
    %3 = vector.load %arg3[%c0_7, %c0_8] : memref<16x64xf32, #tpu.memory_space<vmem>>, vector<16x64xf32>
    %c0_9 = arith.constant 0 : index
    %c0_10 = arith.constant 0 : index
    %4 = vector.load %arg4[%c0_9, %c0_10] : memref<1x64xf32, #tpu.memory_space<vmem>>, vector<1x64xf32>
    %c0_11 = arith.constant 0 : index
    %c0_12 = arith.constant 0 : index
    %5 = vector.load %arg5[%c0_11, %c0_12] : memref<24x64xf32, #tpu.memory_space<vmem>>, vector<24x64xf32>
    %c0_13 = arith.constant 0 : index
    %c0_14 = arith.constant 0 : index
    %6 = vector.load %arg6[%c0_13, %c0_14] : memref<16x64xf32, #tpu.memory_space<vmem>>, vector<16x64xf32>
    %c0_15 = arith.constant 0 : index
    %c0_16 = arith.constant 0 : index
    %7 = vector.load %arg7[%c0_15, %c0_16] : memref<1x64xf32, #tpu.memory_space<vmem>>, vector<1x64xf32>
    %cst = arith.constant 0.000000e+00 : f32
    %8 = vector.broadcast %cst : f32 to vector<2x16xf32>
    %cst_17 = arith.constant 0.000000e+00 : f32
    %9 = vector.broadcast %cst_17 : f32 to vector<2x16xf32>
    %cst_18 = arith.constant 0.000000e+00 : f32
    %10 = vector.broadcast %cst_18 : f32 to vector<2x16xf32>
    %cst_19 = arith.constant 0.000000e+00 : f32
    %11 = vector.broadcast %cst_19 : f32 to vector<2x16xf32>
    %12 = vector.extract_strided_slice %0 {offsets = [0, 0, 0], sizes = [2, 1, 20], strides = [1, 1, 1]} : vector<2x8x20xf32> to vector<2x1x20xf32>
    %13 = vector.shape_cast %12 : vector<2x1x20xf32> to vector<2x20xf32>
    %cst_20 = arith.constant dense<0.000000e+00> : vector<2x64xf32>
    %14 = tpu.matmul %13, %2, %cst_20 {dimension_numbers = #tpu.dot_dimension_numbers<[1], [0], [0], [1], [0, 0, 1, 1], [], []>} : vector<2x20xf32>, vector<20x64xf32>, vector<2x64xf32> -> vector<2x64xf32>
    %cst_21 = arith.constant dense<0.000000e+00> : vector<2x64xf32>
    %15 = tpu.matmul %8, %3, %cst_21 {dimension_numbers = #tpu.dot_dimension_numbers<[1], [0], [0], [1], [0, 0, 1, 1], [], []>} : vector<2x16xf32>, vector<16x64xf32>, vector<2x64xf32> -> vector<2x64xf32>
    %16 = arith.addf %14, %15 : vector<2x64xf32>
    %17 = vector.broadcast %4 : vector<1x64xf32> to vector<2x64xf32>
    %18 = arith.addf %16, %17 : vector<2x64xf32>
    %19 = vector.extract_strided_slice %18 {offsets = [0, 0], sizes = [2, 16], strides = [1, 1]} : vector<2x64xf32> to vector<2x16xf32>
    %20 = arith.negf %19 : vector<2x16xf32>
    %21 = math.exp %20 : vector<2x16xf32>
    %cst_22 = arith.constant 1.000000e+00 : f32
    %22 = vector.broadcast %cst_22 : f32 to vector<2x16xf32>
    %23 = arith.addf %22, %21 : vector<2x16xf32>
    %24 = arith.divf %22, %23 : vector<2x16xf32>
    %25 = vector.extract_strided_slice %18 {offsets = [0, 16], sizes = [2, 16], strides = [1, 1]} : vector<2x64xf32> to vector<2x16xf32>
    %26 = arith.negf %25 : vector<2x16xf32>
    %27 = math.exp %26 : vector<2x16xf32>
    %cst_23 = arith.constant 1.000000e+00 : f32
    %28 = vector.broadcast %cst_23 : f32 to vector<2x16xf32>
    %29 = arith.addf %28, %27 : vector<2x16xf32>
    %30 = arith.divf %28, %29 : vector<2x16xf32>
    %31 = vector.extract_strided_slice %18 {offsets = [0, 32], sizes = [2, 16], strides = [1, 1]} : vector<2x64xf32> to vector<2x16xf32>
    %32 = math.tanh %31 : vector<2x16xf32>
    %33 = vector.extract_strided_slice %18 {offsets = [0, 48], sizes = [2, 16], strides = [1, 1]} : vector<2x64xf32> to vector<2x16xf32>
    %34 = arith.negf %33 : vector<2x16xf32>
    %35 = math.exp %34 : vector<2x16xf32>
    %cst_24 = arith.constant 1.000000e+00 : f32
    %36 = vector.broadcast %cst_24 : f32 to vector<2x16xf32>
    %37 = arith.addf %36, %35 : vector<2x16xf32>
    %38 = arith.divf %36, %37 : vector<2x16xf32>
    %39 = arith.mulf %30, %9 : vector<2x16xf32>
    %40 = arith.mulf %24, %32 : vector<2x16xf32>
    %41 = arith.addf %39, %40 : vector<2x16xf32>
    %42 = math.tanh %41 : vector<2x16xf32>
    %43 = arith.mulf %38, %42 : vector<2x16xf32>
    %44 = vector.extract_strided_slice %1 {offsets = [0, 0, 0], sizes = [2, 1, 24], strides = [1, 1, 1]} : vector<2x8x24xf32> to vector<2x1x24xf32>
    %45 = vector.shape_cast %44 : vector<2x1x24xf32> to vector<2x24xf32>
    %cst_25 = arith.constant dense<0.000000e+00> : vector<2x64xf32>
    %46 = tpu.matmul %45, %5, %cst_25 {dimension_numbers = #tpu.dot_dimension_numbers<[1], [0], [0], [1], [0, 0, 1, 1], [], []>} : vector<2x24xf32>, vector<24x64xf32>, vector<2x64xf32> -> vector<2x64xf32>
    %cst_26 = arith.constant dense<0.000000e+00> : vector<2x64xf32>
    %47 = tpu.matmul %10, %6, %cst_26 {dimension_numbers = #tpu.dot_dimension_numbers<[1], [0], [0], [1], [0, 0, 1, 1], [], []>} : vector<2x16xf32>, vector<16x64xf32>, vector<2x64xf32> -> vector<2x64xf32>
    %48 = arith.addf %46, %47 : vector<2x64xf32>
    %49 = vector.broadcast %7 : vector<1x64xf32> to vector<2x64xf32>
    %50 = arith.addf %48, %49 : vector<2x64xf32>
    %51 = vector.extract_strided_slice %50 {offsets = [0, 0], sizes = [2, 16], strides = [1, 1]} : vector<2x64xf32> to vector<2x16xf32>
    %52 = arith.negf %51 : vector<2x16xf32>
    %53 = math.exp %52 : vector<2x16xf32>
    %cst_27 = arith.constant 1.000000e+00 : f32
    %54 = vector.broadcast %cst_27 : f32 to vector<2x16xf32>
    %55 = arith.addf %54, %53 : vector<2x16xf32>
    %56 = arith.divf %54, %55 : vector<2x16xf32>
    %57 = vector.extract_strided_slice %50 {offsets = [0, 16], sizes = [2, 16], strides = [1, 1]} : vector<2x64xf32> to vector<2x16xf32>
    %58 = arith.negf %57 : vector<2x16xf32>
    %59 = math.exp %58 : vector<2x16xf32>
    %cst_28 = arith.constant 1.000000e+00 : f32
    %60 = vector.broadcast %cst_28 : f32 to vector<2x16xf32>
    %61 = arith.addf %60, %59 : vector<2x16xf32>
    %62 = arith.divf %60, %61 : vector<2x16xf32>
    %63 = vector.extract_strided_slice %50 {offsets = [0, 32], sizes = [2, 16], strides = [1, 1]} : vector<2x64xf32> to vector<2x16xf32>
    %64 = math.tanh %63 : vector<2x16xf32>
    %65 = vector.extract_strided_slice %50 {offsets = [0, 48], sizes = [2, 16], strides = [1, 1]} : vector<2x64xf32> to vector<2x16xf32>
    %66 = arith.negf %65 : vector<2x16xf32>
    %67 = math.exp %66 : vector<2x16xf32>
    %cst_29 = arith.constant 1.000000e+00 : f32
    %68 = vector.broadcast %cst_29 : f32 to vector<2x16xf32>
    %69 = arith.addf %68, %67 : vector<2x16xf32>
    %70 = arith.divf %68, %69 : vector<2x16xf32>
    %71 = arith.mulf %62, %11 : vector<2x16xf32>
    %72 = arith.mulf %56, %64 : vector<2x16xf32>
    %73 = arith.addf %71, %72 : vector<2x16xf32>
    %74 = math.tanh %73 : vector<2x16xf32>
    %75 = arith.mulf %70, %74 : vector<2x16xf32>
    %76 = vector.shape_cast %75 : vector<2x16xf32> to vector<2x1x16xf32>
    %c0_30 = arith.constant 0 : index
    %c0_31 = arith.constant 0 : index
    %c0_32 = arith.constant 0 : index
    %77 = vector.load %arg8[%c0_30, %c0_31, %c0_32] : memref<2x8x32xf32, #tpu.memory_space<vmem>>, vector<2x1x16xf32>
    tpu.vector_store %arg8[%c0_30, %c0_31, %c0_32], %76 {strides = array<i32>} : memref<2x8x32xf32, #tpu.memory_space<vmem>>, vector<2x1x16xf32>,
    %78 = vector.shape_cast %43 : vector<2x16xf32> to vector<2x1x16xf32>
    %c0_33 = arith.constant 0 : index
    %c0_34 = arith.constant 0 : index
    %c16 = arith.constant 16 : index
    %79 = vector.load %arg8[%c0_33, %c0_34, %c16] : memref<2x8x32xf32, #tpu.memory_space<vmem>>, vector<2x1x16xf32>
    tpu.vector_store %arg8[%c0_33, %c0_34, %c16], %78 {strides = array<i32>} : memref<2x8x32xf32, #tpu.memory_space<vmem>>, vector<2x1x16xf32>,
    %80 = vector.extract_strided_slice %0 {offsets = [0, 1, 0], sizes = [2, 1, 20], strides = [1, 1, 1]} : vector<2x8x20xf32> to vector<2x1x20xf32>
    %81 = vector.shape_cast %80 : vector<2x1x20xf32> to vector<2x20xf32>
    %cst_35 = arith.constant dense<0.000000e+00> : vector<2x64xf32>
    %82 = tpu.matmul %81, %2, %cst_35 {dimension_numbers = #tpu.dot_dimension_numbers<[1], [0], [0], [1], [0, 0, 1, 1], [], []>} : vector<2x20xf32>, vector<20x64xf32>, vector<2x64xf32> -> vector<2x64xf32>
    %cst_36 = arith.constant dense<0.000000e+00> : vector<2x64xf32>
    %83 = tpu.matmul %43, %3, %cst_36 {dimension_numbers = #tpu.dot_dimension_numbers<[1], [0], [0], [1], [0, 0, 1, 1], [], []>} : vector<2x16xf32>, vector<16x64xf32>, vector<2x64xf32> -> vector<2x64xf32>
    %84 = arith.addf %82, %83 : vector<2x64xf32>
    %85 = vector.broadcast %4 : vector<1x64xf32> to vector<2x64xf32>
    %86 = arith.addf %84, %85 : vector<2x64xf32>
    %87 = vector.extract_strided_slice %86 {offsets = [0, 0], sizes = [2, 16], strides = [1, 1]} : vector<2x64xf32> to vector<2x16xf32>
    %88 = arith.negf %87 : vector<2x16xf32>
    %89 = math.exp %88 : vector<2x16xf32>
    %cst_37 = arith.constant 1.000000e+00 : f32
    %90 = vector.broadcast %cst_37 : f32 to vector<2x16xf32>
    %91 = arith.addf %90, %89 : vector<2x16xf32>
    %92 = arith.divf %90, %91 : vector<2x16xf32>
    %93 = vector.extract_strided_slice %86 {offsets = [0, 16], sizes = [2, 16], strides = [1, 1]} : vector<2x64xf32> to vector<2x16xf32>
    %94 = arith.negf %93 : vector<2x16xf32>
    %95 = math.exp %94 : vector<2x16xf32>
    %cst_38 = arith.constant 1.000000e+00 : f32
    %96 = vector.broadcast %cst_38 : f32 to vector<2x16xf32>
    %97 = arith.addf %96, %95 : vector<2x16xf32>
    %98 = arith.divf %96, %97 : vector<2x16xf32>
    %99 = vector.extract_strided_slice %86 {offsets = [0, 32], sizes = [2, 16], strides = [1, 1]} : vector<2x64xf32> to vector<2x16xf32>
    %100 = math.tanh %99 : vector<2x16xf32>
    %101 = vector.extract_strided_slice %86 {offsets = [0, 48], sizes = [2, 16], strides = [1, 1]} : vector<2x64xf32> to vector<2x16xf32>
    %102 = arith.negf %101 : vector<2x16xf32>
    %103 = math.exp %102 : vector<2x16xf32>
    %cst_39 = arith.constant 1.000000e+00 : f32
    %104 = vector.broadcast %cst_39 : f32 to vector<2x16xf32>
    %105 = arith.addf %104, %103 : vector<2x16xf32>
    %106 = arith.divf %104, %105 : vector<2x16xf32>
    %107 = arith.mulf %98, %41 : vector<2x16xf32>
    %108 = arith.mulf %92, %100 : vector<2x16xf32>
    %109 = arith.addf %107, %108 : vector<2x16xf32>
    %110 = math.tanh %109 : vector<2x16xf32>
    %111 = arith.mulf %106, %110 : vector<2x16xf32>
    %112 = vector.extract_strided_slice %1 {offsets = [0, 1, 0], sizes = [2, 1, 24], strides = [1, 1, 1]} : vector<2x8x24xf32> to vector<2x1x24xf32>
    %113 = vector.shape_cast %112 : vector<2x1x24xf32> to vector<2x24xf32>
    %cst_40 = arith.constant dense<0.000000e+00> : vector<2x64xf32>
    %114 = tpu.matmul %113, %5, %cst_40 {dimension_numbers = #tpu.dot_dimension_numbers<[1], [0], [0], [1], [0, 0, 1, 1], [], []>} : vector<2x24xf32>, vector<24x64xf32>, vector<2x64xf32> -> vector<2x64xf32>
    %cst_41 = arith.constant dense<0.000000e+00> : vector<2x64xf32>
    %115 = tpu.matmul %75, %6, %cst_41 {dimension_numbers = #tpu.dot_dimension_numbers<[1], [0], [0], [1], [0, 0, 1, 1], [], []>} : vector<2x16xf32>, vector<16x64xf32>, vector<2x64xf32> -> vector<2x64xf32>
    %116 = arith.addf %114, %115 : vector<2x64xf32>
    %117 = vector.broadcast %7 : vector<1x64xf32> to vector<2x64xf32>
    %118 = arith.addf %116, %117 : vector<2x64xf32>
    %119 = vector.extract_strided_slice %118 {offsets = [0, 0], sizes = [2, 16], strides = [1, 1]} : vector<2x64xf32> to vector<2x16xf32>
    %120 = arith.negf %119 : vector<2x16xf32>
    %121 = math.exp %120 : vector<2x16xf32>
    %cst_42 = arith.constant 1.000000e+00 : f32
    %122 = vector.broadcast %cst_42 : f32 to vector<2x16xf32>
    %123 = arith.addf %122, %121 : vector<2x16xf32>
    %124 = arith.divf %122, %123 : vector<2x16xf32>
    %125 = vector.extract_strided_slice %118 {offsets = [0, 16], sizes = [2, 16], strides = [1, 1]} : vector<2x64xf32> to vector<2x16xf32>
    %126 = arith.negf %125 : vector<2x16xf32>
    %127 = math.exp %126 : vector<2x16xf32>
    %cst_43 = arith.constant 1.000000e+00 : f32
    %128 = vector.broadcast %cst_43 : f32 to vector<2x16xf32>
    %129 = arith.addf %128, %127 : vector<2x16xf32>
    %130 = arith.divf %128, %129 : vector<2x16xf32>
    %131 = vector.extract_strided_slice %118 {offsets = [0, 32], sizes = [2, 16], strides = [1, 1]} : vector<2x64xf32> to vector<2x16xf32>
    %132 = math.tanh %131 : vector<2x16xf32>
    %133 = vector.extract_strided_slice %118 {offsets = [0, 48], sizes = [2, 16], strides = [1, 1]} : vector<2x64xf32> to vector<2x16xf32>
    %134 = arith.negf %133 : vector<2x16xf32>
    %135 = math.exp %134 : vector<2x16xf32>
    %cst_44 = arith.constant 1.000000e+00 : f32
    %136 = vector.broadcast %cst_44 : f32 to vector<2x16xf32>
    %137 = arith.addf %136, %135 : vector<2x16xf32>
    %138 = arith.divf %136, %137 : vector<2x16xf32>
    %139 = arith.mulf %130, %73 : vector<2x16xf32>
    %140 = arith.mulf %124, %132 : vector<2x16xf32>
    %141 = arith.addf %139, %140 : vector<2x16xf32>
    %142 = math.tanh %141 : vector<2x16xf32>
    %143 = arith.mulf %138, %142 : vector<2x16xf32>
    %144 = vector.shape_cast %143 : vector<2x16xf32> to vector<2x1x16xf32>
    %c0_45 = arith.constant 0 : index
    %c1 = arith.constant 1 : index
    %c0_46 = arith.constant 0 : index
    %145 = vector.load %arg8[%c0_45, %c1, %c0_46] : memref<2x8x32xf32, #tpu.memory_space<vmem>>, vector<2x1x16xf32>
    tpu.vector_store %arg8[%c0_45, %c1, %c0_46], %144 {strides = array<i32>} : memref<2x8x32xf32, #tpu.memory_space<vmem>>, vector<2x1x16xf32>,
    %146 = vector.shape_cast %111 : vector<2x16xf32> to vector<2x1x16xf32>
    %c0_47 = arith.constant 0 : index
    %c1_48 = arith.constant 1 : index
    %c16_49 = arith.constant 16 : index
    %147 = vector.load %arg8[%c0_47, %c1_48, %c16_49] : memref<2x8x32xf32, #tpu.memory_space<vmem>>, vector<2x1x16xf32>
    tpu.vector_store %arg8[%c0_47, %c1_48, %c16_49], %146 {strides = array<i32>} : memref<2x8x32xf32, #tpu.memory_space<vmem>>, vector<2x1x16xf32>,
    %148 = vector.extract_strided_slice %0 {offsets = [0, 2, 0], sizes = [2, 1, 20], strides = [1, 1, 1]} : vector<2x8x20xf32> to vector<2x1x20xf32>
    %149 = vector.shape_cast %148 : vector<2x1x20xf32> to vector<2x20xf32>
    %cst_50 = arith.constant dense<0.000000e+00> : vector<2x64xf32>
    %150 = tpu.matmul %149, %2, %cst_50 {dimension_numbers = #tpu.dot_dimension_numbers<[1], [0], [0], [1], [0, 0, 1, 1], [], []>} : vector<2x20xf32>, vector<20x64xf32>, vector<2x64xf32> -> vector<2x64xf32>
    %cst_51 = arith.constant dense<0.000000e+00> : vector<2x64xf32>
    %151 = tpu.matmul %111, %3, %cst_51 {dimension_numbers = #tpu.dot_dimension_numbers<[1], [0], [0], [1], [0, 0, 1, 1], [], []>} : vector<2x16xf32>, vector<16x64xf32>, vector<2x64xf32> -> vector<2x64xf32>
    %152 = arith.addf %150, %151 : vector<2x64xf32>
    %153 = vector.broadcast %4 : vector<1x64xf32> to vector<2x64xf32>
    %154 = arith.addf %152, %153 : vector<2x64xf32>
    %155 = vector.extract_strided_slice %154 {offsets = [0, 0], sizes = [2, 16], strides = [1, 1]} : vector<2x64xf32> to vector<2x16xf32>
    %156 = arith.negf %155 : vector<2x16xf32>
    %157 = math.exp %156 : vector<2x16xf32>
    %cst_52 = arith.constant 1.000000e+00 : f32
    %158 = vector.broadcast %cst_52 : f32 to vector<2x16xf32>
    %159 = arith.addf %158, %157 : vector<2x16xf32>
    %160 = arith.divf %158, %159 : vector<2x16xf32>
    %161 = vector.extract_strided_slice %154 {offsets = [0, 16], sizes = [2, 16], strides = [1, 1]} : vector<2x64xf32> to vector<2x16xf32>
    %162 = arith.negf %161 : vector<2x16xf32>
    %163 = math.exp %162 : vector<2x16xf32>
    %cst_53 = arith.constant 1.000000e+00 : f32
    %164 = vector.broadcast %cst_53 : f32 to vector<2x16xf32>
    %165 = arith.addf %164, %163 : vector<2x16xf32>
    %166 = arith.divf %164, %165 : vector<2x16xf32>
    %167 = vector.extract_strided_slice %154 {offsets = [0, 32], sizes = [2, 16], strides = [1, 1]} : vector<2x64xf32> to vector<2x16xf32>
    %168 = math.tanh %167 : vector<2x16xf32>
    %169 = vector.extract_strided_slice %154 {offsets = [0, 48], sizes = [2, 16], strides = [1, 1]} : vector<2x64xf32> to vector<2x16xf32>
    %170 = arith.negf %169 : vector<2x16xf32>
    %171 = math.exp %170 : vector<2x16xf32>
    %cst_54 = arith.constant 1.000000e+00 : f32
    %172 = vector.broadcast %cst_54 : f32 to vector<2x16xf32>
    %173 = arith.addf %172, %171 : vector<2x16xf32>
    %174 = arith.divf %172, %173 : vector<2x16xf32>
    %175 = arith.mulf %166, %109 : vector<2x16xf32>
    %176 = arith.mulf %160, %168 : vector<2x16xf32>
    %177 = arith.addf %175, %176 : vector<2x16xf32>
    %178 = math.tanh %177 : vector<2x16xf32>
    %179 = arith.mulf %174, %178 : vector<2x16xf32>
    %180 = vector.extract_strided_slice %1 {offsets = [0, 2, 0], sizes = [2, 1, 24], strides = [1, 1, 1]} : vector<2x8x24xf32> to vector<2x1x24xf32>
    %181 = vector.shape_cast %180 : vector<2x1x24xf32> to vector<2x24xf32>
    %cst_55 = arith.constant dense<0.000000e+00> : vector<2x64xf32>
    %182 = tpu.matmul %181, %5, %cst_55 {dimension_numbers = #tpu.dot_dimension_numbers<[1], [0], [0], [1], [0, 0, 1, 1], [], []>} : vector<2x24xf32>, vector<24x64xf32>, vector<2x64xf32> -> vector<2x64xf32>
    %cst_56 = arith.constant dense<0.000000e+00> : vector<2x64xf32>
    %183 = tpu.matmul %143, %6, %cst_56 {dimension_numbers = #tpu.dot_dimension_numbers<[1], [0], [0], [1], [0, 0, 1, 1], [], []>} : vector<2x16xf32>, vector<16x64xf32>, vector<2x64xf32> -> vector<2x64xf32>
    %184 = arith.addf %182, %183 : vector<2x64xf32>
    %185 = vector.broadcast %7 : vector<1x64xf32> to vector<2x64xf32>
    %186 = arith.addf %184, %185 : vector<2x64xf32>
    %187 = vector.extract_strided_slice %186 {offsets = [0, 0], sizes = [2, 16], strides = [1, 1]} : vector<2x64xf32> to vector<2x16xf32>
    %188 = arith.negf %187 : vector<2x16xf32>
    %189 = math.exp %188 : vector<2x16xf32>
    %cst_57 = arith.constant 1.000000e+00 : f32
    %190 = vector.broadcast %cst_57 : f32 to vector<2x16xf32>
    %191 = arith.addf %190, %189 : vector<2x16xf32>
    %192 = arith.divf %190, %191 : vector<2x16xf32>
    %193 = vector.extract_strided_slice %186 {offsets = [0, 16], sizes = [2, 16], strides = [1, 1]} : vector<2x64xf32> to vector<2x16xf32>
    %194 = arith.negf %193 : vector<2x16xf32>
    %195 = math.exp %194 : vector<2x16xf32>
    %cst_58 = arith.constant 1.000000e+00 : f32
    %196 = vector.broadcast %cst_58 : f32 to vector<2x16xf32>
    %197 = arith.addf %196, %195 : vector<2x16xf32>
    %198 = arith.divf %196, %197 : vector<2x16xf32>
    %199 = vector.extract_strided_slice %186 {offsets = [0, 32], sizes = [2, 16], strides = [1, 1]} : vector<2x64xf32> to vector<2x16xf32>
    %200 = math.tanh %199 : vector<2x16xf32>
    %201 = vector.extract_strided_slice %186 {offsets = [0, 48], sizes = [2, 16], strides = [1, 1]} : vector<2x64xf32> to vector<2x16xf32>
    %202 = arith.negf %201 : vector<2x16xf32>
    %203 = math.exp %202 : vector<2x16xf32>
    %cst_59 = arith.constant 1.000000e+00 : f32
    %204 = vector.broadcast %cst_59 : f32 to vector<2x16xf32>
    %205 = arith.addf %204, %203 : vector<2x16xf32>
    %206 = arith.divf %204, %205 : vector<2x16xf32>
    %207 = arith.mulf %198, %141 : vector<2x16xf32>
    %208 = arith.mulf %192, %200 : vector<2x16xf32>
    %209 = arith.addf %207, %208 : vector<2x16xf32>
    %210 = math.tanh %209 : vector<2x16xf32>
    %211 = arith.mulf %206, %210 : vector<2x16xf32>
    %212 = vector.shape_cast %211 : vector<2x16xf32> to vector<2x1x16xf32>
    %c0_60 = arith.constant 0 : index
    %c2 = arith.constant 2 : index
    %c0_61 = arith.constant 0 : index
    %213 = vector.load %arg8[%c0_60, %c2, %c0_61] : memref<2x8x32xf32, #tpu.memory_space<vmem>>, vector<2x1x16xf32>
    tpu.vector_store %arg8[%c0_60, %c2, %c0_61], %212 {strides = array<i32>} : memref<2x8x32xf32, #tpu.memory_space<vmem>>, vector<2x1x16xf32>,
    %214 = vector.shape_cast %179 : vector<2x16xf32> to vector<2x1x16xf32>
    %c0_62 = arith.constant 0 : index
    %c2_63 = arith.constant 2 : index
    %c16_64 = arith.constant 16 : index
    %215 = vector.load %arg8[%c0_62, %c2_63, %c16_64] : memref<2x8x32xf32, #tpu.memory_space<vmem>>, vector<2x1x16xf32>
    tpu.vector_store %arg8[%c0_62, %c2_63, %c16_64], %214 {strides = array<i32>} : memref<2x8x32xf32, #tpu.memory_space<vmem>>, vector<2x1x16xf32>,
    %216 = vector.extract_strided_slice %0 {offsets = [0, 3, 0], sizes = [2, 1, 20], strides = [1, 1, 1]} : vector<2x8x20xf32> to vector<2x1x20xf32>
    %217 = vector.shape_cast %216 : vector<2x1x20xf32> to vector<2x20xf32>
    %cst_65 = arith.constant dense<0.000000e+00> : vector<2x64xf32>
    %218 = tpu.matmul %217, %2, %cst_65 {dimension_numbers = #tpu.dot_dimension_numbers<[1], [0], [0], [1], [0, 0, 1, 1], [], []>} : vector<2x20xf32>, vector<20x64xf32>, vector<2x64xf32> -> vector<2x64xf32>
    %cst_66 = arith.constant dense<0.000000e+00> : vector<2x64xf32>
    %219 = tpu.matmul %179, %3, %cst_66 {dimension_numbers = #tpu.dot_dimension_numbers<[1], [0], [0], [1], [0, 0, 1, 1], [], []>} : vector<2x16xf32>, vector<16x64xf32>, vector<2x64xf32> -> vector<2x64xf32>
    %220 = arith.addf %218, %219 : vector<2x64xf32>
    %221 = vector.broadcast %4 : vector<1x64xf32> to vector<2x64xf32>
    %222 = arith.addf %220, %221 : vector<2x64xf32>
    %223 = vector.extract_strided_slice %222 {offsets = [0, 0], sizes = [2, 16], strides = [1, 1]} : vector<2x64xf32> to vector<2x16xf32>
    %224 = arith.negf %223 : vector<2x16xf32>
    %225 = math.exp %224 : vector<2x16xf32>
    %cst_67 = arith.constant 1.000000e+00 : f32
    %226 = vector.broadcast %cst_67 : f32 to vector<2x16xf32>
    %227 = arith.addf %226, %225 : vector<2x16xf32>
    %228 = arith.divf %226, %227 : vector<2x16xf32>
    %229 = vector.extract_strided_slice %222 {offsets = [0, 16], sizes = [2, 16], strides = [1, 1]} : vector<2x64xf32> to vector<2x16xf32>
    %230 = arith.negf %229 : vector<2x16xf32>
    %231 = math.exp %230 : vector<2x16xf32>
    %cst_68 = arith.constant 1.000000e+00 : f32
    %232 = vector.broadcast %cst_68 : f32 to vector<2x16xf32>
    %233 = arith.addf %232, %231 : vector<2x16xf32>
    %234 = arith.divf %232, %233 : vector<2x16xf32>
    %235 = vector.extract_strided_slice %222 {offsets = [0, 32], sizes = [2, 16], strides = [1, 1]} : vector<2x64xf32> to vector<2x16xf32>
    %236 = math.tanh %235 : vector<2x16xf32>
    %237 = vector.extract_strided_slice %222 {offsets = [0, 48], sizes = [2, 16], strides = [1, 1]} : vector<2x64xf32> to vector<2x16xf32>
    %238 = arith.negf %237 : vector<2x16xf32>
    %239 = math.exp %238 : vector<2x16xf32>
    %cst_69 = arith.constant 1.000000e+00 : f32
    %240 = vector.broadcast %cst_69 : f32 to vector<2x16xf32>
    %241 = arith.addf %240, %239 : vector<2x16xf32>
    %242 = arith.divf %240, %241 : vector<2x16xf32>
    %243 = arith.mulf %234, %177 : vector<2x16xf32>
    %244 = arith.mulf %228, %236 : vector<2x16xf32>
    %245 = arith.addf %243, %244 : vector<2x16xf32>
    %246 = math.tanh %245 : vector<2x16xf32>
    %247 = arith.mulf %242, %246 : vector<2x16xf32>
    %248 = vector.extract_strided_slice %1 {offsets = [0, 3, 0], sizes = [2, 1, 24], strides = [1, 1, 1]} : vector<2x8x24xf32> to vector<2x1x24xf32>
    %249 = vector.shape_cast %248 : vector<2x1x24xf32> to vector<2x24xf32>
    %cst_70 = arith.constant dense<0.000000e+00> : vector<2x64xf32>
    %250 = tpu.matmul %249, %5, %cst_70 {dimension_numbers = #tpu.dot_dimension_numbers<[1], [0], [0], [1], [0, 0, 1, 1], [], []>} : vector<2x24xf32>, vector<24x64xf32>, vector<2x64xf32> -> vector<2x64xf32>
    %cst_71 = arith.constant dense<0.000000e+00> : vector<2x64xf32>
    %251 = tpu.matmul %211, %6, %cst_71 {dimension_numbers = #tpu.dot_dimension_numbers<[1], [0], [0], [1], [0, 0, 1, 1], [], []>} : vector<2x16xf32>, vector<16x64xf32>, vector<2x64xf32> -> vector<2x64xf32>
    %252 = arith.addf %250, %251 : vector<2x64xf32>
    %253 = vector.broadcast %7 : vector<1x64xf32> to vector<2x64xf32>
    %254 = arith.addf %252, %253 : vector<2x64xf32>
    %255 = vector.extract_strided_slice %254 {offsets = [0, 0], sizes = [2, 16], strides = [1, 1]} : vector<2x64xf32> to vector<2x16xf32>
    %256 = arith.negf %255 : vector<2x16xf32>
    %257 = math.exp %256 : vector<2x16xf32>
    %cst_72 = arith.constant 1.000000e+00 : f32
    %258 = vector.broadcast %cst_72 : f32 to vector<2x16xf32>
    %259 = arith.addf %258, %257 : vector<2x16xf32>
    %260 = arith.divf %258, %259 : vector<2x16xf32>
    %261 = vector.extract_strided_slice %254 {offsets = [0, 16], sizes = [2, 16], strides = [1, 1]} : vector<2x64xf32> to vector<2x16xf32>
    %262 = arith.negf %261 : vector<2x16xf32>
    %263 = math.exp %262 : vector<2x16xf32>
    %cst_73 = arith.constant 1.000000e+00 : f32
    %264 = vector.broadcast %cst_73 : f32 to vector<2x16xf32>
    %265 = arith.addf %264, %263 : vector<2x16xf32>
    %266 = arith.divf %264, %265 : vector<2x16xf32>
    %267 = vector.extract_strided_slice %254 {offsets = [0, 32], sizes = [2, 16], strides = [1, 1]} : vector<2x64xf32> to vector<2x16xf32>
    %268 = math.tanh %267 : vector<2x16xf32>
    %269 = vector.extract_strided_slice %254 {offsets = [0, 48], sizes = [2, 16], strides = [1, 1]} : vector<2x64xf32> to vector<2x16xf32>
    %270 = arith.negf %269 : vector<2x16xf32>
    %271 = math.exp %270 : vector<2x16xf32>
    %cst_74 = arith.constant 1.000000e+00 : f32
    %272 = vector.broadcast %cst_74 : f32 to vector<2x16xf32>
    %273 = arith.addf %272, %271 : vector<2x16xf32>
    %274 = arith.divf %272, %273 : vector<2x16xf32>
    %275 = arith.mulf %266, %209 : vector<2x16xf32>
    %276 = arith.mulf %260, %268 : vector<2x16xf32>
    %277 = arith.addf %275, %276 : vector<2x16xf32>
    %278 = math.tanh %277 : vector<2x16xf32>
    %279 = arith.mulf %274, %278 : vector<2x16xf32>
    %280 = vector.shape_cast %279 : vector<2x16xf32> to vector<2x1x16xf32>
    %c0_75 = arith.constant 0 : index
    %c3 = arith.constant 3 : index
    %c0_76 = arith.constant 0 : index
    %281 = vector.load %arg8[%c0_75, %c3, %c0_76] : memref<2x8x32xf32, #tpu.memory_space<vmem>>, vector<2x1x16xf32>
    tpu.vector_store %arg8[%c0_75, %c3, %c0_76], %280 {strides = array<i32>} : memref<2x8x32xf32, #tpu.memory_space<vmem>>, vector<2x1x16xf32>,
    %282 = vector.shape_cast %247 : vector<2x16xf32> to vector<2x1x16xf32>
    %c0_77 = arith.constant 0 : index
    %c3_78 = arith.constant 3 : index
    %c16_79 = arith.constant 16 : index
    %283 = vector.load %arg8[%c0_77, %c3_78, %c16_79] : memref<2x8x32xf32, #tpu.memory_space<vmem>>, vector<2x1x16xf32>
    tpu.vector_store %arg8[%c0_77, %c3_78, %c16_79], %282 {strides = array<i32>} : memref<2x8x32xf32, #tpu.memory_space<vmem>>, vector<2x1x16xf32>,
    %284 = vector.extract_strided_slice %0 {offsets = [0, 4, 0], sizes = [2, 1, 20], strides = [1, 1, 1]} : vector<2x8x20xf32> to vector<2x1x20xf32>
    %285 = vector.shape_cast %284 : vector<2x1x20xf32> to vector<2x20xf32>
    %cst_80 = arith.constant dense<0.000000e+00> : vector<2x64xf32>
    %286 = tpu.matmul %285, %2, %cst_80 {dimension_numbers = #tpu.dot_dimension_numbers<[1], [0], [0], [1], [0, 0, 1, 1], [], []>} : vector<2x20xf32>, vector<20x64xf32>, vector<2x64xf32> -> vector<2x64xf32>
    %cst_81 = arith.constant dense<0.000000e+00> : vector<2x64xf32>
    %287 = tpu.matmul %247, %3, %cst_81 {dimension_numbers = #tpu.dot_dimension_numbers<[1], [0], [0], [1], [0, 0, 1, 1], [], []>} : vector<2x16xf32>, vector<16x64xf32>, vector<2x64xf32> -> vector<2x64xf32>
    %288 = arith.addf %286, %287 : vector<2x64xf32>
    %289 = vector.broadcast %4 : vector<1x64xf32> to vector<2x64xf32>
    %290 = arith.addf %288, %289 : vector<2x64xf32>
    %291 = vector.extract_strided_slice %290 {offsets = [0, 0], sizes = [2, 16], strides = [1, 1]} : vector<2x64xf32> to vector<2x16xf32>
    %292 = arith.negf %291 : vector<2x16xf32>
    %293 = math.exp %292 : vector<2x16xf32>
    %cst_82 = arith.constant 1.000000e+00 : f32
    %294 = vector.broadcast %cst_82 : f32 to vector<2x16xf32>
    %295 = arith.addf %294, %293 : vector<2x16xf32>
    %296 = arith.divf %294, %295 : vector<2x16xf32>
    %297 = vector.extract_strided_slice %290 {offsets = [0, 16], sizes = [2, 16], strides = [1, 1]} : vector<2x64xf32> to vector<2x16xf32>
    %298 = arith.negf %297 : vector<2x16xf32>
    %299 = math.exp %298 : vector<2x16xf32>
    %cst_83 = arith.constant 1.000000e+00 : f32
    %300 = vector.broadcast %cst_83 : f32 to vector<2x16xf32>
    %301 = arith.addf %300, %299 : vector<2x16xf32>
    %302 = arith.divf %300, %301 : vector<2x16xf32>
    %303 = vector.extract_strided_slice %290 {offsets = [0, 32], sizes = [2, 16], strides = [1, 1]} : vector<2x64xf32> to vector<2x16xf32>
    %304 = math.tanh %303 : vector<2x16xf32>
    %305 = vector.extract_strided_slice %290 {offsets = [0, 48], sizes = [2, 16], strides = [1, 1]} : vector<2x64xf32> to vector<2x16xf32>
    %306 = arith.negf %305 : vector<2x16xf32>
    %307 = math.exp %306 : vector<2x16xf32>
    %cst_84 = arith.constant 1.000000e+00 : f32
    %308 = vector.broadcast %cst_84 : f32 to vector<2x16xf32>
    %309 = arith.addf %308, %307 : vector<2x16xf32>
    %310 = arith.divf %308, %309 : vector<2x16xf32>
    %311 = arith.mulf %302, %245 : vector<2x16xf32>
    %312 = arith.mulf %296, %304 : vector<2x16xf32>
    %313 = arith.addf %311, %312 : vector<2x16xf32>
    %314 = math.tanh %313 : vector<2x16xf32>
    %315 = arith.mulf %310, %314 : vector<2x16xf32>
    %316 = vector.extract_strided_slice %1 {offsets = [0, 4, 0], sizes = [2, 1, 24], strides = [1, 1, 1]} : vector<2x8x24xf32> to vector<2x1x24xf32>
    %317 = vector.shape_cast %316 : vector<2x1x24xf32> to vector<2x24xf32>
    %cst_85 = arith.constant dense<0.000000e+00> : vector<2x64xf32>
    %318 = tpu.matmul %317, %5, %cst_85 {dimension_numbers = #tpu.dot_dimension_numbers<[1], [0], [0], [1], [0, 0, 1, 1], [], []>} : vector<2x24xf32>, vector<24x64xf32>, vector<2x64xf32> -> vector<2x64xf32>
    %cst_86 = arith.constant dense<0.000000e+00> : vector<2x64xf32>
    %319 = tpu.matmul %279, %6, %cst_86 {dimension_numbers = #tpu.dot_dimension_numbers<[1], [0], [0], [1], [0, 0, 1, 1], [], []>} : vector<2x16xf32>, vector<16x64xf32>, vector<2x64xf32> -> vector<2x64xf32>
    %320 = arith.addf %318, %319 : vector<2x64xf32>
    %321 = vector.broadcast %7 : vector<1x64xf32> to vector<2x64xf32>
    %322 = arith.addf %320, %321 : vector<2x64xf32>
    %323 = vector.extract_strided_slice %322 {offsets = [0, 0], sizes = [2, 16], strides = [1, 1]} : vector<2x64xf32> to vector<2x16xf32>
    %324 = arith.negf %323 : vector<2x16xf32>
    %325 = math.exp %324 : vector<2x16xf32>
    %cst_87 = arith.constant 1.000000e+00 : f32
    %326 = vector.broadcast %cst_87 : f32 to vector<2x16xf32>
    %327 = arith.addf %326, %325 : vector<2x16xf32>
    %328 = arith.divf %326, %327 : vector<2x16xf32>
    %329 = vector.extract_strided_slice %322 {offsets = [0, 16], sizes = [2, 16], strides = [1, 1]} : vector<2x64xf32> to vector<2x16xf32>
    %330 = arith.negf %329 : vector<2x16xf32>
    %331 = math.exp %330 : vector<2x16xf32>
    %cst_88 = arith.constant 1.000000e+00 : f32
    %332 = vector.broadcast %cst_88 : f32 to vector<2x16xf32>
    %333 = arith.addf %332, %331 : vector<2x16xf32>
    %334 = arith.divf %332, %333 : vector<2x16xf32>
    %335 = vector.extract_strided_slice %322 {offsets = [0, 32], sizes = [2, 16], strides = [1, 1]} : vector<2x64xf32> to vector<2x16xf32>
    %336 = math.tanh %335 : vector<2x16xf32>
    %337 = vector.extract_strided_slice %322 {offsets = [0, 48], sizes = [2, 16], strides = [1, 1]} : vector<2x64xf32> to vector<2x16xf32>
    %338 = arith.negf %337 : vector<2x16xf32>
    %339 = math.exp %338 : vector<2x16xf32>
    %cst_89 = arith.constant 1.000000e+00 : f32
    %340 = vector.broadcast %cst_89 : f32 to vector<2x16xf32>
    %341 = arith.addf %340, %339 : vector<2x16xf32>
    %342 = arith.divf %340, %341 : vector<2x16xf32>
    %343 = arith.mulf %334, %277 : vector<2x16xf32>
    %344 = arith.mulf %328, %336 : vector<2x16xf32>
    %345 = arith.addf %343, %344 : vector<2x16xf32>
    %346 = math.tanh %345 : vector<2x16xf32>
    %347 = arith.mulf %342, %346 : vector<2x16xf32>
    %348 = vector.shape_cast %347 : vector<2x16xf32> to vector<2x1x16xf32>
    %c0_90 = arith.constant 0 : index
    %c4 = arith.constant 4 : index
    %c0_91 = arith.constant 0 : index
    %349 = vector.load %arg8[%c0_90, %c4, %c0_91] : memref<2x8x32xf32, #tpu.memory_space<vmem>>, vector<2x1x16xf32>
    tpu.vector_store %arg8[%c0_90, %c4, %c0_91], %348 {strides = array<i32>} : memref<2x8x32xf32, #tpu.memory_space<vmem>>, vector<2x1x16xf32>,
    %350 = vector.shape_cast %315 : vector<2x16xf32> to vector<2x1x16xf32>
    %c0_92 = arith.constant 0 : index
    %c4_93 = arith.constant 4 : index
    %c16_94 = arith.constant 16 : index
    %351 = vector.load %arg8[%c0_92, %c4_93, %c16_94] : memref<2x8x32xf32, #tpu.memory_space<vmem>>, vector<2x1x16xf32>
    tpu.vector_store %arg8[%c0_92, %c4_93, %c16_94], %350 {strides = array<i32>} : memref<2x8x32xf32, #tpu.memory_space<vmem>>, vector<2x1x16xf32>,
    %352 = vector.extract_strided_slice %0 {offsets = [0, 5, 0], sizes = [2, 1, 20], strides = [1, 1, 1]} : vector<2x8x20xf32> to vector<2x1x20xf32>
    %353 = vector.shape_cast %352 : vector<2x1x20xf32> to vector<2x20xf32>
    %cst_95 = arith.constant dense<0.000000e+00> : vector<2x64xf32>
    %354 = tpu.matmul %353, %2, %cst_95 {dimension_numbers = #tpu.dot_dimension_numbers<[1], [0], [0], [1], [0, 0, 1, 1], [], []>} : vector<2x20xf32>, vector<20x64xf32>, vector<2x64xf32> -> vector<2x64xf32>
    %cst_96 = arith.constant dense<0.000000e+00> : vector<2x64xf32>
    %355 = tpu.matmul %315, %3, %cst_96 {dimension_numbers = #tpu.dot_dimension_numbers<[1], [0], [0], [1], [0, 0, 1, 1], [], []>} : vector<2x16xf32>, vector<16x64xf32>, vector<2x64xf32> -> vector<2x64xf32>
    %356 = arith.addf %354, %355 : vector<2x64xf32>
    %357 = vector.broadcast %4 : vector<1x64xf32> to vector<2x64xf32>
    %358 = arith.addf %356, %357 : vector<2x64xf32>
    %359 = vector.extract_strided_slice %358 {offsets = [0, 0], sizes = [2, 16], strides = [1, 1]} : vector<2x64xf32> to vector<2x16xf32>
    %360 = arith.negf %359 : vector<2x16xf32>
    %361 = math.exp %360 : vector<2x16xf32>
    %cst_97 = arith.constant 1.000000e+00 : f32
    %362 = vector.broadcast %cst_97 : f32 to vector<2x16xf32>
    %363 = arith.addf %362, %361 : vector<2x16xf32>
    %364 = arith.divf %362, %363 : vector<2x16xf32>
    %365 = vector.extract_strided_slice %358 {offsets = [0, 16], sizes = [2, 16], strides = [1, 1]} : vector<2x64xf32> to vector<2x16xf32>
    %366 = arith.negf %365 : vector<2x16xf32>
    %367 = math.exp %366 : vector<2x16xf32>
    %cst_98 = arith.constant 1.000000e+00 : f32
    %368 = vector.broadcast %cst_98 : f32 to vector<2x16xf32>
    %369 = arith.addf %368, %367 : vector<2x16xf32>
    %370 = arith.divf %368, %369 : vector<2x16xf32>
    %371 = vector.extract_strided_slice %358 {offsets = [0, 32], sizes = [2, 16], strides = [1, 1]} : vector<2x64xf32> to vector<2x16xf32>
    %372 = math.tanh %371 : vector<2x16xf32>
    %373 = vector.extract_strided_slice %358 {offsets = [0, 48], sizes = [2, 16], strides = [1, 1]} : vector<2x64xf32> to vector<2x16xf32>
    %374 = arith.negf %373 : vector<2x16xf32>
    %375 = math.exp %374 : vector<2x16xf32>
    %cst_99 = arith.constant 1.000000e+00 : f32
    %376 = vector.broadcast %cst_99 : f32 to vector<2x16xf32>
    %377 = arith.addf %376, %375 : vector<2x16xf32>
    %378 = arith.divf %376, %377 : vector<2x16xf32>
    %379 = arith.mulf %370, %313 : vector<2x16xf32>
    %380 = arith.mulf %364, %372 : vector<2x16xf32>
    %381 = arith.addf %379, %380 : vector<2x16xf32>
    %382 = math.tanh %381 : vector<2x16xf32>
    %383 = arith.mulf %378, %382 : vector<2x16xf32>
    %384 = vector.extract_strided_slice %1 {offsets = [0, 5, 0], sizes = [2, 1, 24], strides = [1, 1, 1]} : vector<2x8x24xf32> to vector<2x1x24xf32>
    %385 = vector.shape_cast %384 : vector<2x1x24xf32> to vector<2x24xf32>
    %cst_100 = arith.constant dense<0.000000e+00> : vector<2x64xf32>
    %386 = tpu.matmul %385, %5, %cst_100 {dimension_numbers = #tpu.dot_dimension_numbers<[1], [0], [0], [1], [0, 0, 1, 1], [], []>} : vector<2x24xf32>, vector<24x64xf32>, vector<2x64xf32> -> vector<2x64xf32>
    %cst_101 = arith.constant dense<0.000000e+00> : vector<2x64xf32>
    %387 = tpu.matmul %347, %6, %cst_101 {dimension_numbers = #tpu.dot_dimension_numbers<[1], [0], [0], [1], [0, 0, 1, 1], [], []>} : vector<2x16xf32>, vector<16x64xf32>, vector<2x64xf32> -> vector<2x64xf32>
    %388 = arith.addf %386, %387 : vector<2x64xf32>
    %389 = vector.broadcast %7 : vector<1x64xf32> to vector<2x64xf32>
    %390 = arith.addf %388, %389 : vector<2x64xf32>
    %391 = vector.extract_strided_slice %390 {offsets = [0, 0], sizes = [2, 16], strides = [1, 1]} : vector<2x64xf32> to vector<2x16xf32>
    %392 = arith.negf %391 : vector<2x16xf32>
    %393 = math.exp %392 : vector<2x16xf32>
    %cst_102 = arith.constant 1.000000e+00 : f32
    %394 = vector.broadcast %cst_102 : f32 to vector<2x16xf32>
    %395 = arith.addf %394, %393 : vector<2x16xf32>
    %396 = arith.divf %394, %395 : vector<2x16xf32>
    %397 = vector.extract_strided_slice %390 {offsets = [0, 16], sizes = [2, 16], strides = [1, 1]} : vector<2x64xf32> to vector<2x16xf32>
    %398 = arith.negf %397 : vector<2x16xf32>
    %399 = math.exp %398 : vector<2x16xf32>
    %cst_103 = arith.constant 1.000000e+00 : f32
    %400 = vector.broadcast %cst_103 : f32 to vector<2x16xf32>
    %401 = arith.addf %400, %399 : vector<2x16xf32>
    %402 = arith.divf %400, %401 : vector<2x16xf32>
    %403 = vector.extract_strided_slice %390 {offsets = [0, 32], sizes = [2, 16], strides = [1, 1]} : vector<2x64xf32> to vector<2x16xf32>
    %404 = math.tanh %403 : vector<2x16xf32>
    %405 = vector.extract_strided_slice %390 {offsets = [0, 48], sizes = [2, 16], strides = [1, 1]} : vector<2x64xf32> to vector<2x16xf32>
    %406 = arith.negf %405 : vector<2x16xf32>
    %407 = math.exp %406 : vector<2x16xf32>
    %cst_104 = arith.constant 1.000000e+00 : f32
    %408 = vector.broadcast %cst_104 : f32 to vector<2x16xf32>
    %409 = arith.addf %408, %407 : vector<2x16xf32>
    %410 = arith.divf %408, %409 : vector<2x16xf32>
    %411 = arith.mulf %402, %345 : vector<2x16xf32>
    %412 = arith.mulf %396, %404 : vector<2x16xf32>
    %413 = arith.addf %411, %412 : vector<2x16xf32>
    %414 = math.tanh %413 : vector<2x16xf32>
    %415 = arith.mulf %410, %414 : vector<2x16xf32>
    %416 = vector.shape_cast %415 : vector<2x16xf32> to vector<2x1x16xf32>
    %c0_105 = arith.constant 0 : index
    %c5 = arith.constant 5 : index
    %c0_106 = arith.constant 0 : index
    %417 = vector.load %arg8[%c0_105, %c5, %c0_106] : memref<2x8x32xf32, #tpu.memory_space<vmem>>, vector<2x1x16xf32>
    tpu.vector_store %arg8[%c0_105, %c5, %c0_106], %416 {strides = array<i32>} : memref<2x8x32xf32, #tpu.memory_space<vmem>>, vector<2x1x16xf32>,
    %418 = vector.shape_cast %383 : vector<2x16xf32> to vector<2x1x16xf32>
    %c0_107 = arith.constant 0 : index
    %c5_108 = arith.constant 5 : index
    %c16_109 = arith.constant 16 : index
    %419 = vector.load %arg8[%c0_107, %c5_108, %c16_109] : memref<2x8x32xf32, #tpu.memory_space<vmem>>, vector<2x1x16xf32>
    tpu.vector_store %arg8[%c0_107, %c5_108, %c16_109], %418 {strides = array<i32>} : memref<2x8x32xf32, #tpu.memory_space<vmem>>, vector<2x1x16xf32>,
    %420 = vector.extract_strided_slice %0 {offsets = [0, 6, 0], sizes = [2, 1, 20], strides = [1, 1, 1]} : vector<2x8x20xf32> to vector<2x1x20xf32>
    %421 = vector.shape_cast %420 : vector<2x1x20xf32> to vector<2x20xf32>
    %cst_110 = arith.constant dense<0.000000e+00> : vector<2x64xf32>
    %422 = tpu.matmul %421, %2, %cst_110 {dimension_numbers = #tpu.dot_dimension_numbers<[1], [0], [0], [1], [0, 0, 1, 1], [], []>} : vector<2x20xf32>, vector<20x64xf32>, vector<2x64xf32> -> vector<2x64xf32>
    %cst_111 = arith.constant dense<0.000000e+00> : vector<2x64xf32>
    %423 = tpu.matmul %383, %3, %cst_111 {dimension_numbers = #tpu.dot_dimension_numbers<[1], [0], [0], [1], [0, 0, 1, 1], [], []>} : vector<2x16xf32>, vector<16x64xf32>, vector<2x64xf32> -> vector<2x64xf32>
    %424 = arith.addf %422, %423 : vector<2x64xf32>
    %425 = vector.broadcast %4 : vector<1x64xf32> to vector<2x64xf32>
    %426 = arith.addf %424, %425 : vector<2x64xf32>
    %427 = vector.extract_strided_slice %426 {offsets = [0, 0], sizes = [2, 16], strides = [1, 1]} : vector<2x64xf32> to vector<2x16xf32>
    %428 = arith.negf %427 : vector<2x16xf32>
    %429 = math.exp %428 : vector<2x16xf32>
    %cst_112 = arith.constant 1.000000e+00 : f32
    %430 = vector.broadcast %cst_112 : f32 to vector<2x16xf32>
    %431 = arith.addf %430, %429 : vector<2x16xf32>
    %432 = arith.divf %430, %431 : vector<2x16xf32>
    %433 = vector.extract_strided_slice %426 {offsets = [0, 16], sizes = [2, 16], strides = [1, 1]} : vector<2x64xf32> to vector<2x16xf32>
    %434 = arith.negf %433 : vector<2x16xf32>
    %435 = math.exp %434 : vector<2x16xf32>
    %cst_113 = arith.constant 1.000000e+00 : f32
    %436 = vector.broadcast %cst_113 : f32 to vector<2x16xf32>
    %437 = arith.addf %436, %435 : vector<2x16xf32>
    %438 = arith.divf %436, %437 : vector<2x16xf32>
    %439 = vector.extract_strided_slice %426 {offsets = [0, 32], sizes = [2, 16], strides = [1, 1]} : vector<2x64xf32> to vector<2x16xf32>
    %440 = math.tanh %439 : vector<2x16xf32>
    %441 = vector.extract_strided_slice %426 {offsets = [0, 48], sizes = [2, 16], strides = [1, 1]} : vector<2x64xf32> to vector<2x16xf32>
    %442 = arith.negf %441 : vector<2x16xf32>
    %443 = math.exp %442 : vector<2x16xf32>
    %cst_114 = arith.constant 1.000000e+00 : f32
    %444 = vector.broadcast %cst_114 : f32 to vector<2x16xf32>
    %445 = arith.addf %444, %443 : vector<2x16xf32>
    %446 = arith.divf %444, %445 : vector<2x16xf32>
    %447 = arith.mulf %438, %381 : vector<2x16xf32>
    %448 = arith.mulf %432, %440 : vector<2x16xf32>
    %449 = arith.addf %447, %448 : vector<2x16xf32>
    %450 = math.tanh %449 : vector<2x16xf32>
    %451 = arith.mulf %446, %450 : vector<2x16xf32>
    %452 = vector.extract_strided_slice %1 {offsets = [0, 6, 0], sizes = [2, 1, 24], strides = [1, 1, 1]} : vector<2x8x24xf32> to vector<2x1x24xf32>
    %453 = vector.shape_cast %452 : vector<2x1x24xf32> to vector<2x24xf32>
    %cst_115 = arith.constant dense<0.000000e+00> : vector<2x64xf32>
    %454 = tpu.matmul %453, %5, %cst_115 {dimension_numbers = #tpu.dot_dimension_numbers<[1], [0], [0], [1], [0, 0, 1, 1], [], []>} : vector<2x24xf32>, vector<24x64xf32>, vector<2x64xf32> -> vector<2x64xf32>
    %cst_116 = arith.constant dense<0.000000e+00> : vector<2x64xf32>
    %455 = tpu.matmul %415, %6, %cst_116 {dimension_numbers = #tpu.dot_dimension_numbers<[1], [0], [0], [1], [0, 0, 1, 1], [], []>} : vector<2x16xf32>, vector<16x64xf32>, vector<2x64xf32> -> vector<2x64xf32>
    %456 = arith.addf %454, %455 : vector<2x64xf32>
    %457 = vector.broadcast %7 : vector<1x64xf32> to vector<2x64xf32>
    %458 = arith.addf %456, %457 : vector<2x64xf32>
    %459 = vector.extract_strided_slice %458 {offsets = [0, 0], sizes = [2, 16], strides = [1, 1]} : vector<2x64xf32> to vector<2x16xf32>
    %460 = arith.negf %459 : vector<2x16xf32>
    %461 = math.exp %460 : vector<2x16xf32>
    %cst_117 = arith.constant 1.000000e+00 : f32
    %462 = vector.broadcast %cst_117 : f32 to vector<2x16xf32>
    %463 = arith.addf %462, %461 : vector<2x16xf32>
    %464 = arith.divf %462, %463 : vector<2x16xf32>
    %465 = vector.extract_strided_slice %458 {offsets = [0, 16], sizes = [2, 16], strides = [1, 1]} : vector<2x64xf32> to vector<2x16xf32>
    %466 = arith.negf %465 : vector<2x16xf32>
    %467 = math.exp %466 : vector<2x16xf32>
    %cst_118 = arith.constant 1.000000e+00 : f32
    %468 = vector.broadcast %cst_118 : f32 to vector<2x16xf32>
    %469 = arith.addf %468, %467 : vector<2x16xf32>
    %470 = arith.divf %468, %469 : vector<2x16xf32>
    %471 = vector.extract_strided_slice %458 {offsets = [0, 32], sizes = [2, 16], strides = [1, 1]} : vector<2x64xf32> to vector<2x16xf32>
    %472 = math.tanh %471 : vector<2x16xf32>
    %473 = vector.extract_strided_slice %458 {offsets = [0, 48], sizes = [2, 16], strides = [1, 1]} : vector<2x64xf32> to vector<2x16xf32>
    %474 = arith.negf %473 : vector<2x16xf32>
    %475 = math.exp %474 : vector<2x16xf32>
    %cst_119 = arith.constant 1.000000e+00 : f32
    %476 = vector.broadcast %cst_119 : f32 to vector<2x16xf32>
    %477 = arith.addf %476, %475 : vector<2x16xf32>
    %478 = arith.divf %476, %477 : vector<2x16xf32>
    %479 = arith.mulf %470, %413 : vector<2x16xf32>
    %480 = arith.mulf %464, %472 : vector<2x16xf32>
    %481 = arith.addf %479, %480 : vector<2x16xf32>
    %482 = math.tanh %481 : vector<2x16xf32>
    %483 = arith.mulf %478, %482 : vector<2x16xf32>
    %484 = vector.shape_cast %483 : vector<2x16xf32> to vector<2x1x16xf32>
    %c0_120 = arith.constant 0 : index
    %c6 = arith.constant 6 : index
    %c0_121 = arith.constant 0 : index
    %485 = vector.load %arg8[%c0_120, %c6, %c0_121] : memref<2x8x32xf32, #tpu.memory_space<vmem>>, vector<2x1x16xf32>
    tpu.vector_store %arg8[%c0_120, %c6, %c0_121], %484 {strides = array<i32>} : memref<2x8x32xf32, #tpu.memory_space<vmem>>, vector<2x1x16xf32>,
    %486 = vector.shape_cast %451 : vector<2x16xf32> to vector<2x1x16xf32>
    %c0_122 = arith.constant 0 : index
    %c6_123 = arith.constant 6 : index
    %c16_124 = arith.constant 16 : index
    %487 = vector.load %arg8[%c0_122, %c6_123, %c16_124] : memref<2x8x32xf32, #tpu.memory_space<vmem>>, vector<2x1x16xf32>
    tpu.vector_store %arg8[%c0_122, %c6_123, %c16_124], %486 {strides = array<i32>} : memref<2x8x32xf32, #tpu.memory_space<vmem>>, vector<2x1x16xf32>,
    %488 = vector.extract_strided_slice %0 {offsets = [0, 7, 0], sizes = [2, 1, 20], strides = [1, 1, 1]} : vector<2x8x20xf32> to vector<2x1x20xf32>
    %489 = vector.shape_cast %488 : vector<2x1x20xf32> to vector<2x20xf32>
    %cst_125 = arith.constant dense<0.000000e+00> : vector<2x64xf32>
    %490 = tpu.matmul %489, %2, %cst_125 {dimension_numbers = #tpu.dot_dimension_numbers<[1], [0], [0], [1], [0, 0, 1, 1], [], []>} : vector<2x20xf32>, vector<20x64xf32>, vector<2x64xf32> -> vector<2x64xf32>
    %cst_126 = arith.constant dense<0.000000e+00> : vector<2x64xf32>
    %491 = tpu.matmul %451, %3, %cst_126 {dimension_numbers = #tpu.dot_dimension_numbers<[1], [0], [0], [1], [0, 0, 1, 1], [], []>} : vector<2x16xf32>, vector<16x64xf32>, vector<2x64xf32> -> vector<2x64xf32>
    %492 = arith.addf %490, %491 : vector<2x64xf32>
    %493 = vector.broadcast %4 : vector<1x64xf32> to vector<2x64xf32>
    %494 = arith.addf %492, %493 : vector<2x64xf32>
    %495 = vector.extract_strided_slice %494 {offsets = [0, 0], sizes = [2, 16], strides = [1, 1]} : vector<2x64xf32> to vector<2x16xf32>
    %496 = arith.negf %495 : vector<2x16xf32>
    %497 = math.exp %496 : vector<2x16xf32>
    %cst_127 = arith.constant 1.000000e+00 : f32
    %498 = vector.broadcast %cst_127 : f32 to vector<2x16xf32>
    %499 = arith.addf %498, %497 : vector<2x16xf32>
    %500 = arith.divf %498, %499 : vector<2x16xf32>
    %501 = vector.extract_strided_slice %494 {offsets = [0, 16], sizes = [2, 16], strides = [1, 1]} : vector<2x64xf32> to vector<2x16xf32>
    %502 = arith.negf %501 : vector<2x16xf32>
    %503 = math.exp %502 : vector<2x16xf32>
    %cst_128 = arith.constant 1.000000e+00 : f32
    %504 = vector.broadcast %cst_128 : f32 to vector<2x16xf32>
    %505 = arith.addf %504, %503 : vector<2x16xf32>
    %506 = arith.divf %504, %505 : vector<2x16xf32>
    %507 = vector.extract_strided_slice %494 {offsets = [0, 32], sizes = [2, 16], strides = [1, 1]} : vector<2x64xf32> to vector<2x16xf32>
    %508 = math.tanh %507 : vector<2x16xf32>
    %509 = vector.extract_strided_slice %494 {offsets = [0, 48], sizes = [2, 16], strides = [1, 1]} : vector<2x64xf32> to vector<2x16xf32>
    %510 = arith.negf %509 : vector<2x16xf32>
    %511 = math.exp %510 : vector<2x16xf32>
    %cst_129 = arith.constant 1.000000e+00 : f32
    %512 = vector.broadcast %cst_129 : f32 to vector<2x16xf32>
    %513 = arith.addf %512, %511 : vector<2x16xf32>
    %514 = arith.divf %512, %513 : vector<2x16xf32>
    %515 = arith.mulf %506, %449 : vector<2x16xf32>
    %516 = arith.mulf %500, %508 : vector<2x16xf32>
    %517 = arith.addf %515, %516 : vector<2x16xf32>
    %518 = math.tanh %517 : vector<2x16xf32>
    %519 = arith.mulf %514, %518 : vector<2x16xf32>
    %520 = vector.extract_strided_slice %1 {offsets = [0, 7, 0], sizes = [2, 1, 24], strides = [1, 1, 1]} : vector<2x8x24xf32> to vector<2x1x24xf32>
    %521 = vector.shape_cast %520 : vector<2x1x24xf32> to vector<2x24xf32>
    %cst_130 = arith.constant dense<0.000000e+00> : vector<2x64xf32>
    %522 = tpu.matmul %521, %5, %cst_130 {dimension_numbers = #tpu.dot_dimension_numbers<[1], [0], [0], [1], [0, 0, 1, 1], [], []>} : vector<2x24xf32>, vector<24x64xf32>, vector<2x64xf32> -> vector<2x64xf32>
    %cst_131 = arith.constant dense<0.000000e+00> : vector<2x64xf32>
    %523 = tpu.matmul %483, %6, %cst_131 {dimension_numbers = #tpu.dot_dimension_numbers<[1], [0], [0], [1], [0, 0, 1, 1], [], []>} : vector<2x16xf32>, vector<16x64xf32>, vector<2x64xf32> -> vector<2x64xf32>
    %524 = arith.addf %522, %523 : vector<2x64xf32>
    %525 = vector.broadcast %7 : vector<1x64xf32> to vector<2x64xf32>
    %526 = arith.addf %524, %525 : vector<2x64xf32>
    %527 = vector.extract_strided_slice %526 {offsets = [0, 0], sizes = [2, 16], strides = [1, 1]} : vector<2x64xf32> to vector<2x16xf32>
    %528 = arith.negf %527 : vector<2x16xf32>
    %529 = math.exp %528 : vector<2x16xf32>
    %cst_132 = arith.constant 1.000000e+00 : f32
    %530 = vector.broadcast %cst_132 : f32 to vector<2x16xf32>
    %531 = arith.addf %530, %529 : vector<2x16xf32>
    %532 = arith.divf %530, %531 : vector<2x16xf32>
    %533 = vector.extract_strided_slice %526 {offsets = [0, 16], sizes = [2, 16], strides = [1, 1]} : vector<2x64xf32> to vector<2x16xf32>
    %534 = arith.negf %533 : vector<2x16xf32>
    %535 = math.exp %534 : vector<2x16xf32>
    %cst_133 = arith.constant 1.000000e+00 : f32
    %536 = vector.broadcast %cst_133 : f32 to vector<2x16xf32>
    %537 = arith.addf %536, %535 : vector<2x16xf32>
    %538 = arith.divf %536, %537 : vector<2x16xf32>
    %539 = vector.extract_strided_slice %526 {offsets = [0, 32], sizes = [2, 16], strides = [1, 1]} : vector<2x64xf32> to vector<2x16xf32>
    %540 = math.tanh %539 : vector<2x16xf32>
    %541 = vector.extract_strided_slice %526 {offsets = [0, 48], sizes = [2, 16], strides = [1, 1]} : vector<2x64xf32> to vector<2x16xf32>
    %542 = arith.negf %541 : vector<2x16xf32>
    %543 = math.exp %542 : vector<2x16xf32>
    %cst_134 = arith.constant 1.000000e+00 : f32
    %544 = vector.broadcast %cst_134 : f32 to vector<2x16xf32>
    %545 = arith.addf %544, %543 : vector<2x16xf32>
    %546 = arith.divf %544, %545 : vector<2x16xf32>
    %547 = arith.mulf %538, %481 : vector<2x16xf32>
    %548 = arith.mulf %532, %540 : vector<2x16xf32>
    %549 = arith.addf %547, %548 : vector<2x16xf32>
    %550 = math.tanh %549 : vector<2x16xf32>
    %551 = arith.mulf %546, %550 : vector<2x16xf32>
    %552 = vector.shape_cast %551 : vector<2x16xf32> to vector<2x1x16xf32>
    %c0_135 = arith.constant 0 : index
    %c7 = arith.constant 7 : index
    %c0_136 = arith.constant 0 : index
    %553 = vector.load %arg8[%c0_135, %c7, %c0_136] : memref<2x8x32xf32, #tpu.memory_space<vmem>>, vector<2x1x16xf32>
    tpu.vector_store %arg8[%c0_135, %c7, %c0_136], %552 {strides = array<i32>} : memref<2x8x32xf32, #tpu.memory_space<vmem>>, vector<2x1x16xf32>,
    %554 = vector.shape_cast %519 : vector<2x16xf32> to vector<2x1x16xf32>
    %c0_137 = arith.constant 0 : index
    %c7_138 = arith.constant 7 : index
    %c16_139 = arith.constant 16 : index
    %555 = vector.load %arg8[%c0_137, %c7_138, %c16_139] : memref<2x8x32xf32, #tpu.memory_space<vmem>>, vector<2x1x16xf32>
    tpu.vector_store %arg8[%c0_137, %c7_138, %c16_139], %554 {strides = array<i32>} : memref<2x8x32xf32, #tpu.memory_space<vmem>>, vector<2x1x16xf32>,
    return
  }
}

module attributes {stable_mosaic.version = 11 : i64} {
  func.func @_classifier_kernel(%arg0: memref<2x256xf32, #tpu.memory_space<vmem>>, %arg1: memref<2x1024xf32, #tpu.memory_space<vmem>>, %arg2: memref<1280x64xf32, #tpu.memory_space<vmem>>, %arg3: memref<1x64xf32, #tpu.memory_space<vmem>>, %arg4: memref<64x32xf32, #tpu.memory_space<vmem>>, %arg5: memref<1x32xf32, #tpu.memory_space<vmem>>, %arg6: memref<32x6xf32, #tpu.memory_space<vmem>>, %arg7: memref<1x6xf32, #tpu.memory_space<vmem>>, %arg8: memref<2x6xf32, #tpu.memory_space<vmem>>, %arg9: memref<2x6xf32, #tpu.memory_space<vmem>>) attributes {dimension_semantics = [], scalar_prefetch = 0 : i64, scratch_operands = 0 : i64, tpu.core_type = #tpu.core_type<tc>} {
    %c0 = arith.constant 0 : index
    %c0_0 = arith.constant 0 : index
    %0 = vector.load %arg2[%c0, %c0_0] : memref<1280x64xf32, #tpu.memory_space<vmem>>, vector<1280x64xf32>
    %c0_1 = arith.constant 0 : index
    %c0_2 = arith.constant 0 : index
    %1 = vector.load %arg3[%c0_1, %c0_2] : memref<1x64xf32, #tpu.memory_space<vmem>>, vector<1x64xf32>
    %c0_3 = arith.constant 0 : index
    %c0_4 = arith.constant 0 : index
    %2 = vector.load %arg0[%c0_3, %c0_4] : memref<2x256xf32, #tpu.memory_space<vmem>>, vector<2x256xf32>
    %3 = vector.extract_strided_slice %0 {offsets = [0, 0], sizes = [256, 64], strides = [1, 1]} : vector<1280x64xf32> to vector<256x64xf32>
    %cst = arith.constant dense<0.000000e+00> : vector<2x64xf32>
    %4 = tpu.matmul %2, %3, %cst {dimension_numbers = #tpu.dot_dimension_numbers<[1], [0], [0], [1], [0, 0, 1, 1], [], []>} : vector<2x256xf32>, vector<256x64xf32>, vector<2x64xf32> -> vector<2x64xf32>
    %c0_5 = arith.constant 0 : index
    %c0_6 = arith.constant 0 : index
    %5 = vector.load %arg1[%c0_5, %c0_6] : memref<2x1024xf32, #tpu.memory_space<vmem>>, vector<2x1024xf32>
    %6 = vector.extract_strided_slice %0 {offsets = [256, 0], sizes = [1024, 64], strides = [1, 1]} : vector<1280x64xf32> to vector<1024x64xf32>
    %cst_7 = arith.constant dense<0.000000e+00> : vector<2x64xf32>
    %7 = tpu.matmul %5, %6, %cst_7 {dimension_numbers = #tpu.dot_dimension_numbers<[1], [0], [0], [1], [0, 0, 1, 1], [], []>} : vector<2x1024xf32>, vector<1024x64xf32>, vector<2x64xf32> -> vector<2x64xf32>
    %8 = arith.addf %4, %7 : vector<2x64xf32>
    %9 = vector.broadcast %1 : vector<1x64xf32> to vector<2x64xf32>
    %10 = arith.addf %8, %9 : vector<2x64xf32>
    %cst_8 = arith.constant 0.000000e+00 : f32
    %11 = vector.broadcast %cst_8 : f32 to vector<2x64xf32>
    %12 = arith.maximumf %10, %11 : vector<2x64xf32>
    %c0_9 = arith.constant 0 : index
    %c0_10 = arith.constant 0 : index
    %13 = vector.load %arg4[%c0_9, %c0_10] : memref<64x32xf32, #tpu.memory_space<vmem>>, vector<64x32xf32>
    %c0_11 = arith.constant 0 : index
    %c0_12 = arith.constant 0 : index
    %14 = vector.load %arg5[%c0_11, %c0_12] : memref<1x32xf32, #tpu.memory_space<vmem>>, vector<1x32xf32>
    %cst_13 = arith.constant dense<0.000000e+00> : vector<2x32xf32>
    %15 = tpu.matmul %12, %13, %cst_13 {dimension_numbers = #tpu.dot_dimension_numbers<[1], [0], [0], [1], [0, 0, 1, 1], [], []>} : vector<2x64xf32>, vector<64x32xf32>, vector<2x32xf32> -> vector<2x32xf32>
    %16 = vector.broadcast %14 : vector<1x32xf32> to vector<2x32xf32>
    %17 = arith.addf %15, %16 : vector<2x32xf32>
    %cst_14 = arith.constant 0.000000e+00 : f32
    %18 = vector.broadcast %cst_14 : f32 to vector<2x32xf32>
    %19 = arith.maximumf %17, %18 : vector<2x32xf32>
    %c0_15 = arith.constant 0 : index
    %c0_16 = arith.constant 0 : index
    %20 = vector.load %arg6[%c0_15, %c0_16] : memref<32x6xf32, #tpu.memory_space<vmem>>, vector<32x6xf32>
    %c0_17 = arith.constant 0 : index
    %c0_18 = arith.constant 0 : index
    %21 = vector.load %arg7[%c0_17, %c0_18] : memref<1x6xf32, #tpu.memory_space<vmem>>, vector<1x6xf32>
    %cst_19 = arith.constant dense<0.000000e+00> : vector<2x6xf32>
    %22 = tpu.matmul %19, %20, %cst_19 {dimension_numbers = #tpu.dot_dimension_numbers<[1], [0], [0], [1], [0, 0, 1, 1], [], []>} : vector<2x32xf32>, vector<32x6xf32>, vector<2x6xf32> -> vector<2x6xf32>
    %23 = vector.broadcast %21 : vector<1x6xf32> to vector<2x6xf32>
    %24 = arith.addf %22, %23 : vector<2x6xf32>
    %c0_20 = arith.constant 0 : index
    %c0_21 = arith.constant 0 : index
    %25 = vector.load %arg8[%c0_20, %c0_21] : memref<2x6xf32, #tpu.memory_space<vmem>>, vector<2x6xf32>
    tpu.vector_store %arg8[%c0_20, %c0_21], %24 {strides = array<i32>} : memref<2x6xf32, #tpu.memory_space<vmem>>, vector<2x6xf32>,
    %cst_22 = arith.constant dense<0xFF800000> : vector<2xf32>
    %26 = vector.multi_reduction <maximumf>, %24, %cst_22 [1] : vector<2x6xf32> to vector<2xf32>
    %27 = vector.shape_cast %26 : vector<2xf32> to vector<2x1xf32>
    %28 = vector.broadcast %27 : vector<2x1xf32> to vector<2x6xf32>
    %29 = arith.subf %24, %28 : vector<2x6xf32>
    %30 = math.exp %29 : vector<2x6xf32>
    %cst_23 = arith.constant dense<0.000000e+00> : vector<2xf32>
    %31 = vector.multi_reduction <add>, %30, %cst_23 [1] : vector<2x6xf32> to vector<2xf32>
    %32 = vector.shape_cast %31 : vector<2xf32> to vector<2x1xf32>
    %33 = vector.broadcast %32 : vector<2x1xf32> to vector<2x6xf32>
    %34 = arith.divf %30, %33 : vector<2x6xf32>
    %c0_24 = arith.constant 0 : index
    %c0_25 = arith.constant 0 : index
    %35 = vector.load %arg9[%c0_24, %c0_25] : memref<2x6xf32, #tpu.memory_space<vmem>>, vector<2x6xf32>
    tpu.vector_store %arg9[%c0_24, %c0_25], %34 {strides = array<i32>} : memref<2x6xf32, #tpu.memory_space<vmem>>, vector<2x6xf32>,
    return
  }
}

</mosaic_0001>

<llo_original>
// kernel: custom_model_forward.5
$region0: #{custom_model_forward.5}
  #allocation0 [shape = 'u32[]', space=smem, size = 0x4, offset = 0x4, fixed_abs, tag = 'smem constant byte address 0x4 - core index']
  #allocation1 [shape = 'u32[72,128]{1,0:T(1,128)}', space=vmem, size = 0x9000, scoped, tag = 'internal scratch']
  %s0 = inlined_call_operand.vmem [shape: f32[2,256], index: 0, kind: input, shape index: {}]
  %s1 = inlined_call_operand.vmem [shape: f32[2,1024], index: 1, kind: input, shape index: {}]
  %s2 = inlined_call_operand.vmem [shape: f32[1280,64], index: 2, kind: input, shape index: {}]
  %s3 = inlined_call_operand.vmem [shape: f32[1,64], index: 3, kind: input, shape index: {}]
  %s4 = inlined_call_operand.vmem [shape: f32[64,32], index: 4, kind: input, shape index: {}]
  %s5 = inlined_call_operand.vmem [shape: f32[1,32], index: 5, kind: input, shape index: {}]
  %s6 = inlined_call_operand.vmem [shape: f32[32,6], index: 6, kind: input, shape index: {}]
  %s7 = inlined_call_operand.vmem [shape: f32[1,6], index: 7, kind: input, shape index: {}]
  %s8 = inlined_call_operand.hbm [shape: f32[2,6], index: 8, kind: output, shape index: {0}]
  %s9 = inlined_call_operand.hbm [shape: f32[2,6], index: 9, kind: output, shape index: {1}]
  %10 = xla_tuple %s8, %s9
  %s11 = sld [smem:[#allocation0]]
  $region50: #{custom_model_forward.5} parent=0
    _
  %s13 = ssub.s32 1, %s11
  %s14 = scalar_select 0, %s13, %s11
  $region1: #{custom_model_forward.5} parent=0
    #allocation2 [shape = 'u8[1024]{0}', space=vmem, size = 0x400, scoped, tag = 'output window, operand 0, single buffered']
    #allocation3 [shape = 's32[1]{0}', space=sflag, size = 0x4, scoped, tag = 'scoped memory for custom_model_forward.5']
    #allocation4 [shape = 'u8[1024]{0}', space=vmem, size = 0x400, scoped, tag = 'output window, operand 1, single buffered']
    #allocation5 [shape = 's32[1]{0}', space=sflag, size = 0x4, scoped, tag = 'scoped memory for custom_model_forward.5']
    %15 = vsyncpa [#allocation3], 0
    %16 = vsyncpa [#allocation5], 0
    // Predicated region
    $region2: #{custom_model_forward.5} parent=1 // pred_check
      _
    $region3: #{custom_model_forward.5} parent=1 // pred_check_branch
      %18 = sbr.rel (0) target = $region5
    $region4: #{custom_model_forward.5} parent=1 // pred_region
      _
    $region5: #{custom_model_forward.5} parent=1 // pred_fallthru
      _
    // Predicated region
    $region6: #{custom_model_forward.5} parent=1 // pred_check
      _
    $region7: #{custom_model_forward.5} parent=1 // pred_check_branch
      %20 = sbr.rel (0) target = $region9
    $region8: #{custom_model_forward.5} parent=1 // pred_region
      _
    $region9: #{custom_model_forward.5} parent=1 // pred_fallthru
      _
    // Predicated region
    $region10: #{custom_model_forward.5} parent=1 // pred_check
      _
    $region11: #{custom_model_forward.5} parent=1 // pred_check_branch
      %22 = sbr.rel (0) target = $region13
    $region12: #{custom_model_forward.5} parent=1 // pred_region
      _
    $region13: #{custom_model_forward.5} parent=1 // pred_fallthru
      _
    // Predicated region
    $region14: #{custom_model_forward.5} parent=1 // pred_check
      _
    $region15: #{custom_model_forward.5} parent=1 // pred_check_branch
      %24 = sbr.rel (0) target = $region17
    $region16: #{custom_model_forward.5} parent=1 // pred_region
      _
    $region17: #{custom_model_forward.5} parent=1 // pred_fallthru
      _
    // Predicated region
    $region18: #{custom_model_forward.5} parent=1 // pred_check
      _
    $region19: #{custom_model_forward.5} parent=1 // pred_check_branch
      %26 = sbr.rel (0) target = $region21
    $region20: #{custom_model_forward.5} parent=1 // pred_region
      _
    $region21: #{custom_model_forward.5} parent=1 // pred_fallthru
      _
    // Predicated region
    $region22: #{custom_model_forward.5} parent=1 // pred_check
      _
    $region23: #{custom_model_forward.5} parent=1 // pred_check_branch
      %28 = sbr.rel (0) target = $region25
    $region24: #{custom_model_forward.5} parent=1 // pred_region
      _
    $region25: #{custom_model_forward.5} parent=1 // pred_fallthru
      _
    // Predicated region
    $region26: #{custom_model_forward.5} parent=1 // pred_check
      _
    $region27: #{custom_model_forward.5} parent=1 // pred_check_branch
      %30 = sbr.rel (0) target = $region29
    $region28: #{custom_model_forward.5} parent=1 // pred_region
      _
    $region29: #{custom_model_forward.5} parent=1 // pred_fallthru
      _
    // Predicated region
    $region30: #{custom_model_forward.5} parent=1 // pred_check
      _
    $region31: #{custom_model_forward.5} parent=1 // pred_check_branch
      %32 = sbr.rel (0) target = $region33
    $region32: #{custom_model_forward.5} parent=1 // pred_region
      _
    $region33: #{custom_model_forward.5} parent=1 // pred_fallthru
      _
    %v33 = vld [vmem:[%s2] sm:$0xff]
    %v34 = vld [vmem:[%s2 + $0x8] sm:$0xff]
    %v35 = vld [vmem:[%s2 + $0x10] sm:$0xff]
    %v36 = vld [vmem:[%s2 + $0x18] sm:$0xff]
    %v37 = vld [vmem:[%s2 + $0x20] sm:$0xff]
    %v38 = vld [vmem:[%s2 + $0x28] sm:$0xff]
    %v39 = vld [vmem:[%s2 + $0x30] sm:$0xff]
    %v40 = vld [vmem:[%s2 + $0x38] sm:$0xff]
    %v41 = vld [vmem:[%s2 + $0x40] sm:$0xff]
    %v42 = vld [vmem:[%s2 + $0x48] sm:$0xff]
    %v43 = vld [vmem:[%s2 + $0x50] sm:$0xff]
    %v44 = vld [vmem:[%s2 + $0x58] sm:$0xff]
    %v45 = vld [vmem:[%s2 + $0x60] sm:$0xff]
    %v46 = vld [vmem:[%s2 + $0x68] sm:$0xff]
    %v47 = vld [vmem:[%s2 + $0x70] sm:$0xff]
    %v48 = vld [vmem:[%s2 + $0x78] sm:$0xff]
    %v49 = vld [vmem:[%s2 + $0x80] sm:$0xff]
    %v50 = vld [vmem:[%s2 + $0x88] sm:$0xff]
    %v51 = vld [vmem:[%s2 + $0x90] sm:$0xff]
    %v52 = vld [vmem:[%s2 + $0x98] sm:$0xff]
    %v53 = vld [vmem:[%s2 + $0xa0] sm:$0xff]
    %v54 = vld [vmem:[%s2 + $0xa8] sm:$0xff]
    %v55 = vld [vmem:[%s2 + $0xb0] sm:$0xff]
    %v56 = vld [vmem:[%s2 + $0xb8] sm:$0xff]
    %v57 = vld [vmem:[%s2 + $0xc0] sm:$0xff]
    %v58 = vld [vmem:[%s2 + $0xc8] sm:$0xff]
    %v59 = vld [vmem:[%s2 + $0xd0] sm:$0xff]
    %v60 = vld [vmem:[%s2 + $0xd8] sm:$0xff]
    %v61 = vld [vmem:[%s2 + $0xe0] sm:$0xff]
    %v62 = vld [vmem:[%s2 + $0xe8] sm:$0xff]
    %v63 = vld [vmem:[%s2 + $0xf0] sm:$0xff]
    %v64 = vld [vmem:[%s2 + $0xf8] sm:$0xff]
    %v65 = vld [vmem:[%s2 + $0x100] sm:$0xff]
    %v66 = vld [vmem:[%s2 + $0x108] sm:$0xff]
    %v67 = vld [vmem:[%s2 + $0x110] sm:$0xff]
    %v68 = vld [vmem:[%s2 + $0x118] sm:$0xff]
    %v69 = vld [vmem:[%s2 + $0x120] sm:$0xff]
    %v70 = vld [vmem:[%s2 + $0x128] sm:$0xff]
    %v71 = vld [vmem:[%s2 + $0x130] sm:$0xff]
    %v72 = vld [vmem:[%s2 + $0x138] sm:$0xff]
    %v73 = vld [vmem:[%s2 + $0x140] sm:$0xff]
    %v74 = vld [vmem:[%s2 + $0x148] sm:$0xff]
    %v75 = vld [vmem:[%s2 + $0x150] sm:$0xff]
    %v76 = vld [vmem:[%s2 + $0x158] sm:$0xff]
    %v77 = vld [vmem:[%s2 + $0x160] sm:$0xff]
    %v78 = vld [vmem:[%s2 + $0x168] sm:$0xff]
    %v79 = vld [vmem:[%s2 + $0x170] sm:$0xff]
    %v80 = vld [vmem:[%s2 + $0x178] sm:$0xff]
    %v81 = vld [vmem:[%s2 + $0x180] sm:$0xff]
    %v82 = vld [vmem:[%s2 + $0x188] sm:$0xff]
    %v83 = vld [vmem:[%s2 + $0x190] sm:$0xff]
    %v84 = vld [vmem:[%s2 + $0x198] sm:$0xff]
    %v85 = vld [vmem:[%s2 + $0x1a0] sm:$0xff]
    %v86 = vld [vmem:[%s2 + $0x1a8] sm:$0xff]
    %v87 = vld [vmem:[%s2 + $0x1b0] sm:$0xff]
    %v88 = vld [vmem:[%s2 + $0x1b8] sm:$0xff]
    %v89 = vld [vmem:[%s2 + $0x1c0] sm:$0xff]
    %v90 = vld [vmem:[%s2 + $0x1c8] sm:$0xff]
    %v91 = vld [vmem:[%s2 + $0x1d0] sm:$0xff]
    %v92 = vld [vmem:[%s2 + $0x1d8] sm:$0xff]
    %v93 = vld [vmem:[%s2 + $0x1e0] sm:$0xff]
    %v94 = vld [vmem:[%s2 + $0x1e8] sm:$0xff]
    %v95 = vld [vmem:[%s2 + $0x1f0] sm:$0xff]
    %v96 = vld [vmem:[%s2 + $0x1f8] sm:$0xff]
    %v97 = vld [vmem:[%s2 + $0x200] sm:$0xff]
    %v98 = vld [vmem:[%s2 + $0x208] sm:$0xff]
    %v99 = vld [vmem:[%s2 + $0x210] sm:$0xff]
    %v100 = vld [vmem:[%s2 + $0x218] sm:$0xff]
    %v101 = vld [vmem:[%s2 + $0x220] sm:$0xff]
    %v102 = vld [vmem:[%s2 + $0x228] sm:$0xff]
    %v103 = vld [vmem:[%s2 + $0x230] sm:$0xff]
    %v104 = vld [vmem:[%s2 + $0x238] sm:$0xff]
    %v105 = vld [vmem:[%s2 + $0x240] sm:$0xff]
    %v106 = vld [vmem:[%s2 + $0x248] sm:$0xff]
    %v107 = vld [vmem:[%s2 + $0x250] sm:$0xff]
    %v108 = vld [vmem:[%s2 + $0x258] sm:$0xff]
    %v109 = vld [vmem:[%s2 + $0x260] sm:$0xff]
    %v110 = vld [vmem:[%s2 + $0x268] sm:$0xff]
    %v111 = vld [vmem:[%s2 + $0x270] sm:$0xff]
    %v112 = vld [vmem:[%s2 + $0x278] sm:$0xff]
    %v113 = vld [vmem:[%s2 + $0x280] sm:$0xff]
    %v114 = vld [vmem:[%s2 + $0x288] sm:$0xff]
    %v115 = vld [vmem:[%s2 + $0x290] sm:$0xff]
    %v116 = vld [vmem:[%s2 + $0x298] sm:$0xff]
    %v117 = vld [vmem:[%s2 + $0x2a0] sm:$0xff]
    %v118 = vld [vmem:[%s2 + $0x2a8] sm:$0xff]
    %v119 = vld [vmem:[%s2 + $0x2b0] sm:$0xff]
    %v120 = vld [vmem:[%s2 + $0x2b8] sm:$0xff]
    %v121 = vld [vmem:[%s2 + $0x2c0] sm:$0xff]
    %v122 = vld [vmem:[%s2 + $0x2c8] sm:$0xff]
    %v123 = vld [vmem:[%s2 + $0x2d0] sm:$0xff]
    %v124 = vld [vmem:[%s2 + $0x2d8] sm:$0xff]
    %v125 = vld [vmem:[%s2 + $0x2e0] sm:$0xff]
    %v126 = vld [vmem:[%s2 + $0x2e8] sm:$0xff]
    %v127 = vld [vmem:[%s2 + $0x2f0] sm:$0xff]
    %v128 = vld [vmem:[%s2 + $0x2f8] sm:$0xff]
    %v129 = vld [vmem:[%s2 + $0x300] sm:$0xff]
    %v130 = vld [vmem:[%s2 + $0x308] sm:$0xff]
    %v131 = vld [vmem:[%s2 + $0x310] sm:$0xff]
    %v132 = vld [vmem:[%s2 + $0x318] sm:$0xff]
    %v133 = vld [vmem:[%s2 + $0x320] sm:$0xff]
    %v134 = vld [vmem:[%s2 + $0x328] sm:$0xff]
    %v135 = vld [vmem:[%s2 + $0x330] sm:$0xff]
    %v136 = vld [vmem:[%s2 + $0x338] sm:$0xff]
    %v137 = vld [vmem:[%s2 + $0x340] sm:$0xff]
    %v138 = vld [vmem:[%s2 + $0x348] sm:$0xff]
    %v139 = vld [vmem:[%s2 + $0x350] sm:$0xff]
    %v140 = vld [vmem:[%s2 + $0x358] sm:$0xff]
    %v141 = vld [vmem:[%s2 + $0x360] sm:$0xff]
    %v142 = vld [vmem:[%s2 + $0x368] sm:$0xff]
    %v143 = vld [vmem:[%s2 + $0x370] sm:$0xff]
    %v144 = vld [vmem:[%s2 + $0x378] sm:$0xff]
    %v145 = vld [vmem:[%s2 + $0x380] sm:$0xff]
    %v146 = vld [vmem:[%s2 + $0x388] sm:$0xff]
    %v147 = vld [vmem:[%s2 + $0x390] sm:$0xff]
    %v148 = vld [vmem:[%s2 + $0x398] sm:$0xff]
    %v149 = vld [vmem:[%s2 + $0x3a0] sm:$0xff]
    %v150 = vld [vmem:[%s2 + $0x3a8] sm:$0xff]
    %v151 = vld [vmem:[%s2 + $0x3b0] sm:$0xff]
    %v152 = vld [vmem:[%s2 + $0x3b8] sm:$0xff]
    %v153 = vld [vmem:[%s2 + $0x3c0] sm:$0xff]
    %v154 = vld [vmem:[%s2 + $0x3c8] sm:$0xff]
    %v155 = vld [vmem:[%s2 + $0x3d0] sm:$0xff]
    %v156 = vld [vmem:[%s2 + $0x3d8] sm:$0xff]
    %v157 = vld [vmem:[%s2 + $0x3e0] sm:$0xff]
    %v158 = vld [vmem:[%s2 + $0x3e8] sm:$0xff]
    %v159 = vld [vmem:[%s2 + $0x3f0] sm:$0xff]
    %v160 = vld [vmem:[%s2 + $0x3f8] sm:$0xff]
    %v161 = vld [vmem:[%s2 + $0x400] sm:$0xff]
    %v162 = vld [vmem:[%s2 + $0x408] sm:$0xff]
    %v163 = vld [vmem:[%s2 + $0x410] sm:$0xff]
    %v164 = vld [vmem:[%s2 + $0x418] sm:$0xff]
    %v165 = vld [vmem:[%s2 + $0x420] sm:$0xff]
    %v166 = vld [vmem:[%s2 + $0x428] sm:$0xff]
    %v167 = vld [vmem:[%s2 + $0x430] sm:$0xff]
    %v168 = vld [vmem:[%s2 + $0x438] sm:$0xff]
    %v169 = vld [vmem:[%s2 + $0x440] sm:$0xff]
    %v170 = vld [vmem:[%s2 + $0x448] sm:$0xff]
    %v171 = vld [vmem:[%s2 + $0x450] sm:$0xff]
    %v172 = vld [vmem:[%s2 + $0x458] sm:$0xff]
    %v173 = vld [vmem:[%s2 + $0x460] sm:$0xff]
    %v174 = vld [vmem:[%s2 + $0x468] sm:$0xff]
    %v175 = vld [vmem:[%s2 + $0x470] sm:$0xff]
    %v176 = vld [vmem:[%s2 + $0x478] sm:$0xff]
    %v177 = vld [vmem:[%s2 + $0x480] sm:$0xff]
    %v178 = vld [vmem:[%s2 + $0x488] sm:$0xff]
    %v179 = vld [vmem:[%s2 + $0x490] sm:$0xff]
    %v180 = vld [vmem:[%s2 + $0x498] sm:$0xff]
    %v181 = vld [vmem:[%s2 + $0x4a0] sm:$0xff]
    %v182 = vld [vmem:[%s2 + $0x4a8] sm:$0xff]
    %v183 = vld [vmem:[%s2 + $0x4b0] sm:$0xff]
    %v184 = vld [vmem:[%s2 + $0x4b8] sm:$0xff]
    %v185 = vld [vmem:[%s2 + $0x4c0] sm:$0xff]
    %v186 = vld [vmem:[%s2 + $0x4c8] sm:$0xff]
    %v187 = vld [vmem:[%s2 + $0x4d0] sm:$0xff]
    %v188 = vld [vmem:[%s2 + $0x4d8] sm:$0xff]
    %v189 = vld [vmem:[%s2 + $0x4e0] sm:$0xff]
    %v190 = vld [vmem:[%s2 + $0x4e8] sm:$0xff]
    %v191 = vld [vmem:[%s2 + $0x4f0] sm:$0xff]
    %v192 = vld [vmem:[%s2 + $0x4f8] sm:$0xff]
    %v193 = vld [vmem:[%s3] sm:$0x1]
    %v194 = vld [vmem:[%s0] sm:$0xf]
    %v195 = vld [vmem:[%s1] sm:$0xff]
    %v196 = vld [vmem:[%s1 + $0x8] sm:$0xff]
    %199 = vst [vmem:[#allocation1] ss:$4 sm:$0xff] %v195
    %s200 = scalar_lea.vmem [#allocation1], 32
    %201 = vst [vmem:[%s200] ss:$4 sm:$0xff] %v196
    %v202 = vld.sshfl [vmem:[#allocation1] sm:$0xff pattern:$0x73625140]
    %v203 = vld.sshfl [vmem:[#allocation1 + $0x8] sm:$0xff pattern:$0x73625140]
    %v204 = vld.sshfl [vmem:[#allocation1 + $0x10] sm:$0xff pattern:$0x73625140]
    %v205 = vld.sshfl [vmem:[#allocation1 + $0x18] sm:$0xff pattern:$0x73625140]
    %v206 = vld.sshfl [vmem:[#allocation1 + $0x20] sm:$0xff pattern:$0x73625140]
    %v207 = vld.sshfl [vmem:[#allocation1 + $0x28] sm:$0xff pattern:$0x73625140]
    %v208 = vld.sshfl [vmem:[#allocation1 + $0x30] sm:$0xff pattern:$0x73625140]
    %v209 = vld.sshfl [vmem:[#allocation1 + $0x38] sm:$0xff pattern:$0x73625140]
    %218 = vmatpush.msra.mxu0 %v80
    %219 = vmatpush.msra.mxu0 %v79
    %220 = vmatpush.msra.mxu0 %v78
    %221 = vmatpush.msra.mxu0 %v77
    %222 = vmatpush.msra.mxu0 %v76
    %223 = vmatpush.msra.mxu0 %v75
    %224 = vmatpush.msra.mxu0 %v74
    %225 = vmatpush.msra.mxu0 %v73
    %226 = vmatpush.msra.mxu0 %v72
    %227 = vmatpush.msra.mxu0 %v71
    %228 = vmatpush.msra.mxu0 %v70
    %229 = vmatpush.msra.mxu0 %v69
    %230 = vmatpush.msra.mxu0 %v68
    %231 = vmatpush.msra.mxu0 %v67
    %232 = vmatpush.msra.mxu0 %v66
    %233 = vmatpush.msra.mxu0 %v65
    %234 = vmatmul.f32.gmra.mxu0 %v202
    %v235 = vpop.f32.mrf.mxu0
    %v236 = vadd.f32 0.0, %v235
    %237 = vdwg.mxu0
    %238 = vmatpush.msra.mxu0 %v96
    %239 = vmatpush.msra.mxu0 %v95
    %240 = vmatpush.msra.mxu0 %v94
    %241 = vmatpush.msra.mxu0 %v93
    %242 = vmatpush.msra.mxu0 %v92
    %243 = vmatpush.msra.mxu0 %v91
    %244 = vmatpush.msra.mxu0 %v90
    %245 = vmatpush.msra.mxu0 %v89
    %246 = vmatpush.msra.mxu0 %v88
    %247 = vmatpush.msra.mxu0 %v87
    %248 = vmatpush.msra.mxu0 %v86
    %249 = vmatpush.msra.mxu0 %v85
    %250 = vmatpush.msra.mxu0 %v84
    %251 = vmatpush.msra.mxu0 %v83
    %252 = vmatpush.msra.mxu0 %v82
    %253 = vmatpush.msra.mxu0 %v81
    %254 = vmatmul.f32.gmra.mxu0 %v203
    %v255 = vpop.f32.mrf.mxu0
    %v256 = vadd.f32 %v236, %v255
    %257 = vdwg.mxu0
    %258 = vmatpush.msra.mxu0 %v112
    %259 = vmatpush.msra.mxu0 %v111
    %260 = vmatpush.msra.mxu0 %v110
    %261 = vmatpush.msra.mxu0 %v109
    %262 = vmatpush.msra.mxu0 %v108
    %263 = vmatpush.msra.mxu0 %v107
    %264 = vmatpush.msra.mxu0 %v106
    %265 = vmatpush.msra.mxu0 %v105
    %266 = vmatpush.msra.mxu0 %v104
    %267 = vmatpush.msra.mxu0 %v103
    %268 = vmatpush.msra.mxu0 %v102
    %269 = vmatpush.msra.mxu0 %v101
    %270 = vmatpush.msra.mxu0 %v100
    %271 = vmatpush.msra.mxu0 %v99
    %272 = vmatpush.msra.mxu0 %v98
    %273 = vmatpush.msra.mxu0 %v97
    %274 = vmatmul.f32.gmra.mxu0 %v204
    %v275 = vpop.f32.mrf.mxu0
    %v276 = vadd.f32 %v256, %v275
    %277 = vdwg.mxu0
    %278 = vmatpush.msra.mxu0 %v128
    %279 = vmatpush.msra.mxu0 %v127
    %280 = vmatpush.msra.mxu0 %v126
    %281 = vmatpush.msra.mxu0 %v125
    %282 = vmatpush.msra.mxu0 %v124
    %283 = vmatpush.msra.mxu0 %v123
    %284 = vmatpush.msra.mxu0 %v122
    %285 = vmatpush.msra.mxu0 %v121
    %286 = vmatpush.msra.mxu0 %v120
    %287 = vmatpush.msra.mxu0 %v119
    %288 = vmatpush.msra.mxu0 %v118
    %289 = vmatpush.msra.mxu0 %v117
    %290 = vmatpush.msra.mxu0 %v116
    %291 = vmatpush.msra.mxu0 %v115
    %292 = vmatpush.msra.mxu0 %v114
    %293 = vmatpush.msra.mxu0 %v113
    %294 = vmatmul.f32.gmra.mxu0 %v205
    %v295 = vpop.f32.mrf.mxu0
    %v296 = vadd.f32 %v276, %v295
    %297 = vdwg.mxu0
    %298 = vmatpush.msra.mxu0 %v144
    %299 = vmatpush.msra.mxu0 %v143
    %300 = vmatpush.msra.mxu0 %v142
    %301 = vmatpush.msra.mxu0 %v141
    %302 = vmatpush.msra.mxu0 %v140
    %303 = vmatpush.msra.mxu0 %v139
    %304 = vmatpush.msra.mxu0 %v138
    %305 = vmatpush.msra.mxu0 %v137
    %306 = vmatpush.msra.mxu0 %v136
    %307 = vmatpush.msra.mxu0 %v135
    %308 = vmatpush.msra.mxu0 %v134
    %309 = vmatpush.msra.mxu0 %v133
    %310 = vmatpush.msra.mxu0 %v132
    %311 = vmatpush.msra.mxu0 %v131
    %312 = vmatpush.msra.mxu0 %v130
    %313 = vmatpush.msra.mxu0 %v129
    %314 = vmatmul.f32.gmra.mxu0 %v206
    %v315 = vpop.f32.mrf.mxu0
    %v316 = vadd.f32 %v296, %v315
    %317 = vdwg.mxu0
    %318 = vmatpush.msra.mxu0 %v160
    %319 = vmatpush.msra.mxu0 %v159
    %320 = vmatpush.msra.mxu0 %v158
    %321 = vmatpush.msra.mxu0 %v157
    %322 = vmatpush.msra.mxu0 %v156
    %323 = vmatpush.msra.mxu0 %v155
    %324 = vmatpush.msra.mxu0 %v154
    %325 = vmatpush.msra.mxu0 %v153
    %326 = vmatpush.msra.mxu0 %v152
    %327 = vmatpush.msra.mxu0 %v151
    %328 = vmatpush.msra.mxu0 %v150
    %329 = vmatpush.msra.mxu0 %v149
    %330 = vmatpush.msra.mxu0 %v148
    %331 = vmatpush.msra.mxu0 %v147
    %332 = vmatpush.msra.mxu0 %v146
    %333 = vmatpush.msra.mxu0 %v145
    %334 = vmatmul.f32.gmra.mxu0 %v207
    %v335 = vpop.f32.mrf.mxu0
    %v336 = vadd.f32 %v316, %v335
    %337 = vdwg.mxu0
    %338 = vmatpush.msra.mxu0 %v176
    %339 = vmatpush.msra.mxu0 %v175
    %340 = vmatpush.msra.mxu0 %v174
    %341 = vmatpush.msra.mxu0 %v173
    %342 = vmatpush.msra.mxu0 %v172
    %343 = vmatpush.msra.mxu0 %v171
    %344 = vmatpush.msra.mxu0 %v170
    %345 = vmatpush.msra.mxu0 %v169
    %346 = vmatpush.msra.mxu0 %v168
    %347 = vmatpush.msra.mxu0 %v167
    %348 = vmatpush.msra.mxu0 %v166
    %349 = vmatpush.msra.mxu0 %v165
    %350 = vmatpush.msra.mxu0 %v164
    %351 = vmatpush.msra.mxu0 %v163
    %352 = vmatpush.msra.mxu0 %v162
    %353 = vmatpush.msra.mxu0 %v161
    %354 = vmatmul.f32.gmra.mxu0 %v208
    %v355 = vpop.f32.mrf.mxu0
    %v356 = vadd.f32 %v336, %v355
    %357 = vdwg.mxu0
    %358 = vmatpush.msra.mxu0 %v192
    %359 = vmatpush.msra.mxu0 %v191
    %360 = vmatpush.msra.mxu0 %v190
    %361 = vmatpush.msra.mxu0 %v189
    %362 = vmatpush.msra.mxu0 %v188
    %363 = vmatpush.msra.mxu0 %v187
    %364 = vmatpush.msra.mxu0 %v186
    %365 = vmatpush.msra.mxu0 %v185
    %366 = vmatpush.msra.mxu0 %v184
    %367 = vmatpush.msra.mxu0 %v183
    %368 = vmatpush.msra.mxu0 %v182
    %369 = vmatpush.msra.mxu0 %v181
    %370 = vmatpush.msra.mxu0 %v180
    %371 = vmatpush.msra.mxu0 %v179
    %372 = vmatpush.msra.mxu0 %v178
    %373 = vmatpush.msra.mxu0 %v177
    %374 = vmatmul.f32.gmra.mxu0 %v209
    %v375 = vpop.f32.mrf.mxu0
    %v376 = vadd.f32 %v356, %v375
    %377 = vdwg.mxu0
    %379 = vst [vmem:[#allocation1] ss:$4 sm:$0xff] %v194
    %v380 = vld.sshfl [vmem:[#allocation1] sm:$0xff pattern:$0x73625140]
    %v381 = vld.sshfl [vmem:[#allocation1 + $0x8] sm:$0xff pattern:$0x73625140]
    %384 = vmatpush.msra.mxu0 %v48
    %385 = vmatpush.msra.mxu0 %v47
    %386 = vmatpush.msra.mxu0 %v46
    %387 = vmatpush.msra.mxu0 %v45
    %388 = vmatpush.msra.mxu0 %v44
    %389 = vmatpush.msra.mxu0 %v43
    %390 = vmatpush.msra.mxu0 %v42
    %391 = vmatpush.msra.mxu0 %v41
    %392 = vmatpush.msra.mxu0 %v40
    %393 = vmatpush.msra.mxu0 %v39
    %394 = vmatpush.msra.mxu0 %v38
    %395 = vmatpush.msra.mxu0 %v37
    %396 = vmatpush.msra.mxu0 %v36
    %397 = vmatpush.msra.mxu0 %v35
    %398 = vmatpush.msra.mxu0 %v34
    %399 = vmatpush.msra.mxu0 %v33
    %400 = vmatmul.f32.gmra.mxu0 %v380
    %v401 = vpop.f32.mrf.mxu0
    %v402 = vadd.f32 %v376, %v401
    %403 = vdwg.mxu0
    %404 = vmatpush.msra.mxu0 %v64
    %405 = vmatpush.msra.mxu0 %v63
    %406 = vmatpush.msra.mxu0 %v62
    %407 = vmatpush.msra.mxu0 %v61
    %408 = vmatpush.msra.mxu0 %v60
    %409 = vmatpush.msra.mxu0 %v59
    %410 = vmatpush.msra.mxu0 %v58
    %411 = vmatpush.msra.mxu0 %v57
    %412 = vmatpush.msra.mxu0 %v56
    %413 = vmatpush.msra.mxu0 %v55
    %414 = vmatpush.msra.mxu0 %v54
    %415 = vmatpush.msra.mxu0 %v53
    %416 = vmatpush.msra.mxu0 %v52
    %417 = vmatpush.msra.mxu0 %v51
    %418 = vmatpush.msra.mxu0 %v50
    %419 = vmatpush.msra.mxu0 %v49
    %420 = vmatmul.f32.gmra.mxu0 %v381
    %v421 = vpop.f32.mrf.mxu0
    %v422 = vadd.f32 %v402, %v421
    %423 = vdwg.mxu0
    %v425 = vperm.slane %v193, 0
    %v427 = vadd.f32 %v422, %v425
    %v428 = vmax.f32 %v427, 0.0
    %v429 = vld [vmem:[%s4] sm:$0xff]
    %v430 = vld [vmem:[%s4 + $0x8] sm:$0xff]
    %v431 = vld [vmem:[%s4 + $0x10] sm:$0xff]
    %v432 = vld [vmem:[%s4 + $0x18] sm:$0xff]
    %v433 = vld [vmem:[%s4 + $0x20] sm:$0xff]
    %v434 = vld [vmem:[%s4 + $0x28] sm:$0xff]
    %v435 = vld [vmem:[%s4 + $0x30] sm:$0xff]
    %v436 = vld [vmem:[%s4 + $0x38] sm:$0xff]
    %v437 = vld [vmem:[%s5] sm:$0x1]
    %v439 = vperm.slane %v437, 0
    %vm441 = vcmask 523264
    %v443 = vsel %vm441, %v428, 0
    %445 = vmatpush.msra.mxu0 0.0
    %446 = vmatpush.msra.mxu0 0.0
    %447 = vmatpush.msra.mxu0 0.0
    %448 = vmatpush.msra.mxu0 0.0
    %449 = vmatpush.msra.mxu0 0.0
    %450 = vmatpush.msra.mxu0 0.0
    %451 = vmatpush.msra.mxu0 0.0
    %452 = vmatpush.msra.mxu0 0.0
    %453 = vmatpush.msra.mxu0 %v436
    %454 = vmatpush.msra.mxu0 %v435
    %455 = vmatpush.msra.mxu0 %v434
    %456 = vmatpush.msra.mxu0 %v433
    %457 = vmatpush.msra.mxu0 %v432
    %458 = vmatpush.msra.mxu0 %v431
    %459 = vmatpush.msra.mxu0 %v430
    %460 = vmatpush.msra.mxu0 %v429
    %461 = vmatmul.f32.gmra.mxu0 %v443
    %v462 = vpop.f32.mrf.mxu0
    %v463 = vadd.f32 %v439, %v462
    %464 = vdwg.mxu0
    %v465 = vmax.f32 %v463, 0.0
    %v466 = vld [vmem:[%s6] sm:$0xff]
    %v467 = vld [vmem:[%s6 + $0x8] sm:$0xff]
    %v468 = vld [vmem:[%s6 + $0x10] sm:$0xff]
    %v469 = vld [vmem:[%s6 + $0x18] sm:$0xff]
    %v470 = vld [vmem:[%s7] sm:$0x1]
    %v472 = vperm.slane %v470, 0
    %vm474 = vcmask 261120
    %v476 = vsel %vm474, %v465, 0
    %478 = vmatpush.msra.mxu0 0.0
    %479 = vmatpush.msra.mxu0 0.0
    %480 = vmatpush.msra.mxu0 0.0
    %481 = vmatpush.msra.mxu0 0.0
    %482 = vmatpush.msra.mxu0 0.0
    %483 = vmatpush.msra.mxu0 0.0
    %484 = vmatpush.msra.mxu0 0.0
    %485 = vmatpush.msra.mxu0 0.0
    %486 = vmatpush.msra.mxu0 0.0
    %487 = vmatpush.msra.mxu0 0.0
    %488 = vmatpush.msra.mxu0 0.0
    %489 = vmatpush.msra.mxu0 0.0
    %490 = vmatpush.msra.mxu0 %v469
    %491 = vmatpush.msra.mxu0 %v468
    %492 = vmatpush.msra.mxu0 %v467
    %493 = vmatpush.msra.mxu0 %v466
    %494 = vmatmul.f32.gmra.mxu0 %v476
    %v495 = vpop.f32.mrf.mxu0
    %v496 = vadd.f32 %v472, %v495
    %497 = vdwg.mxu0
    %vm498 = vcmask 41984
    %499 = vst.msk [vmem:[#allocation2] sm:$0x3] %vm498, %v496
    %v500 = vsel %vm498, %v496, -inf
    %501 = vmax.xlane.f32.xlu0 %v500
    %v502 = vpop.xlane.xlu0 %501
    %v503 = vsub.f32 %v496, %v502
    %v504 = vmul.f32 %v503, 1.442695
    %v505 = vpow.pop %v504
    %v506 = vsel %vm498, %v505, 0.0
    %507 = vadd.xlane.f32.xlu0 %v506
    %v508 = vpop.xlane.xlu0 %507
    %v509 = vrcp.pop %v508
    %v510 = vmul.f32 %v508, %v509
    %v511 = vsub.f32 1.0, %v510
    %v512 = vmul.f32 %v509, %v511
    %v513 = vadd.f32 %v509, %v512
    %vm514 = vweird.f32 %v508
    %vm515 = vweird.f32 %v509
    %vm516 = vmor %vm514, %vm515
    %v517 = vsel %vm516, %v509, %v513
    %v518 = vand.u32 2147483647, %v508
    %vm519 = vcmp.eq.f32.partialorder %v518, 8.507059e+37
    %v520 = vand.u32 %v508, 2147483648
    %v521 = vor.u32 1.1754944e-38, %v520
    %v522 = vsel %vm519, %v521, %v517
    %v523 = vmul.f32 %v505, %v522
    %524 = vst.msk [vmem:[#allocation4] sm:$0x3] %vm498, %v523
    // Predicated region
    $region34: #{custom_model_forward.5} parent=1 // pred_check
      _
    $region35: #{custom_model_forward.5} parent=1 // pred_check_branch
      %526 = sbr.rel (0) target = $region37
    $region36: #{custom_model_forward.5} parent=1 // pred_region
      %528 = vsyncadd [#allocation3], 0
      %s530 = sshll.u32 [#allocation2], 4
      %s531 = int_to_ptr.vmem [resolvable:$true] %s530
      %s532 = sshll.u32 %s8, 4
      %s533 = int_to_ptr.hbm [resolvable:$true] %s532
      %535 = dma.vmem_to_hbm [thread:$0]  %s531, 32, %s533, [#allocation3]
    $region37: #{custom_model_forward.5} parent=1 // pred_fallthru
      _
    // Predicated region
    $region38: #{custom_model_forward.5} parent=1 // pred_check
      _
    $region39: #{custom_model_forward.5} parent=1 // pred_check_branch
      %537 = sbr.rel (0) target = $region41
    $region40: #{custom_model_forward.5} parent=1 // pred_region
      %539 = vsyncadd [#allocation5], 0
      %s541 = sshll.u32 [#allocation4], 4
      %s542 = int_to_ptr.vmem [resolvable:$true] %s541
      %s543 = sshll.u32 %s9, 4
      %s544 = int_to_ptr.hbm [resolvable:$true] %s543
      %546 = dma.vmem_to_hbm [thread:$0]  %s542, 32, %s544, [#allocation5]
    $region41: #{custom_model_forward.5} parent=1 // pred_fallthru
      _
    // Predicated region
    $region42: #{custom_model_forward.5} parent=1 // pred_check
      _
    $region43: #{custom_model_forward.5} parent=1 // pred_check_branch
      %548 = sbr.rel (0) target = $region45
    $region44: #{custom_model_forward.5} parent=1 // pred_region
      %550 = dma.done [#allocation3], 32
    $region45: #{custom_model_forward.5} parent=1 // pred_fallthru
      _
    // Predicated region
    $region46: #{custom_model_forward.5} parent=1 // pred_check
      _
    $region47: #{custom_model_forward.5} parent=1 // pred_check_branch
      %552 = sbr.rel (0) target = $region49
    $region48: #{custom_model_forward.5} parent=1 // pred_region
      %554 = dma.done [#allocation5], 32
    $region49: #{custom_model_forward.5} parent=1 // pred_fallthru
      _
    %555 = vsyncpa [#allocation3], 1
    %556 = vsyncpa [#allocation5], 1

// kernel: custom_model_forward.3
$region0: #{custom_model_forward.3}
  #allocation0 [shape = 'u32[]', space=smem, size = 0x4, offset = 0x4, fixed_abs, tag = 'smem constant byte address 0x4 - core index']
  #allocation1 [shape = 'u32[72,128]{1,0:T(1,128)}', space=vmem, size = 0x9000, scoped, tag = 'internal scratch']
  %s0 = inlined_call_operand.vmem [shape: f32[2,8,20], index: 0, kind: input, shape index: {}]
  %s1 = inlined_call_operand.vmem [shape: f32[2,8,24], index: 1, kind: input, shape index: {}]
  %s2 = inlined_call_operand.vmem [shape: f32[20,64], index: 2, kind: input, shape index: {}]
  %s3 = inlined_call_operand.vmem [shape: f32[16,64], index: 3, kind: input, shape index: {}]
  %s4 = inlined_call_operand.vmem [shape: f32[1,64], index: 4, kind: input, shape index: {}]
  %s5 = inlined_call_operand.vmem [shape: f32[24,64], index: 5, kind: input, shape index: {}]
  %s6 = inlined_call_operand.vmem [shape: f32[16,64], index: 6, kind: input, shape index: {}]
  %s7 = inlined_call_operand.vmem [shape: f32[1,64], index: 7, kind: input, shape index: {}]
  %s8 = inlined_call_operand.vmem [shape: f32[2,8,32], index: 8, kind: output, shape index: {}]
  %s9 = sld [smem:[#allocation0]]
  $region42: #{custom_model_forward.3} parent=0
    _
  %s11 = ssub.s32 1, %s9
  %s12 = scalar_select 0, %s11, %s9
  // Predicated region
  $region2: #{custom_model_forward.3} parent=0 // pred_check
    _
  $region3: #{custom_model_forward.3} parent=0 // pred_check_branch
    %14 = sbr.rel (0) target = $region5
  $region4: #{custom_model_forward.3} parent=0 // pred_region
    _
  $region5: #{custom_model_forward.3} parent=0 // pred_fallthru
    _
  // Predicated region
  $region6: #{custom_model_forward.3} parent=0 // pred_check
    _
  $region7: #{custom_model_forward.3} parent=0 // pred_check_branch
    %16 = sbr.rel (0) target = $region9
  $region8: #{custom_model_forward.3} parent=0 // pred_region
    _
  $region9: #{custom_model_forward.3} parent=0 // pred_fallthru
    _
  // Predicated region
  $region10: #{custom_model_forward.3} parent=0 // pred_check
    _
  $region11: #{custom_model_forward.3} parent=0 // pred_check_branch
    %18 = sbr.rel (0) target = $region13
  $region12: #{custom_model_forward.3} parent=0 // pred_region
    _
  $region13: #{custom_model_forward.3} parent=0 // pred_fallthru
    _
  // Predicated region
  $region14: #{custom_model_forward.3} parent=0 // pred_check
    _
  $region15: #{custom_model_forward.3} parent=0 // pred_check_branch
    %20 = sbr.rel (0) target = $region17
  $region16: #{custom_model_forward.3} parent=0 // pred_region
    _
  $region17: #{custom_model_forward.3} parent=0 // pred_fallthru
    _
  // Predicated region
  $region18: #{custom_model_forward.3} parent=0 // pred_check
    _
  $region19: #{custom_model_forward.3} parent=0 // pred_check_branch
    %22 = sbr.rel (0) target = $region21
  $region20: #{custom_model_forward.3} parent=0 // pred_region
    _
  $region21: #{custom_model_forward.3} parent=0 // pred_fallthru
    _
  // Predicated region
  $region22: #{custom_model_forward.3} parent=0 // pred_check
    _
  $region23: #{custom_model_forward.3} parent=0 // pred_check_branch
    %24 = sbr.rel (0) target = $region25
  $region24: #{custom_model_forward.3} parent=0 // pred_region
    _
  $region25: #{custom_model_forward.3} parent=0 // pred_fallthru
    _
  // Predicated region
  $region26: #{custom_model_forward.3} parent=0 // pred_check
    _
  $region27: #{custom_model_forward.3} parent=0 // pred_check_branch
    %26 = sbr.rel (0) target = $region29
  $region28: #{custom_model_forward.3} parent=0 // pred_region
    _
  $region29: #{custom_model_forward.3} parent=0 // pred_fallthru
    _
  // Predicated region
  $region30: #{custom_model_forward.3} parent=0 // pred_check
    _
  $region31: #{custom_model_forward.3} parent=0 // pred_check_branch
    %28 = sbr.rel (0) target = $region33
  $region32: #{custom_model_forward.3} parent=0 // pred_region
    _
  $region33: #{custom_model_forward.3} parent=0 // pred_fallthru
    _
  %v29 = vld [vmem:[%s0] sm:$0xff]
  %v30 = vld [vmem:[%s0 + $0x8] sm:$0xff]
  %v31 = vld [vmem:[%s1] sm:$0xff]
  %v32 = vld [vmem:[%s1 + $0x8] sm:$0xff]
  %v33 = vld [vmem:[%s2] sm:$0xff]
  %v34 = vld [vmem:[%s2 + $0x8] sm:$0xff]
  %v35 = vld [vmem:[%s2 + $0x10] sm:$0xf]
  %v36 = vld [vmem:[%s3] sm:$0xff]
  %v37 = vld [vmem:[%s3 + $0x8] sm:$0xff]
  %v38 = vld [vmem:[%s4] sm:$0x1]
  %v39 = vld [vmem:[%s5] sm:$0xff]
  %v40 = vld [vmem:[%s5 + $0x8] sm:$0xff]
  %v41 = vld [vmem:[%s5 + $0x10] sm:$0xff]
  %v42 = vld [vmem:[%s6] sm:$0xff]
  %v43 = vld [vmem:[%s6 + $0x8] sm:$0xff]
  %v44 = vld [vmem:[%s7] sm:$0x1]
  %vm45 = vcmask 130048
  %v47 = vsel %vm45, 0.0, 0
  %49 = vmatpush.msra.mxu0 0.0
  %50 = vmatpush.msra.mxu0 0.0
  %51 = vmatpush.msra.mxu0 0.0
  %52 = vmatpush.msra.mxu0 0.0
  %53 = vmatpush.msra.mxu0 0.0
  %54 = vmatpush.msra.mxu0 0.0
  %55 = vmatpush.msra.mxu0 0.0
  %56 = vmatpush.msra.mxu0 0.0
  %57 = vmatpush.msra.mxu0 0.0
  %58 = vmatpush.msra.mxu0 0.0
  %59 = vmatpush.msra.mxu0 0.0
  %60 = vmatpush.msra.mxu0 0.0
  %61 = vmatpush.msra.mxu0 0.0
  %62 = vmatpush.msra.mxu0 0.0
  %63 = vmatpush.msra.mxu0 %v37
  %64 = vmatpush.msra.mxu0 %v36
  %65 = vmatmul.f32.gmra.mxu0 %v47
  %v66 = vpop.f32.mrf.mxu0
  %v67 = vadd.f32 0.0, %v66
  %68 = vdwg.mxu0
  %v71 = vrot.slane %v30, 7
  %vm72 = vcmask 1041409
  %v73 = vsel %vm72, %v71, %v29
  %vm74 = vcmask 162816
  %v75 = vsel %vm74, %v73, 0
  %vm77 = vcmask 1043456
  %v79 = vsel %vm77, %v35, 0
  %81 = vmatpush.msra.mxu0 0.0
  %82 = vmatpush.msra.mxu0 0.0
  %83 = vmatpush.msra.mxu0 0.0
  %84 = vmatpush.msra.mxu0 0.0
  %85 = vmatpush.msra.mxu0 0.0
  %86 = vmatpush.msra.mxu0 0.0
  %87 = vmatpush.msra.mxu0 0.0
  %88 = vmatpush.msra.mxu0 0.0
  %89 = vmatpush.msra.mxu0 0.0
  %90 = vmatpush.msra.mxu0 0.0
  %91 = vmatpush.msra.mxu0 0.0
  %92 = vmatpush.msra.mxu0 0.0
  %93 = vmatpush.msra.mxu0 0.0
  %94 = vmatpush.msra.mxu0 %v79
  %95 = vmatpush.msra.mxu0 %v34
  %96 = vmatpush.msra.mxu0 %v33
  %97 = vmatmul.f32.gmra.mxu0 %v75
  %v98 = vpop.f32.mrf.mxu0
  %v99 = vadd.f32 %v67, %v98
  %100 = vdwg.mxu0
  %v102 = vperm.slane %v38, 0
  %v104 = vadd.f32 %v99, %v102
  %v105 = vxor.u32 %v104, 2147483648
  %v106 = vmul.f32 %v105, 1.442695
  %v107 = vpow.pop %v106
  %v108 = vadd.f32 %v107, 1.0
  %v109 = vrcp.pop %v108
  %v110 = vmul.f32 %v108, %v109
  %v111 = vsub.f32 1.0, %v110
  %v112 = vmul.f32 %v109, %v111
  %v113 = vadd.f32 %v109, %v112
  %vm114 = vweird.f32 %v108
  %vm115 = vweird.f32 %v109
  %vm116 = vmor %vm114, %vm115
  %v117 = vsel %vm116, %v109, %v113
  %v118 = vand.u32 2147483647, %v108
  %vm119 = vcmp.eq.f32.partialorder %v118, 8.507059e+37
  %v120 = vand.u32 %v108, 2147483648
  %v121 = vor.u32 1.1754944e-38, %v120
  %v122 = vsel %vm119, %v121, %v117
  %v123 = vmul.f32 1.0, %v122
  %v124 = vtanh.pop %v104
  %v125 = vmul.f32 %v123, 0.0
  %127 = vrot.lane.b32.xlu0 %v124, 96
  %v128 = vpop.permute.xlu0 %127
  %v130 = vmul.f32 %v123, %v128
  %132 = vrot.lane.b32.xlu0 %v130, 16
  %v133 = vpop.permute.xlu0 %132
  %v135 = vadd.f32 %v125, %v133
  %v136 = vtanh.pop %v135
  %138 = vrot.lane.b32.xlu0 %v136, 32
  %v139 = vpop.permute.xlu0 %138
  %v141 = vmul.f32 %v123, %v139
  %142 = vmatpush.msra.mxu0 0.0
  %143 = vmatpush.msra.mxu0 0.0
  %144 = vmatpush.msra.mxu0 0.0
  %145 = vmatpush.msra.mxu0 0.0
  %146 = vmatpush.msra.mxu0 0.0
  %147 = vmatpush.msra.mxu0 0.0
  %148 = vmatpush.msra.mxu0 0.0
  %149 = vmatpush.msra.mxu0 0.0
  %150 = vmatpush.msra.mxu0 0.0
  %151 = vmatpush.msra.mxu0 0.0
  %152 = vmatpush.msra.mxu0 0.0
  %153 = vmatpush.msra.mxu0 0.0
  %154 = vmatpush.msra.mxu0 0.0
  %155 = vmatpush.msra.mxu0 0.0
  %156 = vmatpush.msra.mxu0 %v43
  %157 = vmatpush.msra.mxu0 %v42
  %158 = vmatmul.f32.gmra.mxu0 %v47
  %v159 = vpop.f32.mrf.mxu0
  %v160 = vadd.f32 0.0, %v159
  %161 = vdwg.mxu0
  %v164 = vrot.slane %v32, 7
  %v165 = vsel %vm72, %v164, %v31
  %vm166 = vcmask 195584
  %v167 = vsel %vm166, %v165, 0
  %169 = vmatpush.msra.mxu0 0.0
  %170 = vmatpush.msra.mxu0 0.0
  %171 = vmatpush.msra.mxu0 0.0
  %172 = vmatpush.msra.mxu0 0.0
  %173 = vmatpush.msra.mxu0 0.0
  %174 = vmatpush.msra.mxu0 0.0
  %175 = vmatpush.msra.mxu0 0.0
  %176 = vmatpush.msra.mxu0 0.0
  %177 = vmatpush.msra.mxu0 0.0
  %178 = vmatpush.msra.mxu0 0.0
  %179 = vmatpush.msra.mxu0 0.0
  %180 = vmatpush.msra.mxu0 0.0
  %181 = vmatpush.msra.mxu0 0.0
  %182 = vmatpush.msra.mxu0 %v41
  %183 = vmatpush.msra.mxu0 %v40
  %184 = vmatpush.msra.mxu0 %v39
  %185 = vmatmul.f32.gmra.mxu0 %v167
  %v186 = vpop.f32.mrf.mxu0
  %v187 = vadd.f32 %v160, %v186
  %188 = vdwg.mxu0
  %v190 = vperm.slane %v44, 0
  %v192 = vadd.f32 %v187, %v190
  %v193 = vxor.u32 %v192, 2147483648
  %v194 = vmul.f32 %v193, 1.442695
  %v195 = vpow.pop %v194
  %v196 = vadd.f32 %v195, 1.0
  %v197 = vrcp.pop %v196
  %v198 = vmul.f32 %v196, %v197
  %v199 = vsub.f32 1.0, %v198
  %v200 = vmul.f32 %v197, %v199
  %v201 = vadd.f32 %v197, %v200
  %vm202 = vweird.f32 %v196
  %vm203 = vweird.f32 %v197
  %vm204 = vmor %vm202, %vm203
  %v205 = vsel %vm204, %v197, %v201
  %v206 = vand.u32 2147483647, %v196
  %vm207 = vcmp.eq.f32.partialorder %v206, 8.507059e+37
  %v208 = vand.u32 %v196, 2147483648
  %v209 = vor.u32 1.1754944e-38, %v208
  %v210 = vsel %vm207, %v209, %v205
  %v211 = vmul.f32 1.0, %v210
  %v212 = vtanh.pop %v192
  %v213 = vmul.f32 %v211, 0.0
  %215 = vrot.lane.b32.xlu0 %v212, 96
  %v216 = vpop.permute.xlu0 %215
  %v218 = vmul.f32 %v211, %v216
  %220 = vrot.lane.b32.xlu0 %v218, 16
  %v221 = vpop.permute.xlu0 %220
  %v223 = vadd.f32 %v213, %v221
  %v224 = vtanh.pop %v223
  %226 = vrot.lane.b32.xlu0 %v224, 32
  %v227 = vpop.permute.xlu0 %226
  %v229 = vmul.f32 %v211, %v227
  %v231 = vrot.slane %v229, 1
  %v232 = vperm.slane %v229, 0
  %v233 = vperm.slane %v231, 0
  %234 = vrot.lane.b32.xlu0 %v232, 80
  %v235 = vpop.permute.xlu0 %234
  %236 = vrot.lane.b32.xlu0 %v233, 80
  %v237 = vpop.permute.xlu0 %236
  %vm240 = vcmask 122880
  %241 = vst.msk [vmem:[%s8] sm:$0x1] %vm240, %v235
  %242 = vst.msk [vmem:[%s8 + $0x8] sm:$0x1] %vm240, %v237
  %v244 = vrot.slane %v141, 1
  %v245 = vperm.slane %v141, 0
  %v246 = vperm.slane %v244, 0
  %247 = vrot.lane.b32.xlu0 %v245, 96
  %v248 = vpop.permute.xlu0 %247
  %249 = vrot.lane.b32.xlu0 %v246, 96
  %v250 = vpop.permute.xlu0 %249
  %vm253 = vcmask 254080
  %254 = vst.msk [vmem:[%s8] sm:$0x1] %vm253, %v248
  %255 = vst.msk [vmem:[%s8 + $0x8] sm:$0x1] %vm253, %v250
  %256 = vrot.lane.b32.xlu0 %v141, 80
  %v257 = vpop.permute.xlu0 %256
  %v258 = vsel %vm45, %v257, 0
  %260 = vmatpush.msra.mxu0 0.0
  %261 = vmatpush.msra.mxu0 0.0
  %262 = vmatpush.msra.mxu0 0.0
  %263 = vmatpush.msra.mxu0 0.0
  %264 = vmatpush.msra.mxu0 0.0
  %265 = vmatpush.msra.mxu0 0.0
  %266 = vmatpush.msra.mxu0 0.0
  %267 = vmatpush.msra.mxu0 0.0
  %268 = vmatpush.msra.mxu0 0.0
  %269 = vmatpush.msra.mxu0 0.0
  %270 = vmatpush.msra.mxu0 0.0
  %271 = vmatpush.msra.mxu0 0.0
  %272 = vmatpush.msra.mxu0 0.0
  %273 = vmatpush.msra.mxu0 0.0
  %274 = vmatpush.msra.mxu0 %v37
  %275 = vmatpush.msra.mxu0 %v36
  %276 = vmatmul.f32.gmra.mxu0 %v258
  %v277 = vpop.f32.mrf.mxu0
  %v278 = vadd.f32 0.0, %v277
  %279 = vdwg.mxu0
  %v280 = vrot.slane %v29, 1
  %v281 = vsel %vm72, %v30, %v280
  %v282 = vsel %vm74, %v281, 0
  %284 = vmatpush.msra.mxu0 0.0
  %285 = vmatpush.msra.mxu0 0.0
  %286 = vmatpush.msra.mxu0 0.0
  %287 = vmatpush.msra.mxu0 0.0
  %288 = vmatpush.msra.mxu0 0.0
  %289 = vmatpush.msra.mxu0 0.0
  %290 = vmatpush.msra.mxu0 0.0
  %291 = vmatpush.msra.mxu0 0.0
  %292 = vmatpush.msra.mxu0 0.0
  %293 = vmatpush.msra.mxu0 0.0
  %294 = vmatpush.msra.mxu0 0.0
  %295 = vmatpush.msra.mxu0 0.0
  %296 = vmatpush.msra.mxu0 0.0
  %297 = vmatpush.msra.mxu0 %v79
  %298 = vmatpush.msra.mxu0 %v34
  %299 = vmatpush.msra.mxu0 %v33
  %300 = vmatmul.f32.gmra.mxu0 %v282
  %v301 = vpop.f32.mrf.mxu0
  %v302 = vadd.f32 %v278, %v301
  %303 = vdwg.mxu0
  %v304 = vadd.f32 %v302, %v102
  %v305 = vxor.u32 %v304, 2147483648
  %v306 = vmul.f32 %v305, 1.442695
  %v307 = vpow.pop %v306
  %v308 = vadd.f32 %v307, 1.0
  %v309 = vrcp.pop %v308
  %v310 = vmul.f32 %v308, %v309
  %v311 = vsub.f32 1.0, %v310
  %v312 = vmul.f32 %v309, %v311
  %v313 = vadd.f32 %v309, %v312
  %vm314 = vweird.f32 %v308
  %vm315 = vweird.f32 %v309
  %vm316 = vmor %vm314, %vm315
  %v317 = vsel %vm316, %v309, %v313
  %v318 = vand.u32 2147483647, %v308
  %vm319 = vcmp.eq.f32.partialorder %v318, 8.507059e+37
  %v320 = vand.u32 %v308, 2147483648
  %v321 = vor.u32 1.1754944e-38, %v320
  %v322 = vsel %vm319, %v321, %v317
  %v323 = vmul.f32 1.0, %v322
  %v324 = vtanh.pop %v304
  %v325 = vmul.f32 %v323, %v135
  %327 = vrot.lane.b32.xlu0 %v324, 96
  %v328 = vpop.permute.xlu0 %327
  %v330 = vmul.f32 %v323, %v328
  %332 = vrot.lane.b32.xlu0 %v330, 16
  %v333 = vpop.permute.xlu0 %332
  %v335 = vadd.f32 %v325, %v333
  %v336 = vtanh.pop %v335
  %338 = vrot.lane.b32.xlu0 %v336, 32
  %v339 = vpop.permute.xlu0 %338
  %v341 = vmul.f32 %v323, %v339
  %342 = vrot.lane.b32.xlu0 %v229, 80
  %v343 = vpop.permute.xlu0 %342
  %v344 = vsel %vm45, %v343, 0
  %346 = vmatpush.msra.mxu0 0.0
  %347 = vmatpush.msra.mxu0 0.0
  %348 = vmatpush.msra.mxu0 0.0
  %349 = vmatpush.msra.mxu0 0.0
  %350 = vmatpush.msra.mxu0 0.0
  %351 = vmatpush.msra.mxu0 0.0
  %352 = vmatpush.msra.mxu0 0.0
  %353 = vmatpush.msra.mxu0 0.0
  %354 = vmatpush.msra.mxu0 0.0
  %355 = vmatpush.msra.mxu0 0.0
  %356 = vmatpush.msra.mxu0 0.0
  %357 = vmatpush.msra.mxu0 0.0
  %358 = vmatpush.msra.mxu0 0.0
  %359 = vmatpush.msra.mxu0 0.0
  %360 = vmatpush.msra.mxu0 %v43
  %361 = vmatpush.msra.mxu0 %v42
  %362 = vmatmul.f32.gmra.mxu0 %v344
  %v363 = vpop.f32.mrf.mxu0
  %v364 = vadd.f32 0.0, %v363
  %365 = vdwg.mxu0
  %v366 = vrot.slane %v31, 1
  %v367 = vsel %vm72, %v32, %v366
  %v368 = vsel %vm166, %v367, 0
  %370 = vmatpush.msra.mxu0 0.0
  %371 = vmatpush.msra.mxu0 0.0
  %372 = vmatpush.msra.mxu0 0.0
  %373 = vmatpush.msra.mxu0 0.0
  %374 = vmatpush.msra.mxu0 0.0
  %375 = vmatpush.msra.mxu0 0.0
  %376 = vmatpush.msra.mxu0 0.0
  %377 = vmatpush.msra.mxu0 0.0
  %378 = vmatpush.msra.mxu0 0.0
  %379 = vmatpush.msra.mxu0 0.0
  %380 = vmatpush.msra.mxu0 0.0
  %381 = vmatpush.msra.mxu0 0.0
  %382 = vmatpush.msra.mxu0 0.0
  %383 = vmatpush.msra.mxu0 %v41
  %384 = vmatpush.msra.mxu0 %v40
  %385 = vmatpush.msra.mxu0 %v39
  %386 = vmatmul.f32.gmra.mxu0 %v368
  %v387 = vpop.f32.mrf.mxu0
  %v388 = vadd.f32 %v364, %v387
  %389 = vdwg.mxu0
  %v390 = vadd.f32 %v388, %v190
  %v391 = vxor.u32 %v390, 2147483648
  %v392 = vmul.f32 %v391, 1.442695
  %v393 = vpow.pop %v392
  %v394 = vadd.f32 %v393, 1.0
  %v395 = vrcp.pop %v394
  %v396 = vmul.f32 %v394, %v395
  %v397 = vsub.f32 1.0, %v396
  %v398 = vmul.f32 %v395, %v397
  %v399 = vadd.f32 %v395, %v398
  %vm400 = vweird.f32 %v394
  %vm401 = vweird.f32 %v395
  %vm402 = vmor %vm400, %vm401
  %v403 = vsel %vm402, %v395, %v399
  %v404 = vand.u32 2147483647, %v394
  %vm405 = vcmp.eq.f32.partialorder %v404, 8.507059e+37
  %v406 = vand.u32 %v394, 2147483648
  %v407 = vor.u32 1.1754944e-38, %v406
  %v408 = vsel %vm405, %v407, %v403
  %v409 = vmul.f32 1.0, %v408
  %v410 = vtanh.pop %v390
  %v411 = vmul.f32 %v409, %v223
  %413 = vrot.lane.b32.xlu0 %v410, 96
  %v414 = vpop.permute.xlu0 %413
  %v416 = vmul.f32 %v409, %v414
  %418 = vrot.lane.b32.xlu0 %v416, 16
  %v419 = vpop.permute.xlu0 %418
  %v421 = vadd.f32 %v411, %v419
  %v422 = vtanh.pop %v421
  %424 = vrot.lane.b32.xlu0 %v422, 32
  %v425 = vpop.permute.xlu0 %424
  %v427 = vmul.f32 %v409, %v425
  %v429 = vrot.slane %v427, 1
  %v430 = vperm.slane %v427, 0
  %v431 = vperm.slane %v429, 0
  %432 = vrot.lane.b32.xlu0 %v430, 80
  %v433 = vpop.permute.xlu0 %432
  %434 = vrot.lane.b32.xlu0 %v431, 80
  %v435 = vpop.permute.xlu0 %434
  %438 = vst.msk [vmem:[%s8 + $0x1] sm:$0x1] %vm240, %v433
  %439 = vst.msk [vmem:[%s8 + $0x9] sm:$0x1] %vm240, %v435
  %v441 = vrot.slane %v341, 1
  %v442 = vperm.slane %v341, 0
  %v443 = vperm.slane %v441, 0
  %444 = vrot.lane.b32.xlu0 %v442, 96
  %v445 = vpop.permute.xlu0 %444
  %446 = vrot.lane.b32.xlu0 %v443, 96
  %v447 = vpop.permute.xlu0 %446
  %450 = vst.msk [vmem:[%s8 + $0x1] sm:$0x1] %vm253, %v445
  %451 = vst.msk [vmem:[%s8 + $0x9] sm:$0x1] %vm253, %v447
  %452 = vrot.lane.b32.xlu0 %v341, 80
  %v453 = vpop.permute.xlu0 %452
  %v454 = vsel %vm45, %v453, 0
  %456 = vmatpush.msra.mxu0 0.0
  %457 = vmatpush.msra.mxu0 0.0
  %458 = vmatpush.msra.mxu0 0.0
  %459 = vmatpush.msra.mxu0 0.0
  %460 = vmatpush.msra.mxu0 0.0
  %461 = vmatpush.msra.mxu0 0.0
  %462 = vmatpush.msra.mxu0 0.0
  %463 = vmatpush.msra.mxu0 0.0
  %464 = vmatpush.msra.mxu0 0.0
  %465 = vmatpush.msra.mxu0 0.0
  %466 = vmatpush.msra.mxu0 0.0
  %467 = vmatpush.msra.mxu0 0.0
  %468 = vmatpush.msra.mxu0 0.0
  %469 = vmatpush.msra.mxu0 0.0
  %470 = vmatpush.msra.mxu0 %v37
  %471 = vmatpush.msra.mxu0 %v36
  %472 = vmatmul.f32.gmra.mxu0 %v454
  %v473 = vpop.f32.mrf.mxu0
  %v474 = vadd.f32 0.0, %v473
  %475 = vdwg.mxu0
  %v476 = vrot.slane %v29, 2
  %v477 = vrot.slane %v30, 1
  %v478 = vsel %vm72, %v477, %v476
  %v479 = vsel %vm74, %v478, 0
  %481 = vmatpush.msra.mxu0 0.0
  %482 = vmatpush.msra.mxu0 0.0
  %483 = vmatpush.msra.mxu0 0.0
  %484 = vmatpush.msra.mxu0 0.0
  %485 = vmatpush.msra.mxu0 0.0
  %486 = vmatpush.msra.mxu0 0.0
  %487 = vmatpush.msra.mxu0 0.0
  %488 = vmatpush.msra.mxu0 0.0
  %489 = vmatpush.msra.mxu0 0.0
  %490 = vmatpush.msra.mxu0 0.0
  %491 = vmatpush.msra.mxu0 0.0
  %492 = vmatpush.msra.mxu0 0.0
  %493 = vmatpush.msra.mxu0 0.0
  %494 = vmatpush.msra.mxu0 %v79
  %495 = vmatpush.msra.mxu0 %v34
  %496 = vmatpush.msra.mxu0 %v33
  %497 = vmatmul.f32.gmra.mxu0 %v479
  %v498 = vpop.f32.mrf.mxu0
  %v499 = vadd.f32 %v474, %v498
  %500 = vdwg.mxu0
  %v501 = vadd.f32 %v499, %v102
  %v502 = vxor.u32 %v501, 2147483648
  %v503 = vmul.f32 %v502, 1.442695
  %v504 = vpow.pop %v503
  %v505 = vadd.f32 %v504, 1.0
  %v506 = vrcp.pop %v505
  %v507 = vmul.f32 %v505, %v506
  %v508 = vsub.f32 1.0, %v507
  %v509 = vmul.f32 %v506, %v508
  %v510 = vadd.f32 %v506, %v509
  %vm511 = vweird.f32 %v505
  %vm512 = vweird.f32 %v506
  %vm513 = vmor %vm511, %vm512
  %v514 = vsel %vm513, %v506, %v510
  %v515 = vand.u32 2147483647, %v505
  %vm516 = vcmp.eq.f32.partialorder %v515, 8.507059e+37
  %v517 = vand.u32 %v505, 2147483648
  %v518 = vor.u32 1.1754944e-38, %v517
  %v519 = vsel %vm516, %v518, %v514
  %v520 = vmul.f32 1.0, %v519
  %v521 = vtanh.pop %v501
  %v522 = vmul.f32 %v520, %v335
  %524 = vrot.lane.b32.xlu0 %v521, 96
  %v525 = vpop.permute.xlu0 %524
  %v527 = vmul.f32 %v520, %v525
  %529 = vrot.lane.b32.xlu0 %v527, 16
  %v530 = vpop.permute.xlu0 %529
  %v532 = vadd.f32 %v522, %v530
  %v533 = vtanh.pop %v532
  %535 = vrot.lane.b32.xlu0 %v533, 32
  %v536 = vpop.permute.xlu0 %535
  %v538 = vmul.f32 %v520, %v536
  %539 = vrot.lane.b32.xlu0 %v427, 80
  %v540 = vpop.permute.xlu0 %539
  %v541 = vsel %vm45, %v540, 0
  %543 = vmatpush.msra.mxu0 0.0
  %544 = vmatpush.msra.mxu0 0.0
  %545 = vmatpush.msra.mxu0 0.0
  %546 = vmatpush.msra.mxu0 0.0
  %547 = vmatpush.msra.mxu0 0.0
  %548 = vmatpush.msra.mxu0 0.0
  %549 = vmatpush.msra.mxu0 0.0
  %550 = vmatpush.msra.mxu0 0.0
  %551 = vmatpush.msra.mxu0 0.0
  %552 = vmatpush.msra.mxu0 0.0
  %553 = vmatpush.msra.mxu0 0.0
  %554 = vmatpush.msra.mxu0 0.0
  %555 = vmatpush.msra.mxu0 0.0
  %556 = vmatpush.msra.mxu0 0.0
  %557 = vmatpush.msra.mxu0 %v43
  %558 = vmatpush.msra.mxu0 %v42
  %559 = vmatmul.f32.gmra.mxu0 %v541
  %v560 = vpop.f32.mrf.mxu0
  %v561 = vadd.f32 0.0, %v560
  %562 = vdwg.mxu0
  %v563 = vrot.slane %v31, 2
  %v564 = vrot.slane %v32, 1
  %v565 = vsel %vm72, %v564, %v563
  %v566 = vsel %vm166, %v565, 0
  %568 = vmatpush.msra.mxu0 0.0
  %569 = vmatpush.msra.mxu0 0.0
  %570 = vmatpush.msra.mxu0 0.0
  %571 = vmatpush.msra.mxu0 0.0
  %572 = vmatpush.msra.mxu0 0.0
  %573 = vmatpush.msra.mxu0 0.0
  %574 = vmatpush.msra.mxu0 0.0
  %575 = vmatpush.msra.mxu0 0.0
  %576 = vmatpush.msra.mxu0 0.0
  %577 = vmatpush.msra.mxu0 0.0
  %578 = vmatpush.msra.mxu0 0.0
  %579 = vmatpush.msra.mxu0 0.0
  %580 = vmatpush.msra.mxu0 0.0
  %581 = vmatpush.msra.mxu0 %v41
  %582 = vmatpush.msra.mxu0 %v40
  %583 = vmatpush.msra.mxu0 %v39
  %584 = vmatmul.f32.gmra.mxu0 %v566
  %v585 = vpop.f32.mrf.mxu0
  %v586 = vadd.f32 %v561, %v585
  %587 = vdwg.mxu0
  %v588 = vadd.f32 %v586, %v190
  %v589 = vxor.u32 %v588, 2147483648
  %v590 = vmul.f32 %v589, 1.442695
  %v591 = vpow.pop %v590
  %v592 = vadd.f32 %v591, 1.0
  %v593 = vrcp.pop %v592
  %v594 = vmul.f32 %v592, %v593
  %v595 = vsub.f32 1.0, %v594
  %v596 = vmul.f32 %v593, %v595
  %v597 = vadd.f32 %v593, %v596
  %vm598 = vweird.f32 %v592
  %vm599 = vweird.f32 %v593
  %vm600 = vmor %vm598, %vm599
  %v601 = vsel %vm600, %v593, %v597
  %v602 = vand.u32 2147483647, %v592
  %vm603 = vcmp.eq.f32.partialorder %v602, 8.507059e+37
  %v604 = vand.u32 %v592, 2147483648
  %v605 = vor.u32 1.1754944e-38, %v604
  %v606 = vsel %vm603, %v605, %v601
  %v607 = vmul.f32 1.0, %v606
  %v608 = vtanh.pop %v588
  %v609 = vmul.f32 %v607, %v421
  %611 = vrot.lane.b32.xlu0 %v608, 96
  %v612 = vpop.permute.xlu0 %611
  %v614 = vmul.f32 %v607, %v612
  %616 = vrot.lane.b32.xlu0 %v614, 16
  %v617 = vpop.permute.xlu0 %616
  %v619 = vadd.f32 %v609, %v617
  %v620 = vtanh.pop %v619
  %622 = vrot.lane.b32.xlu0 %v620, 32
  %v623 = vpop.permute.xlu0 %622
  %v625 = vmul.f32 %v607, %v623
  %v627 = vrot.slane %v625, 1
  %v628 = vperm.slane %v625, 0
  %v629 = vperm.slane %v627, 0
  %630 = vrot.lane.b32.xlu0 %v628, 80
  %v631 = vpop.permute.xlu0 %630
  %632 = vrot.lane.b32.xlu0 %v629, 80
  %v633 = vpop.permute.xlu0 %632
  %636 = vst.msk [vmem:[%s8 + $0x2] sm:$0x1] %vm240, %v631
  %637 = vst.msk [vmem:[%s8 + $0xa] sm:$0x1] %vm240, %v633
  %v639 = vrot.slane %v538, 1
  %v640 = vperm.slane %v538, 0
  %v641 = vperm.slane %v639, 0
  %642 = vrot.lane.b32.xlu0 %v640, 96
  %v643 = vpop.permute.xlu0 %642
  %644 = vrot.lane.b32.xlu0 %v641, 96
  %v645 = vpop.permute.xlu0 %644
  %648 = vst.msk [vmem:[%s8 + $0x2] sm:$0x1] %vm253, %v643
  %649 = vst.msk [vmem:[%s8 + $0xa] sm:$0x1] %vm253, %v645
  %650 = vrot.lane.b32.xlu0 %v538, 80
  %v651 = vpop.permute.xlu0 %650
  %v652 = vsel %vm45, %v651, 0
  %654 = vmatpush.msra.mxu0 0.0
  %655 = vmatpush.msra.mxu0 0.0
  %656 = vmatpush.msra.mxu0 0.0
  %657 = vmatpush.msra.mxu0 0.0
  %658 = vmatpush.msra.mxu0 0.0
  %659 = vmatpush.msra.mxu0 0.0
  %660 = vmatpush.msra.mxu0 0.0
  %661 = vmatpush.msra.mxu0 0.0
  %662 = vmatpush.msra.mxu0 0.0
  %663 = vmatpush.msra.mxu0 0.0
  %664 = vmatpush.msra.mxu0 0.0
  %665 = vmatpush.msra.mxu0 0.0
  %666 = vmatpush.msra.mxu0 0.0
  %667 = vmatpush.msra.mxu0 0.0
  %668 = vmatpush.msra.mxu0 %v37
  %669 = vmatpush.msra.mxu0 %v36
  %670 = vmatmul.f32.gmra.mxu0 %v652
  %v671 = vpop.f32.mrf.mxu0
  %v672 = vadd.f32 0.0, %v671
  %673 = vdwg.mxu0
  %v674 = vrot.slane %v29, 3
  %v675 = vrot.slane %v30, 2
  %v676 = vsel %vm72, %v675, %v674
  %v677 = vsel %vm74, %v676, 0
  %679 = vmatpush.msra.mxu0 0.0
  %680 = vmatpush.msra.mxu0 0.0
  %681 = vmatpush.msra.mxu0 0.0
  %682 = vmatpush.msra.mxu0 0.0
  %683 = vmatpush.msra.mxu0 0.0
  %684 = vmatpush.msra.mxu0 0.0
  %685 = vmatpush.msra.mxu0 0.0
  %686 = vmatpush.msra.mxu0 0.0
  %687 = vmatpush.msra.mxu0 0.0
  %688 = vmatpush.msra.mxu0 0.0
  %689 = vmatpush.msra.mxu0 0.0
  %690 = vmatpush.msra.mxu0 0.0
  %691 = vmatpush.msra.mxu0 0.0
  %692 = vmatpush.msra.mxu0 %v79
  %693 = vmatpush.msra.mxu0 %v34
  %694 = vmatpush.msra.mxu0 %v33
  %695 = vmatmul.f32.gmra.mxu0 %v677
  %v696 = vpop.f32.mrf.mxu0
  %v697 = vadd.f32 %v672, %v696
  %698 = vdwg.mxu0
  %v699 = vadd.f32 %v697, %v102
  %v700 = vxor.u32 %v699, 2147483648
  %v701 = vmul.f32 %v700, 1.442695
  %v702 = vpow.pop %v701
  %v703 = vadd.f32 %v702, 1.0
  %v704 = vrcp.pop %v703
  %v705 = vmul.f32 %v703, %v704
  %v706 = vsub.f32 1.0, %v705
  %v707 = vmul.f32 %v704, %v706
  %v708 = vadd.f32 %v704, %v707
  %vm709 = vweird.f32 %v703
  %vm710 = vweird.f32 %v704
  %vm711 = vmor %vm709, %vm710
  %v712 = vsel %vm711, %v704, %v708
  %v713 = vand.u32 2147483647, %v703
  %vm714 = vcmp.eq.f32.partialorder %v713, 8.507059e+37
  %v715 = vand.u32 %v703, 2147483648
  %v716 = vor.u32 1.1754944e-38, %v715
  %v717 = vsel %vm714, %v716, %v712
  %v718 = vmul.f32 1.0, %v717
  %v719 = vtanh.pop %v699
  %v720 = vmul.f32 %v718, %v532
  %722 = vrot.lane.b32.xlu0 %v719, 96
  %v723 = vpop.permute.xlu0 %722
  %v725 = vmul.f32 %v718, %v723
  %727 = vrot.lane.b32.xlu0 %v725, 16
  %v728 = vpop.permute.xlu0 %727
  %v730 = vadd.f32 %v720, %v728
  %v731 = vtanh.pop %v730
  %733 = vrot.lane.b32.xlu0 %v731, 32
  %v734 = vpop.permute.xlu0 %733
  %v736 = vmul.f32 %v718, %v734
  %737 = vrot.lane.b32.xlu0 %v625, 80
  %v738 = vpop.permute.xlu0 %737
  %v739 = vsel %vm45, %v738, 0
  %741 = vmatpush.msra.mxu0 0.0
  %742 = vmatpush.msra.mxu0 0.0
  %743 = vmatpush.msra.mxu0 0.0
  %744 = vmatpush.msra.mxu0 0.0
  %745 = vmatpush.msra.mxu0 0.0
  %746 = vmatpush.msra.mxu0 0.0
  %747 = vmatpush.msra.mxu0 0.0
  %748 = vmatpush.msra.mxu0 0.0
  %749 = vmatpush.msra.mxu0 0.0
  %750 = vmatpush.msra.mxu0 0.0
  %751 = vmatpush.msra.mxu0 0.0
  %752 = vmatpush.msra.mxu0 0.0
  %753 = vmatpush.msra.mxu0 0.0
  %754 = vmatpush.msra.mxu0 0.0
  %755 = vmatpush.msra.mxu0 %v43
  %756 = vmatpush.msra.mxu0 %v42
  %757 = vmatmul.f32.gmra.mxu0 %v739
  %v758 = vpop.f32.mrf.mxu0
  %v759 = vadd.f32 0.0, %v758
  %760 = vdwg.mxu0
  %v761 = vrot.slane %v31, 3
  %v762 = vrot.slane %v32, 2
  %v763 = vsel %vm72, %v762, %v761
  %v764 = vsel %vm166, %v763, 0
  %766 = vmatpush.msra.mxu0 0.0
  %767 = vmatpush.msra.mxu0 0.0
  %768 = vmatpush.msra.mxu0 0.0
  %769 = vmatpush.msra.mxu0 0.0
  %770 = vmatpush.msra.mxu0 0.0
  %771 = vmatpush.msra.mxu0 0.0
  %772 = vmatpush.msra.mxu0 0.0
  %773 = vmatpush.msra.mxu0 0.0
  %774 = vmatpush.msra.mxu0 0.0
  %775 = vmatpush.msra.mxu0 0.0
  %776 = vmatpush.msra.mxu0 0.0
  %777 = vmatpush.msra.mxu0 0.0
  %778 = vmatpush.msra.mxu0 0.0
  %779 = vmatpush.msra.mxu0 %v41
  %780 = vmatpush.msra.mxu0 %v40
  %781 = vmatpush.msra.mxu0 %v39
  %782 = vmatmul.f32.gmra.mxu0 %v764
  %v783 = vpop.f32.mrf.mxu0
  %v784 = vadd.f32 %v759, %v783
  %785 = vdwg.mxu0
  %v786 = vadd.f32 %v784, %v190
  %v787 = vxor.u32 %v786, 2147483648
  %v788 = vmul.f32 %v787, 1.442695
  %v789 = vpow.pop %v788
  %v790 = vadd.f32 %v789, 1.0
  %v791 = vrcp.pop %v790
  %v792 = vmul.f32 %v790, %v791
  %v793 = vsub.f32 1.0, %v792
  %v794 = vmul.f32 %v791, %v793
  %v795 = vadd.f32 %v791, %v794
  %vm796 = vweird.f32 %v790
  %vm797 = vweird.f32 %v791
  %vm798 = vmor %vm796, %vm797
  %v799 = vsel %vm798, %v791, %v795
  %v800 = vand.u32 2147483647, %v790
  %vm801 = vcmp.eq.f32.partialorder %v800, 8.507059e+37
  %v802 = vand.u32 %v790, 2147483648
  %v803 = vor.u32 1.1754944e-38, %v802
  %v804 = vsel %vm801, %v803, %v799
  %v805 = vmul.f32 1.0, %v804
  %v806 = vtanh.pop %v786
  %v807 = vmul.f32 %v805, %v619
  %809 = vrot.lane.b32.xlu0 %v806, 96
  %v810 = vpop.permute.xlu0 %809
  %v812 = vmul.f32 %v805, %v810
  %814 = vrot.lane.b32.xlu0 %v812, 16
  %v815 = vpop.permute.xlu0 %814
  %v817 = vadd.f32 %v807, %v815
  %v818 = vtanh.pop %v817
  %820 = vrot.lane.b32.xlu0 %v818, 32
  %v821 = vpop.permute.xlu0 %820
  %v823 = vmul.f32 %v805, %v821
  %v825 = vrot.slane %v823, 1
  %v826 = vperm.slane %v823, 0
  %v827 = vperm.slane %v825, 0
  %828 = vrot.lane.b32.xlu0 %v826, 80
  %v829 = vpop.permute.xlu0 %828
  %830 = vrot.lane.b32.xlu0 %v827, 80
  %v831 = vpop.permute.xlu0 %830
  %834 = vst.msk [vmem:[%s8 + $0x3] sm:$0x1] %vm240, %v829
  %835 = vst.msk [vmem:[%s8 + $0xb] sm:$0x1] %vm240, %v831
  %v837 = vrot.slane %v736, 1
  %v838 = vperm.slane %v736, 0
  %v839 = vperm.slane %v837, 0
  %840 = vrot.lane.b32.xlu0 %v838, 96
  %v841 = vpop.permute.xlu0 %840
  %842 = vrot.lane.b32.xlu0 %v839, 96
  %v843 = vpop.permute.xlu0 %842
  %846 = vst.msk [vmem:[%s8 + $0x3] sm:$0x1] %vm253, %v841
  %847 = vst.msk [vmem:[%s8 + $0xb] sm:$0x1] %vm253, %v843
  %848 = vrot.lane.b32.xlu0 %v736, 80
  %v849 = vpop.permute.xlu0 %848
  %v850 = vsel %vm45, %v849, 0
  %852 = vmatpush.msra.mxu0 0.0
  %853 = vmatpush.msra.mxu0 0.0
  %854 = vmatpush.msra.mxu0 0.0
  %855 = vmatpush.msra.mxu0 0.0
  %856 = vmatpush.msra.mxu0 0.0
  %857 = vmatpush.msra.mxu0 0.0
  %858 = vmatpush.msra.mxu0 0.0
  %859 = vmatpush.msra.mxu0 0.0
  %860 = vmatpush.msra.mxu0 0.0
  %861 = vmatpush.msra.mxu0 0.0
  %862 = vmatpush.msra.mxu0 0.0
  %863 = vmatpush.msra.mxu0 0.0
  %864 = vmatpush.msra.mxu0 0.0
  %865 = vmatpush.msra.mxu0 0.0
  %866 = vmatpush.msra.mxu0 %v37
  %867 = vmatpush.msra.mxu0 %v36
  %868 = vmatmul.f32.gmra.mxu0 %v850
  %v869 = vpop.f32.mrf.mxu0
  %v870 = vadd.f32 0.0, %v869
  %871 = vdwg.mxu0
  %v872 = vrot.slane %v29, 4
  %v873 = vrot.slane %v30, 3
  %v874 = vsel %vm72, %v873, %v872
  %v875 = vsel %vm74, %v874, 0
  %877 = vmatpush.msra.mxu0 0.0
  %878 = vmatpush.msra.mxu0 0.0
  %879 = vmatpush.msra.mxu0 0.0
  %880 = vmatpush.msra.mxu0 0.0
  %881 = vmatpush.msra.mxu0 0.0
  %882 = vmatpush.msra.mxu0 0.0
  %883 = vmatpush.msra.mxu0 0.0
  %884 = vmatpush.msra.mxu0 0.0
  %885 = vmatpush.msra.mxu0 0.0
  %886 = vmatpush.msra.mxu0 0.0
  %887 = vmatpush.msra.mxu0 0.0
  %888 = vmatpush.msra.mxu0 0.0
  %889 = vmatpush.msra.mxu0 0.0
  %890 = vmatpush.msra.mxu0 %v79
  %891 = vmatpush.msra.mxu0 %v34
  %892 = vmatpush.msra.mxu0 %v33
  %893 = vmatmul.f32.gmra.mxu0 %v875
  %v894 = vpop.f32.mrf.mxu0
  %v895 = vadd.f32 %v870, %v894
  %896 = vdwg.mxu0
  %v897 = vadd.f32 %v895, %v102
  %v898 = vxor.u32 %v897, 2147483648
  %v899 = vmul.f32 %v898, 1.442695
  %v900 = vpow.pop %v899
  %v901 = vadd.f32 %v900, 1.0
  %v902 = vrcp.pop %v901
  %v903 = vmul.f32 %v901, %v902
  %v904 = vsub.f32 1.0, %v903
  %v905 = vmul.f32 %v902, %v904
  %v906 = vadd.f32 %v902, %v905
  %vm907 = vweird.f32 %v901
  %vm908 = vweird.f32 %v902
  %vm909 = vmor %vm907, %vm908
  %v910 = vsel %vm909, %v902, %v906
  %v911 = vand.u32 2147483647, %v901
  %vm912 = vcmp.eq.f32.partialorder %v911, 8.507059e+37
  %v913 = vand.u32 %v901, 2147483648
  %v914 = vor.u32 1.1754944e-38, %v913
  %v915 = vsel %vm912, %v914, %v910
  %v916 = vmul.f32 1.0, %v915
  %v917 = vtanh.pop %v897
  %v918 = vmul.f32 %v916, %v730
  %920 = vrot.lane.b32.xlu0 %v917, 96
  %v921 = vpop.permute.xlu0 %920
  %v923 = vmul.f32 %v916, %v921
  %925 = vrot.lane.b32.xlu0 %v923, 16
  %v926 = vpop.permute.xlu0 %925
  %v928 = vadd.f32 %v918, %v926
  %v929 = vtanh.pop %v928
  %931 = vrot.lane.b32.xlu0 %v929, 32
  %v932 = vpop.permute.xlu0 %931
  %v934 = vmul.f32 %v916, %v932
  %935 = vrot.lane.b32.xlu0 %v823, 80
  %v936 = vpop.permute.xlu0 %935
  %v937 = vsel %vm45, %v936, 0
  %939 = vmatpush.msra.mxu0 0.0
  %940 = vmatpush.msra.mxu0 0.0
  %941 = vmatpush.msra.mxu0 0.0
  %942 = vmatpush.msra.mxu0 0.0
  %943 = vmatpush.msra.mxu0 0.0
  %944 = vmatpush.msra.mxu0 0.0
  %945 = vmatpush.msra.mxu0 0.0
  %946 = vmatpush.msra.mxu0 0.0
  %947 = vmatpush.msra.mxu0 0.0
  %948 = vmatpush.msra.mxu0 0.0
  %949 = vmatpush.msra.mxu0 0.0
  %950 = vmatpush.msra.mxu0 0.0
  %951 = vmatpush.msra.mxu0 0.0
  %952 = vmatpush.msra.mxu0 0.0
  %953 = vmatpush.msra.mxu0 %v43
  %954 = vmatpush.msra.mxu0 %v42
  %955 = vmatmul.f32.gmra.mxu0 %v937
  %v956 = vpop.f32.mrf.mxu0
  %v957 = vadd.f32 0.0, %v956
  %958 = vdwg.mxu0
  %v959 = vrot.slane %v31, 4
  %v960 = vrot.slane %v32, 3
  %v961 = vsel %vm72, %v960, %v959
  %v962 = vsel %vm166, %v961, 0
  %964 = vmatpush.msra.mxu0 0.0
  %965 = vmatpush.msra.mxu0 0.0
  %966 = vmatpush.msra.mxu0 0.0
  %967 = vmatpush.msra.mxu0 0.0
  %968 = vmatpush.msra.mxu0 0.0
  %969 = vmatpush.msra.mxu0 0.0
  %970 = vmatpush.msra.mxu0 0.0
  %971 = vmatpush.msra.mxu0 0.0
  %972 = vmatpush.msra.mxu0 0.0
  %973 = vmatpush.msra.mxu0 0.0
  %974 = vmatpush.msra.mxu0 0.0
  %975 = vmatpush.msra.mxu0 0.0
  %976 = vmatpush.msra.mxu0 0.0
  %977 = vmatpush.msra.mxu0 %v41
  %978 = vmatpush.msra.mxu0 %v40
  %979 = vmatpush.msra.mxu0 %v39
  %980 = vmatmul.f32.gmra.mxu0 %v962
  %v981 = vpop.f32.mrf.mxu0
  %v982 = vadd.f32 %v957, %v981
  %983 = vdwg.mxu0
  %v984 = vadd.f32 %v982, %v190
  %v985 = vxor.u32 %v984, 2147483648
  %v986 = vmul.f32 %v985, 1.442695
  %v987 = vpow.pop %v986
  %v988 = vadd.f32 %v987, 1.0
  %v989 = vrcp.pop %v988
  %v990 = vmul.f32 %v988, %v989
  %v991 = vsub.f32 1.0, %v990
  %v992 = vmul.f32 %v989, %v991
  %v993 = vadd.f32 %v989, %v992
  %vm994 = vweird.f32 %v988
  %vm995 = vweird.f32 %v989
  %vm996 = vmor %vm994, %vm995
  %v997 = vsel %vm996, %v989, %v993
  %v998 = vand.u32 2147483647, %v988
  %vm999 = vcmp.eq.f32.partialorder %v998, 8.507059e+37
  %v1000 = vand.u32 %v988, 2147483648
  %v1001 = vor.u32 1.1754944e-38, %v1000
  %v1002 = vsel %vm999, %v1001, %v997
  %v1003 = vmul.f32 1.0, %v1002
  %v1004 = vtanh.pop %v984
  %v1005 = vmul.f32 %v1003, %v817
  %1007 = vrot.lane.b32.xlu0 %v1004, 96
  %v1008 = vpop.permute.xlu0 %1007
  %v1010 = vmul.f32 %v1003, %v1008
  %1012 = vrot.lane.b32.xlu0 %v1010, 16
  %v1013 = vpop.permute.xlu0 %1012
  %v1015 = vadd.f32 %v1005, %v1013
  %v1016 = vtanh.pop %v1015
  %1018 = vrot.lane.b32.xlu0 %v1016, 32
  %v1019 = vpop.permute.xlu0 %1018
  %v1021 = vmul.f32 %v1003, %v1019
  %v1023 = vrot.slane %v1021, 1
  %v1024 = vperm.slane %v1021, 0
  %v1025 = vperm.slane %v1023, 0
  %1026 = vrot.lane.b32.xlu0 %v1024, 80
  %v1027 = vpop.permute.xlu0 %1026
  %1028 = vrot.lane.b32.xlu0 %v1025, 80
  %v1029 = vpop.permute.xlu0 %1028
  %1032 = vst.msk [vmem:[%s8 + $0x4] sm:$0x1] %vm240, %v1027
  %1033 = vst.msk [vmem:[%s8 + $0xc] sm:$0x1] %vm240, %v1029
  %v1035 = vrot.slane %v934, 1
  %v1036 = vperm.slane %v934, 0
  %v1037 = vperm.slane %v1035, 0
  %1038 = vrot.lane.b32.xlu0 %v1036, 96
  %v1039 = vpop.permute.xlu0 %1038
  %1040 = vrot.lane.b32.xlu0 %v1037, 96
  %v1041 = vpop.permute.xlu0 %1040
  %1044 = vst.msk [vmem:[%s8 + $0x4] sm:$0x1] %vm253, %v1039
  %1045 = vst.msk [vmem:[%s8 + $0xc] sm:$0x1] %vm253, %v1041
  %1046 = vrot.lane.b32.xlu0 %v934, 80
  %v1047 = vpop.permute.xlu0 %1046
  %v1048 = vsel %vm45, %v1047, 0
  %1050 = vmatpush.msra.mxu0 0.0
  %1051 = vmatpush.msra.mxu0 0.0
  %1052 = vmatpush.msra.mxu0 0.0
  %1053 = vmatpush.msra.mxu0 0.0
  %1054 = vmatpush.msra.mxu0 0.0
  %1055 = vmatpush.msra.mxu0 0.0
  %1056 = vmatpush.msra.mxu0 0.0
  %1057 = vmatpush.msra.mxu0 0.0
  %1058 = vmatpush.msra.mxu0 0.0
  %1059 = vmatpush.msra.mxu0 0.0
  %1060 = vmatpush.msra.mxu0 0.0
  %1061 = vmatpush.msra.mxu0 0.0
  %1062 = vmatpush.msra.mxu0 0.0
  %1063 = vmatpush.msra.mxu0 0.0
  %1064 = vmatpush.msra.mxu0 %v37
  %1065 = vmatpush.msra.mxu0 %v36
  %1066 = vmatmul.f32.gmra.mxu0 %v1048
  %v1067 = vpop.f32.mrf.mxu0
  %v1068 = vadd.f32 0.0, %v1067
  %1069 = vdwg.mxu0
  %v1070 = vrot.slane %v29, 5
  %v1071 = vrot.slane %v30, 4
  %v1072 = vsel %vm72, %v1071, %v1070
  %v1073 = vsel %vm74, %v1072, 0
  %1075 = vmatpush.msra.mxu0 0.0
  %1076 = vmatpush.msra.mxu0 0.0
  %1077 = vmatpush.msra.mxu0 0.0
  %1078 = vmatpush.msra.mxu0 0.0
  %1079 = vmatpush.msra.mxu0 0.0
  %1080 = vmatpush.msra.mxu0 0.0
  %1081 = vmatpush.msra.mxu0 0.0
  %1082 = vmatpush.msra.mxu0 0.0
  %1083 = vmatpush.msra.mxu0 0.0
  %1084 = vmatpush.msra.mxu0 0.0
  %1085 = vmatpush.msra.mxu0 0.0
  %1086 = vmatpush.msra.mxu0 0.0
  %1087 = vmatpush.msra.mxu0 0.0
  %1088 = vmatpush.msra.mxu0 %v79
  %1089 = vmatpush.msra.mxu0 %v34
  %1090 = vmatpush.msra.mxu0 %v33
  %1091 = vmatmul.f32.gmra.mxu0 %v1073
  %v1092 = vpop.f32.mrf.mxu0
  %v1093 = vadd.f32 %v1068, %v1092
  %1094 = vdwg.mxu0
  %v1095 = vadd.f32 %v1093, %v102
  %v1096 = vxor.u32 %v1095, 2147483648
  %v1097 = vmul.f32 %v1096, 1.442695
  %v1098 = vpow.pop %v1097
  %v1099 = vadd.f32 %v1098, 1.0
  %v1100 = vrcp.pop %v1099
  %v1101 = vmul.f32 %v1099, %v1100
  %v1102 = vsub.f32 1.0, %v1101
  %v1103 = vmul.f32 %v1100, %v1102
  %v1104 = vadd.f32 %v1100, %v1103
  %vm1105 = vweird.f32 %v1099
  %vm1106 = vweird.f32 %v1100
  %vm1107 = vmor %vm1105, %vm1106
  %v1108 = vsel %vm1107, %v1100, %v1104
  %v1109 = vand.u32 2147483647, %v1099
  %vm1110 = vcmp.eq.f32.partialorder %v1109, 8.507059e+37
  %v1111 = vand.u32 %v1099, 2147483648
  %v1112 = vor.u32 1.1754944e-38, %v1111
  %v1113 = vsel %vm1110, %v1112, %v1108
  %v1114 = vmul.f32 1.0, %v1113
  %v1115 = vtanh.pop %v1095
  %v1116 = vmul.f32 %v1114, %v928
  %1118 = vrot.lane.b32.xlu0 %v1115, 96
  %v1119 = vpop.permute.xlu0 %1118
  %v1121 = vmul.f32 %v1114, %v1119
  %1123 = vrot.lane.b32.xlu0 %v1121, 16
  %v1124 = vpop.permute.xlu0 %1123
  %v1126 = vadd.f32 %v1116, %v1124
  %v1127 = vtanh.pop %v1126
  %1129 = vrot.lane.b32.xlu0 %v1127, 32
  %v1130 = vpop.permute.xlu0 %1129
  %v1132 = vmul.f32 %v1114, %v1130
  %1133 = vrot.lane.b32.xlu0 %v1021, 80
  %v1134 = vpop.permute.xlu0 %1133
  %v1135 = vsel %vm45, %v1134, 0
  %1137 = vmatpush.msra.mxu0 0.0
  %1138 = vmatpush.msra.mxu0 0.0
  %1139 = vmatpush.msra.mxu0 0.0
  %1140 = vmatpush.msra.mxu0 0.0
  %1141 = vmatpush.msra.mxu0 0.0
  %1142 = vmatpush.msra.mxu0 0.0
  %1143 = vmatpush.msra.mxu0 0.0
  %1144 = vmatpush.msra.mxu0 0.0
  %1145 = vmatpush.msra.mxu0 0.0
  %1146 = vmatpush.msra.mxu0 0.0
  %1147 = vmatpush.msra.mxu0 0.0
  %1148 = vmatpush.msra.mxu0 0.0
  %1149 = vmatpush.msra.mxu0 0.0
  %1150 = vmatpush.msra.mxu0 0.0
  %1151 = vmatpush.msra.mxu0 %v43
  %1152 = vmatpush.msra.mxu0 %v42
  %1153 = vmatmul.f32.gmra.mxu0 %v1135
  %v1154 = vpop.f32.mrf.mxu0
  %v1155 = vadd.f32 0.0, %v1154
  %1156 = vdwg.mxu0
  %v1157 = vrot.slane %v31, 5
  %v1158 = vrot.slane %v32, 4
  %v1159 = vsel %vm72, %v1158, %v1157
  %v1160 = vsel %vm166, %v1159, 0
  %1162 = vmatpush.msra.mxu0 0.0
  %1163 = vmatpush.msra.mxu0 0.0
  %1164 = vmatpush.msra.mxu0 0.0
  %1165 = vmatpush.msra.mxu0 0.0
  %1166 = vmatpush.msra.mxu0 0.0
  %1167 = vmatpush.msra.mxu0 0.0
  %1168 = vmatpush.msra.mxu0 0.0
  %1169 = vmatpush.msra.mxu0 0.0
  %1170 = vmatpush.msra.mxu0 0.0
  %1171 = vmatpush.msra.mxu0 0.0
  %1172 = vmatpush.msra.mxu0 0.0
  %1173 = vmatpush.msra.mxu0 0.0
  %1174 = vmatpush.msra.mxu0 0.0
  %1175 = vmatpush.msra.mxu0 %v41
  %1176 = vmatpush.msra.mxu0 %v40
  %1177 = vmatpush.msra.mxu0 %v39
  %1178 = vmatmul.f32.gmra.mxu0 %v1160
  %v1179 = vpop.f32.mrf.mxu0
  %v1180 = vadd.f32 %v1155, %v1179
  %1181 = vdwg.mxu0
  %v1182 = vadd.f32 %v1180, %v190
  %v1183 = vxor.u32 %v1182, 2147483648
  %v1184 = vmul.f32 %v1183, 1.442695
  %v1185 = vpow.pop %v1184
  %v1186 = vadd.f32 %v1185, 1.0
  %v1187 = vrcp.pop %v1186
  %v1188 = vmul.f32 %v1186, %v1187
  %v1189 = vsub.f32 1.0, %v1188
  %v1190 = vmul.f32 %v1187, %v1189
  %v1191 = vadd.f32 %v1187, %v1190
  %vm1192 = vweird.f32 %v1186
  %vm1193 = vweird.f32 %v1187
  %vm1194 = vmor %vm1192, %vm1193
  %v1195 = vsel %vm1194, %v1187, %v1191
  %v1196 = vand.u32 2147483647, %v1186
  %vm1197 = vcmp.eq.f32.partialorder %v1196, 8.507059e+37
  %v1198 = vand.u32 %v1186, 2147483648
  %v1199 = vor.u32 1.1754944e-38, %v1198
  %v1200 = vsel %vm1197, %v1199, %v1195
  %v1201 = vmul.f32 1.0, %v1200
  %v1202 = vtanh.pop %v1182
  %v1203 = vmul.f32 %v1201, %v1015
  %1205 = vrot.lane.b32.xlu0 %v1202, 96
  %v1206 = vpop.permute.xlu0 %1205
  %v1208 = vmul.f32 %v1201, %v1206
  %1210 = vrot.lane.b32.xlu0 %v1208, 16
  %v1211 = vpop.permute.xlu0 %1210
  %v1213 = vadd.f32 %v1203, %v1211
  %v1214 = vtanh.pop %v1213
  %1216 = vrot.lane.b32.xlu0 %v1214, 32
  %v1217 = vpop.permute.xlu0 %1216
  %v1219 = vmul.f32 %v1201, %v1217
  %v1221 = vrot.slane %v1219, 1
  %v1222 = vperm.slane %v1219, 0
  %v1223 = vperm.slane %v1221, 0
  %1224 = vrot.lane.b32.xlu0 %v1222, 80
  %v1225 = vpop.permute.xlu0 %1224
  %1226 = vrot.lane.b32.xlu0 %v1223, 80
  %v1227 = vpop.permute.xlu0 %1226
  %1230 = vst.msk [vmem:[%s8 + $0x5] sm:$0x1] %vm240, %v1225
  %1231 = vst.msk [vmem:[%s8 + $0xd] sm:$0x1] %vm240, %v1227
  %v1233 = vrot.slane %v1132, 1
  %v1234 = vperm.slane %v1132, 0
  %v1235 = vperm.slane %v1233, 0
  %1236 = vrot.lane.b32.xlu0 %v1234, 96
  %v1237 = vpop.permute.xlu0 %1236
  %1238 = vrot.lane.b32.xlu0 %v1235, 96
  %v1239 = vpop.permute.xlu0 %1238
  %1242 = vst.msk [vmem:[%s8 + $0x5] sm:$0x1] %vm253, %v1237
  %1243 = vst.msk [vmem:[%s8 + $0xd] sm:$0x1] %vm253, %v1239
  %1244 = vrot.lane.b32.xlu0 %v1132, 80
  %v1245 = vpop.permute.xlu0 %1244
  %v1246 = vsel %vm45, %v1245, 0
  %1248 = vmatpush.msra.mxu0 0.0
  %1249 = vmatpush.msra.mxu0 0.0
  %1250 = vmatpush.msra.mxu0 0.0
  %1251 = vmatpush.msra.mxu0 0.0
  %1252 = vmatpush.msra.mxu0 0.0
  %1253 = vmatpush.msra.mxu0 0.0
  %1254 = vmatpush.msra.mxu0 0.0
  %1255 = vmatpush.msra.mxu0 0.0
  %1256 = vmatpush.msra.mxu0 0.0
  %1257 = vmatpush.msra.mxu0 0.0
  %1258 = vmatpush.msra.mxu0 0.0
  %1259 = vmatpush.msra.mxu0 0.0
  %1260 = vmatpush.msra.mxu0 0.0
  %1261 = vmatpush.msra.mxu0 0.0
  %1262 = vmatpush.msra.mxu0 %v37
  %1263 = vmatpush.msra.mxu0 %v36
  %1264 = vmatmul.f32.gmra.mxu0 %v1246
  %v1265 = vpop.f32.mrf.mxu0
  %v1266 = vadd.f32 0.0, %v1265
  %1267 = vdwg.mxu0
  %v1268 = vrot.slane %v29, 6
  %v1269 = vrot.slane %v30, 5
  %v1270 = vsel %vm72, %v1269, %v1268
  %v1271 = vsel %vm74, %v1270, 0
  %1273 = vmatpush.msra.mxu0 0.0
  %1274 = vmatpush.msra.mxu0 0.0
  %1275 = vmatpush.msra.mxu0 0.0
  %1276 = vmatpush.msra.mxu0 0.0
  %1277 = vmatpush.msra.mxu0 0.0
  %1278 = vmatpush.msra.mxu0 0.0
  %1279 = vmatpush.msra.mxu0 0.0
  %1280 = vmatpush.msra.mxu0 0.0
  %1281 = vmatpush.msra.mxu0 0.0
  %1282 = vmatpush.msra.mxu0 0.0
  %1283 = vmatpush.msra.mxu0 0.0
  %1284 = vmatpush.msra.mxu0 0.0
  %1285 = vmatpush.msra.mxu0 0.0
  %1286 = vmatpush.msra.mxu0 %v79
  %1287 = vmatpush.msra.mxu0 %v34
  %1288 = vmatpush.msra.mxu0 %v33
  %1289 = vmatmul.f32.gmra.mxu0 %v1271
  %v1290 = vpop.f32.mrf.mxu0
  %v1291 = vadd.f32 %v1266, %v1290
  %1292 = vdwg.mxu0
  %v1293 = vadd.f32 %v1291, %v102
  %v1294 = vxor.u32 %v1293, 2147483648
  %v1295 = vmul.f32 %v1294, 1.442695
  %v1296 = vpow.pop %v1295
  %v1297 = vadd.f32 %v1296, 1.0
  %v1298 = vrcp.pop %v1297
  %v1299 = vmul.f32 %v1297, %v1298
  %v1300 = vsub.f32 1.0, %v1299
  %v1301 = vmul.f32 %v1298, %v1300
  %v1302 = vadd.f32 %v1298, %v1301
  %vm1303 = vweird.f32 %v1297
  %vm1304 = vweird.f32 %v1298
  %vm1305 = vmor %vm1303, %vm1304
  %v1306 = vsel %vm1305, %v1298, %v1302
  %v1307 = vand.u32 2147483647, %v1297
  %vm1308 = vcmp.eq.f32.partialorder %v1307, 8.507059e+37
  %v1309 = vand.u32 %v1297, 2147483648
  %v1310 = vor.u32 1.1754944e-38, %v1309
  %v1311 = vsel %vm1308, %v1310, %v1306
  %v1312 = vmul.f32 1.0, %v1311
  %v1313 = vtanh.pop %v1293
  %v1314 = vmul.f32 %v1312, %v1126
  %1316 = vrot.lane.b32.xlu0 %v1313, 96
  %v1317 = vpop.permute.xlu0 %1316
  %v1319 = vmul.f32 %v1312, %v1317
  %1321 = vrot.lane.b32.xlu0 %v1319, 16
  %v1322 = vpop.permute.xlu0 %1321
  %v1324 = vadd.f32 %v1314, %v1322
  %v1325 = vtanh.pop %v1324
  %1327 = vrot.lane.b32.xlu0 %v1325, 32
  %v1328 = vpop.permute.xlu0 %1327
  %v1330 = vmul.f32 %v1312, %v1328
  %1331 = vrot.lane.b32.xlu0 %v1219, 80
  %v1332 = vpop.permute.xlu0 %1331
  %v1333 = vsel %vm45, %v1332, 0
  %1335 = vmatpush.msra.mxu0 0.0
  %1336 = vmatpush.msra.mxu0 0.0
  %1337 = vmatpush.msra.mxu0 0.0
  %1338 = vmatpush.msra.mxu0 0.0
  %1339 = vmatpush.msra.mxu0 0.0
  %1340 = vmatpush.msra.mxu0 0.0
  %1341 = vmatpush.msra.mxu0 0.0
  %1342 = vmatpush.msra.mxu0 0.0
  %1343 = vmatpush.msra.mxu0 0.0
  %1344 = vmatpush.msra.mxu0 0.0
  %1345 = vmatpush.msra.mxu0 0.0
  %1346 = vmatpush.msra.mxu0 0.0
  %1347 = vmatpush.msra.mxu0 0.0
  %1348 = vmatpush.msra.mxu0 0.0
  %1349 = vmatpush.msra.mxu0 %v43
  %1350 = vmatpush.msra.mxu0 %v42
  %1351 = vmatmul.f32.gmra.mxu0 %v1333
  %v1352 = vpop.f32.mrf.mxu0
  %v1353 = vadd.f32 0.0, %v1352
  %1354 = vdwg.mxu0
  %v1355 = vrot.slane %v31, 6
  %v1356 = vrot.slane %v32, 5
  %v1357 = vsel %vm72, %v1356, %v1355
  %v1358 = vsel %vm166, %v1357, 0
  %1360 = vmatpush.msra.mxu0 0.0
  %1361 = vmatpush.msra.mxu0 0.0
  %1362 = vmatpush.msra.mxu0 0.0
  %1363 = vmatpush.msra.mxu0 0.0
  %1364 = vmatpush.msra.mxu0 0.0
  %1365 = vmatpush.msra.mxu0 0.0
  %1366 = vmatpush.msra.mxu0 0.0
  %1367 = vmatpush.msra.mxu0 0.0
  %1368 = vmatpush.msra.mxu0 0.0
  %1369 = vmatpush.msra.mxu0 0.0
  %1370 = vmatpush.msra.mxu0 0.0
  %1371 = vmatpush.msra.mxu0 0.0
  %1372 = vmatpush.msra.mxu0 0.0
  %1373 = vmatpush.msra.mxu0 %v41
  %1374 = vmatpush.msra.mxu0 %v40
  %1375 = vmatpush.msra.mxu0 %v39
  %1376 = vmatmul.f32.gmra.mxu0 %v1358
  %v1377 = vpop.f32.mrf.mxu0
  %v1378 = vadd.f32 %v1353, %v1377
  %1379 = vdwg.mxu0
  %v1380 = vadd.f32 %v1378, %v190
  %v1381 = vxor.u32 %v1380, 2147483648
  %v1382 = vmul.f32 %v1381, 1.442695
  %v1383 = vpow.pop %v1382
  %v1384 = vadd.f32 %v1383, 1.0
  %v1385 = vrcp.pop %v1384
  %v1386 = vmul.f32 %v1384, %v1385
  %v1387 = vsub.f32 1.0, %v1386
  %v1388 = vmul.f32 %v1385, %v1387
  %v1389 = vadd.f32 %v1385, %v1388
  %vm1390 = vweird.f32 %v1384
  %vm1391 = vweird.f32 %v1385
  %vm1392 = vmor %vm1390, %vm1391
  %v1393 = vsel %vm1392, %v1385, %v1389
  %v1394 = vand.u32 2147483647, %v1384
  %vm1395 = vcmp.eq.f32.partialorder %v1394, 8.507059e+37
  %v1396 = vand.u32 %v1384, 2147483648
  %v1397 = vor.u32 1.1754944e-38, %v1396
  %v1398 = vsel %vm1395, %v1397, %v1393
  %v1399 = vmul.f32 1.0, %v1398
  %v1400 = vtanh.pop %v1380
  %v1401 = vmul.f32 %v1399, %v1213
  %1403 = vrot.lane.b32.xlu0 %v1400, 96
  %v1404 = vpop.permute.xlu0 %1403
  %v1406 = vmul.f32 %v1399, %v1404
  %1408 = vrot.lane.b32.xlu0 %v1406, 16
  %v1409 = vpop.permute.xlu0 %1408
  %v1411 = vadd.f32 %v1401, %v1409
  %v1412 = vtanh.pop %v1411
  %1414 = vrot.lane.b32.xlu0 %v1412, 32
  %v1415 = vpop.permute.xlu0 %1414
  %v1417 = vmul.f32 %v1399, %v1415
  %v1419 = vrot.slane %v1417, 1
  %v1420 = vperm.slane %v1417, 0
  %v1421 = vperm.slane %v1419, 0
  %1422 = vrot.lane.b32.xlu0 %v1420, 80
  %v1423 = vpop.permute.xlu0 %1422
  %1424 = vrot.lane.b32.xlu0 %v1421, 80
  %v1425 = vpop.permute.xlu0 %1424
  %1428 = vst.msk [vmem:[%s8 + $0x6] sm:$0x1] %vm240, %v1423
  %1429 = vst.msk [vmem:[%s8 + $0xe] sm:$0x1] %vm240, %v1425
  %v1431 = vrot.slane %v1330, 1
  %v1432 = vperm.slane %v1330, 0
  %v1433 = vperm.slane %v1431, 0
  %1434 = vrot.lane.b32.xlu0 %v1432, 96
  %v1435 = vpop.permute.xlu0 %1434
  %1436 = vrot.lane.b32.xlu0 %v1433, 96
  %v1437 = vpop.permute.xlu0 %1436
  %1440 = vst.msk [vmem:[%s8 + $0x6] sm:$0x1] %vm253, %v1435
  %1441 = vst.msk [vmem:[%s8 + $0xe] sm:$0x1] %vm253, %v1437
  %1442 = vrot.lane.b32.xlu0 %v1330, 80
  %v1443 = vpop.permute.xlu0 %1442
  %v1444 = vsel %vm45, %v1443, 0
  %1446 = vmatpush.msra.mxu0 0.0
  %1447 = vmatpush.msra.mxu0 0.0
  %1448 = vmatpush.msra.mxu0 0.0
  %1449 = vmatpush.msra.mxu0 0.0
  %1450 = vmatpush.msra.mxu0 0.0
  %1451 = vmatpush.msra.mxu0 0.0
  %1452 = vmatpush.msra.mxu0 0.0
  %1453 = vmatpush.msra.mxu0 0.0
  %1454 = vmatpush.msra.mxu0 0.0
  %1455 = vmatpush.msra.mxu0 0.0
  %1456 = vmatpush.msra.mxu0 0.0
  %1457 = vmatpush.msra.mxu0 0.0
  %1458 = vmatpush.msra.mxu0 0.0
  %1459 = vmatpush.msra.mxu0 0.0
  %1460 = vmatpush.msra.mxu0 %v37
  %1461 = vmatpush.msra.mxu0 %v36
  %1462 = vmatmul.f32.gmra.mxu0 %v1444
  %v1463 = vpop.f32.mrf.mxu0
  %v1464 = vadd.f32 0.0, %v1463
  %1465 = vdwg.mxu0
  %v1466 = vrot.slane %v29, 7
  %v1467 = vrot.slane %v30, 6
  %v1468 = vsel %vm72, %v1467, %v1466
  %v1469 = vsel %vm74, %v1468, 0
  %1471 = vmatpush.msra.mxu0 0.0
  %1472 = vmatpush.msra.mxu0 0.0
  %1473 = vmatpush.msra.mxu0 0.0
  %1474 = vmatpush.msra.mxu0 0.0
  %1475 = vmatpush.msra.mxu0 0.0
  %1476 = vmatpush.msra.mxu0 0.0
  %1477 = vmatpush.msra.mxu0 0.0
  %1478 = vmatpush.msra.mxu0 0.0
  %1479 = vmatpush.msra.mxu0 0.0
  %1480 = vmatpush.msra.mxu0 0.0
  %1481 = vmatpush.msra.mxu0 0.0
  %1482 = vmatpush.msra.mxu0 0.0
  %1483 = vmatpush.msra.mxu0 0.0
  %1484 = vmatpush.msra.mxu0 %v79
  %1485 = vmatpush.msra.mxu0 %v34
  %1486 = vmatpush.msra.mxu0 %v33
  %1487 = vmatmul.f32.gmra.mxu0 %v1469
  %v1488 = vpop.f32.mrf.mxu0
  %v1489 = vadd.f32 %v1464, %v1488
  %1490 = vdwg.mxu0
  %v1491 = vadd.f32 %v1489, %v102
  %v1492 = vxor.u32 %v1491, 2147483648
  %v1493 = vmul.f32 %v1492, 1.442695
  %v1494 = vpow.pop %v1493
  %v1495 = vadd.f32 %v1494, 1.0
  %v1496 = vrcp.pop %v1495
  %v1497 = vmul.f32 %v1495, %v1496
  %v1498 = vsub.f32 1.0, %v1497
  %v1499 = vmul.f32 %v1496, %v1498
  %v1500 = vadd.f32 %v1496, %v1499
  %vm1501 = vweird.f32 %v1495
  %vm1502 = vweird.f32 %v1496
  %vm1503 = vmor %vm1501, %vm1502
  %v1504 = vsel %vm1503, %v1496, %v1500
  %v1505 = vand.u32 2147483647, %v1495
  %vm1506 = vcmp.eq.f32.partialorder %v1505, 8.507059e+37
  %v1507 = vand.u32 %v1495, 2147483648
  %v1508 = vor.u32 1.1754944e-38, %v1507
  %v1509 = vsel %vm1506, %v1508, %v1504
  %v1510 = vmul.f32 1.0, %v1509
  %v1511 = vtanh.pop %v1491
  %v1512 = vmul.f32 %v1510, %v1324
  %1514 = vrot.lane.b32.xlu0 %v1511, 96
  %v1515 = vpop.permute.xlu0 %1514
  %v1517 = vmul.f32 %v1510, %v1515
  %1519 = vrot.lane.b32.xlu0 %v1517, 16
  %v1520 = vpop.permute.xlu0 %1519
  %v1522 = vadd.f32 %v1512, %v1520
  %v1523 = vtanh.pop %v1522
  %1525 = vrot.lane.b32.xlu0 %v1523, 32
  %v1526 = vpop.permute.xlu0 %1525
  %v1528 = vmul.f32 %v1510, %v1526
  %1529 = vrot.lane.b32.xlu0 %v1417, 80
  %v1530 = vpop.permute.xlu0 %1529
  %v1531 = vsel %vm45, %v1530, 0
  %1533 = vmatpush.msra.mxu0 0.0
  %1534 = vmatpush.msra.mxu0 0.0
  %1535 = vmatpush.msra.mxu0 0.0
  %1536 = vmatpush.msra.mxu0 0.0
  %1537 = vmatpush.msra.mxu0 0.0
  %1538 = vmatpush.msra.mxu0 0.0
  %1539 = vmatpush.msra.mxu0 0.0
  %1540 = vmatpush.msra.mxu0 0.0
  %1541 = vmatpush.msra.mxu0 0.0
  %1542 = vmatpush.msra.mxu0 0.0
  %1543 = vmatpush.msra.mxu0 0.0
  %1544 = vmatpush.msra.mxu0 0.0
  %1545 = vmatpush.msra.mxu0 0.0
  %1546 = vmatpush.msra.mxu0 0.0
  %1547 = vmatpush.msra.mxu0 %v43
  %1548 = vmatpush.msra.mxu0 %v42
  %1549 = vmatmul.f32.gmra.mxu0 %v1531
  %v1550 = vpop.f32.mrf.mxu0
  %v1551 = vadd.f32 0.0, %v1550
  %1552 = vdwg.mxu0
  %v1553 = vrot.slane %v31, 7
  %v1554 = vrot.slane %v32, 6
  %v1555 = vsel %vm72, %v1554, %v1553
  %v1556 = vsel %vm166, %v1555, 0
  %1558 = vmatpush.msra.mxu0 0.0
  %1559 = vmatpush.msra.mxu0 0.0
  %1560 = vmatpush.msra.mxu0 0.0
  %1561 = vmatpush.msra.mxu0 0.0
  %1562 = vmatpush.msra.mxu0 0.0
  %1563 = vmatpush.msra.mxu0 0.0
  %1564 = vmatpush.msra.mxu0 0.0
  %1565 = vmatpush.msra.mxu0 0.0
  %1566 = vmatpush.msra.mxu0 0.0
  %1567 = vmatpush.msra.mxu0 0.0
  %1568 = vmatpush.msra.mxu0 0.0
  %1569 = vmatpush.msra.mxu0 0.0
  %1570 = vmatpush.msra.mxu0 0.0
  %1571 = vmatpush.msra.mxu0 %v41
  %1572 = vmatpush.msra.mxu0 %v40
  %1573 = vmatpush.msra.mxu0 %v39
  %1574 = vmatmul.f32.gmra.mxu0 %v1556
  %v1575 = vpop.f32.mrf.mxu0
  %v1576 = vadd.f32 %v1551, %v1575
  %1577 = vdwg.mxu0
  %v1578 = vadd.f32 %v1576, %v190
  %v1579 = vxor.u32 %v1578, 2147483648
  %v1580 = vmul.f32 %v1579, 1.442695
  %v1581 = vpow.pop %v1580
  %v1582 = vadd.f32 %v1581, 1.0
  %v1583 = vrcp.pop %v1582
  %v1584 = vmul.f32 %v1582, %v1583
  %v1585 = vsub.f32 1.0, %v1584
  %v1586 = vmul.f32 %v1583, %v1585
  %v1587 = vadd.f32 %v1583, %v1586
  %vm1588 = vweird.f32 %v1582
  %vm1589 = vweird.f32 %v1583
  %vm1590 = vmor %vm1588, %vm1589
  %v1591 = vsel %vm1590, %v1583, %v1587
  %v1592 = vand.u32 2147483647, %v1582
  %vm1593 = vcmp.eq.f32.partialorder %v1592, 8.507059e+37
  %v1594 = vand.u32 %v1582, 2147483648
  %v1595 = vor.u32 1.1754944e-38, %v1594
  %v1596 = vsel %vm1593, %v1595, %v1591
  %v1597 = vmul.f32 1.0, %v1596
  %v1598 = vtanh.pop %v1578
  %v1599 = vmul.f32 %v1597, %v1411
  %1601 = vrot.lane.b32.xlu0 %v1598, 96
  %v1602 = vpop.permute.xlu0 %1601
  %v1604 = vmul.f32 %v1597, %v1602
  %1606 = vrot.lane.b32.xlu0 %v1604, 16
  %v1607 = vpop.permute.xlu0 %1606
  %v1609 = vadd.f32 %v1599, %v1607
  %v1610 = vtanh.pop %v1609
  %1612 = vrot.lane.b32.xlu0 %v1610, 32
  %v1613 = vpop.permute.xlu0 %1612
  %v1615 = vmul.f32 %v1597, %v1613
  %v1617 = vrot.slane %v1615, 1
  %v1618 = vperm.slane %v1615, 0
  %v1619 = vperm.slane %v1617, 0
  %1620 = vrot.lane.b32.xlu0 %v1618, 80
  %v1621 = vpop.permute.xlu0 %1620
  %1622 = vrot.lane.b32.xlu0 %v1619, 80
  %v1623 = vpop.permute.xlu0 %1622
  %1626 = vst.msk [vmem:[%s8 + $0x7] sm:$0x1] %vm240, %v1621
  %1627 = vst.msk [vmem:[%s8 + $0xf] sm:$0x1] %vm240, %v1623
  %v1629 = vrot.slane %v1528, 1
  %v1630 = vperm.slane %v1528, 0
  %v1631 = vperm.slane %v1629, 0
  %1632 = vrot.lane.b32.xlu0 %v1630, 96
  %v1633 = vpop.permute.xlu0 %1632
  %1634 = vrot.lane.b32.xlu0 %v1631, 96
  %v1635 = vpop.permute.xlu0 %1634
  %1638 = vst.msk [vmem:[%s8 + $0x7] sm:$0x1] %vm253, %v1633
  %1639 = vst.msk [vmem:[%s8 + $0xf] sm:$0x1] %vm253, %v1635
  // Predicated region
  $region34: #{custom_model_forward.3} parent=0 // pred_check
    _
  $region35: #{custom_model_forward.3} parent=0 // pred_check_branch
    %1641 = sbr.rel (0) target = $region37
  $region36: #{custom_model_forward.3} parent=0 // pred_region
    _
  $region37: #{custom_model_forward.3} parent=0 // pred_fallthru
    _
  // Predicated region
  $region38: #{custom_model_forward.3} parent=0 // pred_check
    _
  $region39: #{custom_model_forward.3} parent=0 // pred_check_branch
    %1643 = sbr.rel (0) target = $region41
  $region40: #{custom_model_forward.3} parent=0 // pred_region
    _
  $region41: #{custom_model_forward.3} parent=0 // pred_fallthru
    _

// kernel: custom_model_forward.4
$region0: #{custom_model_forward.4}
  #allocation0 [shape = 'u32[]', space=smem, size = 0x4, offset = 0x4, fixed_abs, tag = 'smem constant byte address 0x4 - core index']
  #allocation1 [shape = 'u32[72,128]{1,0:T(1,128)}', space=vmem, size = 0x9000, scoped, tag = 'internal scratch']
  #allocation2 [shape = 'f32[2,8,32]{2,1,0:T(8,128)}', space=vmem, size = 0x2000, scoped, tag = 'scratch operand']
  %s0 = inlined_call_operand.vmem [shape: f32[2,8,32], index: 0, kind: input, shape index: {}]
  %s1 = inlined_call_operand.vmem [shape: f32[32,96], index: 1, kind: input, shape index: {}]
  %s2 = inlined_call_operand.vmem [shape: f32[1,96], index: 2, kind: input, shape index: {}]
  %s3 = inlined_call_operand.vmem [shape: f32[32,32], index: 3, kind: input, shape index: {}]
  %s4 = inlined_call_operand.vmem [shape: f32[1,32], index: 4, kind: input, shape index: {}]
  %s5 = inlined_call_operand.vmem [shape: f32[1,32], index: 5, kind: input, shape index: {}]
  %s6 = inlined_call_operand.vmem [shape: f32[1,32], index: 6, kind: input, shape index: {}]
  %s7 = inlined_call_operand.vmem [shape: f32[32,2048], index: 7, kind: input, shape index: {}]
  %s8 = inlined_call_operand.vmem [shape: f32[1,2048], index: 8, kind: input, shape index: {}]
  %s9 = inlined_call_operand.vmem [shape: f32[2048,32], index: 9, kind: input, shape index: {}]
  %s10 = inlined_call_operand.vmem [shape: f32[1,32], index: 10, kind: input, shape index: {}]
  %s11 = inlined_call_operand.vmem [shape: f32[1,32], index: 11, kind: input, shape index: {}]
  %s12 = inlined_call_operand.vmem [shape: f32[1,32], index: 12, kind: input, shape index: {}]
  %s13 = inlined_call_operand.vmem [shape: f32[32,96], index: 13, kind: input, shape index: {}]
  %s14 = inlined_call_operand.vmem [shape: f32[1,96], index: 14, kind: input, shape index: {}]
  %s15 = inlined_call_operand.vmem [shape: f32[32,32], index: 15, kind: input, shape index: {}]
  %s16 = inlined_call_operand.vmem [shape: f32[1,32], index: 16, kind: input, shape index: {}]
  %s17 = inlined_call_operand.vmem [shape: f32[1,32], index: 17, kind: input, shape index: {}]
  %s18 = inlined_call_operand.vmem [shape: f32[1,32], index: 18, kind: input, shape index: {}]
  %s19 = inlined_call_operand.vmem [shape: f32[32,2048], index: 19, kind: input, shape index: {}]
  %s20 = inlined_call_operand.vmem [shape: f32[1,2048], index: 20, kind: input, shape index: {}]
  %s21 = inlined_call_operand.vmem [shape: f32[2048,32], index: 21, kind: input, shape index: {}]
  %s22 = inlined_call_operand.vmem [shape: f32[1,32], index: 22, kind: input, shape index: {}]
  %s23 = inlined_call_operand.vmem [shape: f32[1,32], index: 23, kind: input, shape index: {}]
  %s24 = inlined_call_operand.vmem [shape: f32[1,32], index: 24, kind: input, shape index: {}]
  %s25 = inlined_call_operand.vmem [shape: f32[2,8,32], index: 25, kind: output, shape index: {}]
  %s26 = sld [smem:[#allocation0]]
  $region110: #{custom_model_forward.4} parent=0
    _
  %s28 = ssub.s32 1, %s26
  %s29 = scalar_select 0, %s28, %s26
  // Predicated region
  $region2: #{custom_model_forward.4} parent=0 // pred_check
    _
  $region3: #{custom_model_forward.4} parent=0 // pred_check_branch
    %31 = sbr.rel (0) target = $region5
  $region4: #{custom_model_forward.4} parent=0 // pred_region
    _
  $region5: #{custom_model_forward.4} parent=0 // pred_fallthru
    _
  // Predicated region
  $region6: #{custom_model_forward.4} parent=0 // pred_check
    _
  $region7: #{custom_model_forward.4} parent=0 // pred_check_branch
    %33 = sbr.rel (0) target = $region9
  $region8: #{custom_model_forward.4} parent=0 // pred_region
    _
  $region9: #{custom_model_forward.4} parent=0 // pred_fallthru
    _
  // Predicated region
  $region10: #{custom_model_forward.4} parent=0 // pred_check
    _
  $region11: #{custom_model_forward.4} parent=0 // pred_check_branch
    %35 = sbr.rel (0) target = $region13
  $region12: #{custom_model_forward.4} parent=0 // pred_region
    _
  $region13: #{custom_model_forward.4} parent=0 // pred_fallthru
    _
  // Predicated region
  $region14: #{custom_model_forward.4} parent=0 // pred_check
    _
  $region15: #{custom_model_forward.4} parent=0 // pred_check_branch
    %37 = sbr.rel (0) target = $region17
  $region16: #{custom_model_forward.4} parent=0 // pred_region
    _
  $region17: #{custom_model_forward.4} parent=0 // pred_fallthru
    _
  // Predicated region
  $region18: #{custom_model_forward.4} parent=0 // pred_check
    _
  $region19: #{custom_model_forward.4} parent=0 // pred_check_branch
    %39 = sbr.rel (0) target = $region21
  $region20: #{custom_model_forward.4} parent=0 // pred_region
    _
  $region21: #{custom_model_forward.4} parent=0 // pred_fallthru
    _
  // Predicated region
  $region22: #{custom_model_forward.4} parent=0 // pred_check
    _
  $region23: #{custom_model_forward.4} parent=0 // pred_check_branch
    %41 = sbr.rel (0) target = $region25
  $region24: #{custom_model_forward.4} parent=0 // pred_region
    _
  $region25: #{custom_model_forward.4} parent=0 // pred_fallthru
    _
  // Predicated region
  $region26: #{custom_model_forward.4} parent=0 // pred_check
    _
  $region27: #{custom_model_forward.4} parent=0 // pred_check_branch
    %43 = sbr.rel (0) target = $region29
  $region28: #{custom_model_forward.4} parent=0 // pred_region
    _
  $region29: #{custom_model_forward.4} parent=0 // pred_fallthru
    _
  // Predicated region
  $region30: #{custom_model_forward.4} parent=0 // pred_check
    _
  $region31: #{custom_model_forward.4} parent=0 // pred_check_branch
    %45 = sbr.rel (0) target = $region33
  $region32: #{custom_model_forward.4} parent=0 // pred_region
    _
  $region33: #{custom_model_forward.4} parent=0 // pred_fallthru
    _
  // Predicated region
  $region34: #{custom_model_forward.4} parent=0 // pred_check
    _
  $region35: #{custom_model_forward.4} parent=0 // pred_check_branch
    %47 = sbr.rel (0) target = $region37
  $region36: #{custom_model_forward.4} parent=0 // pred_region
    _
  $region37: #{custom_model_forward.4} parent=0 // pred_fallthru
    _
  // Predicated region
  $region38: #{custom_model_forward.4} parent=0 // pred_check
    _
  $region39: #{custom_model_forward.4} parent=0 // pred_check_branch
    %49 = sbr.rel (0) target = $region41
  $region40: #{custom_model_forward.4} parent=0 // pred_region
    _
  $region41: #{custom_model_forward.4} parent=0 // pred_fallthru
    _
  // Predicated region
  $region42: #{custom_model_forward.4} parent=0 // pred_check
    _
  $region43: #{custom_model_forward.4} parent=0 // pred_check_branch
    %51 = sbr.rel (0) target = $region45
  $region44: #{custom_model_forward.4} parent=0 // pred_region
    _
  $region45: #{custom_model_forward.4} parent=0 // pred_fallthru
    _
  // Predicated region
  $region46: #{custom_model_forward.4} parent=0 // pred_check
    _
  $region47: #{custom_model_forward.4} parent=0 // pred_check_branch
    %53 = sbr.rel (0) target = $region49
  $region48: #{custom_model_forward.4} parent=0 // pred_region
    _
  $region49: #{custom_model_forward.4} parent=0 // pred_fallthru
    _
  // Predicated region
  $region50: #{custom_model_forward.4} parent=0 // pred_check
    _
  $region51: #{custom_model_forward.4} parent=0 // pred_check_branch
    %55 = sbr.rel (0) target = $region53
  $region52: #{custom_model_forward.4} parent=0 // pred_region
    _
  $region53: #{custom_model_forward.4} parent=0 // pred_fallthru
    _
  // Predicated region
  $region54: #{custom_model_forward.4} parent=0 // pred_check
    _
  $region55: #{custom_model_forward.4} parent=0 // pred_check_branch
    %57 = sbr.rel (0) target = $region57
  $region56: #{custom_model_forward.4} parent=0 // pred_region
    _
  $region57: #{custom_model_forward.4} parent=0 // pred_fallthru
    _
  // Predicated region
  $region58: #{custom_model_forward.4} parent=0 // pred_check
    _
  $region59: #{custom_model_forward.4} parent=0 // pred_check_branch
    %59 = sbr.rel (0) target = $region61
  $region60: #{custom_model_forward.4} parent=0 // pred_region
    _
  $region61: #{custom_model_forward.4} parent=0 // pred_fallthru
    _
  // Predicated region
  $region62: #{custom_model_forward.4} parent=0 // pred_check
    _
  $region63: #{custom_model_forward.4} parent=0 // pred_check_branch
    %61 = sbr.rel (0) target = $region65
  $region64: #{custom_model_forward.4} parent=0 // pred_region
    _
  $region65: #{custom_model_forward.4} parent=0 // pred_fallthru
    _
  // Predicated region
  $region66: #{custom_model_forward.4} parent=0 // pred_check
    _
  $region67: #{custom_model_forward.4} parent=0 // pred_check_branch
    %63 = sbr.rel (0) target = $region69
  $region68: #{custom_model_forward.4} parent=0 // pred_region
    _
  $region69: #{custom_model_forward.4} parent=0 // pred_fallthru
    _
  // Predicated region
  $region70: #{custom_model_forward.4} parent=0 // pred_check
    _
  $region71: #{custom_model_forward.4} parent=0 // pred_check_branch
    %65 = sbr.rel (0) target = $region73
  $region72: #{custom_model_forward.4} parent=0 // pred_region
    _
  $region73: #{custom_model_forward.4} parent=0 // pred_fallthru
    _
  // Predicated region
  $region74: #{custom_model_forward.4} parent=0 // pred_check
    _
  $region75: #{custom_model_forward.4} parent=0 // pred_check_branch
    %67 = sbr.rel (0) target = $region77
  $region76: #{custom_model_forward.4} parent=0 // pred_region
    _
  $region77: #{custom_model_forward.4} parent=0 // pred_fallthru
    _
  // Predicated region
  $region78: #{custom_model_forward.4} parent=0 // pred_check
    _
  $region79: #{custom_model_forward.4} parent=0 // pred_check_branch
    %69 = sbr.rel (0) target = $region81
  $region80: #{custom_model_forward.4} parent=0 // pred_region
    _
  $region81: #{custom_model_forward.4} parent=0 // pred_fallthru
    _
  // Predicated region
  $region82: #{custom_model_forward.4} parent=0 // pred_check
    _
  $region83: #{custom_model_forward.4} parent=0 // pred_check_branch
    %71 = sbr.rel (0) target = $region85
  $region84: #{custom_model_forward.4} parent=0 // pred_region
    _
  $region85: #{custom_model_forward.4} parent=0 // pred_fallthru
    _
  // Predicated region
  $region86: #{custom_model_forward.4} parent=0 // pred_check
    _
  $region87: #{custom_model_forward.4} parent=0 // pred_check_branch
    %73 = sbr.rel (0) target = $region89
  $region88: #{custom_model_forward.4} parent=0 // pred_region
    _
  $region89: #{custom_model_forward.4} parent=0 // pred_fallthru
    _
  // Predicated region
  $region90: #{custom_model_forward.4} parent=0 // pred_check
    _
  $region91: #{custom_model_forward.4} parent=0 // pred_check_branch
    %75 = sbr.rel (0) target = $region93
  $region92: #{custom_model_forward.4} parent=0 // pred_region
    _
  $region93: #{custom_model_forward.4} parent=0 // pred_fallthru
    _
  // Predicated region
  $region94: #{custom_model_forward.4} parent=0 // pred_check
    _
  $region95: #{custom_model_forward.4} parent=0 // pred_check_branch
    %77 = sbr.rel (0) target = $region97
  $region96: #{custom_model_forward.4} parent=0 // pred_region
    _
  $region97: #{custom_model_forward.4} parent=0 // pred_fallthru
    _
  // Predicated region
  $region98: #{custom_model_forward.4} parent=0 // pred_check
    _
  $region99: #{custom_model_forward.4} parent=0 // pred_check_branch
    %79 = sbr.rel (0) target = $region101
  $region100: #{custom_model_forward.4} parent=0 // pred_region
    _
  $region101: #{custom_model_forward.4} parent=0 // pred_fallthru
    _
  %v80 = vld [vmem:[%s0] sm:$0xff]
  %v81 = vld [vmem:[%s0 + $0x8] sm:$0xff]
  %v82 = vld [vmem:[%s1] sm:$0xff]
  %v83 = vld [vmem:[%s1 + $0x8] sm:$0xff]
  %v84 = vld [vmem:[%s1 + $0x10] sm:$0xff]
  %v85 = vld [vmem:[%s1 + $0x18] sm:$0xff]
  %v86 = vld [vmem:[%s2] sm:$0x1]
  %v87 = vld [vmem:[%s3] sm:$0xff]
  %v88 = vld [vmem:[%s3 + $0x8] sm:$0xff]
  %v89 = vld [vmem:[%s3 + $0x10] sm:$0xff]
  %v90 = vld [vmem:[%s3 + $0x18] sm:$0xff]
  %v91 = vld [vmem:[%s4] sm:$0x1]
  %v92 = vld [vmem:[%s5] sm:$0x1]
  %v93 = vld [vmem:[%s6] sm:$0x1]
  %v94 = vld [vmem:[%s7] sm:$0xff]
  %v95 = vld [vmem:[%s7 + $0x8] sm:$0xff]
  %v96 = vld [vmem:[%s7 + $0x10] sm:$0xff]
  %v97 = vld [vmem:[%s7 + $0x18] sm:$0xff]
  %v98 = vld [vmem:[%s7 + $0x20] sm:$0xff]
  %v99 = vld [vmem:[%s7 + $0x28] sm:$0xff]
  %v100 = vld [vmem:[%s7 + $0x30] sm:$0xff]
  %v101 = vld [vmem:[%s7 + $0x38] sm:$0xff]
  %v102 = vld [vmem:[%s7 + $0x40] sm:$0xff]
  %v103 = vld [vmem:[%s7 + $0x48] sm:$0xff]
  %v104 = vld [vmem:[%s7 + $0x50] sm:$0xff]
  %v105 = vld [vmem:[%s7 + $0x58] sm:$0xff]
  %v106 = vld [vmem:[%s7 + $0x60] sm:$0xff]
  %v107 = vld [vmem:[%s7 + $0x68] sm:$0xff]
  %v108 = vld [vmem:[%s7 + $0x70] sm:$0xff]
  %v109 = vld [vmem:[%s7 + $0x78] sm:$0xff]
  %v110 = vld [vmem:[%s7 + $0x80] sm:$0xff]
  %v111 = vld [vmem:[%s7 + $0x88] sm:$0xff]
  %v112 = vld [vmem:[%s7 + $0x90] sm:$0xff]
  %v113 = vld [vmem:[%s7 + $0x98] sm:$0xff]
  %v114 = vld [vmem:[%s7 + $0xa0] sm:$0xff]
  %v115 = vld [vmem:[%s7 + $0xa8] sm:$0xff]
  %v116 = vld [vmem:[%s7 + $0xb0] sm:$0xff]
  %v117 = vld [vmem:[%s7 + $0xb8] sm:$0xff]
  %v118 = vld [vmem:[%s7 + $0xc0] sm:$0xff]
  %v119 = vld [vmem:[%s7 + $0xc8] sm:$0xff]
  %v120 = vld [vmem:[%s7 + $0xd0] sm:$0xff]
  %v121 = vld [vmem:[%s7 + $0xd8] sm:$0xff]
  %v122 = vld [vmem:[%s7 + $0xe0] sm:$0xff]
  %v123 = vld [vmem:[%s7 + $0xe8] sm:$0xff]
  %v124 = vld [vmem:[%s7 + $0xf0] sm:$0xff]
  %v125 = vld [vmem:[%s7 + $0xf8] sm:$0xff]
  %v126 = vld [vmem:[%s7 + $0x100] sm:$0xff]
  %v127 = vld [vmem:[%s7 + $0x108] sm:$0xff]
  %v128 = vld [vmem:[%s7 + $0x110] sm:$0xff]
  %v129 = vld [vmem:[%s7 + $0x118] sm:$0xff]
  %v130 = vld [vmem:[%s7 + $0x120] sm:$0xff]
  %v131 = vld [vmem:[%s7 + $0x128] sm:$0xff]
  %v132 = vld [vmem:[%s7 + $0x130] sm:$0xff]
  %v133 = vld [vmem:[%s7 + $0x138] sm:$0xff]
  %v134 = vld [vmem:[%s7 + $0x140] sm:$0xff]
  %v135 = vld [vmem:[%s7 + $0x148] sm:$0xff]
  %v136 = vld [vmem:[%s7 + $0x150] sm:$0xff]
  %v137 = vld [vmem:[%s7 + $0x158] sm:$0xff]
  %v138 = vld [vmem:[%s7 + $0x160] sm:$0xff]
  %v139 = vld [vmem:[%s7 + $0x168] sm:$0xff]
  %v140 = vld [vmem:[%s7 + $0x170] sm:$0xff]
  %v141 = vld [vmem:[%s7 + $0x178] sm:$0xff]
  %v142 = vld [vmem:[%s7 + $0x180] sm:$0xff]
  %v143 = vld [vmem:[%s7 + $0x188] sm:$0xff]
  %v144 = vld [vmem:[%s7 + $0x190] sm:$0xff]
  %v145 = vld [vmem:[%s7 + $0x198] sm:$0xff]
  %v146 = vld [vmem:[%s7 + $0x1a0] sm:$0xff]
  %v147 = vld [vmem:[%s7 + $0x1a8] sm:$0xff]
  %v148 = vld [vmem:[%s7 + $0x1b0] sm:$0xff]
  %v149 = vld [vmem:[%s7 + $0x1b8] sm:$0xff]
  %v150 = vld [vmem:[%s7 + $0x1c0] sm:$0xff]
  %v151 = vld [vmem:[%s7 + $0x1c8] sm:$0xff]
  %v152 = vld [vmem:[%s7 + $0x1d0] sm:$0xff]
  %v153 = vld [vmem:[%s7 + $0x1d8] sm:$0xff]
  %v154 = vld [vmem:[%s7 + $0x1e0] sm:$0xff]
  %v155 = vld [vmem:[%s7 + $0x1e8] sm:$0xff]
  %v156 = vld [vmem:[%s7 + $0x1f0] sm:$0xff]
  %v157 = vld [vmem:[%s7 + $0x1f8] sm:$0xff]
  %v158 = vld [vmem:[%s8] sm:$0xff]
  %v159 = vld [vmem:[%s8 + $0x8] sm:$0xff]
  %v160 = vld [vmem:[%s9] sm:$0xff]
  %v161 = vld [vmem:[%s9 + $0x8] sm:$0xff]
  %v162 = vld [vmem:[%s9 + $0x10] sm:$0xff]
  %v163 = vld [vmem:[%s9 + $0x18] sm:$0xff]
  %v164 = vld [vmem:[%s9 + $0x20] sm:$0xff]
  %v165 = vld [vmem:[%s9 + $0x28] sm:$0xff]
  %v166 = vld [vmem:[%s9 + $0x30] sm:$0xff]
  %v167 = vld [vmem:[%s9 + $0x38] sm:$0xff]
  %v168 = vld [vmem:[%s9 + $0x40] sm:$0xff]
  %v169 = vld [vmem:[%s9 + $0x48] sm:$0xff]
  %v170 = vld [vmem:[%s9 + $0x50] sm:$0xff]
  %v171 = vld [vmem:[%s9 + $0x58] sm:$0xff]
  %v172 = vld [vmem:[%s9 + $0x60] sm:$0xff]
  %v173 = vld [vmem:[%s9 + $0x68] sm:$0xff]
  %v174 = vld [vmem:[%s9 + $0x70] sm:$0xff]
  %v175 = vld [vmem:[%s9 + $0x78] sm:$0xff]
  %v176 = vld [vmem:[%s9 + $0x80] sm:$0xff]
  %v177 = vld [vmem:[%s9 + $0x88] sm:$0xff]
  %v178 = vld [vmem:[%s9 + $0x90] sm:$0xff]
  %v179 = vld [vmem:[%s9 + $0x98] sm:$0xff]
  %v180 = vld [vmem:[%s9 + $0xa0] sm:$0xff]
  %v181 = vld [vmem:[%s9 + $0xa8] sm:$0xff]
  %v182 = vld [vmem:[%s9 + $0xb0] sm:$0xff]
  %v183 = vld [vmem:[%s9 + $0xb8] sm:$0xff]
  %v184 = vld [vmem:[%s9 + $0xc0] sm:$0xff]
  %v185 = vld [vmem:[%s9 + $0xc8] sm:$0xff]
  %v186 = vld [vmem:[%s9 + $0xd0] sm:$0xff]
  %v187 = vld [vmem:[%s9 + $0xd8] sm:$0xff]
  %v188 = vld [vmem:[%s9 + $0xe0] sm:$0xff]
  %v189 = vld [vmem:[%s9 + $0xe8] sm:$0xff]
  %v190 = vld [vmem:[%s9 + $0xf0] sm:$0xff]
  %v191 = vld [vmem:[%s9 + $0xf8] sm:$0xff]
  %v192 = vld [vmem:[%s9 + $0x100] sm:$0xff]
  %v193 = vld [vmem:[%s9 + $0x108] sm:$0xff]
  %v194 = vld [vmem:[%s9 + $0x110] sm:$0xff]
  %v195 = vld [vmem:[%s9 + $0x118] sm:$0xff]
  %v196 = vld [vmem:[%s9 + $0x120] sm:$0xff]
  %v197 = vld [vmem:[%s9 + $0x128] sm:$0xff]
  %v198 = vld [vmem:[%s9 + $0x130] sm:$0xff]
  %v199 = vld [vmem:[%s9 + $0x138] sm:$0xff]
  %v200 = vld [vmem:[%s9 + $0x140] sm:$0xff]
  %v201 = vld [vmem:[%s9 + $0x148] sm:$0xff]
  %v202 = vld [vmem:[%s9 + $0x150] sm:$0xff]
  %v203 = vld [vmem:[%s9 + $0x158] sm:$0xff]
  %v204 = vld [vmem:[%s9 + $0x160] sm:$0xff]
  %v205 = vld [vmem:[%s9 + $0x168] sm:$0xff]
  %v206 = vld [vmem:[%s9 + $0x170] sm:$0xff]
  %v207 = vld [vmem:[%s9 + $0x178] sm:$0xff]
  %v208 = vld [vmem:[%s9 + $0x180] sm:$0xff]
  %v209 = vld [vmem:[%s9 + $0x188] sm:$0xff]
  %v210 = vld [vmem:[%s9 + $0x190] sm:$0xff]
  %v211 = vld [vmem:[%s9 + $0x198] sm:$0xff]
  %v212 = vld [vmem:[%s9 + $0x1a0] sm:$0xff]
  %v213 = vld [vmem:[%s9 + $0x1a8] sm:$0xff]
  %v214 = vld [vmem:[%s9 + $0x1b0] sm:$0xff]
  %v215 = vld [vmem:[%s9 + $0x1b8] sm:$0xff]
  %v216 = vld [vmem:[%s9 + $0x1c0] sm:$0xff]
  %v217 = vld [vmem:[%s9 + $0x1c8] sm:$0xff]
  %v218 = vld [vmem:[%s9 + $0x1d0] sm:$0xff]
  %v219 = vld [vmem:[%s9 + $0x1d8] sm:$0xff]
  %v220 = vld [vmem:[%s9 + $0x1e0] sm:$0xff]
  %v221 = vld [vmem:[%s9 + $0x1e8] sm:$0xff]
  %v222 = vld [vmem:[%s9 + $0x1f0] sm:$0xff]
  %v223 = vld [vmem:[%s9 + $0x1f8] sm:$0xff]
  %v224 = vld [vmem:[%s9 + $0x200] sm:$0xff]
  %v225 = vld [vmem:[%s9 + $0x208] sm:$0xff]
  %v226 = vld [vmem:[%s9 + $0x210] sm:$0xff]
  %v227 = vld [vmem:[%s9 + $0x218] sm:$0xff]
  %v228 = vld [vmem:[%s9 + $0x220] sm:$0xff]
  %v229 = vld [vmem:[%s9 + $0x228] sm:$0xff]
  %v230 = vld [vmem:[%s9 + $0x230] sm:$0xff]
  %v231 = vld [vmem:[%s9 + $0x238] sm:$0xff]
  %v232 = vld [vmem:[%s9 + $0x240] sm:$0xff]
  %v233 = vld [vmem:[%s9 + $0x248] sm:$0xff]
  %v234 = vld [vmem:[%s9 + $0x250] sm:$0xff]
  %v235 = vld [vmem:[%s9 + $0x258] sm:$0xff]
  %v236 = vld [vmem:[%s9 + $0x260] sm:$0xff]
  %v237 = vld [vmem:[%s9 + $0x268] sm:$0xff]
  %v238 = vld [vmem:[%s9 + $0x270] sm:$0xff]
  %v239 = vld [vmem:[%s9 + $0x278] sm:$0xff]
  %v240 = vld [vmem:[%s9 + $0x280] sm:$0xff]
  %v241 = vld [vmem:[%s9 + $0x288] sm:$0xff]
  %v242 = vld [vmem:[%s9 + $0x290] sm:$0xff]
  %v243 = vld [vmem:[%s9 + $0x298] sm:$0xff]
  %v244 = vld [vmem:[%s9 + $0x2a0] sm:$0xff]
  %v245 = vld [vmem:[%s9 + $0x2a8] sm:$0xff]
  %v246 = vld [vmem:[%s9 + $0x2b0] sm:$0xff]
  %v247 = vld [vmem:[%s9 + $0x2b8] sm:$0xff]
  %v248 = vld [vmem:[%s9 + $0x2c0] sm:$0xff]
  %v249 = vld [vmem:[%s9 + $0x2c8] sm:$0xff]
  %v250 = vld [vmem:[%s9 + $0x2d0] sm:$0xff]
  %v251 = vld [vmem:[%s9 + $0x2d8] sm:$0xff]
  %v252 = vld [vmem:[%s9 + $0x2e0] sm:$0xff]
  %v253 = vld [vmem:[%s9 + $0x2e8] sm:$0xff]
  %v254 = vld [vmem:[%s9 + $0x2f0] sm:$0xff]
  %v255 = vld [vmem:[%s9 + $0x2f8] sm:$0xff]
  %v256 = vld [vmem:[%s9 + $0x300] sm:$0xff]
  %v257 = vld [vmem:[%s9 + $0x308] sm:$0xff]
  %v258 = vld [vmem:[%s9 + $0x310] sm:$0xff]
  %v259 = vld [vmem:[%s9 + $0x318] sm:$0xff]
  %v260 = vld [vmem:[%s9 + $0x320] sm:$0xff]
  %v261 = vld [vmem:[%s9 + $0x328] sm:$0xff]
  %v262 = vld [vmem:[%s9 + $0x330] sm:$0xff]
  %v263 = vld [vmem:[%s9 + $0x338] sm:$0xff]
  %v264 = vld [vmem:[%s9 + $0x340] sm:$0xff]
  %v265 = vld [vmem:[%s9 + $0x348] sm:$0xff]
  %v266 = vld [vmem:[%s9 + $0x350] sm:$0xff]
  %v267 = vld [vmem:[%s9 + $0x358] sm:$0xff]
  %v268 = vld [vmem:[%s9 + $0x360] sm:$0xff]
  %v269 = vld [vmem:[%s9 + $0x368] sm:$0xff]
  %v270 = vld [vmem:[%s9 + $0x370] sm:$0xff]
  %v271 = vld [vmem:[%s9 + $0x378] sm:$0xff]
  %v272 = vld [vmem:[%s9 + $0x380] sm:$0xff]
  %v273 = vld [vmem:[%s9 + $0x388] sm:$0xff]
  %v274 = vld [vmem:[%s9 + $0x390] sm:$0xff]
  %v275 = vld [vmem:[%s9 + $0x398] sm:$0xff]
  %v276 = vld [vmem:[%s9 + $0x3a0] sm:$0xff]
  %v277 = vld [vmem:[%s9 + $0x3a8] sm:$0xff]
  %v278 = vld [vmem:[%s9 + $0x3b0] sm:$0xff]
  %v279 = vld [vmem:[%s9 + $0x3b8] sm:$0xff]
  %v280 = vld [vmem:[%s9 + $0x3c0] sm:$0xff]
  %v281 = vld [vmem:[%s9 + $0x3c8] sm:$0xff]
  %v282 = vld [vmem:[%s9 + $0x3d0] sm:$0xff]
  %v283 = vld [vmem:[%s9 + $0x3d8] sm:$0xff]
  %v284 = vld [vmem:[%s9 + $0x3e0] sm:$0xff]
  %v285 = vld [vmem:[%s9 + $0x3e8] sm:$0xff]
  %v286 = vld [vmem:[%s9 + $0x3f0] sm:$0xff]
  %v287 = vld [vmem:[%s9 + $0x3f8] sm:$0xff]
  %v288 = vld [vmem:[%s9 + $0x400] sm:$0xff]
  %v289 = vld [vmem:[%s9 + $0x408] sm:$0xff]
  %v290 = vld [vmem:[%s9 + $0x410] sm:$0xff]
  %v291 = vld [vmem:[%s9 + $0x418] sm:$0xff]
  %v292 = vld [vmem:[%s9 + $0x420] sm:$0xff]
  %v293 = vld [vmem:[%s9 + $0x428] sm:$0xff]
  %v294 = vld [vmem:[%s9 + $0x430] sm:$0xff]
  %v295 = vld [vmem:[%s9 + $0x438] sm:$0xff]
  %v296 = vld [vmem:[%s9 + $0x440] sm:$0xff]
  %v297 = vld [vmem:[%s9 + $0x448] sm:$0xff]
  %v298 = vld [vmem:[%s9 + $0x450] sm:$0xff]
  %v299 = vld [vmem:[%s9 + $0x458] sm:$0xff]
  %v300 = vld [vmem:[%s9 + $0x460] sm:$0xff]
  %v301 = vld [vmem:[%s9 + $0x468] sm:$0xff]
  %v302 = vld [vmem:[%s9 + $0x470] sm:$0xff]
  %v303 = vld [vmem:[%s9 + $0x478] sm:$0xff]
  %v304 = vld [vmem:[%s9 + $0x480] sm:$0xff]
  %v305 = vld [vmem:[%s9 + $0x488] sm:$0xff]
  %v306 = vld [vmem:[%s9 + $0x490] sm:$0xff]
  %v307 = vld [vmem:[%s9 + $0x498] sm:$0xff]
  %v308 = vld [vmem:[%s9 + $0x4a0] sm:$0xff]
  %v309 = vld [vmem:[%s9 + $0x4a8] sm:$0xff]
  %v310 = vld [vmem:[%s9 + $0x4b0] sm:$0xff]
  %v311 = vld [vmem:[%s9 + $0x4b8] sm:$0xff]
  %v312 = vld [vmem:[%s9 + $0x4c0] sm:$0xff]
  %v313 = vld [vmem:[%s9 + $0x4c8] sm:$0xff]
  %v314 = vld [vmem:[%s9 + $0x4d0] sm:$0xff]
  %v315 = vld [vmem:[%s9 + $0x4d8] sm:$0xff]
  %v316 = vld [vmem:[%s9 + $0x4e0] sm:$0xff]
  %v317 = vld [vmem:[%s9 + $0x4e8] sm:$0xff]
  %v318 = vld [vmem:[%s9 + $0x4f0] sm:$0xff]
  %v319 = vld [vmem:[%s9 + $0x4f8] sm:$0xff]
  %v320 = vld [vmem:[%s9 + $0x500] sm:$0xff]
  %v321 = vld [vmem:[%s9 + $0x508] sm:$0xff]
  %v322 = vld [vmem:[%s9 + $0x510] sm:$0xff]
  %v323 = vld [vmem:[%s9 + $0x518] sm:$0xff]
  %v324 = vld [vmem:[%s9 + $0x520] sm:$0xff]
  %v325 = vld [vmem:[%s9 + $0x528] sm:$0xff]
  %v326 = vld [vmem:[%s9 + $0x530] sm:$0xff]
  %v327 = vld [vmem:[%s9 + $0x538] sm:$0xff]
  %v328 = vld [vmem:[%s9 + $0x540] sm:$0xff]
  %v329 = vld [vmem:[%s9 + $0x548] sm:$0xff]
  %v330 = vld [vmem:[%s9 + $0x550] sm:$0xff]
  %v331 = vld [vmem:[%s9 + $0x558] sm:$0xff]
  %v332 = vld [vmem:[%s9 + $0x560] sm:$0xff]
  %v333 = vld [vmem:[%s9 + $0x568] sm:$0xff]
  %v334 = vld [vmem:[%s9 + $0x570] sm:$0xff]
  %v335 = vld [vmem:[%s9 + $0x578] sm:$0xff]
  %v336 = vld [vmem:[%s9 + $0x580] sm:$0xff]
  %v337 = vld [vmem:[%s9 + $0x588] sm:$0xff]
  %v338 = vld [vmem:[%s9 + $0x590] sm:$0xff]
  %v339 = vld [vmem:[%s9 + $0x598] sm:$0xff]
  %v340 = vld [vmem:[%s9 + $0x5a0] sm:$0xff]
  %v341 = vld [vmem:[%s9 + $0x5a8] sm:$0xff]
  %v342 = vld [vmem:[%s9 + $0x5b0] sm:$0xff]
  %v343 = vld [vmem:[%s9 + $0x5b8] sm:$0xff]
  %v344 = vld [vmem:[%s9 + $0x5c0] sm:$0xff]
  %v345 = vld [vmem:[%s9 + $0x5c8] sm:$0xff]
  %v346 = vld [vmem:[%s9 + $0x5d0] sm:$0xff]
  %v347 = vld [vmem:[%s9 + $0x5d8] sm:$0xff]
  %v348 = vld [vmem:[%s9 + $0x5e0] sm:$0xff]
  %v349 = vld [vmem:[%s9 + $0x5e8] sm:$0xff]
  %v350 = vld [vmem:[%s9 + $0x5f0] sm:$0xff]
  %v351 = vld [vmem:[%s9 + $0x5f8] sm:$0xff]
  %v352 = vld [vmem:[%s9 + $0x600] sm:$0xff]
  %v353 = vld [vmem:[%s9 + $0x608] sm:$0xff]
  %v354 = vld [vmem:[%s9 + $0x610] sm:$0xff]
  %v355 = vld [vmem:[%s9 + $0x618] sm:$0xff]
  %v356 = vld [vmem:[%s9 + $0x620] sm:$0xff]
  %v357 = vld [vmem:[%s9 + $0x628] sm:$0xff]
  %v358 = vld [vmem:[%s9 + $0x630] sm:$0xff]
  %v359 = vld [vmem:[%s9 + $0x638] sm:$0xff]
  %v360 = vld [vmem:[%s9 + $0x640] sm:$0xff]
  %v361 = vld [vmem:[%s9 + $0x648] sm:$0xff]
  %v362 = vld [vmem:[%s9 + $0x650] sm:$0xff]
  %v363 = vld [vmem:[%s9 + $0x658] sm:$0xff]
  %v364 = vld [vmem:[%s9 + $0x660] sm:$0xff]
  %v365 = vld [vmem:[%s9 + $0x668] sm:$0xff]
  %v366 = vld [vmem:[%s9 + $0x670] sm:$0xff]
  %v367 = vld [vmem:[%s9 + $0x678] sm:$0xff]
  %v368 = vld [vmem:[%s9 + $0x680] sm:$0xff]
  %v369 = vld [vmem:[%s9 + $0x688] sm:$0xff]
  %v370 = vld [vmem:[%s9 + $0x690] sm:$0xff]
  %v371 = vld [vmem:[%s9 + $0x698] sm:$0xff]
  %v372 = vld [vmem:[%s9 + $0x6a0] sm:$0xff]
  %v373 = vld [vmem:[%s9 + $0x6a8] sm:$0xff]
  %v374 = vld [vmem:[%s9 + $0x6b0] sm:$0xff]
  %v375 = vld [vmem:[%s9 + $0x6b8] sm:$0xff]
  %v376 = vld [vmem:[%s9 + $0x6c0] sm:$0xff]
  %v377 = vld [vmem:[%s9 + $0x6c8] sm:$0xff]
  %v378 = vld [vmem:[%s9 + $0x6d0] sm:$0xff]
  %v379 = vld [vmem:[%s9 + $0x6d8] sm:$0xff]
  %v380 = vld [vmem:[%s9 + $0x6e0] sm:$0xff]
  %v381 = vld [vmem:[%s9 + $0x6e8] sm:$0xff]
  %v382 = vld [vmem:[%s9 + $0x6f0] sm:$0xff]
  %v383 = vld [vmem:[%s9 + $0x6f8] sm:$0xff]
  %v384 = vld [vmem:[%s9 + $0x700] sm:$0xff]
  %v385 = vld [vmem:[%s9 + $0x708] sm:$0xff]
  %v386 = vld [vmem:[%s9 + $0x710] sm:$0xff]
  %v387 = vld [vmem:[%s9 + $0x718] sm:$0xff]
  %v388 = vld [vmem:[%s9 + $0x720] sm:$0xff]
  %v389 = vld [vmem:[%s9 + $0x728] sm:$0xff]
  %v390 = vld [vmem:[%s9 + $0x730] sm:$0xff]
  %v391 = vld [vmem:[%s9 + $0x738] sm:$0xff]
  %v392 = vld [vmem:[%s9 + $0x740] sm:$0xff]
  %v393 = vld [vmem:[%s9 + $0x748] sm:$0xff]
  %v394 = vld [vmem:[%s9 + $0x750] sm:$0xff]
  %v395 = vld [vmem:[%s9 + $0x758] sm:$0xff]
  %v396 = vld [vmem:[%s9 + $0x760] sm:$0xff]
  %v397 = vld [vmem:[%s9 + $0x768] sm:$0xff]
  %v398 = vld [vmem:[%s9 + $0x770] sm:$0xff]
  %v399 = vld [vmem:[%s9 + $0x778] sm:$0xff]
  %v400 = vld [vmem:[%s9 + $0x780] sm:$0xff]
  %v401 = vld [vmem:[%s9 + $0x788] sm:$0xff]
  %v402 = vld [vmem:[%s9 + $0x790] sm:$0xff]
  %v403 = vld [vmem:[%s9 + $0x798] sm:$0xff]
  %v404 = vld [vmem:[%s9 + $0x7a0] sm:$0xff]
  %v405 = vld [vmem:[%s9 + $0x7a8] sm:$0xff]
  %v406 = vld [vmem:[%s9 + $0x7b0] sm:$0xff]
  %v407 = vld [vmem:[%s9 + $0x7b8] sm:$0xff]
  %v408 = vld [vmem:[%s9 + $0x7c0] sm:$0xff]
  %v409 = vld [vmem:[%s9 + $0x7c8] sm:$0xff]
  %v410 = vld [vmem:[%s9 + $0x7d0] sm:$0xff]
  %v411 = vld [vmem:[%s9 + $0x7d8] sm:$0xff]
  %v412 = vld [vmem:[%s9 + $0x7e0] sm:$0xff]
  %v413 = vld [vmem:[%s9 + $0x7e8] sm:$0xff]
  %v414 = vld [vmem:[%s9 + $0x7f0] sm:$0xff]
  %v415 = vld [vmem:[%s9 + $0x7f8] sm:$0xff]
  %v416 = vld [vmem:[%s10] sm:$0x1]
  %v417 = vld [vmem:[%s11] sm:$0x1]
  %v418 = vld [vmem:[%s12] sm:$0x1]
  %v420 = vperm.slane %v86, 0
  %vm422 = vcmask 261120
  %v424 = vsel %vm422, %v80, 0
  %v427 = vsel %vm422, %v81, 0
  %429 = vmatpush.msra.mxu0 0.0
  %430 = vmatpush.msra.mxu0 0.0
  %431 = vmatpush.msra.mxu0 0.0
  %432 = vmatpush.msra.mxu0 0.0
  %433 = vmatpush.msra.mxu0 0.0
  %434 = vmatpush.msra.mxu0 0.0
  %435 = vmatpush.msra.mxu0 0.0
  %436 = vmatpush.msra.mxu0 0.0
  %437 = vmatpush.msra.mxu0 0.0
  %438 = vmatpush.msra.mxu0 0.0
  %439 = vmatpush.msra.mxu0 0.0
  %440 = vmatpush.msra.mxu0 0.0
  %441 = vmatpush.msra.mxu0 %v85
  %442 = vmatpush.msra.mxu0 %v84
  %443 = vmatpush.msra.mxu0 %v83
  %444 = vmatpush.msra.mxu0 %v82
  %445 = vmatmul.f32.gmra.mxu0 %v424
  %v446 = vpop.f32.mrf.mxu0
  %v447 = vadd.f32 %v420, %v446
  %448 = vmatmul.f32.gmra.mxu0 %v427
  %v449 = vpop.f32.mrf.mxu0
  %v450 = vadd.f32 %v420, %v449
  %451 = vdwg.mxu0
  %453 = vrot.lane.b32.xlu0 %v447, 96
  %v454 = vpop.permute.xlu0 %453
  %vm455 = vcmask 64512
  %v456 = vsel %vm455, %v447, 0
  %v458 = vsel %vm455, %v454, 0
  %460 = vmatpush.xpose.msra.mxu0 0.0
  %461 = vmatpush.xpose.msra.mxu0 0.0
  %462 = vmatpush.xpose.msra.mxu0 0.0
  %463 = vmatpush.xpose.msra.mxu0 0.0
  %464 = vmatpush.xpose.msra.mxu0 0.0
  %465 = vmatpush.xpose.msra.mxu0 0.0
  %466 = vmatpush.xpose.msra.mxu0 0.0
  %467 = vmatpush.xpose.msra.mxu0 0.0
  %468 = vmatpush.xpose.msra.mxu0 0.0
  %469 = vmatpush.xpose.msra.mxu0 0.0
  %470 = vmatpush.xpose.msra.mxu0 0.0
  %471 = vmatpush.xpose.msra.mxu0 0.0
  %472 = vmatpush.xpose.msra.mxu0 0.0
  %473 = vmatpush.xpose.msra.mxu0 0.0
  %474 = vmatpush.xpose.msra.mxu0 0.0
  %475 = vmatpush.xpose.msra.mxu0 %v458
  %476 = vmatmul.f32.gmra.mxu0 %v456
  %v477 = vpop.f32.mrf.mxu0
  %v478 = vadd.f32 0.0, %v477
  %479 = vdwg.mxu0
  %481 = vrot.lane.b32.xlu0 %v450, 96
  %v482 = vpop.permute.xlu0 %481
  %v483 = vsel %vm455, %v450, 0
  %v485 = vsel %vm455, %v482, 0
  %487 = vmatpush.xpose.msra.mxu0 0.0
  %488 = vmatpush.xpose.msra.mxu0 0.0
  %489 = vmatpush.xpose.msra.mxu0 0.0
  %490 = vmatpush.xpose.msra.mxu0 0.0
  %491 = vmatpush.xpose.msra.mxu0 0.0
  %492 = vmatpush.xpose.msra.mxu0 0.0
  %493 = vmatpush.xpose.msra.mxu0 0.0
  %494 = vmatpush.xpose.msra.mxu0 0.0
  %495 = vmatpush.xpose.msra.mxu0 0.0
  %496 = vmatpush.xpose.msra.mxu0 0.0
  %497 = vmatpush.xpose.msra.mxu0 0.0
  %498 = vmatpush.xpose.msra.mxu0 0.0
  %499 = vmatpush.xpose.msra.mxu0 0.0
  %500 = vmatpush.xpose.msra.mxu0 0.0
  %501 = vmatpush.xpose.msra.mxu0 0.0
  %502 = vmatpush.xpose.msra.mxu0 %v485
  %503 = vmatmul.f32.gmra.mxu0 %v483
  %v504 = vpop.f32.mrf.mxu0
  %v505 = vadd.f32 0.0, %v504
  %506 = vdwg.mxu0
  %v507 = vmul.f32 %v478, 0.35355338
  %v508 = vmul.f32 %v505, 0.35355338
  %v509 = vsel %vm455, %v507, -inf
  %510 = vmax.xlane.f32.xlu0 %v509
  %v511 = vpop.xlane.xlu0 %510
  %v512 = vsel %vm455, %v508, -inf
  %513 = vmax.xlane.f32.xlu0 %v512
  %v514 = vpop.xlane.xlu0 %513
  %v515 = vsub.f32 %v507, %v511
  %v516 = vsub.f32 %v508, %v514
  %v517 = vmul.f32 %v515, 1.442695
  %v518 = vpow.pop %v517
  %v519 = vmul.f32 %v516, 1.442695
  %v520 = vpow.pop %v519
  %v521 = vsel %vm455, %v518, 0.0
  %522 = vadd.xlane.f32.xlu0 %v521
  %v523 = vpop.xlane.xlu0 %522
  %v524 = vsel %vm455, %v520, 0.0
  %525 = vadd.xlane.f32.xlu0 %v524
  %v526 = vpop.xlane.xlu0 %525
  %v527 = vrcp.pop %v523
  %v528 = vrcp.pop %v526
  %v529 = vmul.f32 %v518, %v527
  %v530 = vmul.f32 %v520, %v528
  %531 = vrot.lane.b32.xlu0 %v447, 64
  %v532 = vpop.permute.xlu0 %531
  %v535 = vsel %vm455, %v529, 0
  %537 = vmatpush.msra.mxu0 0.0
  %538 = vmatpush.msra.mxu0 0.0
  %539 = vmatpush.msra.mxu0 0.0
  %540 = vmatpush.msra.mxu0 0.0
  %541 = vmatpush.msra.mxu0 0.0
  %542 = vmatpush.msra.mxu0 0.0
  %543 = vmatpush.msra.mxu0 0.0
  %544 = vmatpush.msra.mxu0 0.0
  %545 = vmatpush.msra.mxu0 0.0
  %546 = vmatpush.msra.mxu0 0.0
  %547 = vmatpush.msra.mxu0 0.0
  %548 = vmatpush.msra.mxu0 0.0
  %549 = vmatpush.msra.mxu0 0.0
  %550 = vmatpush.msra.mxu0 0.0
  %551 = vmatpush.msra.mxu0 0.0
  %552 = vmatpush.msra.mxu0 %v532
  %553 = vmatmul.f32.gmra.mxu0 %v535
  %v554 = vpop.f32.mrf.mxu0
  %v555 = vadd.f32 0.0, %v554
  %556 = vdwg.mxu0
  %557 = vrot.lane.b32.xlu0 %v450, 64
  %v558 = vpop.permute.xlu0 %557
  %v561 = vsel %vm455, %v530, 0
  %563 = vmatpush.msra.mxu0 0.0
  %564 = vmatpush.msra.mxu0 0.0
  %565 = vmatpush.msra.mxu0 0.0
  %566 = vmatpush.msra.mxu0 0.0
  %567 = vmatpush.msra.mxu0 0.0
  %568 = vmatpush.msra.mxu0 0.0
  %569 = vmatpush.msra.mxu0 0.0
  %570 = vmatpush.msra.mxu0 0.0
  %571 = vmatpush.msra.mxu0 0.0
  %572 = vmatpush.msra.mxu0 0.0
  %573 = vmatpush.msra.mxu0 0.0
  %574 = vmatpush.msra.mxu0 0.0
  %575 = vmatpush.msra.mxu0 0.0
  %576 = vmatpush.msra.mxu0 0.0
  %577 = vmatpush.msra.mxu0 0.0
  %578 = vmatpush.msra.mxu0 %v558
  %579 = vmatmul.f32.gmra.mxu0 %v561
  %v580 = vpop.f32.mrf.mxu0
  %v581 = vadd.f32 0.0, %v580
  %582 = vdwg.mxu0
  %583 = vst.msk [vmem:[#allocation2] sm:$0xff] %vm455, %v555
  %584 = vst.msk [vmem:[#allocation2 + $0x8] sm:$0xff] %vm455, %v581
  %585 = vrot.lane.b32.xlu0 %v447, 120
  %v586 = vpop.permute.xlu0 %585
  %587 = vrot.lane.b32.xlu0 %v447, 88
  %v588 = vpop.permute.xlu0 %587
  %v589 = vsel %vm455, %v586, 0
  %v591 = vsel %vm455, %v588, 0
  %593 = vmatpush.xpose.msra.mxu0 0.0
  %594 = vmatpush.xpose.msra.mxu0 0.0
  %595 = vmatpush.xpose.msra.mxu0 0.0
  %596 = vmatpush.xpose.msra.mxu0 0.0
  %597 = vmatpush.xpose.msra.mxu0 0.0
  %598 = vmatpush.xpose.msra.mxu0 0.0
  %599 = vmatpush.xpose.msra.mxu0 0.0
  %600 = vmatpush.xpose.msra.mxu0 0.0
  %601 = vmatpush.xpose.msra.mxu0 0.0
  %602 = vmatpush.xpose.msra.mxu0 0.0
  %603 = vmatpush.xpose.msra.mxu0 0.0
  %604 = vmatpush.xpose.msra.mxu0 0.0
  %605 = vmatpush.xpose.msra.mxu0 0.0
  %606 = vmatpush.xpose.msra.mxu0 0.0
  %607 = vmatpush.xpose.msra.mxu0 0.0
  %608 = vmatpush.xpose.msra.mxu0 %v591
  %609 = vmatmul.f32.gmra.mxu0 %v589
  %v610 = vpop.f32.mrf.mxu0
  %v611 = vadd.f32 0.0, %v610
  %612 = vdwg.mxu0
  %613 = vrot.lane.b32.xlu0 %v450, 120
  %v614 = vpop.permute.xlu0 %613
  %615 = vrot.lane.b32.xlu0 %v450, 88
  %v616 = vpop.permute.xlu0 %615
  %v617 = vsel %vm455, %v614, 0
  %v619 = vsel %vm455, %v616, 0
  %621 = vmatpush.xpose.msra.mxu0 0.0
  %622 = vmatpush.xpose.msra.mxu0 0.0
  %623 = vmatpush.xpose.msra.mxu0 0.0
  %624 = vmatpush.xpose.msra.mxu0 0.0
  %625 = vmatpush.xpose.msra.mxu0 0.0
  %626 = vmatpush.xpose.msra.mxu0 0.0
  %627 = vmatpush.xpose.msra.mxu0 0.0
  %628 = vmatpush.xpose.msra.mxu0 0.0
  %629 = vmatpush.xpose.msra.mxu0 0.0
  %630 = vmatpush.xpose.msra.mxu0 0.0
  %631 = vmatpush.xpose.msra.mxu0 0.0
  %632 = vmatpush.xpose.msra.mxu0 0.0
  %633 = vmatpush.xpose.msra.mxu0 0.0
  %634 = vmatpush.xpose.msra.mxu0 0.0
  %635 = vmatpush.xpose.msra.mxu0 0.0
  %636 = vmatpush.xpose.msra.mxu0 %v619
  %637 = vmatmul.f32.gmra.mxu0 %v617
  %v638 = vpop.f32.mrf.mxu0
  %v639 = vadd.f32 0.0, %v638
  %640 = vdwg.mxu0
  %v641 = vmul.f32 %v611, 0.35355338
  %v642 = vmul.f32 %v639, 0.35355338
  %v643 = vsel %vm455, %v641, -inf
  %644 = vmax.xlane.f32.xlu0 %v643
  %v645 = vpop.xlane.xlu0 %644
  %v646 = vsel %vm455, %v642, -inf
  %647 = vmax.xlane.f32.xlu0 %v646
  %v648 = vpop.xlane.xlu0 %647
  %v649 = vsub.f32 %v641, %v645
  %v650 = vsub.f32 %v642, %v648
  %v651 = vmul.f32 %v649, 1.442695
  %v652 = vpow.pop %v651
  %v653 = vmul.f32 %v650, 1.442695
  %v654 = vpow.pop %v653
  %v655 = vsel %vm455, %v652, 0.0
  %656 = vadd.xlane.f32.xlu0 %v655
  %v657 = vpop.xlane.xlu0 %656
  %v658 = vsel %vm455, %v654, 0.0
  %659 = vadd.xlane.f32.xlu0 %v658
  %v660 = vpop.xlane.xlu0 %659
  %v661 = vrcp.pop %v657
  %v662 = vrcp.pop %v660
  %v663 = vmul.f32 %v652, %v661
  %v664 = vmul.f32 %v654, %v662
  %665 = vrot.lane.b32.xlu0 %v447, 56
  %v666 = vpop.permute.xlu0 %665
  %v669 = vsel %vm455, %v663, 0
  %671 = vmatpush.msra.mxu0 0.0
  %672 = vmatpush.msra.mxu0 0.0
  %673 = vmatpush.msra.mxu0 0.0
  %674 = vmatpush.msra.mxu0 0.0
  %675 = vmatpush.msra.mxu0 0.0
  %676 = vmatpush.msra.mxu0 0.0
  %677 = vmatpush.msra.mxu0 0.0
  %678 = vmatpush.msra.mxu0 0.0
  %679 = vmatpush.msra.mxu0 0.0
  %680 = vmatpush.msra.mxu0 0.0
  %681 = vmatpush.msra.mxu0 0.0
  %682 = vmatpush.msra.mxu0 0.0
  %683 = vmatpush.msra.mxu0 0.0
  %684 = vmatpush.msra.mxu0 0.0
  %685 = vmatpush.msra.mxu0 0.0
  %686 = vmatpush.msra.mxu0 %v666
  %687 = vmatmul.f32.gmra.mxu0 %v669
  %v688 = vpop.f32.mrf.mxu0
  %v689 = vadd.f32 0.0, %v688
  %690 = vdwg.mxu0
  %691 = vrot.lane.b32.xlu0 %v450, 56
  %v692 = vpop.permute.xlu0 %691
  %v695 = vsel %vm455, %v664, 0
  %697 = vmatpush.msra.mxu0 0.0
  %698 = vmatpush.msra.mxu0 0.0
  %699 = vmatpush.msra.mxu0 0.0
  %700 = vmatpush.msra.mxu0 0.0
  %701 = vmatpush.msra.mxu0 0.0
  %702 = vmatpush.msra.mxu0 0.0
  %703 = vmatpush.msra.mxu0 0.0
  %704 = vmatpush.msra.mxu0 0.0
  %705 = vmatpush.msra.mxu0 0.0
  %706 = vmatpush.msra.mxu0 0.0
  %707 = vmatpush.msra.mxu0 0.0
  %708 = vmatpush.msra.mxu0 0.0
  %709 = vmatpush.msra.mxu0 0.0
  %710 = vmatpush.msra.mxu0 0.0
  %711 = vmatpush.msra.mxu0 0.0
  %712 = vmatpush.msra.mxu0 %v692
  %713 = vmatmul.f32.gmra.mxu0 %v695
  %v714 = vpop.f32.mrf.mxu0
  %v715 = vadd.f32 0.0, %v714
  %716 = vdwg.mxu0
  %719 = vrot.lane.b32.xlu0 %v689, 8
  %v720 = vpop.permute.xlu0 %719
  %721 = vrot.lane.b32.xlu0 %v715, 8
  %v722 = vpop.permute.xlu0 %721
  %vm725 = vcmask 130112
  %726 = vst.msk [vmem:[#allocation2] sm:$0xff] %vm725, %v720
  %727 = vst.msk [vmem:[#allocation2 + $0x8] sm:$0xff] %vm725, %v722
  %728 = vrot.lane.b32.xlu0 %v447, 112
  %v729 = vpop.permute.xlu0 %728
  %730 = vrot.lane.b32.xlu0 %v447, 80
  %v731 = vpop.permute.xlu0 %730
  %v732 = vsel %vm455, %v729, 0
  %v734 = vsel %vm455, %v731, 0
  %736 = vmatpush.xpose.msra.mxu0 0.0
  %737 = vmatpush.xpose.msra.mxu0 0.0
  %738 = vmatpush.xpose.msra.mxu0 0.0
  %739 = vmatpush.xpose.msra.mxu0 0.0
  %740 = vmatpush.xpose.msra.mxu0 0.0
  %741 = vmatpush.xpose.msra.mxu0 0.0
  %742 = vmatpush.xpose.msra.mxu0 0.0
  %743 = vmatpush.xpose.msra.mxu0 0.0
  %744 = vmatpush.xpose.msra.mxu0 0.0
  %745 = vmatpush.xpose.msra.mxu0 0.0
  %746 = vmatpush.xpose.msra.mxu0 0.0
  %747 = vmatpush.xpose.msra.mxu0 0.0
  %748 = vmatpush.xpose.msra.mxu0 0.0
  %749 = vmatpush.xpose.msra.mxu0 0.0
  %750 = vmatpush.xpose.msra.mxu0 0.0
  %751 = vmatpush.xpose.msra.mxu0 %v734
  %752 = vmatmul.f32.gmra.mxu0 %v732
  %v753 = vpop.f32.mrf.mxu0
  %v754 = vadd.f32 0.0, %v753
  %755 = vdwg.mxu0
  %756 = vrot.lane.b32.xlu0 %v450, 112
  %v757 = vpop.permute.xlu0 %756
  %758 = vrot.lane.b32.xlu0 %v450, 80
  %v759 = vpop.permute.xlu0 %758
  %v760 = vsel %vm455, %v757, 0
  %v762 = vsel %vm455, %v759, 0
  %764 = vmatpush.xpose.msra.mxu0 0.0
  %765 = vmatpush.xpose.msra.mxu0 0.0
  %766 = vmatpush.xpose.msra.mxu0 0.0
  %767 = vmatpush.xpose.msra.mxu0 0.0
  %768 = vmatpush.xpose.msra.mxu0 0.0
  %769 = vmatpush.xpose.msra.mxu0 0.0
  %770 = vmatpush.xpose.msra.mxu0 0.0
  %771 = vmatpush.xpose.msra.mxu0 0.0
  %772 = vmatpush.xpose.msra.mxu0 0.0
  %773 = vmatpush.xpose.msra.mxu0 0.0
  %774 = vmatpush.xpose.msra.mxu0 0.0
  %775 = vmatpush.xpose.msra.mxu0 0.0
  %776 = vmatpush.xpose.msra.mxu0 0.0
  %777 = vmatpush.xpose.msra.mxu0 0.0
  %778 = vmatpush.xpose.msra.mxu0 0.0
  %779 = vmatpush.xpose.msra.mxu0 %v762
  %780 = vmatmul.f32.gmra.mxu0 %v760
  %v781 = vpop.f32.mrf.mxu0
  %v782 = vadd.f32 0.0, %v781
  %783 = vdwg.mxu0
  %v784 = vmul.f32 %v754, 0.35355338
  %v785 = vmul.f32 %v782, 0.35355338
  %v786 = vsel %vm455, %v784, -inf
  %787 = vmax.xlane.f32.xlu0 %v786
  %v788 = vpop.xlane.xlu0 %787
  %v789 = vsel %vm455, %v785, -inf
  %790 = vmax.xlane.f32.xlu0 %v789
  %v791 = vpop.xlane.xlu0 %790
  %v792 = vsub.f32 %v784, %v788
  %v793 = vsub.f32 %v785, %v791
  %v794 = vmul.f32 %v792, 1.442695
  %v795 = vpow.pop %v794
  %v796 = vmul.f32 %v793, 1.442695
  %v797 = vpow.pop %v796
  %v798 = vsel %vm455, %v795, 0.0
  %799 = vadd.xlane.f32.xlu0 %v798
  %v800 = vpop.xlane.xlu0 %799
  %v801 = vsel %vm455, %v797, 0.0
  %802 = vadd.xlane.f32.xlu0 %v801
  %v803 = vpop.xlane.xlu0 %802
  %v804 = vrcp.pop %v800
  %v805 = vrcp.pop %v803
  %v806 = vmul.f32 %v795, %v804
  %v807 = vmul.f32 %v797, %v805
  %808 = vrot.lane.b32.xlu0 %v447, 48
  %v809 = vpop.permute.xlu0 %808
  %v812 = vsel %vm455, %v806, 0
  %814 = vmatpush.msra.mxu0 0.0
  %815 = vmatpush.msra.mxu0 0.0
  %816 = vmatpush.msra.mxu0 0.0
  %817 = vmatpush.msra.mxu0 0.0
  %818 = vmatpush.msra.mxu0 0.0
  %819 = vmatpush.msra.mxu0 0.0
  %820 = vmatpush.msra.mxu0 0.0
  %821 = vmatpush.msra.mxu0 0.0
  %822 = vmatpush.msra.mxu0 0.0
  %823 = vmatpush.msra.mxu0 0.0
  %824 = vmatpush.msra.mxu0 0.0
  %825 = vmatpush.msra.mxu0 0.0
  %826 = vmatpush.msra.mxu0 0.0
  %827 = vmatpush.msra.mxu0 0.0
  %828 = vmatpush.msra.mxu0 0.0
  %829 = vmatpush.msra.mxu0 %v809
  %830 = vmatmul.f32.gmra.mxu0 %v812
  %v831 = vpop.f32.mrf.mxu0
  %v832 = vadd.f32 0.0, %v831
  %833 = vdwg.mxu0
  %834 = vrot.lane.b32.xlu0 %v450, 48
  %v835 = vpop.permute.xlu0 %834
  %v838 = vsel %vm455, %v807, 0
  %840 = vmatpush.msra.mxu0 0.0
  %841 = vmatpush.msra.mxu0 0.0
  %842 = vmatpush.msra.mxu0 0.0
  %843 = vmatpush.msra.mxu0 0.0
  %844 = vmatpush.msra.mxu0 0.0
  %845 = vmatpush.msra.mxu0 0.0
  %846 = vmatpush.msra.mxu0 0.0
  %847 = vmatpush.msra.mxu0 0.0
  %848 = vmatpush.msra.mxu0 0.0
  %849 = vmatpush.msra.mxu0 0.0
  %850 = vmatpush.msra.mxu0 0.0
  %851 = vmatpush.msra.mxu0 0.0
  %852 = vmatpush.msra.mxu0 0.0
  %853 = vmatpush.msra.mxu0 0.0
  %854 = vmatpush.msra.mxu0 0.0
  %855 = vmatpush.msra.mxu0 %v835
  %856 = vmatmul.f32.gmra.mxu0 %v838
  %v857 = vpop.f32.mrf.mxu0
  %v858 = vadd.f32 0.0, %v857
  %859 = vdwg.mxu0
  %862 = vrot.lane.b32.xlu0 %v832, 16
  %v863 = vpop.permute.xlu0 %862
  %864 = vrot.lane.b32.xlu0 %v858, 16
  %v865 = vpop.permute.xlu0 %864
  %vm868 = vcmask 195712
  %869 = vst.msk [vmem:[#allocation2] sm:$0xff] %vm868, %v863
  %870 = vst.msk [vmem:[#allocation2 + $0x8] sm:$0xff] %vm868, %v865
  %871 = vrot.lane.b32.xlu0 %v447, 104
  %v872 = vpop.permute.xlu0 %871
  %873 = vrot.lane.b32.xlu0 %v447, 72
  %v874 = vpop.permute.xlu0 %873
  %v875 = vsel %vm455, %v872, 0
  %v877 = vsel %vm455, %v874, 0
  %879 = vmatpush.xpose.msra.mxu0 0.0
  %880 = vmatpush.xpose.msra.mxu0 0.0
  %881 = vmatpush.xpose.msra.mxu0 0.0
  %882 = vmatpush.xpose.msra.mxu0 0.0
  %883 = vmatpush.xpose.msra.mxu0 0.0
  %884 = vmatpush.xpose.msra.mxu0 0.0
  %885 = vmatpush.xpose.msra.mxu0 0.0
  %886 = vmatpush.xpose.msra.mxu0 0.0
  %887 = vmatpush.xpose.msra.mxu0 0.0
  %888 = vmatpush.xpose.msra.mxu0 0.0
  %889 = vmatpush.xpose.msra.mxu0 0.0
  %890 = vmatpush.xpose.msra.mxu0 0.0
  %891 = vmatpush.xpose.msra.mxu0 0.0
  %892 = vmatpush.xpose.msra.mxu0 0.0
  %893 = vmatpush.xpose.msra.mxu0 0.0
  %894 = vmatpush.xpose.msra.mxu0 %v877
  %895 = vmatmul.f32.gmra.mxu0 %v875
  %v896 = vpop.f32.mrf.mxu0
  %v897 = vadd.f32 0.0, %v896
  %898 = vdwg.mxu0
  %899 = vrot.lane.b32.xlu0 %v450, 104
  %v900 = vpop.permute.xlu0 %899
  %901 = vrot.lane.b32.xlu0 %v450, 72
  %v902 = vpop.permute.xlu0 %901
  %v903 = vsel %vm455, %v900, 0
  %v905 = vsel %vm455, %v902, 0
  %907 = vmatpush.xpose.msra.mxu0 0.0
  %908 = vmatpush.xpose.msra.mxu0 0.0
  %909 = vmatpush.xpose.msra.mxu0 0.0
  %910 = vmatpush.xpose.msra.mxu0 0.0
  %911 = vmatpush.xpose.msra.mxu0 0.0
  %912 = vmatpush.xpose.msra.mxu0 0.0
  %913 = vmatpush.xpose.msra.mxu0 0.0
  %914 = vmatpush.xpose.msra.mxu0 0.0
  %915 = vmatpush.xpose.msra.mxu0 0.0
  %916 = vmatpush.xpose.msra.mxu0 0.0
  %917 = vmatpush.xpose.msra.mxu0 0.0
  %918 = vmatpush.xpose.msra.mxu0 0.0
  %919 = vmatpush.xpose.msra.mxu0 0.0
  %920 = vmatpush.xpose.msra.mxu0 0.0
  %921 = vmatpush.xpose.msra.mxu0 0.0
  %922 = vmatpush.xpose.msra.mxu0 %v905
  %923 = vmatmul.f32.gmra.mxu0 %v903
  %v924 = vpop.f32.mrf.mxu0
  %v925 = vadd.f32 0.0, %v924
  %926 = vdwg.mxu0
  %v927 = vmul.f32 %v897, 0.35355338
  %v928 = vmul.f32 %v925, 0.35355338
  %v929 = vsel %vm455, %v927, -inf
  %930 = vmax.xlane.f32.xlu0 %v929
  %v931 = vpop.xlane.xlu0 %930
  %v932 = vsel %vm455, %v928, -inf
  %933 = vmax.xlane.f32.xlu0 %v932
  %v934 = vpop.xlane.xlu0 %933
  %v935 = vsub.f32 %v927, %v931
  %v936 = vsub.f32 %v928, %v934
  %v937 = vmul.f32 %v935, 1.442695
  %v938 = vpow.pop %v937
  %v939 = vmul.f32 %v936, 1.442695
  %v940 = vpow.pop %v939
  %v941 = vsel %vm455, %v938, 0.0
  %942 = vadd.xlane.f32.xlu0 %v941
  %v943 = vpop.xlane.xlu0 %942
  %v944 = vsel %vm455, %v940, 0.0
  %945 = vadd.xlane.f32.xlu0 %v944
  %v946 = vpop.xlane.xlu0 %945
  %v947 = vrcp.pop %v943
  %v948 = vrcp.pop %v946
  %v949 = vmul.f32 %v938, %v947
  %v950 = vmul.f32 %v940, %v948
  %951 = vrot.lane.b32.xlu0 %v447, 40
  %v952 = vpop.permute.xlu0 %951
  %v955 = vsel %vm455, %v949, 0
  %957 = vmatpush.msra.mxu0 0.0
  %958 = vmatpush.msra.mxu0 0.0
  %959 = vmatpush.msra.mxu0 0.0
  %960 = vmatpush.msra.mxu0 0.0
  %961 = vmatpush.msra.mxu0 0.0
  %962 = vmatpush.msra.mxu0 0.0
  %963 = vmatpush.msra.mxu0 0.0
  %964 = vmatpush.msra.mxu0 0.0
  %965 = vmatpush.msra.mxu0 0.0
  %966 = vmatpush.msra.mxu0 0.0
  %967 = vmatpush.msra.mxu0 0.0
  %968 = vmatpush.msra.mxu0 0.0
  %969 = vmatpush.msra.mxu0 0.0
  %970 = vmatpush.msra.mxu0 0.0
  %971 = vmatpush.msra.mxu0 0.0
  %972 = vmatpush.msra.mxu0 %v952
  %973 = vmatmul.f32.gmra.mxu0 %v955
  %v974 = vpop.f32.mrf.mxu0
  %v975 = vadd.f32 0.0, %v974
  %976 = vdwg.mxu0
  %977 = vrot.lane.b32.xlu0 %v450, 40
  %v978 = vpop.permute.xlu0 %977
  %v981 = vsel %vm455, %v950, 0
  %983 = vmatpush.msra.mxu0 0.0
  %984 = vmatpush.msra.mxu0 0.0
  %985 = vmatpush.msra.mxu0 0.0
  %986 = vmatpush.msra.mxu0 0.0
  %987 = vmatpush.msra.mxu0 0.0
  %988 = vmatpush.msra.mxu0 0.0
  %989 = vmatpush.msra.mxu0 0.0
  %990 = vmatpush.msra.mxu0 0.0
  %991 = vmatpush.msra.mxu0 0.0
  %992 = vmatpush.msra.mxu0 0.0
  %993 = vmatpush.msra.mxu0 0.0
  %994 = vmatpush.msra.mxu0 0.0
  %995 = vmatpush.msra.mxu0 0.0
  %996 = vmatpush.msra.mxu0 0.0
  %997 = vmatpush.msra.mxu0 0.0
  %998 = vmatpush.msra.mxu0 %v978
  %999 = vmatmul.f32.gmra.mxu0 %v981
  %v1000 = vpop.f32.mrf.mxu0
  %v1001 = vadd.f32 0.0, %v1000
  %1002 = vdwg.mxu0
  %1005 = vrot.lane.b32.xlu0 %v975, 24
  %v1006 = vpop.permute.xlu0 %1005
  %1007 = vrot.lane.b32.xlu0 %v1001, 24
  %v1008 = vpop.permute.xlu0 %1007
  %vm1011 = vcmask 261312
  %1012 = vst.msk [vmem:[#allocation2] sm:$0xff] %vm1011, %v1006
  %1013 = vst.msk [vmem:[#allocation2 + $0x8] sm:$0xff] %vm1011, %v1008
  %v1014 = vld [vmem:[#allocation2] sm:$0xff]
  %v1015 = vld [vmem:[#allocation2 + $0x8] sm:$0xff]
  %v1017 = vperm.slane %v91, 0
  %v1020 = vsel %vm422, %v1014, 0
  %v1023 = vsel %vm422, %v1015, 0
  %1025 = vmatpush.msra.mxu0 0.0
  %1026 = vmatpush.msra.mxu0 0.0
  %1027 = vmatpush.msra.mxu0 0.0
  %1028 = vmatpush.msra.mxu0 0.0
  %1029 = vmatpush.msra.mxu0 0.0
  %1030 = vmatpush.msra.mxu0 0.0
  %1031 = vmatpush.msra.mxu0 0.0
  %1032 = vmatpush.msra.mxu0 0.0
  %1033 = vmatpush.msra.mxu0 0.0
  %1034 = vmatpush.msra.mxu0 0.0
  %1035 = vmatpush.msra.mxu0 0.0
  %1036 = vmatpush.msra.mxu0 0.0
  %1037 = vmatpush.msra.mxu0 %v90
  %1038 = vmatpush.msra.mxu0 %v89
  %1039 = vmatpush.msra.mxu0 %v88
  %1040 = vmatpush.msra.mxu0 %v87
  %1041 = vmatmul.f32.gmra.mxu0 %v1020
  %v1042 = vpop.f32.mrf.mxu0
  %v1043 = vadd.f32 %v1017, %v1042
  %1044 = vmatmul.f32.gmra.mxu0 %v1023
  %v1045 = vpop.f32.mrf.mxu0
  %v1046 = vadd.f32 %v1017, %v1045
  %1047 = vdwg.mxu0
  %v1048 = vadd.f32 %v80, %v1043
  %v1049 = vadd.f32 %v81, %v1046
  %v1050 = vsel %vm422, %v1048, 0.0
  %1051 = vadd.xlane.f32.xlu0 %v1050
  %v1052 = vpop.xlane.xlu0 %1051
  %v1053 = vsel %vm422, %v1049, 0.0
  %1054 = vadd.xlane.f32.xlu0 %v1053
  %v1055 = vpop.xlane.xlu0 %1054
  %v1056 = vrcp.pop 32.0
  %v1057 = vmul.f32 32.0, %v1056
  %v1058 = vsub.f32 1.0, %v1057
  %v1059 = vmul.f32 %v1056, %v1058
  %v1060 = vadd.f32 %v1056, %v1059
  %vm1061 = vweird.f32 %v1056
  %v1062 = vsel %vm1061, %v1056, %v1060
  %v1063 = vmul.f32 %v1052, %v1062
  %v1064 = vmul.f32 %v1055, %v1062
  %v1065 = vsub.f32 %v1048, %v1063
  %v1066 = vsub.f32 %v1049, %v1064
  %v1067 = vmul.f32 %v1065, %v1065
  %v1068 = vmul.f32 %v1066, %v1066
  %v1069 = vsel %vm422, %v1067, 0.0
  %1070 = vadd.xlane.f32.xlu0 %v1069
  %v1071 = vpop.xlane.xlu0 %1070
  %v1072 = vsel %vm422, %v1068, 0.0
  %1073 = vadd.xlane.f32.xlu0 %v1072
  %v1074 = vpop.xlane.xlu0 %1073
  %v1075 = vmul.f32 %v1071, %v1062
  %v1076 = vmul.f32 %v1074, %v1062
  %v1077 = vadd.f32 %v1075, 1e-05
  %v1078 = vadd.f32 %v1076, 1e-05
  %v1079 = vrsqrt.pop %v1077
  %v1080 = vmul.f32 %v1079, %v1077
  %v1081 = vmul.f32 %v1080, %v1079
  %v1082 = vmul.f32 0.5, %v1081
  %v1083 = vsub.f32 1.5, %v1082
  %v1084 = vmul.f32 %v1079, %v1083
  %vm1085 = vweird.f32 %v1077
  %vm1086 = vweird.f32 %v1079
  %vm1087 = vmor %vm1085, %vm1086
  %v1088 = vsel %vm1087, %v1079, %v1084
  %v1089 = vrsqrt.pop %v1078
  %v1090 = vmul.f32 %v1089, %v1078
  %v1091 = vmul.f32 %v1090, %v1089
  %v1092 = vmul.f32 0.5, %v1091
  %v1093 = vsub.f32 1.5, %v1092
  %v1094 = vmul.f32 %v1089, %v1093
  %vm1095 = vweird.f32 %v1078
  %vm1096 = vweird.f32 %v1089
  %vm1097 = vmor %vm1095, %vm1096
  %v1098 = vsel %vm1097, %v1089, %v1094
  %v1099 = vmul.f32 %v1065, %v1088
  %v1100 = vmul.f32 %v1066, %v1098
  %v1102 = vperm.slane %v92, 0
  %v1104 = vmul.f32 %v1099, %v1102
  %v1105 = vmul.f32 %v1100, %v1102
  %v1107 = vperm.slane %v93, 0
  %v1109 = vadd.f32 %v1104, %v1107
  %v1110 = vadd.f32 %v1105, %v1107
  %v1113 = vperm.slane %v158, 0
  %v1114 = vperm.slane %v158, 1
  %v1115 = vperm.slane %v158, 2
  %v1116 = vperm.slane %v158, 3
  %v1117 = vperm.slane %v158, 4
  %v1118 = vperm.slane %v158, 5
  %v1119 = vperm.slane %v158, 6
  %v1120 = vperm.slane %v158, 7
  %v1121 = vperm.slane %v159, 0
  %v1122 = vperm.slane %v159, 1
  %v1123 = vperm.slane %v159, 2
  %v1124 = vperm.slane %v159, 3
  %v1125 = vperm.slane %v159, 4
  %v1126 = vperm.slane %v159, 5
  %v1127 = vperm.slane %v159, 6
  %v1128 = vperm.slane %v159, 7
  %v1146 = vsel %vm422, %v1109, 0
  %v1149 = vsel %vm422, %v1110, 0
  %1151 = vmatpush.msra.mxu0 0.0
  %1152 = vmatpush.msra.mxu0 0.0
  %1153 = vmatpush.msra.mxu0 0.0
  %1154 = vmatpush.msra.mxu0 0.0
  %1155 = vmatpush.msra.mxu0 0.0
  %1156 = vmatpush.msra.mxu0 0.0
  %1157 = vmatpush.msra.mxu0 0.0
  %1158 = vmatpush.msra.mxu0 0.0
  %1159 = vmatpush.msra.mxu0 0.0
  %1160 = vmatpush.msra.mxu0 0.0
  %1161 = vmatpush.msra.mxu0 0.0
  %1162 = vmatpush.msra.mxu0 0.0
  %1163 = vmatpush.msra.mxu0 %v142
  %1164 = vmatpush.msra.mxu0 %v126
  %1165 = vmatpush.msra.mxu0 %v110
  %1166 = vmatpush.msra.mxu0 %v94
  %1167 = vmatmul.f32.gmra.mxu0 %v1146
  %v1168 = vpop.f32.mrf.mxu0
  %v1169 = vadd.f32 %v1113, %v1168
  %1170 = vmatmul.f32.gmra.mxu0 %v1149
  %v1171 = vpop.f32.mrf.mxu0
  %v1172 = vadd.f32 %v1113, %v1171
  %1173 = vdwg.mxu0
  %1174 = vmatpush.msra.mxu0 0.0
  %1175 = vmatpush.msra.mxu0 0.0
  %1176 = vmatpush.msra.mxu0 0.0
  %1177 = vmatpush.msra.mxu0 0.0
  %1178 = vmatpush.msra.mxu0 0.0
  %1179 = vmatpush.msra.mxu0 0.0
  %1180 = vmatpush.msra.mxu0 0.0
  %1181 = vmatpush.msra.mxu0 0.0
  %1182 = vmatpush.msra.mxu0 0.0
  %1183 = vmatpush.msra.mxu0 0.0
  %1184 = vmatpush.msra.mxu0 0.0
  %1185 = vmatpush.msra.mxu0 0.0
  %1186 = vmatpush.msra.mxu0 %v143
  %1187 = vmatpush.msra.mxu0 %v127
  %1188 = vmatpush.msra.mxu0 %v111
  %1189 = vmatpush.msra.mxu0 %v95
  %1190 = vmatmul.f32.gmra.mxu0 %v1146
  %v1191 = vpop.f32.mrf.mxu0
  %v1192 = vadd.f32 %v1114, %v1191
  %1193 = vmatmul.f32.gmra.mxu0 %v1149
  %v1194 = vpop.f32.mrf.mxu0
  %v1195 = vadd.f32 %v1114, %v1194
  %1196 = vdwg.mxu0
  %1197 = vmatpush.msra.mxu0 0.0
  %1198 = vmatpush.msra.mxu0 0.0
  %1199 = vmatpush.msra.mxu0 0.0
  %1200 = vmatpush.msra.mxu0 0.0
  %1201 = vmatpush.msra.mxu0 0.0
  %1202 = vmatpush.msra.mxu0 0.0
  %1203 = vmatpush.msra.mxu0 0.0
  %1204 = vmatpush.msra.mxu0 0.0
  %1205 = vmatpush.msra.mxu0 0.0
  %1206 = vmatpush.msra.mxu0 0.0
  %1207 = vmatpush.msra.mxu0 0.0
  %1208 = vmatpush.msra.mxu0 0.0
  %1209 = vmatpush.msra.mxu0 %v144
  %1210 = vmatpush.msra.mxu0 %v128
  %1211 = vmatpush.msra.mxu0 %v112
  %1212 = vmatpush.msra.mxu0 %v96
  %1213 = vmatmul.f32.gmra.mxu0 %v1146
  %v1214 = vpop.f32.mrf.mxu0
  %v1215 = vadd.f32 %v1115, %v1214
  %1216 = vmatmul.f32.gmra.mxu0 %v1149
  %v1217 = vpop.f32.mrf.mxu0
  %v1218 = vadd.f32 %v1115, %v1217
  %1219 = vdwg.mxu0
  %1220 = vmatpush.msra.mxu0 0.0
  %1221 = vmatpush.msra.mxu0 0.0
  %1222 = vmatpush.msra.mxu0 0.0
  %1223 = vmatpush.msra.mxu0 0.0
  %1224 = vmatpush.msra.mxu0 0.0
  %1225 = vmatpush.msra.mxu0 0.0
  %1226 = vmatpush.msra.mxu0 0.0
  %1227 = vmatpush.msra.mxu0 0.0
  %1228 = vmatpush.msra.mxu0 0.0
  %1229 = vmatpush.msra.mxu0 0.0
  %1230 = vmatpush.msra.mxu0 0.0
  %1231 = vmatpush.msra.mxu0 0.0
  %1232 = vmatpush.msra.mxu0 %v145
  %1233 = vmatpush.msra.mxu0 %v129
  %1234 = vmatpush.msra.mxu0 %v113
  %1235 = vmatpush.msra.mxu0 %v97
  %1236 = vmatmul.f32.gmra.mxu0 %v1146
  %v1237 = vpop.f32.mrf.mxu0
  %v1238 = vadd.f32 %v1116, %v1237
  %1239 = vmatmul.f32.gmra.mxu0 %v1149
  %v1240 = vpop.f32.mrf.mxu0
  %v1241 = vadd.f32 %v1116, %v1240
  %1242 = vdwg.mxu0
  %1243 = vmatpush.msra.mxu0 0.0
  %1244 = vmatpush.msra.mxu0 0.0
  %1245 = vmatpush.msra.mxu0 0.0
  %1246 = vmatpush.msra.mxu0 0.0
  %1247 = vmatpush.msra.mxu0 0.0
  %1248 = vmatpush.msra.mxu0 0.0
  %1249 = vmatpush.msra.mxu0 0.0
  %1250 = vmatpush.msra.mxu0 0.0
  %1251 = vmatpush.msra.mxu0 0.0
  %1252 = vmatpush.msra.mxu0 0.0
  %1253 = vmatpush.msra.mxu0 0.0
  %1254 = vmatpush.msra.mxu0 0.0
  %1255 = vmatpush.msra.mxu0 %v146
  %1256 = vmatpush.msra.mxu0 %v130
  %1257 = vmatpush.msra.mxu0 %v114
  %1258 = vmatpush.msra.mxu0 %v98
  %1259 = vmatmul.f32.gmra.mxu0 %v1146
  %v1260 = vpop.f32.mrf.mxu0
  %v1261 = vadd.f32 %v1117, %v1260
  %1262 = vmatmul.f32.gmra.mxu0 %v1149
  %v1263 = vpop.f32.mrf.mxu0
  %v1264 = vadd.f32 %v1117, %v1263
  %1265 = vdwg.mxu0
  %1266 = vmatpush.msra.mxu0 0.0
  %1267 = vmatpush.msra.mxu0 0.0
  %1268 = vmatpush.msra.mxu0 0.0
  %1269 = vmatpush.msra.mxu0 0.0
  %1270 = vmatpush.msra.mxu0 0.0
  %1271 = vmatpush.msra.mxu0 0.0
  %1272 = vmatpush.msra.mxu0 0.0
  %1273 = vmatpush.msra.mxu0 0.0
  %1274 = vmatpush.msra.mxu0 0.0
  %1275 = vmatpush.msra.mxu0 0.0
  %1276 = vmatpush.msra.mxu0 0.0
  %1277 = vmatpush.msra.mxu0 0.0
  %1278 = vmatpush.msra.mxu0 %v147
  %1279 = vmatpush.msra.mxu0 %v131
  %1280 = vmatpush.msra.mxu0 %v115
  %1281 = vmatpush.msra.mxu0 %v99
  %1282 = vmatmul.f32.gmra.mxu0 %v1146
  %v1283 = vpop.f32.mrf.mxu0
  %v1284 = vadd.f32 %v1118, %v1283
  %1285 = vmatmul.f32.gmra.mxu0 %v1149
  %v1286 = vpop.f32.mrf.mxu0
  %v1287 = vadd.f32 %v1118, %v1286
  %1288 = vdwg.mxu0
  %1289 = vmatpush.msra.mxu0 0.0
  %1290 = vmatpush.msra.mxu0 0.0
  %1291 = vmatpush.msra.mxu0 0.0
  %1292 = vmatpush.msra.mxu0 0.0
  %1293 = vmatpush.msra.mxu0 0.0
  %1294 = vmatpush.msra.mxu0 0.0
  %1295 = vmatpush.msra.mxu0 0.0
  %1296 = vmatpush.msra.mxu0 0.0
  %1297 = vmatpush.msra.mxu0 0.0
  %1298 = vmatpush.msra.mxu0 0.0
  %1299 = vmatpush.msra.mxu0 0.0
  %1300 = vmatpush.msra.mxu0 0.0
  %1301 = vmatpush.msra.mxu0 %v148
  %1302 = vmatpush.msra.mxu0 %v132
  %1303 = vmatpush.msra.mxu0 %v116
  %1304 = vmatpush.msra.mxu0 %v100
  %1305 = vmatmul.f32.gmra.mxu0 %v1146
  %v1306 = vpop.f32.mrf.mxu0
  %v1307 = vadd.f32 %v1119, %v1306
  %1308 = vmatmul.f32.gmra.mxu0 %v1149
  %v1309 = vpop.f32.mrf.mxu0
  %v1310 = vadd.f32 %v1119, %v1309
  %1311 = vdwg.mxu0
  %1312 = vmatpush.msra.mxu0 0.0
  %1313 = vmatpush.msra.mxu0 0.0
  %1314 = vmatpush.msra.mxu0 0.0
  %1315 = vmatpush.msra.mxu0 0.0
  %1316 = vmatpush.msra.mxu0 0.0
  %1317 = vmatpush.msra.mxu0 0.0
  %1318 = vmatpush.msra.mxu0 0.0
  %1319 = vmatpush.msra.mxu0 0.0
  %1320 = vmatpush.msra.mxu0 0.0
  %1321 = vmatpush.msra.mxu0 0.0
  %1322 = vmatpush.msra.mxu0 0.0
  %1323 = vmatpush.msra.mxu0 0.0
  %1324 = vmatpush.msra.mxu0 %v149
  %1325 = vmatpush.msra.mxu0 %v133
  %1326 = vmatpush.msra.mxu0 %v117
  %1327 = vmatpush.msra.mxu0 %v101
  %1328 = vmatmul.f32.gmra.mxu0 %v1146
  %v1329 = vpop.f32.mrf.mxu0
  %v1330 = vadd.f32 %v1120, %v1329
  %1331 = vmatmul.f32.gmra.mxu0 %v1149
  %v1332 = vpop.f32.mrf.mxu0
  %v1333 = vadd.f32 %v1120, %v1332
  %1334 = vdwg.mxu0
  %1335 = vmatpush.msra.mxu0 0.0
  %1336 = vmatpush.msra.mxu0 0.0
  %1337 = vmatpush.msra.mxu0 0.0
  %1338 = vmatpush.msra.mxu0 0.0
  %1339 = vmatpush.msra.mxu0 0.0
  %1340 = vmatpush.msra.mxu0 0.0
  %1341 = vmatpush.msra.mxu0 0.0
  %1342 = vmatpush.msra.mxu0 0.0
  %1343 = vmatpush.msra.mxu0 0.0
  %1344 = vmatpush.msra.mxu0 0.0
  %1345 = vmatpush.msra.mxu0 0.0
  %1346 = vmatpush.msra.mxu0 0.0
  %1347 = vmatpush.msra.mxu0 %v150
  %1348 = vmatpush.msra.mxu0 %v134
  %1349 = vmatpush.msra.mxu0 %v118
  %1350 = vmatpush.msra.mxu0 %v102
  %1351 = vmatmul.f32.gmra.mxu0 %v1146
  %v1352 = vpop.f32.mrf.mxu0
  %v1353 = vadd.f32 %v1121, %v1352
  %1354 = vmatmul.f32.gmra.mxu0 %v1149
  %v1355 = vpop.f32.mrf.mxu0
  %v1356 = vadd.f32 %v1121, %v1355
  %1357 = vdwg.mxu0
  %1358 = vmatpush.msra.mxu0 0.0
  %1359 = vmatpush.msra.mxu0 0.0
  %1360 = vmatpush.msra.mxu0 0.0
  %1361 = vmatpush.msra.mxu0 0.0
  %1362 = vmatpush.msra.mxu0 0.0
  %1363 = vmatpush.msra.mxu0 0.0
  %1364 = vmatpush.msra.mxu0 0.0
  %1365 = vmatpush.msra.mxu0 0.0
  %1366 = vmatpush.msra.mxu0 0.0
  %1367 = vmatpush.msra.mxu0 0.0
  %1368 = vmatpush.msra.mxu0 0.0
  %1369 = vmatpush.msra.mxu0 0.0
  %1370 = vmatpush.msra.mxu0 %v151
  %1371 = vmatpush.msra.mxu0 %v135
  %1372 = vmatpush.msra.mxu0 %v119
  %1373 = vmatpush.msra.mxu0 %v103
  %1374 = vmatmul.f32.gmra.mxu0 %v1146
  %v1375 = vpop.f32.mrf.mxu0
  %v1376 = vadd.f32 %v1122, %v1375
  %1377 = vmatmul.f32.gmra.mxu0 %v1149
  %v1378 = vpop.f32.mrf.mxu0
  %v1379 = vadd.f32 %v1122, %v1378
  %1380 = vdwg.mxu0
  %1381 = vmatpush.msra.mxu0 0.0
  %1382 = vmatpush.msra.mxu0 0.0
  %1383 = vmatpush.msra.mxu0 0.0
  %1384 = vmatpush.msra.mxu0 0.0
  %1385 = vmatpush.msra.mxu0 0.0
  %1386 = vmatpush.msra.mxu0 0.0
  %1387 = vmatpush.msra.mxu0 0.0
  %1388 = vmatpush.msra.mxu0 0.0
  %1389 = vmatpush.msra.mxu0 0.0
  %1390 = vmatpush.msra.mxu0 0.0
  %1391 = vmatpush.msra.mxu0 0.0
  %1392 = vmatpush.msra.mxu0 0.0
  %1393 = vmatpush.msra.mxu0 %v152
  %1394 = vmatpush.msra.mxu0 %v136
  %1395 = vmatpush.msra.mxu0 %v120
  %1396 = vmatpush.msra.mxu0 %v104
  %1397 = vmatmul.f32.gmra.mxu0 %v1146
  %v1398 = vpop.f32.mrf.mxu0
  %v1399 = vadd.f32 %v1123, %v1398
  %1400 = vmatmul.f32.gmra.mxu0 %v1149
  %v1401 = vpop.f32.mrf.mxu0
  %v1402 = vadd.f32 %v1123, %v1401
  %1403 = vdwg.mxu0
  %1404 = vmatpush.msra.mxu0 0.0
  %1405 = vmatpush.msra.mxu0 0.0
  %1406 = vmatpush.msra.mxu0 0.0
  %1407 = vmatpush.msra.mxu0 0.0
  %1408 = vmatpush.msra.mxu0 0.0
  %1409 = vmatpush.msra.mxu0 0.0
  %1410 = vmatpush.msra.mxu0 0.0
  %1411 = vmatpush.msra.mxu0 0.0
  %1412 = vmatpush.msra.mxu0 0.0
  %1413 = vmatpush.msra.mxu0 0.0
  %1414 = vmatpush.msra.mxu0 0.0
  %1415 = vmatpush.msra.mxu0 0.0
  %1416 = vmatpush.msra.mxu0 %v153
  %1417 = vmatpush.msra.mxu0 %v137
  %1418 = vmatpush.msra.mxu0 %v121
  %1419 = vmatpush.msra.mxu0 %v105
  %1420 = vmatmul.f32.gmra.mxu0 %v1146
  %v1421 = vpop.f32.mrf.mxu0
  %v1422 = vadd.f32 %v1124, %v1421
  %1423 = vmatmul.f32.gmra.mxu0 %v1149
  %v1424 = vpop.f32.mrf.mxu0
  %v1425 = vadd.f32 %v1124, %v1424
  %1426 = vdwg.mxu0
  %1427 = vmatpush.msra.mxu0 0.0
  %1428 = vmatpush.msra.mxu0 0.0
  %1429 = vmatpush.msra.mxu0 0.0
  %1430 = vmatpush.msra.mxu0 0.0
  %1431 = vmatpush.msra.mxu0 0.0
  %1432 = vmatpush.msra.mxu0 0.0
  %1433 = vmatpush.msra.mxu0 0.0
  %1434 = vmatpush.msra.mxu0 0.0
  %1435 = vmatpush.msra.mxu0 0.0
  %1436 = vmatpush.msra.mxu0 0.0
  %1437 = vmatpush.msra.mxu0 0.0
  %1438 = vmatpush.msra.mxu0 0.0
  %1439 = vmatpush.msra.mxu0 %v154
  %1440 = vmatpush.msra.mxu0 %v138
  %1441 = vmatpush.msra.mxu0 %v122
  %1442 = vmatpush.msra.mxu0 %v106
  %1443 = vmatmul.f32.gmra.mxu0 %v1146
  %v1444 = vpop.f32.mrf.mxu0
  %v1445 = vadd.f32 %v1125, %v1444
  %1446 = vmatmul.f32.gmra.mxu0 %v1149
  %v1447 = vpop.f32.mrf.mxu0
  %v1448 = vadd.f32 %v1125, %v1447
  %1449 = vdwg.mxu0
  %1450 = vmatpush.msra.mxu0 0.0
  %1451 = vmatpush.msra.mxu0 0.0
  %1452 = vmatpush.msra.mxu0 0.0
  %1453 = vmatpush.msra.mxu0 0.0
  %1454 = vmatpush.msra.mxu0 0.0
  %1455 = vmatpush.msra.mxu0 0.0
  %1456 = vmatpush.msra.mxu0 0.0
  %1457 = vmatpush.msra.mxu0 0.0
  %1458 = vmatpush.msra.mxu0 0.0
  %1459 = vmatpush.msra.mxu0 0.0
  %1460 = vmatpush.msra.mxu0 0.0
  %1461 = vmatpush.msra.mxu0 0.0
  %1462 = vmatpush.msra.mxu0 %v155
  %1463 = vmatpush.msra.mxu0 %v139
  %1464 = vmatpush.msra.mxu0 %v123
  %1465 = vmatpush.msra.mxu0 %v107
  %1466 = vmatmul.f32.gmra.mxu0 %v1146
  %v1467 = vpop.f32.mrf.mxu0
  %v1468 = vadd.f32 %v1126, %v1467
  %1469 = vmatmul.f32.gmra.mxu0 %v1149
  %v1470 = vpop.f32.mrf.mxu0
  %v1471 = vadd.f32 %v1126, %v1470
  %1472 = vdwg.mxu0
  %1473 = vmatpush.msra.mxu0 0.0
  %1474 = vmatpush.msra.mxu0 0.0
  %1475 = vmatpush.msra.mxu0 0.0
  %1476 = vmatpush.msra.mxu0 0.0
  %1477 = vmatpush.msra.mxu0 0.0
  %1478 = vmatpush.msra.mxu0 0.0
  %1479 = vmatpush.msra.mxu0 0.0
  %1480 = vmatpush.msra.mxu0 0.0
  %1481 = vmatpush.msra.mxu0 0.0
  %1482 = vmatpush.msra.mxu0 0.0
  %1483 = vmatpush.msra.mxu0 0.0
  %1484 = vmatpush.msra.mxu0 0.0
  %1485 = vmatpush.msra.mxu0 %v156
  %1486 = vmatpush.msra.mxu0 %v140
  %1487 = vmatpush.msra.mxu0 %v124
  %1488 = vmatpush.msra.mxu0 %v108
  %1489 = vmatmul.f32.gmra.mxu0 %v1146
  %v1490 = vpop.f32.mrf.mxu0
  %v1491 = vadd.f32 %v1127, %v1490
  %1492 = vmatmul.f32.gmra.mxu0 %v1149
  %v1493 = vpop.f32.mrf.mxu0
  %v1494 = vadd.f32 %v1127, %v1493
  %1495 = vdwg.mxu0
  %1496 = vmatpush.msra.mxu0 0.0
  %1497 = vmatpush.msra.mxu0 0.0
  %1498 = vmatpush.msra.mxu0 0.0
  %1499 = vmatpush.msra.mxu0 0.0
  %1500 = vmatpush.msra.mxu0 0.0
  %1501 = vmatpush.msra.mxu0 0.0
  %1502 = vmatpush.msra.mxu0 0.0
  %1503 = vmatpush.msra.mxu0 0.0
  %1504 = vmatpush.msra.mxu0 0.0
  %1505 = vmatpush.msra.mxu0 0.0
  %1506 = vmatpush.msra.mxu0 0.0
  %1507 = vmatpush.msra.mxu0 0.0
  %1508 = vmatpush.msra.mxu0 %v157
  %1509 = vmatpush.msra.mxu0 %v141
  %1510 = vmatpush.msra.mxu0 %v125
  %1511 = vmatpush.msra.mxu0 %v109
  %1512 = vmatmul.f32.gmra.mxu0 %v1146
  %v1513 = vpop.f32.mrf.mxu0
  %v1514 = vadd.f32 %v1128, %v1513
  %1515 = vmatmul.f32.gmra.mxu0 %v1149
  %v1516 = vpop.f32.mrf.mxu0
  %v1517 = vadd.f32 %v1128, %v1516
  %1518 = vdwg.mxu0
  %v1519 = vmax.f32 %v1169, 0.0
  %v1520 = vmax.f32 %v1192, 0.0
  %v1521 = vmax.f32 %v1215, 0.0
  %v1522 = vmax.f32 %v1238, 0.0
  %v1523 = vmax.f32 %v1261, 0.0
  %v1524 = vmax.f32 %v1284, 0.0
  %v1525 = vmax.f32 %v1307, 0.0
  %v1526 = vmax.f32 %v1330, 0.0
  %v1527 = vmax.f32 %v1353, 0.0
  %v1528 = vmax.f32 %v1376, 0.0
  %v1529 = vmax.f32 %v1399, 0.0
  %v1530 = vmax.f32 %v1422, 0.0
  %v1531 = vmax.f32 %v1445, 0.0
  %v1532 = vmax.f32 %v1468, 0.0
  %v1533 = vmax.f32 %v1491, 0.0
  %v1534 = vmax.f32 %v1514, 0.0
  %v1535 = vmax.f32 %v1172, 0.0
  %v1536 = vmax.f32 %v1195, 0.0
  %v1537 = vmax.f32 %v1218, 0.0
  %v1538 = vmax.f32 %v1241, 0.0
  %v1539 = vmax.f32 %v1264, 0.0
  %v1540 = vmax.f32 %v1287, 0.0
  %v1541 = vmax.f32 %v1310, 0.0
  %v1542 = vmax.f32 %v1333, 0.0
  %v1543 = vmax.f32 %v1356, 0.0
  %v1544 = vmax.f32 %v1379, 0.0
  %v1545 = vmax.f32 %v1402, 0.0
  %v1546 = vmax.f32 %v1425, 0.0
  %v1547 = vmax.f32 %v1448, 0.0
  %v1548 = vmax.f32 %v1471, 0.0
  %v1549 = vmax.f32 %v1494, 0.0
  %v1550 = vmax.f32 %v1517, 0.0
  %v1552 = vperm.slane %v416, 0
  %1554 = vmatpush.msra.mxu0 %v175
  %1555 = vmatpush.msra.mxu0 %v174
  %1556 = vmatpush.msra.mxu0 %v173
  %1557 = vmatpush.msra.mxu0 %v172
  %1558 = vmatpush.msra.mxu0 %v171
  %1559 = vmatpush.msra.mxu0 %v170
  %1560 = vmatpush.msra.mxu0 %v169
  %1561 = vmatpush.msra.mxu0 %v168
  %1562 = vmatpush.msra.mxu0 %v167
  %1563 = vmatpush.msra.mxu0 %v166
  %1564 = vmatpush.msra.mxu0 %v165
  %1565 = vmatpush.msra.mxu0 %v164
  %1566 = vmatpush.msra.mxu0 %v163
  %1567 = vmatpush.msra.mxu0 %v162
  %1568 = vmatpush.msra.mxu0 %v161
  %1569 = vmatpush.msra.mxu0 %v160
  %1570 = vmatmul.f32.gmra.mxu0 %v1519
  %v1571 = vpop.f32.mrf.mxu0
  %v1572 = vadd.f32 %v1552, %v1571
  %1573 = vmatmul.f32.gmra.mxu0 %v1535
  %v1574 = vpop.f32.mrf.mxu0
  %v1575 = vadd.f32 %v1552, %v1574
  %1576 = vdwg.mxu0
  %1577 = vmatpush.msra.mxu0 %v191
  %1578 = vmatpush.msra.mxu0 %v190
  %1579 = vmatpush.msra.mxu0 %v189
  %1580 = vmatpush.msra.mxu0 %v188
  %1581 = vmatpush.msra.mxu0 %v187
  %1582 = vmatpush.msra.mxu0 %v186
  %1583 = vmatpush.msra.mxu0 %v185
  %1584 = vmatpush.msra.mxu0 %v184
  %1585 = vmatpush.msra.mxu0 %v183
  %1586 = vmatpush.msra.mxu0 %v182
  %1587 = vmatpush.msra.mxu0 %v181
  %1588 = vmatpush.msra.mxu0 %v180
  %1589 = vmatpush.msra.mxu0 %v179
  %1590 = vmatpush.msra.mxu0 %v178
  %1591 = vmatpush.msra.mxu0 %v177
  %1592 = vmatpush.msra.mxu0 %v176
  %1593 = vmatmul.f32.gmra.mxu0 %v1520
  %v1594 = vpop.f32.mrf.mxu0
  %v1595 = vadd.f32 %v1572, %v1594
  %1596 = vmatmul.f32.gmra.mxu0 %v1536
  %v1597 = vpop.f32.mrf.mxu0
  %v1598 = vadd.f32 %v1575, %v1597
  %1599 = vdwg.mxu0
  %1600 = vmatpush.msra.mxu0 %v207
  %1601 = vmatpush.msra.mxu0 %v206
  %1602 = vmatpush.msra.mxu0 %v205
  %1603 = vmatpush.msra.mxu0 %v204
  %1604 = vmatpush.msra.mxu0 %v203
  %1605 = vmatpush.msra.mxu0 %v202
  %1606 = vmatpush.msra.mxu0 %v201
  %1607 = vmatpush.msra.mxu0 %v200
  %1608 = vmatpush.msra.mxu0 %v199
  %1609 = vmatpush.msra.mxu0 %v198
  %1610 = vmatpush.msra.mxu0 %v197
  %1611 = vmatpush.msra.mxu0 %v196
  %1612 = vmatpush.msra.mxu0 %v195
  %1613 = vmatpush.msra.mxu0 %v194
  %1614 = vmatpush.msra.mxu0 %v193
  %1615 = vmatpush.msra.mxu0 %v192
  %1616 = vmatmul.f32.gmra.mxu0 %v1521
  %v1617 = vpop.f32.mrf.mxu0
  %v1618 = vadd.f32 %v1595, %v1617
  %1619 = vmatmul.f32.gmra.mxu0 %v1537
  %v1620 = vpop.f32.mrf.mxu0
  %v1621 = vadd.f32 %v1598, %v1620
  %1622 = vdwg.mxu0
  %1623 = vmatpush.msra.mxu0 %v223
  %1624 = vmatpush.msra.mxu0 %v222
  %1625 = vmatpush.msra.mxu0 %v221
  %1626 = vmatpush.msra.mxu0 %v220
  %1627 = vmatpush.msra.mxu0 %v219
  %1628 = vmatpush.msra.mxu0 %v218
  %1629 = vmatpush.msra.mxu0 %v217
  %1630 = vmatpush.msra.mxu0 %v216
  %1631 = vmatpush.msra.mxu0 %v215
  %1632 = vmatpush.msra.mxu0 %v214
  %1633 = vmatpush.msra.mxu0 %v213
  %1634 = vmatpush.msra.mxu0 %v212
  %1635 = vmatpush.msra.mxu0 %v211
  %1636 = vmatpush.msra.mxu0 %v210
  %1637 = vmatpush.msra.mxu0 %v209
  %1638 = vmatpush.msra.mxu0 %v208
  %1639 = vmatmul.f32.gmra.mxu0 %v1522
  %v1640 = vpop.f32.mrf.mxu0
  %v1641 = vadd.f32 %v1618, %v1640
  %1642 = vmatmul.f32.gmra.mxu0 %v1538
  %v1643 = vpop.f32.mrf.mxu0
  %v1644 = vadd.f32 %v1621, %v1643
  %1645 = vdwg.mxu0
  %1646 = vmatpush.msra.mxu0 %v239
  %1647 = vmatpush.msra.mxu0 %v238
  %1648 = vmatpush.msra.mxu0 %v237
  %1649 = vmatpush.msra.mxu0 %v236
  %1650 = vmatpush.msra.mxu0 %v235
  %1651 = vmatpush.msra.mxu0 %v234
  %1652 = vmatpush.msra.mxu0 %v233
  %1653 = vmatpush.msra.mxu0 %v232
  %1654 = vmatpush.msra.mxu0 %v231
  %1655 = vmatpush.msra.mxu0 %v230
  %1656 = vmatpush.msra.mxu0 %v229
  %1657 = vmatpush.msra.mxu0 %v228
  %1658 = vmatpush.msra.mxu0 %v227
  %1659 = vmatpush.msra.mxu0 %v226
  %1660 = vmatpush.msra.mxu0 %v225
  %1661 = vmatpush.msra.mxu0 %v224
  %1662 = vmatmul.f32.gmra.mxu0 %v1523
  %v1663 = vpop.f32.mrf.mxu0
  %v1664 = vadd.f32 %v1641, %v1663
  %1665 = vmatmul.f32.gmra.mxu0 %v1539
  %v1666 = vpop.f32.mrf.mxu0
  %v1667 = vadd.f32 %v1644, %v1666
  %1668 = vdwg.mxu0
  %1669 = vmatpush.msra.mxu0 %v255
  %1670 = vmatpush.msra.mxu0 %v254
  %1671 = vmatpush.msra.mxu0 %v253
  %1672 = vmatpush.msra.mxu0 %v252
  %1673 = vmatpush.msra.mxu0 %v251
  %1674 = vmatpush.msra.mxu0 %v250
  %1675 = vmatpush.msra.mxu0 %v249
  %1676 = vmatpush.msra.mxu0 %v248
  %1677 = vmatpush.msra.mxu0 %v247
  %1678 = vmatpush.msra.mxu0 %v246
  %1679 = vmatpush.msra.mxu0 %v245
  %1680 = vmatpush.msra.mxu0 %v244
  %1681 = vmatpush.msra.mxu0 %v243
  %1682 = vmatpush.msra.mxu0 %v242
  %1683 = vmatpush.msra.mxu0 %v241
  %1684 = vmatpush.msra.mxu0 %v240
  %1685 = vmatmul.f32.gmra.mxu0 %v1524
  %v1686 = vpop.f32.mrf.mxu0
  %v1687 = vadd.f32 %v1664, %v1686
  %1688 = vmatmul.f32.gmra.mxu0 %v1540
  %v1689 = vpop.f32.mrf.mxu0
  %v1690 = vadd.f32 %v1667, %v1689
  %1691 = vdwg.mxu0
  %1692 = vmatpush.msra.mxu0 %v271
  %1693 = vmatpush.msra.mxu0 %v270
  %1694 = vmatpush.msra.mxu0 %v269
  %1695 = vmatpush.msra.mxu0 %v268
  %1696 = vmatpush.msra.mxu0 %v267
  %1697 = vmatpush.msra.mxu0 %v266
  %1698 = vmatpush.msra.mxu0 %v265
  %1699 = vmatpush.msra.mxu0 %v264
  %1700 = vmatpush.msra.mxu0 %v263
  %1701 = vmatpush.msra.mxu0 %v262
  %1702 = vmatpush.msra.mxu0 %v261
  %1703 = vmatpush.msra.mxu0 %v260
  %1704 = vmatpush.msra.mxu0 %v259
  %1705 = vmatpush.msra.mxu0 %v258
  %1706 = vmatpush.msra.mxu0 %v257
  %1707 = vmatpush.msra.mxu0 %v256
  %1708 = vmatmul.f32.gmra.mxu0 %v1525
  %v1709 = vpop.f32.mrf.mxu0
  %v1710 = vadd.f32 %v1687, %v1709
  %1711 = vmatmul.f32.gmra.mxu0 %v1541
  %v1712 = vpop.f32.mrf.mxu0
  %v1713 = vadd.f32 %v1690, %v1712
  %1714 = vdwg.mxu0
  %1715 = vmatpush.msra.mxu0 %v287
  %1716 = vmatpush.msra.mxu0 %v286
  %1717 = vmatpush.msra.mxu0 %v285
  %1718 = vmatpush.msra.mxu0 %v284
  %1719 = vmatpush.msra.mxu0 %v283
  %1720 = vmatpush.msra.mxu0 %v282
  %1721 = vmatpush.msra.mxu0 %v281
  %1722 = vmatpush.msra.mxu0 %v280
  %1723 = vmatpush.msra.mxu0 %v279
  %1724 = vmatpush.msra.mxu0 %v278
  %1725 = vmatpush.msra.mxu0 %v277
  %1726 = vmatpush.msra.mxu0 %v276
  %1727 = vmatpush.msra.mxu0 %v275
  %1728 = vmatpush.msra.mxu0 %v274
  %1729 = vmatpush.msra.mxu0 %v273
  %1730 = vmatpush.msra.mxu0 %v272
  %1731 = vmatmul.f32.gmra.mxu0 %v1526
  %v1732 = vpop.f32.mrf.mxu0
  %v1733 = vadd.f32 %v1710, %v1732
  %1734 = vmatmul.f32.gmra.mxu0 %v1542
  %v1735 = vpop.f32.mrf.mxu0
  %v1736 = vadd.f32 %v1713, %v1735
  %1737 = vdwg.mxu0
  %1738 = vmatpush.msra.mxu0 %v303
  %1739 = vmatpush.msra.mxu0 %v302
  %1740 = vmatpush.msra.mxu0 %v301
  %1741 = vmatpush.msra.mxu0 %v300
  %1742 = vmatpush.msra.mxu0 %v299
  %1743 = vmatpush.msra.mxu0 %v298
  %1744 = vmatpush.msra.mxu0 %v297
  %1745 = vmatpush.msra.mxu0 %v296
  %1746 = vmatpush.msra.mxu0 %v295
  %1747 = vmatpush.msra.mxu0 %v294
  %1748 = vmatpush.msra.mxu0 %v293
  %1749 = vmatpush.msra.mxu0 %v292
  %1750 = vmatpush.msra.mxu0 %v291
  %1751 = vmatpush.msra.mxu0 %v290
  %1752 = vmatpush.msra.mxu0 %v289
  %1753 = vmatpush.msra.mxu0 %v288
  %1754 = vmatmul.f32.gmra.mxu0 %v1527
  %v1755 = vpop.f32.mrf.mxu0
  %v1756 = vadd.f32 %v1733, %v1755
  %1757 = vmatmul.f32.gmra.mxu0 %v1543
  %v1758 = vpop.f32.mrf.mxu0
  %v1759 = vadd.f32 %v1736, %v1758
  %1760 = vdwg.mxu0
  %1761 = vmatpush.msra.mxu0 %v319
  %1762 = vmatpush.msra.mxu0 %v318
  %1763 = vmatpush.msra.mxu0 %v317
  %1764 = vmatpush.msra.mxu0 %v316
  %1765 = vmatpush.msra.mxu0 %v315
  %1766 = vmatpush.msra.mxu0 %v314
  %1767 = vmatpush.msra.mxu0 %v313
  %1768 = vmatpush.msra.mxu0 %v312
  %1769 = vmatpush.msra.mxu0 %v311
  %1770 = vmatpush.msra.mxu0 %v310
  %1771 = vmatpush.msra.mxu0 %v309
  %1772 = vmatpush.msra.mxu0 %v308
  %1773 = vmatpush.msra.mxu0 %v307
  %1774 = vmatpush.msra.mxu0 %v306
  %1775 = vmatpush.msra.mxu0 %v305
  %1776 = vmatpush.msra.mxu0 %v304
  %1777 = vmatmul.f32.gmra.mxu0 %v1528
  %v1778 = vpop.f32.mrf.mxu0
  %v1779 = vadd.f32 %v1756, %v1778
  %1780 = vmatmul.f32.gmra.mxu0 %v1544
  %v1781 = vpop.f32.mrf.mxu0
  %v1782 = vadd.f32 %v1759, %v1781
  %1783 = vdwg.mxu0
  %1784 = vmatpush.msra.mxu0 %v335
  %1785 = vmatpush.msra.mxu0 %v334
  %1786 = vmatpush.msra.mxu0 %v333
  %1787 = vmatpush.msra.mxu0 %v332
  %1788 = vmatpush.msra.mxu0 %v331
  %1789 = vmatpush.msra.mxu0 %v330
  %1790 = vmatpush.msra.mxu0 %v329
  %1791 = vmatpush.msra.mxu0 %v328
  %1792 = vmatpush.msra.mxu0 %v327
  %1793 = vmatpush.msra.mxu0 %v326
  %1794 = vmatpush.msra.mxu0 %v325
  %1795 = vmatpush.msra.mxu0 %v324
  %1796 = vmatpush.msra.mxu0 %v323
  %1797 = vmatpush.msra.mxu0 %v322
  %1798 = vmatpush.msra.mxu0 %v321
  %1799 = vmatpush.msra.mxu0 %v320
  %1800 = vmatmul.f32.gmra.mxu0 %v1529
  %v1801 = vpop.f32.mrf.mxu0
  %v1802 = vadd.f32 %v1779, %v1801
  %1803 = vmatmul.f32.gmra.mxu0 %v1545
  %v1804 = vpop.f32.mrf.mxu0
  %v1805 = vadd.f32 %v1782, %v1804
  %1806 = vdwg.mxu0
  %1807 = vmatpush.msra.mxu0 %v351
  %1808 = vmatpush.msra.mxu0 %v350
  %1809 = vmatpush.msra.mxu0 %v349
  %1810 = vmatpush.msra.mxu0 %v348
  %1811 = vmatpush.msra.mxu0 %v347
  %1812 = vmatpush.msra.mxu0 %v346
  %1813 = vmatpush.msra.mxu0 %v345
  %1814 = vmatpush.msra.mxu0 %v344
  %1815 = vmatpush.msra.mxu0 %v343
  %1816 = vmatpush.msra.mxu0 %v342
  %1817 = vmatpush.msra.mxu0 %v341
  %1818 = vmatpush.msra.mxu0 %v340
  %1819 = vmatpush.msra.mxu0 %v339
  %1820 = vmatpush.msra.mxu0 %v338
  %1821 = vmatpush.msra.mxu0 %v337
  %1822 = vmatpush.msra.mxu0 %v336
  %1823 = vmatmul.f32.gmra.mxu0 %v1530
  %v1824 = vpop.f32.mrf.mxu0
  %v1825 = vadd.f32 %v1802, %v1824
  %1826 = vmatmul.f32.gmra.mxu0 %v1546
  %v1827 = vpop.f32.mrf.mxu0
  %v1828 = vadd.f32 %v1805, %v1827
  %1829 = vdwg.mxu0
  %1830 = vmatpush.msra.mxu0 %v367
  %1831 = vmatpush.msra.mxu0 %v366
  %1832 = vmatpush.msra.mxu0 %v365
  %1833 = vmatpush.msra.mxu0 %v364
  %1834 = vmatpush.msra.mxu0 %v363
  %1835 = vmatpush.msra.mxu0 %v362
  %1836 = vmatpush.msra.mxu0 %v361
  %1837 = vmatpush.msra.mxu0 %v360
  %1838 = vmatpush.msra.mxu0 %v359
  %1839 = vmatpush.msra.mxu0 %v358
  %1840 = vmatpush.msra.mxu0 %v357
  %1841 = vmatpush.msra.mxu0 %v356
  %1842 = vmatpush.msra.mxu0 %v355
  %1843 = vmatpush.msra.mxu0 %v354
  %1844 = vmatpush.msra.mxu0 %v353
  %1845 = vmatpush.msra.mxu0 %v352
  %1846 = vmatmul.f32.gmra.mxu0 %v1531
  %v1847 = vpop.f32.mrf.mxu0
  %v1848 = vadd.f32 %v1825, %v1847
  %1849 = vmatmul.f32.gmra.mxu0 %v1547
  %v1850 = vpop.f32.mrf.mxu0
  %v1851 = vadd.f32 %v1828, %v1850
  %1852 = vdwg.mxu0
  %1853 = vmatpush.msra.mxu0 %v383
  %1854 = vmatpush.msra.mxu0 %v382
  %1855 = vmatpush.msra.mxu0 %v381
  %1856 = vmatpush.msra.mxu0 %v380
  %1857 = vmatpush.msra.mxu0 %v379
  %1858 = vmatpush.msra.mxu0 %v378
  %1859 = vmatpush.msra.mxu0 %v377
  %1860 = vmatpush.msra.mxu0 %v376
  %1861 = vmatpush.msra.mxu0 %v375
  %1862 = vmatpush.msra.mxu0 %v374
  %1863 = vmatpush.msra.mxu0 %v373
  %1864 = vmatpush.msra.mxu0 %v372
  %1865 = vmatpush.msra.mxu0 %v371
  %1866 = vmatpush.msra.mxu0 %v370
  %1867 = vmatpush.msra.mxu0 %v369
  %1868 = vmatpush.msra.mxu0 %v368
  %1869 = vmatmul.f32.gmra.mxu0 %v1532
  %v1870 = vpop.f32.mrf.mxu0
  %v1871 = vadd.f32 %v1848, %v1870
  %1872 = vmatmul.f32.gmra.mxu0 %v1548
  %v1873 = vpop.f32.mrf.mxu0
  %v1874 = vadd.f32 %v1851, %v1873
  %1875 = vdwg.mxu0
  %1876 = vmatpush.msra.mxu0 %v399
  %1877 = vmatpush.msra.mxu0 %v398
  %1878 = vmatpush.msra.mxu0 %v397
  %1879 = vmatpush.msra.mxu0 %v396
  %1880 = vmatpush.msra.mxu0 %v395
  %1881 = vmatpush.msra.mxu0 %v394
  %1882 = vmatpush.msra.mxu0 %v393
  %1883 = vmatpush.msra.mxu0 %v392
  %1884 = vmatpush.msra.mxu0 %v391
  %1885 = vmatpush.msra.mxu0 %v390
  %1886 = vmatpush.msra.mxu0 %v389
  %1887 = vmatpush.msra.mxu0 %v388
  %1888 = vmatpush.msra.mxu0 %v387
  %1889 = vmatpush.msra.mxu0 %v386
  %1890 = vmatpush.msra.mxu0 %v385
  %1891 = vmatpush.msra.mxu0 %v384
  %1892 = vmatmul.f32.gmra.mxu0 %v1533
  %v1893 = vpop.f32.mrf.mxu0
  %v1894 = vadd.f32 %v1871, %v1893
  %1895 = vmatmul.f32.gmra.mxu0 %v1549
  %v1896 = vpop.f32.mrf.mxu0
  %v1897 = vadd.f32 %v1874, %v1896
  %1898 = vdwg.mxu0
  %1899 = vmatpush.msra.mxu0 %v415
  %1900 = vmatpush.msra.mxu0 %v414
  %1901 = vmatpush.msra.mxu0 %v413
  %1902 = vmatpush.msra.mxu0 %v412
  %1903 = vmatpush.msra.mxu0 %v411
  %1904 = vmatpush.msra.mxu0 %v410
  %1905 = vmatpush.msra.mxu0 %v409
  %1906 = vmatpush.msra.mxu0 %v408
  %1907 = vmatpush.msra.mxu0 %v407
  %1908 = vmatpush.msra.mxu0 %v406
  %1909 = vmatpush.msra.mxu0 %v405
  %1910 = vmatpush.msra.mxu0 %v404
  %1911 = vmatpush.msra.mxu0 %v403
  %1912 = vmatpush.msra.mxu0 %v402
  %1913 = vmatpush.msra.mxu0 %v401
  %1914 = vmatpush.msra.mxu0 %v400
  %1915 = vmatmul.f32.gmra.mxu0 %v1534
  %v1916 = vpop.f32.mrf.mxu0
  %v1917 = vadd.f32 %v1894, %v1916
  %1918 = vmatmul.f32.gmra.mxu0 %v1550
  %v1919 = vpop.f32.mrf.mxu0
  %v1920 = vadd.f32 %v1897, %v1919
  %1921 = vdwg.mxu0
  %v1922 = vadd.f32 %v1109, %v1917
  %v1923 = vadd.f32 %v1110, %v1920
  %v1924 = vsel %vm422, %v1922, 0.0
  %1925 = vadd.xlane.f32.xlu0 %v1924
  %v1926 = vpop.xlane.xlu0 %1925
  %v1927 = vsel %vm422, %v1923, 0.0
  %1928 = vadd.xlane.f32.xlu0 %v1927
  %v1929 = vpop.xlane.xlu0 %1928
  %v1930 = vmul.f32 %v1926, %v1062
  %v1931 = vmul.f32 %v1929, %v1062
  %v1932 = vsub.f32 %v1922, %v1930
  %v1933 = vsub.f32 %v1923, %v1931
  %v1934 = vmul.f32 %v1932, %v1932
  %v1935 = vmul.f32 %v1933, %v1933
  %v1936 = vsel %vm422, %v1934, 0.0
  %1937 = vadd.xlane.f32.xlu0 %v1936
  %v1938 = vpop.xlane.xlu0 %1937
  %v1939 = vsel %vm422, %v1935, 0.0
  %1940 = vadd.xlane.f32.xlu0 %v1939
  %v1941 = vpop.xlane.xlu0 %1940
  %v1942 = vmul.f32 %v1938, %v1062
  %v1943 = vmul.f32 %v1941, %v1062
  %v1944 = vadd.f32 %v1942, 1e-05
  %v1945 = vadd.f32 %v1943, 1e-05
  %v1946 = vrsqrt.pop %v1944
  %v1947 = vmul.f32 %v1946, %v1944
  %v1948 = vmul.f32 %v1947, %v1946
  %v1949 = vmul.f32 0.5, %v1948
  %v1950 = vsub.f32 1.5, %v1949
  %v1951 = vmul.f32 %v1946, %v1950
  %vm1952 = vweird.f32 %v1944
  %vm1953 = vweird.f32 %v1946
  %vm1954 = vmor %vm1952, %vm1953
  %v1955 = vsel %vm1954, %v1946, %v1951
  %v1956 = vrsqrt.pop %v1945
  %v1957 = vmul.f32 %v1956, %v1945
  %v1958 = vmul.f32 %v1957, %v1956
  %v1959 = vmul.f32 0.5, %v1958
  %v1960 = vsub.f32 1.5, %v1959
  %v1961 = vmul.f32 %v1956, %v1960
  %vm1962 = vweird.f32 %v1945
  %vm1963 = vweird.f32 %v1956
  %vm1964 = vmor %vm1962, %vm1963
  %v1965 = vsel %vm1964, %v1956, %v1961
  %v1966 = vmul.f32 %v1932, %v1955
  %v1967 = vmul.f32 %v1933, %v1965
  %v1969 = vperm.slane %v417, 0
  %v1971 = vmul.f32 %v1966, %v1969
  %v1972 = vmul.f32 %v1967, %v1969
  %v1974 = vperm.slane %v418, 0
  %v1976 = vadd.f32 %v1971, %v1974
  %v1977 = vadd.f32 %v1972, %v1974
  %v1978 = vld [vmem:[%s13] sm:$0xff]
  %v1979 = vld [vmem:[%s13 + $0x8] sm:$0xff]
  %v1980 = vld [vmem:[%s13 + $0x10] sm:$0xff]
  %v1981 = vld [vmem:[%s13 + $0x18] sm:$0xff]
  %v1982 = vld [vmem:[%s14] sm:$0x1]
  %v1983 = vld [vmem:[%s15] sm:$0xff]
  %v1984 = vld [vmem:[%s15 + $0x8] sm:$0xff]
  %v1985 = vld [vmem:[%s15 + $0x10] sm:$0xff]
  %v1986 = vld [vmem:[%s15 + $0x18] sm:$0xff]
  %v1987 = vld [vmem:[%s16] sm:$0x1]
  %v1988 = vld [vmem:[%s17] sm:$0x1]
  %v1989 = vld [vmem:[%s18] sm:$0x1]
  %v1990 = vld [vmem:[%s19] sm:$0xff]
  %v1991 = vld [vmem:[%s19 + $0x8] sm:$0xff]
  %v1992 = vld [vmem:[%s19 + $0x10] sm:$0xff]
  %v1993 = vld [vmem:[%s19 + $0x18] sm:$0xff]
  %v1994 = vld [vmem:[%s19 + $0x20] sm:$0xff]
  %v1995 = vld [vmem:[%s19 + $0x28] sm:$0xff]
  %v1996 = vld [vmem:[%s19 + $0x30] sm:$0xff]
  %v1997 = vld [vmem:[%s19 + $0x38] sm:$0xff]
  %v1998 = vld [vmem:[%s19 + $0x40] sm:$0xff]
  %v1999 = vld [vmem:[%s19 + $0x48] sm:$0xff]
  %v2000 = vld [vmem:[%s19 + $0x50] sm:$0xff]
  %v2001 = vld [vmem:[%s19 + $0x58] sm:$0xff]
  %v2002 = vld [vmem:[%s19 + $0x60] sm:$0xff]
  %v2003 = vld [vmem:[%s19 + $0x68] sm:$0xff]
  %v2004 = vld [vmem:[%s19 + $0x70] sm:$0xff]
  %v2005 = vld [vmem:[%s19 + $0x78] sm:$0xff]
  %v2006 = vld [vmem:[%s19 + $0x80] sm:$0xff]
  %v2007 = vld [vmem:[%s19 + $0x88] sm:$0xff]
  %v2008 = vld [vmem:[%s19 + $0x90] sm:$0xff]
  %v2009 = vld [vmem:[%s19 + $0x98] sm:$0xff]
  %v2010 = vld [vmem:[%s19 + $0xa0] sm:$0xff]
  %v2011 = vld [vmem:[%s19 + $0xa8] sm:$0xff]
  %v2012 = vld [vmem:[%s19 + $0xb0] sm:$0xff]
  %v2013 = vld [vmem:[%s19 + $0xb8] sm:$0xff]
  %v2014 = vld [vmem:[%s19 + $0xc0] sm:$0xff]
  %v2015 = vld [vmem:[%s19 + $0xc8] sm:$0xff]
  %v2016 = vld [vmem:[%s19 + $0xd0] sm:$0xff]
  %v2017 = vld [vmem:[%s19 + $0xd8] sm:$0xff]
  %v2018 = vld [vmem:[%s19 + $0xe0] sm:$0xff]
  %v2019 = vld [vmem:[%s19 + $0xe8] sm:$0xff]
  %v2020 = vld [vmem:[%s19 + $0xf0] sm:$0xff]
  %v2021 = vld [vmem:[%s19 + $0xf8] sm:$0xff]
  %v2022 = vld [vmem:[%s19 + $0x100] sm:$0xff]
  %v2023 = vld [vmem:[%s19 + $0x108] sm:$0xff]
  %v2024 = vld [vmem:[%s19 + $0x110] sm:$0xff]
  %v2025 = vld [vmem:[%s19 + $0x118] sm:$0xff]
  %v2026 = vld [vmem:[%s19 + $0x120] sm:$0xff]
  %v2027 = vld [vmem:[%s19 + $0x128] sm:$0xff]
  %v2028 = vld [vmem:[%s19 + $0x130] sm:$0xff]
  %v2029 = vld [vmem:[%s19 + $0x138] sm:$0xff]
  %v2030 = vld [vmem:[%s19 + $0x140] sm:$0xff]
  %v2031 = vld [vmem:[%s19 + $0x148] sm:$0xff]
  %v2032 = vld [vmem:[%s19 + $0x150] sm:$0xff]
  %v2033 = vld [vmem:[%s19 + $0x158] sm:$0xff]
  %v2034 = vld [vmem:[%s19 + $0x160] sm:$0xff]
  %v2035 = vld [vmem:[%s19 + $0x168] sm:$0xff]
  %v2036 = vld [vmem:[%s19 + $0x170] sm:$0xff]
  %v2037 = vld [vmem:[%s19 + $0x178] sm:$0xff]
  %v2038 = vld [vmem:[%s19 + $0x180] sm:$0xff]
  %v2039 = vld [vmem:[%s19 + $0x188] sm:$0xff]
  %v2040 = vld [vmem:[%s19 + $0x190] sm:$0xff]
  %v2041 = vld [vmem:[%s19 + $0x198] sm:$0xff]
  %v2042 = vld [vmem:[%s19 + $0x1a0] sm:$0xff]
  %v2043 = vld [vmem:[%s19 + $0x1a8] sm:$0xff]
  %v2044 = vld [vmem:[%s19 + $0x1b0] sm:$0xff]
  %v2045 = vld [vmem:[%s19 + $0x1b8] sm:$0xff]
  %v2046 = vld [vmem:[%s19 + $0x1c0] sm:$0xff]
  %v2047 = vld [vmem:[%s19 + $0x1c8] sm:$0xff]
  %v2048 = vld [vmem:[%s19 + $0x1d0] sm:$0xff]
  %v2049 = vld [vmem:[%s19 + $0x1d8] sm:$0xff]
  %v2050 = vld [vmem:[%s19 + $0x1e0] sm:$0xff]
  %v2051 = vld [vmem:[%s19 + $0x1e8] sm:$0xff]
  %v2052 = vld [vmem:[%s19 + $0x1f0] sm:$0xff]
  %v2053 = vld [vmem:[%s19 + $0x1f8] sm:$0xff]
  %v2054 = vld [vmem:[%s20] sm:$0xff]
  %v2055 = vld [vmem:[%s20 + $0x8] sm:$0xff]
  %v2056 = vld [vmem:[%s21] sm:$0xff]
  %v2057 = vld [vmem:[%s21 + $0x8] sm:$0xff]
  %v2058 = vld [vmem:[%s21 + $0x10] sm:$0xff]
  %v2059 = vld [vmem:[%s21 + $0x18] sm:$0xff]
  %v2060 = vld [vmem:[%s21 + $0x20] sm:$0xff]
  %v2061 = vld [vmem:[%s21 + $0x28] sm:$0xff]
  %v2062 = vld [vmem:[%s21 + $0x30] sm:$0xff]
  %v2063 = vld [vmem:[%s21 + $0x38] sm:$0xff]
  %v2064 = vld [vmem:[%s21 + $0x40] sm:$0xff]
  %v2065 = vld [vmem:[%s21 + $0x48] sm:$0xff]
  %v2066 = vld [vmem:[%s21 + $0x50] sm:$0xff]
  %v2067 = vld [vmem:[%s21 + $0x58] sm:$0xff]
  %v2068 = vld [vmem:[%s21 + $0x60] sm:$0xff]
  %v2069 = vld [vmem:[%s21 + $0x68] sm:$0xff]
  %v2070 = vld [vmem:[%s21 + $0x70] sm:$0xff]
  %v2071 = vld [vmem:[%s21 + $0x78] sm:$0xff]
  %v2072 = vld [vmem:[%s21 + $0x80] sm:$0xff]
  %v2073 = vld [vmem:[%s21 + $0x88] sm:$0xff]
  %v2074 = vld [vmem:[%s21 + $0x90] sm:$0xff]
  %v2075 = vld [vmem:[%s21 + $0x98] sm:$0xff]
  %v2076 = vld [vmem:[%s21 + $0xa0] sm:$0xff]
  %v2077 = vld [vmem:[%s21 + $0xa8] sm:$0xff]
  %v2078 = vld [vmem:[%s21 + $0xb0] sm:$0xff]
  %v2079 = vld [vmem:[%s21 + $0xb8] sm:$0xff]
  %v2080 = vld [vmem:[%s21 + $0xc0] sm:$0xff]
  %v2081 = vld [vmem:[%s21 + $0xc8] sm:$0xff]
  %v2082 = vld [vmem:[%s21 + $0xd0] sm:$0xff]
  %v2083 = vld [vmem:[%s21 + $0xd8] sm:$0xff]
  %v2084 = vld [vmem:[%s21 + $0xe0] sm:$0xff]
  %v2085 = vld [vmem:[%s21 + $0xe8] sm:$0xff]
  %v2086 = vld [vmem:[%s21 + $0xf0] sm:$0xff]
  %v2087 = vld [vmem:[%s21 + $0xf8] sm:$0xff]
  %v2088 = vld [vmem:[%s21 + $0x100] sm:$0xff]
  %v2089 = vld [vmem:[%s21 + $0x108] sm:$0xff]
  %v2090 = vld [vmem:[%s21 + $0x110] sm:$0xff]
  %v2091 = vld [vmem:[%s21 + $0x118] sm:$0xff]
  %v2092 = vld [vmem:[%s21 + $0x120] sm:$0xff]
  %v2093 = vld [vmem:[%s21 + $0x128] sm:$0xff]
  %v2094 = vld [vmem:[%s21 + $0x130] sm:$0xff]
  %v2095 = vld [vmem:[%s21 + $0x138] sm:$0xff]
  %v2096 = vld [vmem:[%s21 + $0x140] sm:$0xff]
  %v2097 = vld [vmem:[%s21 + $0x148] sm:$0xff]
  %v2098 = vld [vmem:[%s21 + $0x150] sm:$0xff]
  %v2099 = vld [vmem:[%s21 + $0x158] sm:$0xff]
  %v2100 = vld [vmem:[%s21 + $0x160] sm:$0xff]
  %v2101 = vld [vmem:[%s21 + $0x168] sm:$0xff]
  %v2102 = vld [vmem:[%s21 + $0x170] sm:$0xff]
  %v2103 = vld [vmem:[%s21 + $0x178] sm:$0xff]
  %v2104 = vld [vmem:[%s21 + $0x180] sm:$0xff]
  %v2105 = vld [vmem:[%s21 + $0x188] sm:$0xff]
  %v2106 = vld [vmem:[%s21 + $0x190] sm:$0xff]
  %v2107 = vld [vmem:[%s21 + $0x198] sm:$0xff]
  %v2108 = vld [vmem:[%s21 + $0x1a0] sm:$0xff]
  %v2109 = vld [vmem:[%s21 + $0x1a8] sm:$0xff]
  %v2110 = vld [vmem:[%s21 + $0x1b0] sm:$0xff]
  %v2111 = vld [vmem:[%s21 + $0x1b8] sm:$0xff]
  %v2112 = vld [vmem:[%s21 + $0x1c0] sm:$0xff]
  %v2113 = vld [vmem:[%s21 + $0x1c8] sm:$0xff]
  %v2114 = vld [vmem:[%s21 + $0x1d0] sm:$0xff]
  %v2115 = vld [vmem:[%s21 + $0x1d8] sm:$0xff]
  %v2116 = vld [vmem:[%s21 + $0x1e0] sm:$0xff]
  %v2117 = vld [vmem:[%s21 + $0x1e8] sm:$0xff]
  %v2118 = vld [vmem:[%s21 + $0x1f0] sm:$0xff]
  %v2119 = vld [vmem:[%s21 + $0x1f8] sm:$0xff]
  %v2120 = vld [vmem:[%s21 + $0x200] sm:$0xff]
  %v2121 = vld [vmem:[%s21 + $0x208] sm:$0xff]
  %v2122 = vld [vmem:[%s21 + $0x210] sm:$0xff]
  %v2123 = vld [vmem:[%s21 + $0x218] sm:$0xff]
  %v2124 = vld [vmem:[%s21 + $0x220] sm:$0xff]
  %v2125 = vld [vmem:[%s21 + $0x228] sm:$0xff]
  %v2126 = vld [vmem:[%s21 + $0x230] sm:$0xff]
  %v2127 = vld [vmem:[%s21 + $0x238] sm:$0xff]
  %v2128 = vld [vmem:[%s21 + $0x240] sm:$0xff]
  %v2129 = vld [vmem:[%s21 + $0x248] sm:$0xff]
  %v2130 = vld [vmem:[%s21 + $0x250] sm:$0xff]
  %v2131 = vld [vmem:[%s21 + $0x258] sm:$0xff]
  %v2132 = vld [vmem:[%s21 + $0x260] sm:$0xff]
  %v2133 = vld [vmem:[%s21 + $0x268] sm:$0xff]
  %v2134 = vld [vmem:[%s21 + $0x270] sm:$0xff]
  %v2135 = vld [vmem:[%s21 + $0x278] sm:$0xff]
  %v2136 = vld [vmem:[%s21 + $0x280] sm:$0xff]
  %v2137 = vld [vmem:[%s21 + $0x288] sm:$0xff]
  %v2138 = vld [vmem:[%s21 + $0x290] sm:$0xff]
  %v2139 = vld [vmem:[%s21 + $0x298] sm:$0xff]
  %v2140 = vld [vmem:[%s21 + $0x2a0] sm:$0xff]
  %v2141 = vld [vmem:[%s21 + $0x2a8] sm:$0xff]
  %v2142 = vld [vmem:[%s21 + $0x2b0] sm:$0xff]
  %v2143 = vld [vmem:[%s21 + $0x2b8] sm:$0xff]
  %v2144 = vld [vmem:[%s21 + $0x2c0] sm:$0xff]
  %v2145 = vld [vmem:[%s21 + $0x2c8] sm:$0xff]
  %v2146 = vld [vmem:[%s21 + $0x2d0] sm:$0xff]
  %v2147 = vld [vmem:[%s21 + $0x2d8] sm:$0xff]
  %v2148 = vld [vmem:[%s21 + $0x2e0] sm:$0xff]
  %v2149 = vld [vmem:[%s21 + $0x2e8] sm:$0xff]
  %v2150 = vld [vmem:[%s21 + $0x2f0] sm:$0xff]
  %v2151 = vld [vmem:[%s21 + $0x2f8] sm:$0xff]
  %v2152 = vld [vmem:[%s21 + $0x300] sm:$0xff]
  %v2153 = vld [vmem:[%s21 + $0x308] sm:$0xff]
  %v2154 = vld [vmem:[%s21 + $0x310] sm:$0xff]
  %v2155 = vld [vmem:[%s21 + $0x318] sm:$0xff]
  %v2156 = vld [vmem:[%s21 + $0x320] sm:$0xff]
  %v2157 = vld [vmem:[%s21 + $0x328] sm:$0xff]
  %v2158 = vld [vmem:[%s21 + $0x330] sm:$0xff]
  %v2159 = vld [vmem:[%s21 + $0x338] sm:$0xff]
  %v2160 = vld [vmem:[%s21 + $0x340] sm:$0xff]
  %v2161 = vld [vmem:[%s21 + $0x348] sm:$0xff]
  %v2162 = vld [vmem:[%s21 + $0x350] sm:$0xff]
  %v2163 = vld [vmem:[%s21 + $0x358] sm:$0xff]
  %v2164 = vld [vmem:[%s21 + $0x360] sm:$0xff]
  %v2165 = vld [vmem:[%s21 + $0x368] sm:$0xff]
  %v2166 = vld [vmem:[%s21 + $0x370] sm:$0xff]
  %v2167 = vld [vmem:[%s21 + $0x378] sm:$0xff]
  %v2168 = vld [vmem:[%s21 + $0x380] sm:$0xff]
  %v2169 = vld [vmem:[%s21 + $0x388] sm:$0xff]
  %v2170 = vld [vmem:[%s21 + $0x390] sm:$0xff]
  %v2171 = vld [vmem:[%s21 + $0x398] sm:$0xff]
  %v2172 = vld [vmem:[%s21 + $0x3a0] sm:$0xff]
  %v2173 = vld [vmem:[%s21 + $0x3a8] sm:$0xff]
  %v2174 = vld [vmem:[%s21 + $0x3b0] sm:$0xff]
  %v2175 = vld [vmem:[%s21 + $0x3b8] sm:$0xff]
  %v2176 = vld [vmem:[%s21 + $0x3c0] sm:$0xff]
  %v2177 = vld [vmem:[%s21 + $0x3c8] sm:$0xff]
  %v2178 = vld [vmem:[%s21 + $0x3d0] sm:$0xff]
  %v2179 = vld [vmem:[%s21 + $0x3d8] sm:$0xff]
  %v2180 = vld [vmem:[%s21 + $0x3e0] sm:$0xff]
  %v2181 = vld [vmem:[%s21 + $0x3e8] sm:$0xff]
  %v2182 = vld [vmem:[%s21 + $0x3f0] sm:$0xff]
  %v2183 = vld [vmem:[%s21 + $0x3f8] sm:$0xff]
  %v2184 = vld [vmem:[%s21 + $0x400] sm:$0xff]
  %v2185 = vld [vmem:[%s21 + $0x408] sm:$0xff]
  %v2186 = vld [vmem:[%s21 + $0x410] sm:$0xff]
  %v2187 = vld [vmem:[%s21 + $0x418] sm:$0xff]
  %v2188 = vld [vmem:[%s21 + $0x420] sm:$0xff]
  %v2189 = vld [vmem:[%s21 + $0x428] sm:$0xff]
  %v2190 = vld [vmem:[%s21 + $0x430] sm:$0xff]
  %v2191 = vld [vmem:[%s21 + $0x438] sm:$0xff]
  %v2192 = vld [vmem:[%s21 + $0x440] sm:$0xff]
  %v2193 = vld [vmem:[%s21 + $0x448] sm:$0xff]
  %v2194 = vld [vmem:[%s21 + $0x450] sm:$0xff]
  %v2195 = vld [vmem:[%s21 + $0x458] sm:$0xff]
  %v2196 = vld [vmem:[%s21 + $0x460] sm:$0xff]
  %v2197 = vld [vmem:[%s21 + $0x468] sm:$0xff]
  %v2198 = vld [vmem:[%s21 + $0x470] sm:$0xff]
  %v2199 = vld [vmem:[%s21 + $0x478] sm:$0xff]
  %v2200 = vld [vmem:[%s21 + $0x480] sm:$0xff]
  %v2201 = vld [vmem:[%s21 + $0x488] sm:$0xff]
  %v2202 = vld [vmem:[%s21 + $0x490] sm:$0xff]
  %v2203 = vld [vmem:[%s21 + $0x498] sm:$0xff]
  %v2204 = vld [vmem:[%s21 + $0x4a0] sm:$0xff]
  %v2205 = vld [vmem:[%s21 + $0x4a8] sm:$0xff]
  %v2206 = vld [vmem:[%s21 + $0x4b0] sm:$0xff]
  %v2207 = vld [vmem:[%s21 + $0x4b8] sm:$0xff]
  %v2208 = vld [vmem:[%s21 + $0x4c0] sm:$0xff]
  %v2209 = vld [vmem:[%s21 + $0x4c8] sm:$0xff]
  %v2210 = vld [vmem:[%s21 + $0x4d0] sm:$0xff]
  %v2211 = vld [vmem:[%s21 + $0x4d8] sm:$0xff]
  %v2212 = vld [vmem:[%s21 + $0x4e0] sm:$0xff]
  %v2213 = vld [vmem:[%s21 + $0x4e8] sm:$0xff]
  %v2214 = vld [vmem:[%s21 + $0x4f0] sm:$0xff]
  %v2215 = vld [vmem:[%s21 + $0x4f8] sm:$0xff]
  %v2216 = vld [vmem:[%s21 + $0x500] sm:$0xff]
  %v2217 = vld [vmem:[%s21 + $0x508] sm:$0xff]
  %v2218 = vld [vmem:[%s21 + $0x510] sm:$0xff]
  %v2219 = vld [vmem:[%s21 + $0x518] sm:$0xff]
  %v2220 = vld [vmem:[%s21 + $0x520] sm:$0xff]
  %v2221 = vld [vmem:[%s21 + $0x528] sm:$0xff]
  %v2222 = vld [vmem:[%s21 + $0x530] sm:$0xff]
  %v2223 = vld [vmem:[%s21 + $0x538] sm:$0xff]
  %v2224 = vld [vmem:[%s21 + $0x540] sm:$0xff]
  %v2225 = vld [vmem:[%s21 + $0x548] sm:$0xff]
  %v2226 = vld [vmem:[%s21 + $0x550] sm:$0xff]
  %v2227 = vld [vmem:[%s21 + $0x558] sm:$0xff]
  %v2228 = vld [vmem:[%s21 + $0x560] sm:$0xff]
  %v2229 = vld [vmem:[%s21 + $0x568] sm:$0xff]
  %v2230 = vld [vmem:[%s21 + $0x570] sm:$0xff]
  %v2231 = vld [vmem:[%s21 + $0x578] sm:$0xff]
  %v2232 = vld [vmem:[%s21 + $0x580] sm:$0xff]
  %v2233 = vld [vmem:[%s21 + $0x588] sm:$0xff]
  %v2234 = vld [vmem:[%s21 + $0x590] sm:$0xff]
  %v2235 = vld [vmem:[%s21 + $0x598] sm:$0xff]
  %v2236 = vld [vmem:[%s21 + $0x5a0] sm:$0xff]
  %v2237 = vld [vmem:[%s21 + $0x5a8] sm:$0xff]
  %v2238 = vld [vmem:[%s21 + $0x5b0] sm:$0xff]
  %v2239 = vld [vmem:[%s21 + $0x5b8] sm:$0xff]
  %v2240 = vld [vmem:[%s21 + $0x5c0] sm:$0xff]
  %v2241 = vld [vmem:[%s21 + $0x5c8] sm:$0xff]
  %v2242 = vld [vmem:[%s21 + $0x5d0] sm:$0xff]
  %v2243 = vld [vmem:[%s21 + $0x5d8] sm:$0xff]
  %v2244 = vld [vmem:[%s21 + $0x5e0] sm:$0xff]
  %v2245 = vld [vmem:[%s21 + $0x5e8] sm:$0xff]
  %v2246 = vld [vmem:[%s21 + $0x5f0] sm:$0xff]
  %v2247 = vld [vmem:[%s21 + $0x5f8] sm:$0xff]
  %v2248 = vld [vmem:[%s21 + $0x600] sm:$0xff]
  %v2249 = vld [vmem:[%s21 + $0x608] sm:$0xff]
  %v2250 = vld [vmem:[%s21 + $0x610] sm:$0xff]
  %v2251 = vld [vmem:[%s21 + $0x618] sm:$0xff]
  %v2252 = vld [vmem:[%s21 + $0x620] sm:$0xff]
  %v2253 = vld [vmem:[%s21 + $0x628] sm:$0xff]
  %v2254 = vld [vmem:[%s21 + $0x630] sm:$0xff]
  %v2255 = vld [vmem:[%s21 + $0x638] sm:$0xff]
  %v2256 = vld [vmem:[%s21 + $0x640] sm:$0xff]
  %v2257 = vld [vmem:[%s21 + $0x648] sm:$0xff]
  %v2258 = vld [vmem:[%s21 + $0x650] sm:$0xff]
  %v2259 = vld [vmem:[%s21 + $0x658] sm:$0xff]
  %v2260 = vld [vmem:[%s21 + $0x660] sm:$0xff]
  %v2261 = vld [vmem:[%s21 + $0x668] sm:$0xff]
  %v2262 = vld [vmem:[%s21 + $0x670] sm:$0xff]
  %v2263 = vld [vmem:[%s21 + $0x678] sm:$0xff]
  %v2264 = vld [vmem:[%s21 + $0x680] sm:$0xff]
  %v2265 = vld [vmem:[%s21 + $0x688] sm:$0xff]
  %v2266 = vld [vmem:[%s21 + $0x690] sm:$0xff]
  %v2267 = vld [vmem:[%s21 + $0x698] sm:$0xff]
  %v2268 = vld [vmem:[%s21 + $0x6a0] sm:$0xff]
  %v2269 = vld [vmem:[%s21 + $0x6a8] sm:$0xff]
  %v2270 = vld [vmem:[%s21 + $0x6b0] sm:$0xff]
  %v2271 = vld [vmem:[%s21 + $0x6b8] sm:$0xff]
  %v2272 = vld [vmem:[%s21 + $0x6c0] sm:$0xff]
  %v2273 = vld [vmem:[%s21 + $0x6c8] sm:$0xff]
  %v2274 = vld [vmem:[%s21 + $0x6d0] sm:$0xff]
  %v2275 = vld [vmem:[%s21 + $0x6d8] sm:$0xff]
  %v2276 = vld [vmem:[%s21 + $0x6e0] sm:$0xff]
  %v2277 = vld [vmem:[%s21 + $0x6e8] sm:$0xff]
  %v2278 = vld [vmem:[%s21 + $0x6f0] sm:$0xff]
  %v2279 = vld [vmem:[%s21 + $0x6f8] sm:$0xff]
  %v2280 = vld [vmem:[%s21 + $0x700] sm:$0xff]
  %v2281 = vld [vmem:[%s21 + $0x708] sm:$0xff]
  %v2282 = vld [vmem:[%s21 + $0x710] sm:$0xff]
  %v2283 = vld [vmem:[%s21 + $0x718] sm:$0xff]
  %v2284 = vld [vmem:[%s21 + $0x720] sm:$0xff]
  %v2285 = vld [vmem:[%s21 + $0x728] sm:$0xff]
  %v2286 = vld [vmem:[%s21 + $0x730] sm:$0xff]
  %v2287 = vld [vmem:[%s21 + $0x738] sm:$0xff]
  %v2288 = vld [vmem:[%s21 + $0x740] sm:$0xff]
  %v2289 = vld [vmem:[%s21 + $0x748] sm:$0xff]
  %v2290 = vld [vmem:[%s21 + $0x750] sm:$0xff]
  %v2291 = vld [vmem:[%s21 + $0x758] sm:$0xff]
  %v2292 = vld [vmem:[%s21 + $0x760] sm:$0xff]
  %v2293 = vld [vmem:[%s21 + $0x768] sm:$0xff]
  %v2294 = vld [vmem:[%s21 + $0x770] sm:$0xff]
  %v2295 = vld [vmem:[%s21 + $0x778] sm:$0xff]
  %v2296 = vld [vmem:[%s21 + $0x780] sm:$0xff]
  %v2297 = vld [vmem:[%s21 + $0x788] sm:$0xff]
  %v2298 = vld [vmem:[%s21 + $0x790] sm:$0xff]
  %v2299 = vld [vmem:[%s21 + $0x798] sm:$0xff]
  %v2300 = vld [vmem:[%s21 + $0x7a0] sm:$0xff]
  %v2301 = vld [vmem:[%s21 + $0x7a8] sm:$0xff]
  %v2302 = vld [vmem:[%s21 + $0x7b0] sm:$0xff]
  %v2303 = vld [vmem:[%s21 + $0x7b8] sm:$0xff]
  %v2304 = vld [vmem:[%s21 + $0x7c0] sm:$0xff]
  %v2305 = vld [vmem:[%s21 + $0x7c8] sm:$0xff]
  %v2306 = vld [vmem:[%s21 + $0x7d0] sm:$0xff]
  %v2307 = vld [vmem:[%s21 + $0x7d8] sm:$0xff]
  %v2308 = vld [vmem:[%s21 + $0x7e0] sm:$0xff]
  %v2309 = vld [vmem:[%s21 + $0x7e8] sm:$0xff]
  %v2310 = vld [vmem:[%s21 + $0x7f0] sm:$0xff]
  %v2311 = vld [vmem:[%s21 + $0x7f8] sm:$0xff]
  %v2312 = vld [vmem:[%s22] sm:$0x1]
  %v2313 = vld [vmem:[%s23] sm:$0x1]
  %v2314 = vld [vmem:[%s24] sm:$0x1]
  %v2316 = vperm.slane %v1982, 0
  %v2319 = vsel %vm422, %v1976, 0
  %v2322 = vsel %vm422, %v1977, 0
  %2324 = vmatpush.msra.mxu0 0.0
  %2325 = vmatpush.msra.mxu0 0.0
  %2326 = vmatpush.msra.mxu0 0.0
  %2327 = vmatpush.msra.mxu0 0.0
  %2328 = vmatpush.msra.mxu0 0.0
  %2329 = vmatpush.msra.mxu0 0.0
  %2330 = vmatpush.msra.mxu0 0.0
  %2331 = vmatpush.msra.mxu0 0.0
  %2332 = vmatpush.msra.mxu0 0.0
  %2333 = vmatpush.msra.mxu0 0.0
  %2334 = vmatpush.msra.mxu0 0.0
  %2335 = vmatpush.msra.mxu0 0.0
  %2336 = vmatpush.msra.mxu0 %v1981
  %2337 = vmatpush.msra.mxu0 %v1980
  %2338 = vmatpush.msra.mxu0 %v1979
  %2339 = vmatpush.msra.mxu0 %v1978
  %2340 = vmatmul.f32.gmra.mxu0 %v2319
  %v2341 = vpop.f32.mrf.mxu0
  %v2342 = vadd.f32 %v2316, %v2341
  %2343 = vmatmul.f32.gmra.mxu0 %v2322
  %v2344 = vpop.f32.mrf.mxu0
  %v2345 = vadd.f32 %v2316, %v2344
  %2346 = vdwg.mxu0
  %2348 = vrot.lane.b32.xlu0 %v2342, 96
  %v2349 = vpop.permute.xlu0 %2348
  %v2350 = vsel %vm455, %v2342, 0
  %v2352 = vsel %vm455, %v2349, 0
  %2354 = vmatpush.xpose.msra.mxu0 0.0
  %2355 = vmatpush.xpose.msra.mxu0 0.0
  %2356 = vmatpush.xpose.msra.mxu0 0.0
  %2357 = vmatpush.xpose.msra.mxu0 0.0
  %2358 = vmatpush.xpose.msra.mxu0 0.0
  %2359 = vmatpush.xpose.msra.mxu0 0.0
  %2360 = vmatpush.xpose.msra.mxu0 0.0
  %2361 = vmatpush.xpose.msra.mxu0 0.0
  %2362 = vmatpush.xpose.msra.mxu0 0.0
  %2363 = vmatpush.xpose.msra.mxu0 0.0
  %2364 = vmatpush.xpose.msra.mxu0 0.0
  %2365 = vmatpush.xpose.msra.mxu0 0.0
  %2366 = vmatpush.xpose.msra.mxu0 0.0
  %2367 = vmatpush.xpose.msra.mxu0 0.0
  %2368 = vmatpush.xpose.msra.mxu0 0.0
  %2369 = vmatpush.xpose.msra.mxu0 %v2352
  %2370 = vmatmul.f32.gmra.mxu0 %v2350
  %v2371 = vpop.f32.mrf.mxu0
  %v2372 = vadd.f32 0.0, %v2371
  %2373 = vdwg.mxu0
  %2375 = vrot.lane.b32.xlu0 %v2345, 96
  %v2376 = vpop.permute.xlu0 %2375
  %v2377 = vsel %vm455, %v2345, 0
  %v2379 = vsel %vm455, %v2376, 0
  %2381 = vmatpush.xpose.msra.mxu0 0.0
  %2382 = vmatpush.xpose.msra.mxu0 0.0
  %2383 = vmatpush.xpose.msra.mxu0 0.0
  %2384 = vmatpush.xpose.msra.mxu0 0.0
  %2385 = vmatpush.xpose.msra.mxu0 0.0
  %2386 = vmatpush.xpose.msra.mxu0 0.0
  %2387 = vmatpush.xpose.msra.mxu0 0.0
  %2388 = vmatpush.xpose.msra.mxu0 0.0
  %2389 = vmatpush.xpose.msra.mxu0 0.0
  %2390 = vmatpush.xpose.msra.mxu0 0.0
  %2391 = vmatpush.xpose.msra.mxu0 0.0
  %2392 = vmatpush.xpose.msra.mxu0 0.0
  %2393 = vmatpush.xpose.msra.mxu0 0.0
  %2394 = vmatpush.xpose.msra.mxu0 0.0
  %2395 = vmatpush.xpose.msra.mxu0 0.0
  %2396 = vmatpush.xpose.msra.mxu0 %v2379
  %2397 = vmatmul.f32.gmra.mxu0 %v2377
  %v2398 = vpop.f32.mrf.mxu0
  %v2399 = vadd.f32 0.0, %v2398
  %2400 = vdwg.mxu0
  %v2401 = vmul.f32 %v2372, 0.35355338
  %v2402 = vmul.f32 %v2399, 0.35355338
  %v2403 = vsel %vm455, %v2401, -inf
  %2404 = vmax.xlane.f32.xlu0 %v2403
  %v2405 = vpop.xlane.xlu0 %2404
  %v2406 = vsel %vm455, %v2402, -inf
  %2407 = vmax.xlane.f32.xlu0 %v2406
  %v2408 = vpop.xlane.xlu0 %2407
  %v2409 = vsub.f32 %v2401, %v2405
  %v2410 = vsub.f32 %v2402, %v2408
  %v2411 = vmul.f32 %v2409, 1.442695
  %v2412 = vpow.pop %v2411
  %v2413 = vmul.f32 %v2410, 1.442695
  %v2414 = vpow.pop %v2413
  %v2415 = vsel %vm455, %v2412, 0.0
  %2416 = vadd.xlane.f32.xlu0 %v2415
  %v2417 = vpop.xlane.xlu0 %2416
  %v2418 = vsel %vm455, %v2414, 0.0
  %2419 = vadd.xlane.f32.xlu0 %v2418
  %v2420 = vpop.xlane.xlu0 %2419
  %v2421 = vrcp.pop %v2417
  %v2422 = vrcp.pop %v2420
  %v2423 = vmul.f32 %v2412, %v2421
  %v2424 = vmul.f32 %v2414, %v2422
  %2425 = vrot.lane.b32.xlu0 %v2342, 64
  %v2426 = vpop.permute.xlu0 %2425
  %v2429 = vsel %vm455, %v2423, 0
  %2431 = vmatpush.msra.mxu0 0.0
  %2432 = vmatpush.msra.mxu0 0.0
  %2433 = vmatpush.msra.mxu0 0.0
  %2434 = vmatpush.msra.mxu0 0.0
  %2435 = vmatpush.msra.mxu0 0.0
  %2436 = vmatpush.msra.mxu0 0.0
  %2437 = vmatpush.msra.mxu0 0.0
  %2438 = vmatpush.msra.mxu0 0.0
  %2439 = vmatpush.msra.mxu0 0.0
  %2440 = vmatpush.msra.mxu0 0.0
  %2441 = vmatpush.msra.mxu0 0.0
  %2442 = vmatpush.msra.mxu0 0.0
  %2443 = vmatpush.msra.mxu0 0.0
  %2444 = vmatpush.msra.mxu0 0.0
  %2445 = vmatpush.msra.mxu0 0.0
  %2446 = vmatpush.msra.mxu0 %v2426
  %2447 = vmatmul.f32.gmra.mxu0 %v2429
  %v2448 = vpop.f32.mrf.mxu0
  %v2449 = vadd.f32 0.0, %v2448
  %2450 = vdwg.mxu0
  %2451 = vrot.lane.b32.xlu0 %v2345, 64
  %v2452 = vpop.permute.xlu0 %2451
  %v2455 = vsel %vm455, %v2424, 0
  %2457 = vmatpush.msra.mxu0 0.0
  %2458 = vmatpush.msra.mxu0 0.0
  %2459 = vmatpush.msra.mxu0 0.0
  %2460 = vmatpush.msra.mxu0 0.0
  %2461 = vmatpush.msra.mxu0 0.0
  %2462 = vmatpush.msra.mxu0 0.0
  %2463 = vmatpush.msra.mxu0 0.0
  %2464 = vmatpush.msra.mxu0 0.0
  %2465 = vmatpush.msra.mxu0 0.0
  %2466 = vmatpush.msra.mxu0 0.0
  %2467 = vmatpush.msra.mxu0 0.0
  %2468 = vmatpush.msra.mxu0 0.0
  %2469 = vmatpush.msra.mxu0 0.0
  %2470 = vmatpush.msra.mxu0 0.0
  %2471 = vmatpush.msra.mxu0 0.0
  %2472 = vmatpush.msra.mxu0 %v2452
  %2473 = vmatmul.f32.gmra.mxu0 %v2455
  %v2474 = vpop.f32.mrf.mxu0
  %v2475 = vadd.f32 0.0, %v2474
  %2476 = vdwg.mxu0
  %2477 = vst.msk [vmem:[#allocation2] sm:$0xff] %vm455, %v2449
  %2478 = vst.msk [vmem:[#allocation2 + $0x8] sm:$0xff] %vm455, %v2475
  %2479 = vrot.lane.b32.xlu0 %v2342, 120
  %v2480 = vpop.permute.xlu0 %2479
  %2481 = vrot.lane.b32.xlu0 %v2342, 88
  %v2482 = vpop.permute.xlu0 %2481
  %v2483 = vsel %vm455, %v2480, 0
  %v2485 = vsel %vm455, %v2482, 0
  %2487 = vmatpush.xpose.msra.mxu0 0.0
  %2488 = vmatpush.xpose.msra.mxu0 0.0
  %2489 = vmatpush.xpose.msra.mxu0 0.0
  %2490 = vmatpush.xpose.msra.mxu0 0.0
  %2491 = vmatpush.xpose.msra.mxu0 0.0
  %2492 = vmatpush.xpose.msra.mxu0 0.0
  %2493 = vmatpush.xpose.msra.mxu0 0.0
  %2494 = vmatpush.xpose.msra.mxu0 0.0
  %2495 = vmatpush.xpose.msra.mxu0 0.0
  %2496 = vmatpush.xpose.msra.mxu0 0.0
  %2497 = vmatpush.xpose.msra.mxu0 0.0
  %2498 = vmatpush.xpose.msra.mxu0 0.0
  %2499 = vmatpush.xpose.msra.mxu0 0.0
  %2500 = vmatpush.xpose.msra.mxu0 0.0
  %2501 = vmatpush.xpose.msra.mxu0 0.0
  %2502 = vmatpush.xpose.msra.mxu0 %v2485
  %2503 = vmatmul.f32.gmra.mxu0 %v2483
  %v2504 = vpop.f32.mrf.mxu0
  %v2505 = vadd.f32 0.0, %v2504
  %2506 = vdwg.mxu0
  %2507 = vrot.lane.b32.xlu0 %v2345, 120
  %v2508 = vpop.permute.xlu0 %2507
  %2509 = vrot.lane.b32.xlu0 %v2345, 88
  %v2510 = vpop.permute.xlu0 %2509
  %v2511 = vsel %vm455, %v2508, 0
  %v2513 = vsel %vm455, %v2510, 0
  %2515 = vmatpush.xpose.msra.mxu0 0.0
  %2516 = vmatpush.xpose.msra.mxu0 0.0
  %2517 = vmatpush.xpose.msra.mxu0 0.0
  %2518 = vmatpush.xpose.msra.mxu0 0.0
  %2519 = vmatpush.xpose.msra.mxu0 0.0
  %2520 = vmatpush.xpose.msra.mxu0 0.0
  %2521 = vmatpush.xpose.msra.mxu0 0.0
  %2522 = vmatpush.xpose.msra.mxu0 0.0
  %2523 = vmatpush.xpose.msra.mxu0 0.0
  %2524 = vmatpush.xpose.msra.mxu0 0.0
  %2525 = vmatpush.xpose.msra.mxu0 0.0
  %2526 = vmatpush.xpose.msra.mxu0 0.0
  %2527 = vmatpush.xpose.msra.mxu0 0.0
  %2528 = vmatpush.xpose.msra.mxu0 0.0
  %2529 = vmatpush.xpose.msra.mxu0 0.0
  %2530 = vmatpush.xpose.msra.mxu0 %v2513
  %2531 = vmatmul.f32.gmra.mxu0 %v2511
  %v2532 = vpop.f32.mrf.mxu0
  %v2533 = vadd.f32 0.0, %v2532
  %2534 = vdwg.mxu0
  %v2535 = vmul.f32 %v2505, 0.35355338
  %v2536 = vmul.f32 %v2533, 0.35355338
  %v2537 = vsel %vm455, %v2535, -inf
  %2538 = vmax.xlane.f32.xlu0 %v2537
  %v2539 = vpop.xlane.xlu0 %2538
  %v2540 = vsel %vm455, %v2536, -inf
  %2541 = vmax.xlane.f32.xlu0 %v2540
  %v2542 = vpop.xlane.xlu0 %2541
  %v2543 = vsub.f32 %v2535, %v2539
  %v2544 = vsub.f32 %v2536, %v2542
  %v2545 = vmul.f32 %v2543, 1.442695
  %v2546 = vpow.pop %v2545
  %v2547 = vmul.f32 %v2544, 1.442695
  %v2548 = vpow.pop %v2547
  %v2549 = vsel %vm455, %v2546, 0.0
  %2550 = vadd.xlane.f32.xlu0 %v2549
  %v2551 = vpop.xlane.xlu0 %2550
  %v2552 = vsel %vm455, %v2548, 0.0
  %2553 = vadd.xlane.f32.xlu0 %v2552
  %v2554 = vpop.xlane.xlu0 %2553
  %v2555 = vrcp.pop %v2551
  %v2556 = vrcp.pop %v2554
  %v2557 = vmul.f32 %v2546, %v2555
  %v2558 = vmul.f32 %v2548, %v2556
  %2559 = vrot.lane.b32.xlu0 %v2342, 56
  %v2560 = vpop.permute.xlu0 %2559
  %v2563 = vsel %vm455, %v2557, 0
  %2565 = vmatpush.msra.mxu0 0.0
  %2566 = vmatpush.msra.mxu0 0.0
  %2567 = vmatpush.msra.mxu0 0.0
  %2568 = vmatpush.msra.mxu0 0.0
  %2569 = vmatpush.msra.mxu0 0.0
  %2570 = vmatpush.msra.mxu0 0.0
  %2571 = vmatpush.msra.mxu0 0.0
  %2572 = vmatpush.msra.mxu0 0.0
  %2573 = vmatpush.msra.mxu0 0.0
  %2574 = vmatpush.msra.mxu0 0.0
  %2575 = vmatpush.msra.mxu0 0.0
  %2576 = vmatpush.msra.mxu0 0.0
  %2577 = vmatpush.msra.mxu0 0.0
  %2578 = vmatpush.msra.mxu0 0.0
  %2579 = vmatpush.msra.mxu0 0.0
  %2580 = vmatpush.msra.mxu0 %v2560
  %2581 = vmatmul.f32.gmra.mxu0 %v2563
  %v2582 = vpop.f32.mrf.mxu0
  %v2583 = vadd.f32 0.0, %v2582
  %2584 = vdwg.mxu0
  %2585 = vrot.lane.b32.xlu0 %v2345, 56
  %v2586 = vpop.permute.xlu0 %2585
  %v2589 = vsel %vm455, %v2558, 0
  %2591 = vmatpush.msra.mxu0 0.0
  %2592 = vmatpush.msra.mxu0 0.0
  %2593 = vmatpush.msra.mxu0 0.0
  %2594 = vmatpush.msra.mxu0 0.0
  %2595 = vmatpush.msra.mxu0 0.0
  %2596 = vmatpush.msra.mxu0 0.0
  %2597 = vmatpush.msra.mxu0 0.0
  %2598 = vmatpush.msra.mxu0 0.0
  %2599 = vmatpush.msra.mxu0 0.0
  %2600 = vmatpush.msra.mxu0 0.0
  %2601 = vmatpush.msra.mxu0 0.0
  %2602 = vmatpush.msra.mxu0 0.0
  %2603 = vmatpush.msra.mxu0 0.0
  %2604 = vmatpush.msra.mxu0 0.0
  %2605 = vmatpush.msra.mxu0 0.0
  %2606 = vmatpush.msra.mxu0 %v2586
  %2607 = vmatmul.f32.gmra.mxu0 %v2589
  %v2608 = vpop.f32.mrf.mxu0
  %v2609 = vadd.f32 0.0, %v2608
  %2610 = vdwg.mxu0
  %2613 = vrot.lane.b32.xlu0 %v2583, 8
  %v2614 = vpop.permute.xlu0 %2613
  %2615 = vrot.lane.b32.xlu0 %v2609, 8
  %v2616 = vpop.permute.xlu0 %2615
  %2619 = vst.msk [vmem:[#allocation2] sm:$0xff] %vm725, %v2614
  %2620 = vst.msk [vmem:[#allocation2 + $0x8] sm:$0xff] %vm725, %v2616
  %2621 = vrot.lane.b32.xlu0 %v2342, 112
  %v2622 = vpop.permute.xlu0 %2621
  %2623 = vrot.lane.b32.xlu0 %v2342, 80
  %v2624 = vpop.permute.xlu0 %2623
  %v2625 = vsel %vm455, %v2622, 0
  %v2627 = vsel %vm455, %v2624, 0
  %2629 = vmatpush.xpose.msra.mxu0 0.0
  %2630 = vmatpush.xpose.msra.mxu0 0.0
  %2631 = vmatpush.xpose.msra.mxu0 0.0
  %2632 = vmatpush.xpose.msra.mxu0 0.0
  %2633 = vmatpush.xpose.msra.mxu0 0.0
  %2634 = vmatpush.xpose.msra.mxu0 0.0
  %2635 = vmatpush.xpose.msra.mxu0 0.0
  %2636 = vmatpush.xpose.msra.mxu0 0.0
  %2637 = vmatpush.xpose.msra.mxu0 0.0
  %2638 = vmatpush.xpose.msra.mxu0 0.0
  %2639 = vmatpush.xpose.msra.mxu0 0.0
  %2640 = vmatpush.xpose.msra.mxu0 0.0
  %2641 = vmatpush.xpose.msra.mxu0 0.0
  %2642 = vmatpush.xpose.msra.mxu0 0.0
  %2643 = vmatpush.xpose.msra.mxu0 0.0
  %2644 = vmatpush.xpose.msra.mxu0 %v2627
  %2645 = vmatmul.f32.gmra.mxu0 %v2625
  %v2646 = vpop.f32.mrf.mxu0
  %v2647 = vadd.f32 0.0, %v2646
  %2648 = vdwg.mxu0
  %2649 = vrot.lane.b32.xlu0 %v2345, 112
  %v2650 = vpop.permute.xlu0 %2649
  %2651 = vrot.lane.b32.xlu0 %v2345, 80
  %v2652 = vpop.permute.xlu0 %2651
  %v2653 = vsel %vm455, %v2650, 0
  %v2655 = vsel %vm455, %v2652, 0
  %2657 = vmatpush.xpose.msra.mxu0 0.0
  %2658 = vmatpush.xpose.msra.mxu0 0.0
  %2659 = vmatpush.xpose.msra.mxu0 0.0
  %2660 = vmatpush.xpose.msra.mxu0 0.0
  %2661 = vmatpush.xpose.msra.mxu0 0.0
  %2662 = vmatpush.xpose.msra.mxu0 0.0
  %2663 = vmatpush.xpose.msra.mxu0 0.0
  %2664 = vmatpush.xpose.msra.mxu0 0.0
  %2665 = vmatpush.xpose.msra.mxu0 0.0
  %2666 = vmatpush.xpose.msra.mxu0 0.0
  %2667 = vmatpush.xpose.msra.mxu0 0.0
  %2668 = vmatpush.xpose.msra.mxu0 0.0
  %2669 = vmatpush.xpose.msra.mxu0 0.0
  %2670 = vmatpush.xpose.msra.mxu0 0.0
  %2671 = vmatpush.xpose.msra.mxu0 0.0
  %2672 = vmatpush.xpose.msra.mxu0 %v2655
  %2673 = vmatmul.f32.gmra.mxu0 %v2653
  %v2674 = vpop.f32.mrf.mxu0
  %v2675 = vadd.f32 0.0, %v2674
  %2676 = vdwg.mxu0
  %v2677 = vmul.f32 %v2647, 0.35355338
  %v2678 = vmul.f32 %v2675, 0.35355338
  %v2679 = vsel %vm455, %v2677, -inf
  %2680 = vmax.xlane.f32.xlu0 %v2679
  %v2681 = vpop.xlane.xlu0 %2680
  %v2682 = vsel %vm455, %v2678, -inf
  %2683 = vmax.xlane.f32.xlu0 %v2682
  %v2684 = vpop.xlane.xlu0 %2683
  %v2685 = vsub.f32 %v2677, %v2681
  %v2686 = vsub.f32 %v2678, %v2684
  %v2687 = vmul.f32 %v2685, 1.442695
  %v2688 = vpow.pop %v2687
  %v2689 = vmul.f32 %v2686, 1.442695
  %v2690 = vpow.pop %v2689
  %v2691 = vsel %vm455, %v2688, 0.0
  %2692 = vadd.xlane.f32.xlu0 %v2691
  %v2693 = vpop.xlane.xlu0 %2692
  %v2694 = vsel %vm455, %v2690, 0.0
  %2695 = vadd.xlane.f32.xlu0 %v2694
  %v2696 = vpop.xlane.xlu0 %2695
  %v2697 = vrcp.pop %v2693
  %v2698 = vrcp.pop %v2696
  %v2699 = vmul.f32 %v2688, %v2697
  %v2700 = vmul.f32 %v2690, %v2698
  %2701 = vrot.lane.b32.xlu0 %v2342, 48
  %v2702 = vpop.permute.xlu0 %2701
  %v2705 = vsel %vm455, %v2699, 0
  %2707 = vmatpush.msra.mxu0 0.0
  %2708 = vmatpush.msra.mxu0 0.0
  %2709 = vmatpush.msra.mxu0 0.0
  %2710 = vmatpush.msra.mxu0 0.0
  %2711 = vmatpush.msra.mxu0 0.0
  %2712 = vmatpush.msra.mxu0 0.0
  %2713 = vmatpush.msra.mxu0 0.0
  %2714 = vmatpush.msra.mxu0 0.0
  %2715 = vmatpush.msra.mxu0 0.0
  %2716 = vmatpush.msra.mxu0 0.0
  %2717 = vmatpush.msra.mxu0 0.0
  %2718 = vmatpush.msra.mxu0 0.0
  %2719 = vmatpush.msra.mxu0 0.0
  %2720 = vmatpush.msra.mxu0 0.0
  %2721 = vmatpush.msra.mxu0 0.0
  %2722 = vmatpush.msra.mxu0 %v2702
  %2723 = vmatmul.f32.gmra.mxu0 %v2705
  %v2724 = vpop.f32.mrf.mxu0
  %v2725 = vadd.f32 0.0, %v2724
  %2726 = vdwg.mxu0
  %2727 = vrot.lane.b32.xlu0 %v2345, 48
  %v2728 = vpop.permute.xlu0 %2727
  %v2731 = vsel %vm455, %v2700, 0
  %2733 = vmatpush.msra.mxu0 0.0
  %2734 = vmatpush.msra.mxu0 0.0
  %2735 = vmatpush.msra.mxu0 0.0
  %2736 = vmatpush.msra.mxu0 0.0
  %2737 = vmatpush.msra.mxu0 0.0
  %2738 = vmatpush.msra.mxu0 0.0
  %2739 = vmatpush.msra.mxu0 0.0
  %2740 = vmatpush.msra.mxu0 0.0
  %2741 = vmatpush.msra.mxu0 0.0
  %2742 = vmatpush.msra.mxu0 0.0
  %2743 = vmatpush.msra.mxu0 0.0
  %2744 = vmatpush.msra.mxu0 0.0
  %2745 = vmatpush.msra.mxu0 0.0
  %2746 = vmatpush.msra.mxu0 0.0
  %2747 = vmatpush.msra.mxu0 0.0
  %2748 = vmatpush.msra.mxu0 %v2728
  %2749 = vmatmul.f32.gmra.mxu0 %v2731
  %v2750 = vpop.f32.mrf.mxu0
  %v2751 = vadd.f32 0.0, %v2750
  %2752 = vdwg.mxu0
  %2755 = vrot.lane.b32.xlu0 %v2725, 16
  %v2756 = vpop.permute.xlu0 %2755
  %2757 = vrot.lane.b32.xlu0 %v2751, 16
  %v2758 = vpop.permute.xlu0 %2757
  %2761 = vst.msk [vmem:[#allocation2] sm:$0xff] %vm868, %v2756
  %2762 = vst.msk [vmem:[#allocation2 + $0x8] sm:$0xff] %vm868, %v2758
  %2763 = vrot.lane.b32.xlu0 %v2342, 104
  %v2764 = vpop.permute.xlu0 %2763
  %2765 = vrot.lane.b32.xlu0 %v2342, 72
  %v2766 = vpop.permute.xlu0 %2765
  %v2767 = vsel %vm455, %v2764, 0
  %v2769 = vsel %vm455, %v2766, 0
  %2771 = vmatpush.xpose.msra.mxu0 0.0
  %2772 = vmatpush.xpose.msra.mxu0 0.0
  %2773 = vmatpush.xpose.msra.mxu0 0.0
  %2774 = vmatpush.xpose.msra.mxu0 0.0
  %2775 = vmatpush.xpose.msra.mxu0 0.0
  %2776 = vmatpush.xpose.msra.mxu0 0.0
  %2777 = vmatpush.xpose.msra.mxu0 0.0
  %2778 = vmatpush.xpose.msra.mxu0 0.0
  %2779 = vmatpush.xpose.msra.mxu0 0.0
  %2780 = vmatpush.xpose.msra.mxu0 0.0
  %2781 = vmatpush.xpose.msra.mxu0 0.0
  %2782 = vmatpush.xpose.msra.mxu0 0.0
  %2783 = vmatpush.xpose.msra.mxu0 0.0
  %2784 = vmatpush.xpose.msra.mxu0 0.0
  %2785 = vmatpush.xpose.msra.mxu0 0.0
  %2786 = vmatpush.xpose.msra.mxu0 %v2769
  %2787 = vmatmul.f32.gmra.mxu0 %v2767
  %v2788 = vpop.f32.mrf.mxu0
  %v2789 = vadd.f32 0.0, %v2788
  %2790 = vdwg.mxu0
  %2791 = vrot.lane.b32.xlu0 %v2345, 104
  %v2792 = vpop.permute.xlu0 %2791
  %2793 = vrot.lane.b32.xlu0 %v2345, 72
  %v2794 = vpop.permute.xlu0 %2793
  %v2795 = vsel %vm455, %v2792, 0
  %v2797 = vsel %vm455, %v2794, 0
  %2799 = vmatpush.xpose.msra.mxu0 0.0
  %2800 = vmatpush.xpose.msra.mxu0 0.0
  %2801 = vmatpush.xpose.msra.mxu0 0.0
  %2802 = vmatpush.xpose.msra.mxu0 0.0
  %2803 = vmatpush.xpose.msra.mxu0 0.0
  %2804 = vmatpush.xpose.msra.mxu0 0.0
  %2805 = vmatpush.xpose.msra.mxu0 0.0
  %2806 = vmatpush.xpose.msra.mxu0 0.0
  %2807 = vmatpush.xpose.msra.mxu0 0.0
  %2808 = vmatpush.xpose.msra.mxu0 0.0
  %2809 = vmatpush.xpose.msra.mxu0 0.0
  %2810 = vmatpush.xpose.msra.mxu0 0.0
  %2811 = vmatpush.xpose.msra.mxu0 0.0
  %2812 = vmatpush.xpose.msra.mxu0 0.0
  %2813 = vmatpush.xpose.msra.mxu0 0.0
  %2814 = vmatpush.xpose.msra.mxu0 %v2797
  %2815 = vmatmul.f32.gmra.mxu0 %v2795
  %v2816 = vpop.f32.mrf.mxu0
  %v2817 = vadd.f32 0.0, %v2816
  %2818 = vdwg.mxu0
  %v2819 = vmul.f32 %v2789, 0.35355338
  %v2820 = vmul.f32 %v2817, 0.35355338
  %v2821 = vsel %vm455, %v2819, -inf
  %2822 = vmax.xlane.f32.xlu0 %v2821
  %v2823 = vpop.xlane.xlu0 %2822
  %v2824 = vsel %vm455, %v2820, -inf
  %2825 = vmax.xlane.f32.xlu0 %v2824
  %v2826 = vpop.xlane.xlu0 %2825
  %v2827 = vsub.f32 %v2819, %v2823
  %v2828 = vsub.f32 %v2820, %v2826
  %v2829 = vmul.f32 %v2827, 1.442695
  %v2830 = vpow.pop %v2829
  %v2831 = vmul.f32 %v2828, 1.442695
  %v2832 = vpow.pop %v2831
  %v2833 = vsel %vm455, %v2830, 0.0
  %2834 = vadd.xlane.f32.xlu0 %v2833
  %v2835 = vpop.xlane.xlu0 %2834
  %v2836 = vsel %vm455, %v2832, 0.0
  %2837 = vadd.xlane.f32.xlu0 %v2836
  %v2838 = vpop.xlane.xlu0 %2837
  %v2839 = vrcp.pop %v2835
  %v2840 = vrcp.pop %v2838
  %v2841 = vmul.f32 %v2830, %v2839
  %v2842 = vmul.f32 %v2832, %v2840
  %2843 = vrot.lane.b32.xlu0 %v2342, 40
  %v2844 = vpop.permute.xlu0 %2843
  %v2847 = vsel %vm455, %v2841, 0
  %2849 = vmatpush.msra.mxu0 0.0
  %2850 = vmatpush.msra.mxu0 0.0
  %2851 = vmatpush.msra.mxu0 0.0
  %2852 = vmatpush.msra.mxu0 0.0
  %2853 = vmatpush.msra.mxu0 0.0
  %2854 = vmatpush.msra.mxu0 0.0
  %2855 = vmatpush.msra.mxu0 0.0
  %2856 = vmatpush.msra.mxu0 0.0
  %2857 = vmatpush.msra.mxu0 0.0
  %2858 = vmatpush.msra.mxu0 0.0
  %2859 = vmatpush.msra.mxu0 0.0
  %2860 = vmatpush.msra.mxu0 0.0
  %2861 = vmatpush.msra.mxu0 0.0
  %2862 = vmatpush.msra.mxu0 0.0
  %2863 = vmatpush.msra.mxu0 0.0
  %2864 = vmatpush.msra.mxu0 %v2844
  %2865 = vmatmul.f32.gmra.mxu0 %v2847
  %v2866 = vpop.f32.mrf.mxu0
  %v2867 = vadd.f32 0.0, %v2866
  %2868 = vdwg.mxu0
  %2869 = vrot.lane.b32.xlu0 %v2345, 40
  %v2870 = vpop.permute.xlu0 %2869
  %v2873 = vsel %vm455, %v2842, 0
  %2875 = vmatpush.msra.mxu0 0.0
  %2876 = vmatpush.msra.mxu0 0.0
  %2877 = vmatpush.msra.mxu0 0.0
  %2878 = vmatpush.msra.mxu0 0.0
  %2879 = vmatpush.msra.mxu0 0.0
  %2880 = vmatpush.msra.mxu0 0.0
  %2881 = vmatpush.msra.mxu0 0.0
  %2882 = vmatpush.msra.mxu0 0.0
  %2883 = vmatpush.msra.mxu0 0.0
  %2884 = vmatpush.msra.mxu0 0.0
  %2885 = vmatpush.msra.mxu0 0.0
  %2886 = vmatpush.msra.mxu0 0.0
  %2887 = vmatpush.msra.mxu0 0.0
  %2888 = vmatpush.msra.mxu0 0.0
  %2889 = vmatpush.msra.mxu0 0.0
  %2890 = vmatpush.msra.mxu0 %v2870
  %2891 = vmatmul.f32.gmra.mxu0 %v2873
  %v2892 = vpop.f32.mrf.mxu0
  %v2893 = vadd.f32 0.0, %v2892
  %2894 = vdwg.mxu0
  %2897 = vrot.lane.b32.xlu0 %v2867, 24
  %v2898 = vpop.permute.xlu0 %2897
  %2899 = vrot.lane.b32.xlu0 %v2893, 24
  %v2900 = vpop.permute.xlu0 %2899
  %2903 = vst.msk [vmem:[#allocation2] sm:$0xff] %vm1011, %v2898
  %2904 = vst.msk [vmem:[#allocation2 + $0x8] sm:$0xff] %vm1011, %v2900
  %v2905 = vld [vmem:[#allocation2] sm:$0xff]
  %v2906 = vld [vmem:[#allocation2 + $0x8] sm:$0xff]
  %v2908 = vperm.slane %v1987, 0
  %v2911 = vsel %vm422, %v2905, 0
  %v2914 = vsel %vm422, %v2906, 0
  %2916 = vmatpush.msra.mxu0 0.0
  %2917 = vmatpush.msra.mxu0 0.0
  %2918 = vmatpush.msra.mxu0 0.0
  %2919 = vmatpush.msra.mxu0 0.0
  %2920 = vmatpush.msra.mxu0 0.0
  %2921 = vmatpush.msra.mxu0 0.0
  %2922 = vmatpush.msra.mxu0 0.0
  %2923 = vmatpush.msra.mxu0 0.0
  %2924 = vmatpush.msra.mxu0 0.0
  %2925 = vmatpush.msra.mxu0 0.0
  %2926 = vmatpush.msra.mxu0 0.0
  %2927 = vmatpush.msra.mxu0 0.0
  %2928 = vmatpush.msra.mxu0 %v1986
  %2929 = vmatpush.msra.mxu0 %v1985
  %2930 = vmatpush.msra.mxu0 %v1984
  %2931 = vmatpush.msra.mxu0 %v1983
  %2932 = vmatmul.f32.gmra.mxu0 %v2911
  %v2933 = vpop.f32.mrf.mxu0
  %v2934 = vadd.f32 %v2908, %v2933
  %2935 = vmatmul.f32.gmra.mxu0 %v2914
  %v2936 = vpop.f32.mrf.mxu0
  %v2937 = vadd.f32 %v2908, %v2936
  %2938 = vdwg.mxu0
  %v2939 = vadd.f32 %v1976, %v2934
  %v2940 = vadd.f32 %v1977, %v2937
  %v2941 = vsel %vm422, %v2939, 0.0
  %2942 = vadd.xlane.f32.xlu0 %v2941
  %v2943 = vpop.xlane.xlu0 %2942
  %v2944 = vsel %vm422, %v2940, 0.0
  %2945 = vadd.xlane.f32.xlu0 %v2944
  %v2946 = vpop.xlane.xlu0 %2945
  %v2947 = vmul.f32 %v2943, %v1062
  %v2948 = vmul.f32 %v2946, %v1062
  %v2949 = vsub.f32 %v2939, %v2947
  %v2950 = vsub.f32 %v2940, %v2948
  %v2951 = vmul.f32 %v2949, %v2949
  %v2952 = vmul.f32 %v2950, %v2950
  %v2953 = vsel %vm422, %v2951, 0.0
  %2954 = vadd.xlane.f32.xlu0 %v2953
  %v2955 = vpop.xlane.xlu0 %2954
  %v2956 = vsel %vm422, %v2952, 0.0
  %2957 = vadd.xlane.f32.xlu0 %v2956
  %v2958 = vpop.xlane.xlu0 %2957
  %v2959 = vmul.f32 %v2955, %v1062
  %v2960 = vmul.f32 %v2958, %v1062
  %v2961 = vadd.f32 %v2959, 1e-05
  %v2962 = vadd.f32 %v2960, 1e-05
  %v2963 = vrsqrt.pop %v2961
  %v2964 = vmul.f32 %v2963, %v2961
  %v2965 = vmul.f32 %v2964, %v2963
  %v2966 = vmul.f32 0.5, %v2965
  %v2967 = vsub.f32 1.5, %v2966
  %v2968 = vmul.f32 %v2963, %v2967
  %vm2969 = vweird.f32 %v2961
  %vm2970 = vweird.f32 %v2963
  %vm2971 = vmor %vm2969, %vm2970
  %v2972 = vsel %vm2971, %v2963, %v2968
  %v2973 = vrsqrt.pop %v2962
  %v2974 = vmul.f32 %v2973, %v2962
  %v2975 = vmul.f32 %v2974, %v2973
  %v2976 = vmul.f32 0.5, %v2975
  %v2977 = vsub.f32 1.5, %v2976
  %v2978 = vmul.f32 %v2973, %v2977
  %vm2979 = vweird.f32 %v2962
  %vm2980 = vweird.f32 %v2973
  %vm2981 = vmor %vm2979, %vm2980
  %v2982 = vsel %vm2981, %v2973, %v2978
  %v2983 = vmul.f32 %v2949, %v2972
  %v2984 = vmul.f32 %v2950, %v2982
  %v2986 = vperm.slane %v1988, 0
  %v2988 = vmul.f32 %v2983, %v2986
  %v2989 = vmul.f32 %v2984, %v2986
  %v2991 = vperm.slane %v1989, 0
  %v2993 = vadd.f32 %v2988, %v2991
  %v2994 = vadd.f32 %v2989, %v2991
  %v2997 = vperm.slane %v2054, 0
  %v2998 = vperm.slane %v2054, 1
  %v2999 = vperm.slane %v2054, 2
  %v3000 = vperm.slane %v2054, 3
  %v3001 = vperm.slane %v2054, 4
  %v3002 = vperm.slane %v2054, 5
  %v3003 = vperm.slane %v2054, 6
  %v3004 = vperm.slane %v2054, 7
  %v3005 = vperm.slane %v2055, 0
  %v3006 = vperm.slane %v2055, 1
  %v3007 = vperm.slane %v2055, 2
  %v3008 = vperm.slane %v2055, 3
  %v3009 = vperm.slane %v2055, 4
  %v3010 = vperm.slane %v2055, 5
  %v3011 = vperm.slane %v2055, 6
  %v3012 = vperm.slane %v2055, 7
  %v3030 = vsel %vm422, %v2993, 0
  %v3033 = vsel %vm422, %v2994, 0
  %3035 = vmatpush.msra.mxu0 0.0
  %3036 = vmatpush.msra.mxu0 0.0
  %3037 = vmatpush.msra.mxu0 0.0
  %3038 = vmatpush.msra.mxu0 0.0
  %3039 = vmatpush.msra.mxu0 0.0
  %3040 = vmatpush.msra.mxu0 0.0
  %3041 = vmatpush.msra.mxu0 0.0
  %3042 = vmatpush.msra.mxu0 0.0
  %3043 = vmatpush.msra.mxu0 0.0
  %3044 = vmatpush.msra.mxu0 0.0
  %3045 = vmatpush.msra.mxu0 0.0
  %3046 = vmatpush.msra.mxu0 0.0
  %3047 = vmatpush.msra.mxu0 %v2038
  %3048 = vmatpush.msra.mxu0 %v2022
  %3049 = vmatpush.msra.mxu0 %v2006
  %3050 = vmatpush.msra.mxu0 %v1990
  %3051 = vmatmul.f32.gmra.mxu0 %v3030
  %v3052 = vpop.f32.mrf.mxu0
  %v3053 = vadd.f32 %v2997, %v3052
  %3054 = vmatmul.f32.gmra.mxu0 %v3033
  %v3055 = vpop.f32.mrf.mxu0
  %v3056 = vadd.f32 %v2997, %v3055
  %3057 = vdwg.mxu0
  %3058 = vmatpush.msra.mxu0 0.0
  %3059 = vmatpush.msra.mxu0 0.0
  %3060 = vmatpush.msra.mxu0 0.0
  %3061 = vmatpush.msra.mxu0 0.0
  %3062 = vmatpush.msra.mxu0 0.0
  %3063 = vmatpush.msra.mxu0 0.0
  %3064 = vmatpush.msra.mxu0 0.0
  %3065 = vmatpush.msra.mxu0 0.0
  %3066 = vmatpush.msra.mxu0 0.0
  %3067 = vmatpush.msra.mxu0 0.0
  %3068 = vmatpush.msra.mxu0 0.0
  %3069 = vmatpush.msra.mxu0 0.0
  %3070 = vmatpush.msra.mxu0 %v2039
  %3071 = vmatpush.msra.mxu0 %v2023
  %3072 = vmatpush.msra.mxu0 %v2007
  %3073 = vmatpush.msra.mxu0 %v1991
  %3074 = vmatmul.f32.gmra.mxu0 %v3030
  %v3075 = vpop.f32.mrf.mxu0
  %v3076 = vadd.f32 %v2998, %v3075
  %3077 = vmatmul.f32.gmra.mxu0 %v3033
  %v3078 = vpop.f32.mrf.mxu0
  %v3079 = vadd.f32 %v2998, %v3078
  %3080 = vdwg.mxu0
  %3081 = vmatpush.msra.mxu0 0.0
  %3082 = vmatpush.msra.mxu0 0.0
  %3083 = vmatpush.msra.mxu0 0.0
  %3084 = vmatpush.msra.mxu0 0.0
  %3085 = vmatpush.msra.mxu0 0.0
  %3086 = vmatpush.msra.mxu0 0.0
  %3087 = vmatpush.msra.mxu0 0.0
  %3088 = vmatpush.msra.mxu0 0.0
  %3089 = vmatpush.msra.mxu0 0.0
  %3090 = vmatpush.msra.mxu0 0.0
  %3091 = vmatpush.msra.mxu0 0.0
  %3092 = vmatpush.msra.mxu0 0.0
  %3093 = vmatpush.msra.mxu0 %v2040
  %3094 = vmatpush.msra.mxu0 %v2024
  %3095 = vmatpush.msra.mxu0 %v2008
  %3096 = vmatpush.msra.mxu0 %v1992
  %3097 = vmatmul.f32.gmra.mxu0 %v3030
  %v3098 = vpop.f32.mrf.mxu0
  %v3099 = vadd.f32 %v2999, %v3098
  %3100 = vmatmul.f32.gmra.mxu0 %v3033
  %v3101 = vpop.f32.mrf.mxu0
  %v3102 = vadd.f32 %v2999, %v3101
  %3103 = vdwg.mxu0
  %3104 = vmatpush.msra.mxu0 0.0
  %3105 = vmatpush.msra.mxu0 0.0
  %3106 = vmatpush.msra.mxu0 0.0
  %3107 = vmatpush.msra.mxu0 0.0
  %3108 = vmatpush.msra.mxu0 0.0
  %3109 = vmatpush.msra.mxu0 0.0
  %3110 = vmatpush.msra.mxu0 0.0
  %3111 = vmatpush.msra.mxu0 0.0
  %3112 = vmatpush.msra.mxu0 0.0
  %3113 = vmatpush.msra.mxu0 0.0
  %3114 = vmatpush.msra.mxu0 0.0
  %3115 = vmatpush.msra.mxu0 0.0
  %3116 = vmatpush.msra.mxu0 %v2041
  %3117 = vmatpush.msra.mxu0 %v2025
  %3118 = vmatpush.msra.mxu0 %v2009
  %3119 = vmatpush.msra.mxu0 %v1993
  %3120 = vmatmul.f32.gmra.mxu0 %v3030
  %v3121 = vpop.f32.mrf.mxu0
  %v3122 = vadd.f32 %v3000, %v3121
  %3123 = vmatmul.f32.gmra.mxu0 %v3033
  %v3124 = vpop.f32.mrf.mxu0
  %v3125 = vadd.f32 %v3000, %v3124
  %3126 = vdwg.mxu0
  %3127 = vmatpush.msra.mxu0 0.0
  %3128 = vmatpush.msra.mxu0 0.0
  %3129 = vmatpush.msra.mxu0 0.0
  %3130 = vmatpush.msra.mxu0 0.0
  %3131 = vmatpush.msra.mxu0 0.0
  %3132 = vmatpush.msra.mxu0 0.0
  %3133 = vmatpush.msra.mxu0 0.0
  %3134 = vmatpush.msra.mxu0 0.0
  %3135 = vmatpush.msra.mxu0 0.0
  %3136 = vmatpush.msra.mxu0 0.0
  %3137 = vmatpush.msra.mxu0 0.0
  %3138 = vmatpush.msra.mxu0 0.0
  %3139 = vmatpush.msra.mxu0 %v2042
  %3140 = vmatpush.msra.mxu0 %v2026
  %3141 = vmatpush.msra.mxu0 %v2010
  %3142 = vmatpush.msra.mxu0 %v1994
  %3143 = vmatmul.f32.gmra.mxu0 %v3030
  %v3144 = vpop.f32.mrf.mxu0
  %v3145 = vadd.f32 %v3001, %v3144
  %3146 = vmatmul.f32.gmra.mxu0 %v3033
  %v3147 = vpop.f32.mrf.mxu0
  %v3148 = vadd.f32 %v3001, %v3147
  %3149 = vdwg.mxu0
  %3150 = vmatpush.msra.mxu0 0.0
  %3151 = vmatpush.msra.mxu0 0.0
  %3152 = vmatpush.msra.mxu0 0.0
  %3153 = vmatpush.msra.mxu0 0.0
  %3154 = vmatpush.msra.mxu0 0.0
  %3155 = vmatpush.msra.mxu0 0.0
  %3156 = vmatpush.msra.mxu0 0.0
  %3157 = vmatpush.msra.mxu0 0.0
  %3158 = vmatpush.msra.mxu0 0.0
  %3159 = vmatpush.msra.mxu0 0.0
  %3160 = vmatpush.msra.mxu0 0.0
  %3161 = vmatpush.msra.mxu0 0.0
  %3162 = vmatpush.msra.mxu0 %v2043
  %3163 = vmatpush.msra.mxu0 %v2027
  %3164 = vmatpush.msra.mxu0 %v2011
  %3165 = vmatpush.msra.mxu0 %v1995
  %3166 = vmatmul.f32.gmra.mxu0 %v3030
  %v3167 = vpop.f32.mrf.mxu0
  %v3168 = vadd.f32 %v3002, %v3167
  %3169 = vmatmul.f32.gmra.mxu0 %v3033
  %v3170 = vpop.f32.mrf.mxu0
  %v3171 = vadd.f32 %v3002, %v3170
  %3172 = vdwg.mxu0
  %3173 = vmatpush.msra.mxu0 0.0
  %3174 = vmatpush.msra.mxu0 0.0
  %3175 = vmatpush.msra.mxu0 0.0
  %3176 = vmatpush.msra.mxu0 0.0
  %3177 = vmatpush.msra.mxu0 0.0
  %3178 = vmatpush.msra.mxu0 0.0
  %3179 = vmatpush.msra.mxu0 0.0
  %3180 = vmatpush.msra.mxu0 0.0
  %3181 = vmatpush.msra.mxu0 0.0
  %3182 = vmatpush.msra.mxu0 0.0
  %3183 = vmatpush.msra.mxu0 0.0
  %3184 = vmatpush.msra.mxu0 0.0
  %3185 = vmatpush.msra.mxu0 %v2044
  %3186 = vmatpush.msra.mxu0 %v2028
  %3187 = vmatpush.msra.mxu0 %v2012
  %3188 = vmatpush.msra.mxu0 %v1996
  %3189 = vmatmul.f32.gmra.mxu0 %v3030
  %v3190 = vpop.f32.mrf.mxu0
  %v3191 = vadd.f32 %v3003, %v3190
  %3192 = vmatmul.f32.gmra.mxu0 %v3033
  %v3193 = vpop.f32.mrf.mxu0
  %v3194 = vadd.f32 %v3003, %v3193
  %3195 = vdwg.mxu0
  %3196 = vmatpush.msra.mxu0 0.0
  %3197 = vmatpush.msra.mxu0 0.0
  %3198 = vmatpush.msra.mxu0 0.0
  %3199 = vmatpush.msra.mxu0 0.0
  %3200 = vmatpush.msra.mxu0 0.0
  %3201 = vmatpush.msra.mxu0 0.0
  %3202 = vmatpush.msra.mxu0 0.0
  %3203 = vmatpush.msra.mxu0 0.0
  %3204 = vmatpush.msra.mxu0 0.0
  %3205 = vmatpush.msra.mxu0 0.0
  %3206 = vmatpush.msra.mxu0 0.0
  %3207 = vmatpush.msra.mxu0 0.0
  %3208 = vmatpush.msra.mxu0 %v2045
  %3209 = vmatpush.msra.mxu0 %v2029
  %3210 = vmatpush.msra.mxu0 %v2013
  %3211 = vmatpush.msra.mxu0 %v1997
  %3212 = vmatmul.f32.gmra.mxu0 %v3030
  %v3213 = vpop.f32.mrf.mxu0
  %v3214 = vadd.f32 %v3004, %v3213
  %3215 = vmatmul.f32.gmra.mxu0 %v3033
  %v3216 = vpop.f32.mrf.mxu0
  %v3217 = vadd.f32 %v3004, %v3216
  %3218 = vdwg.mxu0
  %3219 = vmatpush.msra.mxu0 0.0
  %3220 = vmatpush.msra.mxu0 0.0
  %3221 = vmatpush.msra.mxu0 0.0
  %3222 = vmatpush.msra.mxu0 0.0
  %3223 = vmatpush.msra.mxu0 0.0
  %3224 = vmatpush.msra.mxu0 0.0
  %3225 = vmatpush.msra.mxu0 0.0
  %3226 = vmatpush.msra.mxu0 0.0
  %3227 = vmatpush.msra.mxu0 0.0
  %3228 = vmatpush.msra.mxu0 0.0
  %3229 = vmatpush.msra.mxu0 0.0
  %3230 = vmatpush.msra.mxu0 0.0
  %3231 = vmatpush.msra.mxu0 %v2046
  %3232 = vmatpush.msra.mxu0 %v2030
  %3233 = vmatpush.msra.mxu0 %v2014
  %3234 = vmatpush.msra.mxu0 %v1998
  %3235 = vmatmul.f32.gmra.mxu0 %v3030
  %v3236 = vpop.f32.mrf.mxu0
  %v3237 = vadd.f32 %v3005, %v3236
  %3238 = vmatmul.f32.gmra.mxu0 %v3033
  %v3239 = vpop.f32.mrf.mxu0
  %v3240 = vadd.f32 %v3005, %v3239
  %3241 = vdwg.mxu0
  %3242 = vmatpush.msra.mxu0 0.0
  %3243 = vmatpush.msra.mxu0 0.0
  %3244 = vmatpush.msra.mxu0 0.0
  %3245 = vmatpush.msra.mxu0 0.0
  %3246 = vmatpush.msra.mxu0 0.0
  %3247 = vmatpush.msra.mxu0 0.0
  %3248 = vmatpush.msra.mxu0 0.0
  %3249 = vmatpush.msra.mxu0 0.0
  %3250 = vmatpush.msra.mxu0 0.0
  %3251 = vmatpush.msra.mxu0 0.0
  %3252 = vmatpush.msra.mxu0 0.0
  %3253 = vmatpush.msra.mxu0 0.0
  %3254 = vmatpush.msra.mxu0 %v2047
  %3255 = vmatpush.msra.mxu0 %v2031
  %3256 = vmatpush.msra.mxu0 %v2015
  %3257 = vmatpush.msra.mxu0 %v1999
  %3258 = vmatmul.f32.gmra.mxu0 %v3030
  %v3259 = vpop.f32.mrf.mxu0
  %v3260 = vadd.f32 %v3006, %v3259
  %3261 = vmatmul.f32.gmra.mxu0 %v3033
  %v3262 = vpop.f32.mrf.mxu0
  %v3263 = vadd.f32 %v3006, %v3262
  %3264 = vdwg.mxu0
  %3265 = vmatpush.msra.mxu0 0.0
  %3266 = vmatpush.msra.mxu0 0.0
  %3267 = vmatpush.msra.mxu0 0.0
  %3268 = vmatpush.msra.mxu0 0.0
  %3269 = vmatpush.msra.mxu0 0.0
  %3270 = vmatpush.msra.mxu0 0.0
  %3271 = vmatpush.msra.mxu0 0.0
  %3272 = vmatpush.msra.mxu0 0.0
  %3273 = vmatpush.msra.mxu0 0.0
  %3274 = vmatpush.msra.mxu0 0.0
  %3275 = vmatpush.msra.mxu0 0.0
  %3276 = vmatpush.msra.mxu0 0.0
  %3277 = vmatpush.msra.mxu0 %v2048
  %3278 = vmatpush.msra.mxu0 %v2032
  %3279 = vmatpush.msra.mxu0 %v2016
  %3280 = vmatpush.msra.mxu0 %v2000
  %3281 = vmatmul.f32.gmra.mxu0 %v3030
  %v3282 = vpop.f32.mrf.mxu0
  %v3283 = vadd.f32 %v3007, %v3282
  %3284 = vmatmul.f32.gmra.mxu0 %v3033
  %v3285 = vpop.f32.mrf.mxu0
  %v3286 = vadd.f32 %v3007, %v3285
  %3287 = vdwg.mxu0
  %3288 = vmatpush.msra.mxu0 0.0
  %3289 = vmatpush.msra.mxu0 0.0
  %3290 = vmatpush.msra.mxu0 0.0
  %3291 = vmatpush.msra.mxu0 0.0
  %3292 = vmatpush.msra.mxu0 0.0
  %3293 = vmatpush.msra.mxu0 0.0
  %3294 = vmatpush.msra.mxu0 0.0
  %3295 = vmatpush.msra.mxu0 0.0
  %3296 = vmatpush.msra.mxu0 0.0
  %3297 = vmatpush.msra.mxu0 0.0
  %3298 = vmatpush.msra.mxu0 0.0
  %3299 = vmatpush.msra.mxu0 0.0
  %3300 = vmatpush.msra.mxu0 %v2049
  %3301 = vmatpush.msra.mxu0 %v2033
  %3302 = vmatpush.msra.mxu0 %v2017
  %3303 = vmatpush.msra.mxu0 %v2001
  %3304 = vmatmul.f32.gmra.mxu0 %v3030
  %v3305 = vpop.f32.mrf.mxu0
  %v3306 = vadd.f32 %v3008, %v3305
  %3307 = vmatmul.f32.gmra.mxu0 %v3033
  %v3308 = vpop.f32.mrf.mxu0
  %v3309 = vadd.f32 %v3008, %v3308
  %3310 = vdwg.mxu0
  %3311 = vmatpush.msra.mxu0 0.0
  %3312 = vmatpush.msra.mxu0 0.0
  %3313 = vmatpush.msra.mxu0 0.0
  %3314 = vmatpush.msra.mxu0 0.0
  %3315 = vmatpush.msra.mxu0 0.0
  %3316 = vmatpush.msra.mxu0 0.0
  %3317 = vmatpush.msra.mxu0 0.0
  %3318 = vmatpush.msra.mxu0 0.0
  %3319 = vmatpush.msra.mxu0 0.0
  %3320 = vmatpush.msra.mxu0 0.0
  %3321 = vmatpush.msra.mxu0 0.0
  %3322 = vmatpush.msra.mxu0 0.0
  %3323 = vmatpush.msra.mxu0 %v2050
  %3324 = vmatpush.msra.mxu0 %v2034
  %3325 = vmatpush.msra.mxu0 %v2018
  %3326 = vmatpush.msra.mxu0 %v2002
  %3327 = vmatmul.f32.gmra.mxu0 %v3030
  %v3328 = vpop.f32.mrf.mxu0
  %v3329 = vadd.f32 %v3009, %v3328
  %3330 = vmatmul.f32.gmra.mxu0 %v3033
  %v3331 = vpop.f32.mrf.mxu0
  %v3332 = vadd.f32 %v3009, %v3331
  %3333 = vdwg.mxu0
  %3334 = vmatpush.msra.mxu0 0.0
  %3335 = vmatpush.msra.mxu0 0.0
  %3336 = vmatpush.msra.mxu0 0.0
  %3337 = vmatpush.msra.mxu0 0.0
  %3338 = vmatpush.msra.mxu0 0.0
  %3339 = vmatpush.msra.mxu0 0.0
  %3340 = vmatpush.msra.mxu0 0.0
  %3341 = vmatpush.msra.mxu0 0.0
  %3342 = vmatpush.msra.mxu0 0.0
  %3343 = vmatpush.msra.mxu0 0.0
  %3344 = vmatpush.msra.mxu0 0.0
  %3345 = vmatpush.msra.mxu0 0.0
  %3346 = vmatpush.msra.mxu0 %v2051
  %3347 = vmatpush.msra.mxu0 %v2035
  %3348 = vmatpush.msra.mxu0 %v2019
  %3349 = vmatpush.msra.mxu0 %v2003
  %3350 = vmatmul.f32.gmra.mxu0 %v3030
  %v3351 = vpop.f32.mrf.mxu0
  %v3352 = vadd.f32 %v3010, %v3351
  %3353 = vmatmul.f32.gmra.mxu0 %v3033
  %v3354 = vpop.f32.mrf.mxu0
  %v3355 = vadd.f32 %v3010, %v3354
  %3356 = vdwg.mxu0
  %3357 = vmatpush.msra.mxu0 0.0
  %3358 = vmatpush.msra.mxu0 0.0
  %3359 = vmatpush.msra.mxu0 0.0
  %3360 = vmatpush.msra.mxu0 0.0
  %3361 = vmatpush.msra.mxu0 0.0
  %3362 = vmatpush.msra.mxu0 0.0
  %3363 = vmatpush.msra.mxu0 0.0
  %3364 = vmatpush.msra.mxu0 0.0
  %3365 = vmatpush.msra.mxu0 0.0
  %3366 = vmatpush.msra.mxu0 0.0
  %3367 = vmatpush.msra.mxu0 0.0
  %3368 = vmatpush.msra.mxu0 0.0
  %3369 = vmatpush.msra.mxu0 %v2052
  %3370 = vmatpush.msra.mxu0 %v2036
  %3371 = vmatpush.msra.mxu0 %v2020
  %3372 = vmatpush.msra.mxu0 %v2004
  %3373 = vmatmul.f32.gmra.mxu0 %v3030
  %v3374 = vpop.f32.mrf.mxu0
  %v3375 = vadd.f32 %v3011, %v3374
  %3376 = vmatmul.f32.gmra.mxu0 %v3033
  %v3377 = vpop.f32.mrf.mxu0
  %v3378 = vadd.f32 %v3011, %v3377
  %3379 = vdwg.mxu0
  %3380 = vmatpush.msra.mxu0 0.0
  %3381 = vmatpush.msra.mxu0 0.0
  %3382 = vmatpush.msra.mxu0 0.0
  %3383 = vmatpush.msra.mxu0 0.0
  %3384 = vmatpush.msra.mxu0 0.0
  %3385 = vmatpush.msra.mxu0 0.0
  %3386 = vmatpush.msra.mxu0 0.0
  %3387 = vmatpush.msra.mxu0 0.0
  %3388 = vmatpush.msra.mxu0 0.0
  %3389 = vmatpush.msra.mxu0 0.0
  %3390 = vmatpush.msra.mxu0 0.0
  %3391 = vmatpush.msra.mxu0 0.0
  %3392 = vmatpush.msra.mxu0 %v2053
  %3393 = vmatpush.msra.mxu0 %v2037
  %3394 = vmatpush.msra.mxu0 %v2021
  %3395 = vmatpush.msra.mxu0 %v2005
  %3396 = vmatmul.f32.gmra.mxu0 %v3030
  %v3397 = vpop.f32.mrf.mxu0
  %v3398 = vadd.f32 %v3012, %v3397
  %3399 = vmatmul.f32.gmra.mxu0 %v3033
  %v3400 = vpop.f32.mrf.mxu0
  %v3401 = vadd.f32 %v3012, %v3400
  %3402 = vdwg.mxu0
  %v3403 = vmax.f32 %v3053, 0.0
  %v3404 = vmax.f32 %v3076, 0.0
  %v3405 = vmax.f32 %v3099, 0.0
  %v3406 = vmax.f32 %v3122, 0.0
  %v3407 = vmax.f32 %v3145, 0.0
  %v3408 = vmax.f32 %v3168, 0.0
  %v3409 = vmax.f32 %v3191, 0.0
  %v3410 = vmax.f32 %v3214, 0.0
  %v3411 = vmax.f32 %v3237, 0.0
  %v3412 = vmax.f32 %v3260, 0.0
  %v3413 = vmax.f32 %v3283, 0.0
  %v3414 = vmax.f32 %v3306, 0.0
  %v3415 = vmax.f32 %v3329, 0.0
  %v3416 = vmax.f32 %v3352, 0.0
  %v3417 = vmax.f32 %v3375, 0.0
  %v3418 = vmax.f32 %v3398, 0.0
  %v3419 = vmax.f32 %v3056, 0.0
  %v3420 = vmax.f32 %v3079, 0.0
  %v3421 = vmax.f32 %v3102, 0.0
  %v3422 = vmax.f32 %v3125, 0.0
  %v3423 = vmax.f32 %v3148, 0.0
  %v3424 = vmax.f32 %v3171, 0.0
  %v3425 = vmax.f32 %v3194, 0.0
  %v3426 = vmax.f32 %v3217, 0.0
  %v3427 = vmax.f32 %v3240, 0.0
  %v3428 = vmax.f32 %v3263, 0.0
  %v3429 = vmax.f32 %v3286, 0.0
  %v3430 = vmax.f32 %v3309, 0.0
  %v3431 = vmax.f32 %v3332, 0.0
  %v3432 = vmax.f32 %v3355, 0.0
  %v3433 = vmax.f32 %v3378, 0.0
  %v3434 = vmax.f32 %v3401, 0.0
  %v3436 = vperm.slane %v2312, 0
  %3438 = vmatpush.msra.mxu0 %v2071
  %3439 = vmatpush.msra.mxu0 %v2070
  %3440 = vmatpush.msra.mxu0 %v2069
  %3441 = vmatpush.msra.mxu0 %v2068
  %3442 = vmatpush.msra.mxu0 %v2067
  %3443 = vmatpush.msra.mxu0 %v2066
  %3444 = vmatpush.msra.mxu0 %v2065
  %3445 = vmatpush.msra.mxu0 %v2064
  %3446 = vmatpush.msra.mxu0 %v2063
  %3447 = vmatpush.msra.mxu0 %v2062
  %3448 = vmatpush.msra.mxu0 %v2061
  %3449 = vmatpush.msra.mxu0 %v2060
  %3450 = vmatpush.msra.mxu0 %v2059
  %3451 = vmatpush.msra.mxu0 %v2058
  %3452 = vmatpush.msra.mxu0 %v2057
  %3453 = vmatpush.msra.mxu0 %v2056
  %3454 = vmatmul.f32.gmra.mxu0 %v3403
  %v3455 = vpop.f32.mrf.mxu0
  %v3456 = vadd.f32 %v3436, %v3455
  %3457 = vmatmul.f32.gmra.mxu0 %v3419
  %v3458 = vpop.f32.mrf.mxu0
  %v3459 = vadd.f32 %v3436, %v3458
  %3460 = vdwg.mxu0
  %3461 = vmatpush.msra.mxu0 %v2087
  %3462 = vmatpush.msra.mxu0 %v2086
  %3463 = vmatpush.msra.mxu0 %v2085
  %3464 = vmatpush.msra.mxu0 %v2084
  %3465 = vmatpush.msra.mxu0 %v2083
  %3466 = vmatpush.msra.mxu0 %v2082
  %3467 = vmatpush.msra.mxu0 %v2081
  %3468 = vmatpush.msra.mxu0 %v2080
  %3469 = vmatpush.msra.mxu0 %v2079
  %3470 = vmatpush.msra.mxu0 %v2078
  %3471 = vmatpush.msra.mxu0 %v2077
  %3472 = vmatpush.msra.mxu0 %v2076
  %3473 = vmatpush.msra.mxu0 %v2075
  %3474 = vmatpush.msra.mxu0 %v2074
  %3475 = vmatpush.msra.mxu0 %v2073
  %3476 = vmatpush.msra.mxu0 %v2072
  %3477 = vmatmul.f32.gmra.mxu0 %v3404
  %v3478 = vpop.f32.mrf.mxu0
  %v3479 = vadd.f32 %v3456, %v3478
  %3480 = vmatmul.f32.gmra.mxu0 %v3420
  %v3481 = vpop.f32.mrf.mxu0
  %v3482 = vadd.f32 %v3459, %v3481
  %3483 = vdwg.mxu0
  %3484 = vmatpush.msra.mxu0 %v2103
  %3485 = vmatpush.msra.mxu0 %v2102
  %3486 = vmatpush.msra.mxu0 %v2101
  %3487 = vmatpush.msra.mxu0 %v2100
  %3488 = vmatpush.msra.mxu0 %v2099
  %3489 = vmatpush.msra.mxu0 %v2098
  %3490 = vmatpush.msra.mxu0 %v2097
  %3491 = vmatpush.msra.mxu0 %v2096
  %3492 = vmatpush.msra.mxu0 %v2095
  %3493 = vmatpush.msra.mxu0 %v2094
  %3494 = vmatpush.msra.mxu0 %v2093
  %3495 = vmatpush.msra.mxu0 %v2092
  %3496 = vmatpush.msra.mxu0 %v2091
  %3497 = vmatpush.msra.mxu0 %v2090
  %3498 = vmatpush.msra.mxu0 %v2089
  %3499 = vmatpush.msra.mxu0 %v2088
  %3500 = vmatmul.f32.gmra.mxu0 %v3405
  %v3501 = vpop.f32.mrf.mxu0
  %v3502 = vadd.f32 %v3479, %v3501
  %3503 = vmatmul.f32.gmra.mxu0 %v3421
  %v3504 = vpop.f32.mrf.mxu0
  %v3505 = vadd.f32 %v3482, %v3504
  %3506 = vdwg.mxu0
  %3507 = vmatpush.msra.mxu0 %v2119
  %3508 = vmatpush.msra.mxu0 %v2118
  %3509 = vmatpush.msra.mxu0 %v2117
  %3510 = vmatpush.msra.mxu0 %v2116
  %3511 = vmatpush.msra.mxu0 %v2115
  %3512 = vmatpush.msra.mxu0 %v2114
  %3513 = vmatpush.msra.mxu0 %v2113
  %3514 = vmatpush.msra.mxu0 %v2112
  %3515 = vmatpush.msra.mxu0 %v2111
  %3516 = vmatpush.msra.mxu0 %v2110
  %3517 = vmatpush.msra.mxu0 %v2109
  %3518 = vmatpush.msra.mxu0 %v2108
  %3519 = vmatpush.msra.mxu0 %v2107
  %3520 = vmatpush.msra.mxu0 %v2106
  %3521 = vmatpush.msra.mxu0 %v2105
  %3522 = vmatpush.msra.mxu0 %v2104
  %3523 = vmatmul.f32.gmra.mxu0 %v3406
  %v3524 = vpop.f32.mrf.mxu0
  %v3525 = vadd.f32 %v3502, %v3524
  %3526 = vmatmul.f32.gmra.mxu0 %v3422
  %v3527 = vpop.f32.mrf.mxu0
  %v3528 = vadd.f32 %v3505, %v3527
  %3529 = vdwg.mxu0
  %3530 = vmatpush.msra.mxu0 %v2135
  %3531 = vmatpush.msra.mxu0 %v2134
  %3532 = vmatpush.msra.mxu0 %v2133
  %3533 = vmatpush.msra.mxu0 %v2132
  %3534 = vmatpush.msra.mxu0 %v2131
  %3535 = vmatpush.msra.mxu0 %v2130
  %3536 = vmatpush.msra.mxu0 %v2129
  %3537 = vmatpush.msra.mxu0 %v2128
  %3538 = vmatpush.msra.mxu0 %v2127
  %3539 = vmatpush.msra.mxu0 %v2126
  %3540 = vmatpush.msra.mxu0 %v2125
  %3541 = vmatpush.msra.mxu0 %v2124
  %3542 = vmatpush.msra.mxu0 %v2123
  %3543 = vmatpush.msra.mxu0 %v2122
  %3544 = vmatpush.msra.mxu0 %v2121
  %3545 = vmatpush.msra.mxu0 %v2120
  %3546 = vmatmul.f32.gmra.mxu0 %v3407
  %v3547 = vpop.f32.mrf.mxu0
  %v3548 = vadd.f32 %v3525, %v3547
  %3549 = vmatmul.f32.gmra.mxu0 %v3423
  %v3550 = vpop.f32.mrf.mxu0
  %v3551 = vadd.f32 %v3528, %v3550
  %3552 = vdwg.mxu0
  %3553 = vmatpush.msra.mxu0 %v2151
  %3554 = vmatpush.msra.mxu0 %v2150
  %3555 = vmatpush.msra.mxu0 %v2149
  %3556 = vmatpush.msra.mxu0 %v2148
  %3557 = vmatpush.msra.mxu0 %v2147
  %3558 = vmatpush.msra.mxu0 %v2146
  %3559 = vmatpush.msra.mxu0 %v2145
  %3560 = vmatpush.msra.mxu0 %v2144
  %3561 = vmatpush.msra.mxu0 %v2143
  %3562 = vmatpush.msra.mxu0 %v2142
  %3563 = vmatpush.msra.mxu0 %v2141
  %3564 = vmatpush.msra.mxu0 %v2140
  %3565 = vmatpush.msra.mxu0 %v2139
  %3566 = vmatpush.msra.mxu0 %v2138
  %3567 = vmatpush.msra.mxu0 %v2137
  %3568 = vmatpush.msra.mxu0 %v2136
  %3569 = vmatmul.f32.gmra.mxu0 %v3408
  %v3570 = vpop.f32.mrf.mxu0
  %v3571 = vadd.f32 %v3548, %v3570
  %3572 = vmatmul.f32.gmra.mxu0 %v3424
  %v3573 = vpop.f32.mrf.mxu0
  %v3574 = vadd.f32 %v3551, %v3573
  %3575 = vdwg.mxu0
  %3576 = vmatpush.msra.mxu0 %v2167
  %3577 = vmatpush.msra.mxu0 %v2166
  %3578 = vmatpush.msra.mxu0 %v2165
  %3579 = vmatpush.msra.mxu0 %v2164
  %3580 = vmatpush.msra.mxu0 %v2163
  %3581 = vmatpush.msra.mxu0 %v2162
  %3582 = vmatpush.msra.mxu0 %v2161
  %3583 = vmatpush.msra.mxu0 %v2160
  %3584 = vmatpush.msra.mxu0 %v2159
  %3585 = vmatpush.msra.mxu0 %v2158
  %3586 = vmatpush.msra.mxu0 %v2157
  %3587 = vmatpush.msra.mxu0 %v2156
  %3588 = vmatpush.msra.mxu0 %v2155
  %3589 = vmatpush.msra.mxu0 %v2154
  %3590 = vmatpush.msra.mxu0 %v2153
  %3591 = vmatpush.msra.mxu0 %v2152
  %3592 = vmatmul.f32.gmra.mxu0 %v3409
  %v3593 = vpop.f32.mrf.mxu0
  %v3594 = vadd.f32 %v3571, %v3593
  %3595 = vmatmul.f32.gmra.mxu0 %v3425
  %v3596 = vpop.f32.mrf.mxu0
  %v3597 = vadd.f32 %v3574, %v3596
  %3598 = vdwg.mxu0
  %3599 = vmatpush.msra.mxu0 %v2183
  %3600 = vmatpush.msra.mxu0 %v2182
  %3601 = vmatpush.msra.mxu0 %v2181
  %3602 = vmatpush.msra.mxu0 %v2180
  %3603 = vmatpush.msra.mxu0 %v2179
  %3604 = vmatpush.msra.mxu0 %v2178
  %3605 = vmatpush.msra.mxu0 %v2177
  %3606 = vmatpush.msra.mxu0 %v2176
  %3607 = vmatpush.msra.mxu0 %v2175
  %3608 = vmatpush.msra.mxu0 %v2174
  %3609 = vmatpush.msra.mxu0 %v2173
  %3610 = vmatpush.msra.mxu0 %v2172
  %3611 = vmatpush.msra.mxu0 %v2171
  %3612 = vmatpush.msra.mxu0 %v2170
  %3613 = vmatpush.msra.mxu0 %v2169
  %3614 = vmatpush.msra.mxu0 %v2168
  %3615 = vmatmul.f32.gmra.mxu0 %v3410
  %v3616 = vpop.f32.mrf.mxu0
  %v3617 = vadd.f32 %v3594, %v3616
  %3618 = vmatmul.f32.gmra.mxu0 %v3426
  %v3619 = vpop.f32.mrf.mxu0
  %v3620 = vadd.f32 %v3597, %v3619
  %3621 = vdwg.mxu0
  %3622 = vmatpush.msra.mxu0 %v2199
  %3623 = vmatpush.msra.mxu0 %v2198
  %3624 = vmatpush.msra.mxu0 %v2197
  %3625 = vmatpush.msra.mxu0 %v2196
  %3626 = vmatpush.msra.mxu0 %v2195
  %3627 = vmatpush.msra.mxu0 %v2194
  %3628 = vmatpush.msra.mxu0 %v2193
  %3629 = vmatpush.msra.mxu0 %v2192
  %3630 = vmatpush.msra.mxu0 %v2191
  %3631 = vmatpush.msra.mxu0 %v2190
  %3632 = vmatpush.msra.mxu0 %v2189
  %3633 = vmatpush.msra.mxu0 %v2188
  %3634 = vmatpush.msra.mxu0 %v2187
  %3635 = vmatpush.msra.mxu0 %v2186
  %3636 = vmatpush.msra.mxu0 %v2185
  %3637 = vmatpush.msra.mxu0 %v2184
  %3638 = vmatmul.f32.gmra.mxu0 %v3411
  %v3639 = vpop.f32.mrf.mxu0
  %v3640 = vadd.f32 %v3617, %v3639
  %3641 = vmatmul.f32.gmra.mxu0 %v3427
  %v3642 = vpop.f32.mrf.mxu0
  %v3643 = vadd.f32 %v3620, %v3642
  %3644 = vdwg.mxu0
  %3645 = vmatpush.msra.mxu0 %v2215
  %3646 = vmatpush.msra.mxu0 %v2214
  %3647 = vmatpush.msra.mxu0 %v2213
  %3648 = vmatpush.msra.mxu0 %v2212
  %3649 = vmatpush.msra.mxu0 %v2211
  %3650 = vmatpush.msra.mxu0 %v2210
  %3651 = vmatpush.msra.mxu0 %v2209
  %3652 = vmatpush.msra.mxu0 %v2208
  %3653 = vmatpush.msra.mxu0 %v2207
  %3654 = vmatpush.msra.mxu0 %v2206
  %3655 = vmatpush.msra.mxu0 %v2205
  %3656 = vmatpush.msra.mxu0 %v2204
  %3657 = vmatpush.msra.mxu0 %v2203
  %3658 = vmatpush.msra.mxu0 %v2202
  %3659 = vmatpush.msra.mxu0 %v2201
  %3660 = vmatpush.msra.mxu0 %v2200
  %3661 = vmatmul.f32.gmra.mxu0 %v3412
  %v3662 = vpop.f32.mrf.mxu0
  %v3663 = vadd.f32 %v3640, %v3662
  %3664 = vmatmul.f32.gmra.mxu0 %v3428
  %v3665 = vpop.f32.mrf.mxu0
  %v3666 = vadd.f32 %v3643, %v3665
  %3667 = vdwg.mxu0
  %3668 = vmatpush.msra.mxu0 %v2231
  %3669 = vmatpush.msra.mxu0 %v2230
  %3670 = vmatpush.msra.mxu0 %v2229
  %3671 = vmatpush.msra.mxu0 %v2228
  %3672 = vmatpush.msra.mxu0 %v2227
  %3673 = vmatpush.msra.mxu0 %v2226
  %3674 = vmatpush.msra.mxu0 %v2225
  %3675 = vmatpush.msra.mxu0 %v2224
  %3676 = vmatpush.msra.mxu0 %v2223
  %3677 = vmatpush.msra.mxu0 %v2222
  %3678 = vmatpush.msra.mxu0 %v2221
  %3679 = vmatpush.msra.mxu0 %v2220
  %3680 = vmatpush.msra.mxu0 %v2219
  %3681 = vmatpush.msra.mxu0 %v2218
  %3682 = vmatpush.msra.mxu0 %v2217
  %3683 = vmatpush.msra.mxu0 %v2216
  %3684 = vmatmul.f32.gmra.mxu0 %v3413
  %v3685 = vpop.f32.mrf.mxu0
  %v3686 = vadd.f32 %v3663, %v3685
  %3687 = vmatmul.f32.gmra.mxu0 %v3429
  %v3688 = vpop.f32.mrf.mxu0
  %v3689 = vadd.f32 %v3666, %v3688
  %3690 = vdwg.mxu0
  %3691 = vmatpush.msra.mxu0 %v2247
  %3692 = vmatpush.msra.mxu0 %v2246
  %3693 = vmatpush.msra.mxu0 %v2245
  %3694 = vmatpush.msra.mxu0 %v2244
  %3695 = vmatpush.msra.mxu0 %v2243
  %3696 = vmatpush.msra.mxu0 %v2242
  %3697 = vmatpush.msra.mxu0 %v2241
  %3698 = vmatpush.msra.mxu0 %v2240
  %3699 = vmatpush.msra.mxu0 %v2239
  %3700 = vmatpush.msra.mxu0 %v2238
  %3701 = vmatpush.msra.mxu0 %v2237
  %3702 = vmatpush.msra.mxu0 %v2236
  %3703 = vmatpush.msra.mxu0 %v2235
  %3704 = vmatpush.msra.mxu0 %v2234
  %3705 = vmatpush.msra.mxu0 %v2233
  %3706 = vmatpush.msra.mxu0 %v2232
  %3707 = vmatmul.f32.gmra.mxu0 %v3414
  %v3708 = vpop.f32.mrf.mxu0
  %v3709 = vadd.f32 %v3686, %v3708
  %3710 = vmatmul.f32.gmra.mxu0 %v3430
  %v3711 = vpop.f32.mrf.mxu0
  %v3712 = vadd.f32 %v3689, %v3711
  %3713 = vdwg.mxu0
  %3714 = vmatpush.msra.mxu0 %v2263
  %3715 = vmatpush.msra.mxu0 %v2262
  %3716 = vmatpush.msra.mxu0 %v2261
  %3717 = vmatpush.msra.mxu0 %v2260
  %3718 = vmatpush.msra.mxu0 %v2259
  %3719 = vmatpush.msra.mxu0 %v2258
  %3720 = vmatpush.msra.mxu0 %v2257
  %3721 = vmatpush.msra.mxu0 %v2256
  %3722 = vmatpush.msra.mxu0 %v2255
  %3723 = vmatpush.msra.mxu0 %v2254
  %3724 = vmatpush.msra.mxu0 %v2253
  %3725 = vmatpush.msra.mxu0 %v2252
  %3726 = vmatpush.msra.mxu0 %v2251
  %3727 = vmatpush.msra.mxu0 %v2250
  %3728 = vmatpush.msra.mxu0 %v2249
  %3729 = vmatpush.msra.mxu0 %v2248
  %3730 = vmatmul.f32.gmra.mxu0 %v3415
  %v3731 = vpop.f32.mrf.mxu0
  %v3732 = vadd.f32 %v3709, %v3731
  %3733 = vmatmul.f32.gmra.mxu0 %v3431
  %v3734 = vpop.f32.mrf.mxu0
  %v3735 = vadd.f32 %v3712, %v3734
  %3736 = vdwg.mxu0
  %3737 = vmatpush.msra.mxu0 %v2279
  %3738 = vmatpush.msra.mxu0 %v2278
  %3739 = vmatpush.msra.mxu0 %v2277
  %3740 = vmatpush.msra.mxu0 %v2276
  %3741 = vmatpush.msra.mxu0 %v2275
  %3742 = vmatpush.msra.mxu0 %v2274
  %3743 = vmatpush.msra.mxu0 %v2273
  %3744 = vmatpush.msra.mxu0 %v2272
  %3745 = vmatpush.msra.mxu0 %v2271
  %3746 = vmatpush.msra.mxu0 %v2270
  %3747 = vmatpush.msra.mxu0 %v2269
  %3748 = vmatpush.msra.mxu0 %v2268
  %3749 = vmatpush.msra.mxu0 %v2267
  %3750 = vmatpush.msra.mxu0 %v2266
  %3751 = vmatpush.msra.mxu0 %v2265
  %3752 = vmatpush.msra.mxu0 %v2264
  %3753 = vmatmul.f32.gmra.mxu0 %v3416
  %v3754 = vpop.f32.mrf.mxu0
  %v3755 = vadd.f32 %v3732, %v3754
  %3756 = vmatmul.f32.gmra.mxu0 %v3432
  %v3757 = vpop.f32.mrf.mxu0
  %v3758 = vadd.f32 %v3735, %v3757
  %3759 = vdwg.mxu0
  %3760 = vmatpush.msra.mxu0 %v2295
  %3761 = vmatpush.msra.mxu0 %v2294
  %3762 = vmatpush.msra.mxu0 %v2293
  %3763 = vmatpush.msra.mxu0 %v2292
  %3764 = vmatpush.msra.mxu0 %v2291
  %3765 = vmatpush.msra.mxu0 %v2290
  %3766 = vmatpush.msra.mxu0 %v2289
  %3767 = vmatpush.msra.mxu0 %v2288
  %3768 = vmatpush.msra.mxu0 %v2287
  %3769 = vmatpush.msra.mxu0 %v2286
  %3770 = vmatpush.msra.mxu0 %v2285
  %3771 = vmatpush.msra.mxu0 %v2284
  %3772 = vmatpush.msra.mxu0 %v2283
  %3773 = vmatpush.msra.mxu0 %v2282
  %3774 = vmatpush.msra.mxu0 %v2281
  %3775 = vmatpush.msra.mxu0 %v2280
  %3776 = vmatmul.f32.gmra.mxu0 %v3417
  %v3777 = vpop.f32.mrf.mxu0
  %v3778 = vadd.f32 %v3755, %v3777
  %3779 = vmatmul.f32.gmra.mxu0 %v3433
  %v3780 = vpop.f32.mrf.mxu0
  %v3781 = vadd.f32 %v3758, %v3780
  %3782 = vdwg.mxu0
  %3783 = vmatpush.msra.mxu0 %v2311
  %3784 = vmatpush.msra.mxu0 %v2310
  %3785 = vmatpush.msra.mxu0 %v2309
  %3786 = vmatpush.msra.mxu0 %v2308
  %3787 = vmatpush.msra.mxu0 %v2307
  %3788 = vmatpush.msra.mxu0 %v2306
  %3789 = vmatpush.msra.mxu0 %v2305
  %3790 = vmatpush.msra.mxu0 %v2304
  %3791 = vmatpush.msra.mxu0 %v2303
  %3792 = vmatpush.msra.mxu0 %v2302
  %3793 = vmatpush.msra.mxu0 %v2301
  %3794 = vmatpush.msra.mxu0 %v2300
  %3795 = vmatpush.msra.mxu0 %v2299
  %3796 = vmatpush.msra.mxu0 %v2298
  %3797 = vmatpush.msra.mxu0 %v2297
  %3798 = vmatpush.msra.mxu0 %v2296
  %3799 = vmatmul.f32.gmra.mxu0 %v3418
  %v3800 = vpop.f32.mrf.mxu0
  %v3801 = vadd.f32 %v3778, %v3800
  %3802 = vmatmul.f32.gmra.mxu0 %v3434
  %v3803 = vpop.f32.mrf.mxu0
  %v3804 = vadd.f32 %v3781, %v3803
  %3805 = vdwg.mxu0
  %v3806 = vadd.f32 %v2993, %v3801
  %v3807 = vadd.f32 %v2994, %v3804
  %v3808 = vsel %vm422, %v3806, 0.0
  %3809 = vadd.xlane.f32.xlu0 %v3808
  %v3810 = vpop.xlane.xlu0 %3809
  %v3811 = vsel %vm422, %v3807, 0.0
  %3812 = vadd.xlane.f32.xlu0 %v3811
  %v3813 = vpop.xlane.xlu0 %3812
  %v3814 = vmul.f32 %v3810, %v1062
  %v3815 = vmul.f32 %v3813, %v1062
  %v3816 = vsub.f32 %v3806, %v3814
  %v3817 = vsub.f32 %v3807, %v3815
  %v3818 = vmul.f32 %v3816, %v3816
  %v3819 = vmul.f32 %v3817, %v3817
  %v3820 = vsel %vm422, %v3818, 0.0
  %3821 = vadd.xlane.f32.xlu0 %v3820
  %v3822 = vpop.xlane.xlu0 %3821
  %v3823 = vsel %vm422, %v3819, 0.0
  %3824 = vadd.xlane.f32.xlu0 %v3823
  %v3825 = vpop.xlane.xlu0 %3824
  %v3826 = vmul.f32 %v3822, %v1062
  %v3827 = vmul.f32 %v3825, %v1062
  %v3828 = vadd.f32 %v3826, 1e-05
  %v3829 = vadd.f32 %v3827, 1e-05
  %v3830 = vrsqrt.pop %v3828
  %v3831 = vmul.f32 %v3830, %v3828
  %v3832 = vmul.f32 %v3831, %v3830
  %v3833 = vmul.f32 0.5, %v3832
  %v3834 = vsub.f32 1.5, %v3833
  %v3835 = vmul.f32 %v3830, %v3834
  %vm3836 = vweird.f32 %v3828
  %vm3837 = vweird.f32 %v3830
  %vm3838 = vmor %vm3836, %vm3837
  %v3839 = vsel %vm3838, %v3830, %v3835
  %v3840 = vrsqrt.pop %v3829
  %v3841 = vmul.f32 %v3840, %v3829
  %v3842 = vmul.f32 %v3841, %v3840
  %v3843 = vmul.f32 0.5, %v3842
  %v3844 = vsub.f32 1.5, %v3843
  %v3845 = vmul.f32 %v3840, %v3844
  %vm3846 = vweird.f32 %v3829
  %vm3847 = vweird.f32 %v3840
  %vm3848 = vmor %vm3846, %vm3847
  %v3849 = vsel %vm3848, %v3840, %v3845
  %v3850 = vmul.f32 %v3816, %v3839
  %v3851 = vmul.f32 %v3817, %v3849
  %v3853 = vperm.slane %v2313, 0
  %v3855 = vmul.f32 %v3850, %v3853
  %v3856 = vmul.f32 %v3851, %v3853
  %v3858 = vperm.slane %v2314, 0
  %v3860 = vadd.f32 %v3855, %v3858
  %v3861 = vadd.f32 %v3856, %v3858
  %3862 = vst.msk [vmem:[%s25] sm:$0xff] %vm422, %v3860
  %3863 = vst.msk [vmem:[%s25 + $0x8] sm:$0xff] %vm422, %v3861
  // Predicated region
  $region102: #{custom_model_forward.4} parent=0 // pred_check
    _
  $region103: #{custom_model_forward.4} parent=0 // pred_check_branch
    %3865 = sbr.rel (0) target = $region105
  $region104: #{custom_model_forward.4} parent=0 // pred_region
    _
  $region105: #{custom_model_forward.4} parent=0 // pred_fallthru
    _
  // Predicated region
  $region106: #{custom_model_forward.4} parent=0 // pred_check
    _
  $region107: #{custom_model_forward.4} parent=0 // pred_check_branch
    %3867 = sbr.rel (0) target = $region109
  $region108: #{custom_model_forward.4} parent=0 // pred_region
    _
  $region109: #{custom_model_forward.4} parent=0 // pred_fallthru
    _

</llo_original>
